<compile_context>
chip_gen: v5e
topology: v5e:2x2
jax: 0.10.0
libtpu: 0.0.40
codegen_flags: <defaults>
</compile_context>

<pallas_src>
import numpy as np
import jax
import jax.numpy as jnp
from jax import lax
from jax.experimental import pallas as pl
from jax.experimental.pallas import tpu as pltpu

EPS = 1e-5          # nn.InstanceNorm2d default eps
NEG_SLOPE = 0.2     # LeakyReLU(0.2)
C1, C2 = 16, 32     # conv channel counts
K = 5               # conv kernel size (padding=2)
OUT_LANES = 128     # lane-dense output slab width


def _leaky(x):
    return jnp.where(x >= 0, x, NEG_SLOPE * x)


# ---------------- fused Pallas kernel (built per static H, W) ----------------

def _make_kernel(H, W):
    Wf, Hf = W + 4, H + 4
    Lf = Hf * Wf                       # flattened padded-frame length
    M1 = 2 * Wf + 2                    # max |flat shift| of a 5x5 tap on the frame
    M2 = 2 * M1                        # max |flat shift| of a 5x5 tap on the stride-2 pooled grid
    LE = Lf + 2 * M2                   # zero-extended pooled-map scratch width
    LP = Lf - (Wf + 1)                 # width on which the 4 pooling shifts stay in-bounds
    Lx = -(-(Lf + M2) // 128) * 128    # per-sample input row length (>= Lf + M2), lane aligned
    inv_hw = 1.0 / float(H * W)
    inv_hwp = 1.0 / float((H // 2) * (W // 2))
    # conv1 tap t=(di,dj) reads x_ext at lane (di*Wf + dj) + k   (k = frame flat index)
    shifts1 = [di * Wf + dj for di in range(K) for dj in range(K)]
    # conv2 tap t=(di,dj) reads the zero-extended pooled map at lane M2 + 2*((di-2)*Wf + (dj-2)) + k
    shifts2 = [M2 + 2 * ((di - 2) * Wf + (dj - 2)) for di in range(K) for dj in range(K)]

    def kernel(x_ref, mi_ref, mp_ref, w1_ref, b1_ref, w2_ref, b2_ref,
               l1w_ref, l1b_ref, l2w_ref, l2b_ref, out_ref, pme_ref):
        xrow = x_ref[0]            # (1, Lx): zero-margined flattened padded image
        mi = mi_ref[...]           # (1, Lf): 1 on the true HxW interior of the frame
        mp = mp_ref[...]           # (1, Lf): 1 on the stride-2 pooled-grid sites

        # ---- Conv2d(1,16,5,pad=2): 25 shifted-slice broadcast FMAs (spatial on lanes) ----
        y1 = jnp.zeros((C1, Lf), jnp.float32)
        for t in range(K * K):
            st = shifts1[t]
            y1 = y1 + w1_ref[:, t:t + 1] * xrow[:, st:st + Lf]
        y1 = y1 + b1_ref[...]

        # ---- masked InstanceNorm (biased var, one-pass) + LeakyReLU ----
        def inorm_lrelu(y, mask, inv_cnt):
            s1 = jnp.sum(y * mask, axis=1, keepdims=True)
            s2 = jnp.sum(y * y * mask, axis=1, keepdims=True)
            m = s1 * inv_cnt
            v = s2 * inv_cnt - m * m
            return _leaky((y - m) * lax.rsqrt(v + EPS))

        h1 = inorm_lrelu(y1, mi, inv_hw) * mi              # zero outside the valid interior

        # ---- AvgPool2d(2): average of 4 flat-shifted copies; result sits on the pooled grid ----
        pooled = 0.25 * (h1[:, 0:LP] + h1[:, 1:1 + LP]
                         + h1[:, Wf:Wf + LP] + h1[:, Wf + 1:Wf + 1 + LP])
        pooled = pooled * mp[:, 0:LP]                      # keep only valid pooled sites

        # zero-extended pooled map (margins act as conv2 zero padding)
        pme_ref[...] = jnp.zeros((C1, LE), jnp.float32)
        pme_ref[:, M2:M2 + LP] = pooled

        # ---- Conv2d(16,32,5,pad=2): 25 accumulated (32,16)@(16,Lf) MXU matmuls ----
        y2 = jnp.zeros((C2, Lf), jnp.float32)
        for t in range(K * K):
            st = shifts2[t]
            y2 = y2 + jnp.dot(w2_ref[:, t * C1:(t + 1) * C1],
                              pme_ref[:, st:st + Lf],
                              preferred_element_type=jnp.float32)
        y2 = y2 + b2_ref[...]

        h2 = inorm_lrelu(y2, mp, inv_hwp)

        # ---- AdaptiveAvgPool2d(1) + Flatten + Linear(32,32) + LeakyReLU + Linear(32,1) ----
        g = jnp.sum(h2 * mp, axis=1, keepdims=True) * inv_hwp              # (32, 1)
        z = jnp.dot(l1w_ref[...], g, preferred_element_type=jnp.float32) + l1b_ref[...]
        z = _leaky(z)
        # TODO(synk): Dropout(0.3) implemented as eval-mode identity; training RNG mask omitted.
        o = jnp.dot(l2w_ref[...], z, preferred_element_type=jnp.float32) + l2b_ref[...]  # (1, 1)

        out_ref[0] = jnp.broadcast_to(o, (1, OUT_LANES))   # lane-dense output slab

    dims = dict(Wf=Wf, Lf=Lf, M1=M1, M2=M2, LE=LE, Lx=Lx)
    return kernel, dims


# ---------------- wrapper ----------------

def light_fc_cnn_forward(x_nchw, params):
    w1, b1, w2, b2, l1w, l1b, l2w, l2b = params
    B, Cin, H, W = x_nchw.shape
    assert Cin == 1 and H % 2 == 0 and W % 2 == 0

    kernel, d = _make_kernel(H, W)
    Wf, Lf, M1, M2, LE, Lx = d["Wf"], d["Lf"], d["M1"], d["M2"], d["LE"], d["Lx"]

    # flattened zero-padded frame with extra zero margins for the flat conv shifts
    xpad = jnp.pad(x_nchw[:, 0].astype(jnp.float32), ((0, 0), (2, 2), (2, 2)))   # (B, H+4, W+4)
    x_ext = jnp.pad(xpad.reshape(B, Lf), ((0, 0), (M1, Lx - Lf - M1)))            # (B, Lx)
    x_ext = x_ext.reshape(B, 1, Lx)

    # constant lane masks (valid HxW interior; stride-2 pooled-grid sites), in frame flat coords
    r = np.arange(H + 4)[:, None]
    c = np.arange(W + 4)[None, :]
    interior = (r >= 2) & (r < H + 2) & (c >= 2) & (c < W + 2)
    mask_in = jnp.asarray(interior.astype(np.float32).reshape(1, Lf))
    pool_sites = interior & (r % 2 == 0) & (c % 2 == 0)
    mask_pool = jnp.asarray(pool_sites.astype(np.float32).reshape(1, Lf))

    # weight prep: conv taps ordered t = di*K + dj, conv2 columns ordered t*C1 + c_in
    w1col = w1.reshape(C1, K * K)
    w2col = jnp.transpose(w2, (0, 2, 3, 1)).reshape(C2, K * K * C1)

    const = lambda b: (0, 0)
    out = pl.pallas_call(
        kernel,
        out_shape=jax.ShapeDtypeStruct((B, 1, OUT_LANES), jnp.float32),
        grid=(B,),
        in_specs=[
            pl.BlockSpec((1, 1, Lx), lambda b: (b, 0, 0)),     # x_ext
            pl.BlockSpec((1, Lf), const),                      # mask_in
            pl.BlockSpec((1, Lf), const),                      # mask_pool
            pl.BlockSpec((C1, K * K), const),                  # w1col
            pl.BlockSpec((C1, 1), const),                      # b1
            pl.BlockSpec((C2, K * K * C1), const),             # w2col
            pl.BlockSpec((C2, 1), const),                      # b2
            pl.BlockSpec((C2, C2), const),                     # l1w
            pl.BlockSpec((C2, 1), const),                      # l1b
            pl.BlockSpec((1, C2), const),                      # l2w
            pl.BlockSpec((1, 1), const),                       # l2b
        ],
        out_specs=pl.BlockSpec((1, 1, OUT_LANES), lambda b: (b, 0, 0)),
        scratch_shapes=[pltpu.VMEM((C1, LE), jnp.float32)],    # zero-extended pooled map
        compiler_params=pltpu.CompilerParams(dimension_semantics=("parallel",)),
    )(x_ext, mask_in, mask_pool, w1col, b1.reshape(C1, 1), w2col, b2.reshape(C2, 1),
      l1w, l1b.reshape(C2, 1), l2w, l2b.reshape(1, 1))

    return out[:, 0, 0:1]                                      # (B, 1)


# ---------------- deterministic parameter init (matches module shapes) ----------------

def init_params(key):
    ks = jax.random.split(key, 8)
    w1 = jax.random.normal(ks[0], (C1, 1, K, K), jnp.float32) * (2.0 / (1 * K * K)) ** 0.5
    b1 = jax.random.uniform(ks[1], (C1,), jnp.float32, -1.0, 1.0) / (1 * K * K) ** 0.5
    w2 = jax.random.normal(ks[2], (C2, C1, K, K), jnp.float32) * (2.0 / (C1 * K * K)) ** 0.5
    b2 = jax.random.uniform(ks[3], (C2,), jnp.float32, -1.0, 1.0) / (C1 * K * K) ** 0.5
    l1w = jax.random.uniform(ks[4], (C2, C2), jnp.float32, -1.0, 1.0) / C2 ** 0.5
    l1b = jax.random.uniform(ks[5], (C2,), jnp.float32, -1.0, 1.0) / C2 ** 0.5
    l2w = jax.random.uniform(ks[6], (1, C2), jnp.float32, -1.0, 1.0) / C2 ** 0.5
    l2b = jax.random.uniform(ks[7], (1,), jnp.float32, -1.0, 1.0) / C2 ** 0.5
    return (w1, b1, w2, b2, l1w, l1b, l2w, l2b)


# ---------------- plain-JAX reference (PyTorch semantics, NCHW) ----------------

def reference_forward(x_nchw, params):
    w1, b1, w2, b2, l1w, l1b, l2w, l2b = params
    dn = ("NCHW", "OIHW", "NCHW")

    def inorm_lrelu(h):
        mean = h.mean(axis=(2, 3), keepdims=True)
        var = ((h - mean) ** 2).mean(axis=(2, 3), keepdims=True)
        h = (h - mean) / jnp.sqrt(var + EPS)
        return jnp.where(h >= 0, h, NEG_SLOPE * h)

    h = lax.conv_general_dilated(x_nchw, w1, (1, 1), "SAME", dimension_numbers=dn)
    h = inorm_lrelu(h + b1[None, :, None, None])
    B, C, H, W = h.shape
    h = h.reshape(B, C, H // 2, 2, W // 2, 2).mean(axis=(3, 5))        # AvgPool2d(2)
    h = lax.conv_general_dilated(h, w2, (1, 1), "SAME", dimension_numbers=dn)
    h = inorm_lrelu(h + b2[None, :, None, None])
    g = h.mean(axis=(2, 3))                                            # AdaptiveAvgPool2d(1)+Flatten
    z = g @ l1w.T + l1b
    z = jnp.where(z >= 0, z, NEG_SLOPE * z)
    return z @ l2w.T + l2b                                             # (B, 1)


if __name__ == "__main__":
    key = jax.random.PRNGKey(0)
    pkey, xkey = jax.random.split(key)
    params = init_params(pkey)

    n_nodes = 16                                     # small FC-matrix size
    x = jax.random.normal(xkey, (2, 1, n_nodes, n_nodes), jnp.float32)

    out = light_fc_cnn_forward(x, params)
    out = jax.block_until_ready(out)

    ref = reference_forward(x, params)
    assert out.shape == (2, 1), out.shape
    assert jnp.allclose(out, ref, atol=2e-3, rtol=2e-3), (out, ref)
    print("KERNEL_OK")
</pallas_src>

<mosaic_0001>
module attributes {stable_mosaic.version = 11 : i64} {
  func.func @kernel(%arg0: i32, %arg1: memref<1x1x512xf32, #tpu.memory_space<vmem>>, %arg2: memref<1x400xf32, #tpu.memory_space<vmem>>, %arg3: memref<1x400xf32, #tpu.memory_space<vmem>>, %arg4: memref<16x25xf32, #tpu.memory_space<vmem>>, %arg5: memref<16x1xf32, #tpu.memory_space<vmem>>, %arg6: memref<32x400xf32, #tpu.memory_space<vmem>>, %arg7: memref<32x1xf32, #tpu.memory_space<vmem>>, %arg8: memref<32x32xf32, #tpu.memory_space<vmem>>, %arg9: memref<32x1xf32, #tpu.memory_space<vmem>>, %arg10: memref<1x32xf32, #tpu.memory_space<vmem>>, %arg11: memref<1x1xf32, #tpu.memory_space<vmem>>, %arg12: memref<1x1x128xf32, #tpu.memory_space<vmem>>, %arg13: memref<16x568xf32, #tpu.memory_space<vmem>>) attributes {dimension_semantics = [#tpu.dimension_semantics<parallel>], iteration_bounds = array<i64: 2>, scalar_prefetch = 0 : i64, scratch_operands = 1 : i64, tpu.core_type = #tpu.core_type<tc>, window_params = [{transform_indices = @transform_0, window_bounds = array<i64: 1, 1, 512>}, {pipeline_mode = #tpu.pipeline_mode<synchronous>, transform_indices = @transform_1, window_bounds = array<i64: 1, 400>}, {pipeline_mode = #tpu.pipeline_mode<synchronous>, transform_indices = @transform_2, window_bounds = array<i64: 1, 400>}, {pipeline_mode = #tpu.pipeline_mode<synchronous>, transform_indices = @transform_3, window_bounds = array<i64: 16, 25>}, {pipeline_mode = #tpu.pipeline_mode<synchronous>, transform_indices = @transform_4, window_bounds = array<i64: 16, 1>}, {pipeline_mode = #tpu.pipeline_mode<synchronous>, transform_indices = @transform_5, window_bounds = array<i64: 32, 400>}, {pipeline_mode = #tpu.pipeline_mode<synchronous>, transform_indices = @transform_6, window_bounds = array<i64: 32, 1>}, {pipeline_mode = #tpu.pipeline_mode<synchronous>, transform_indices = @transform_7, window_bounds = array<i64: 32, 32>}, {pipeline_mode = #tpu.pipeline_mode<synchronous>, transform_indices = @transform_8, window_bounds = array<i64: 32, 1>}, {pipeline_mode = #tpu.pipeline_mode<synchronous>, transform_indices = @transform_9, window_bounds = array<i64: 1, 32>}, {pipeline_mode = #tpu.pipeline_mode<synchronous>, transform_indices = @transform_10, window_bounds = array<i64: 1, 1>}, {transform_indices = @transform_11, window_bounds = array<i64: 1, 1, 128>}]} {
    %c0 = arith.constant 0 : index
    %c0_0 = arith.constant 0 : index
    %c0_1 = arith.constant 0 : index
    %0 = vector.load %arg1[%c0, %c0_0, %c0_1] : memref<1x1x512xf32, #tpu.memory_space<vmem>>, vector<1x1x512xf32>
    %1 = vector.shape_cast %0 : vector<1x1x512xf32> to vector<1x512xf32>
    %c0_2 = arith.constant 0 : index
    %c0_3 = arith.constant 0 : index
    %2 = vector.load %arg2[%c0_2, %c0_3] : memref<1x400xf32, #tpu.memory_space<vmem>>, vector<1x400xf32>
    %c0_4 = arith.constant 0 : index
    %c0_5 = arith.constant 0 : index
    %3 = vector.load %arg3[%c0_4, %c0_5] : memref<1x400xf32, #tpu.memory_space<vmem>>, vector<1x400xf32>
    %cst = arith.constant 0.000000e+00 : f32
    %4 = vector.broadcast %cst : f32 to vector<16x400xf32>
    %c0_6 = arith.constant 0 : index
    %c0_7 = arith.constant 0 : index
    %5 = vector.load %arg4[%c0_6, %c0_7] : memref<16x25xf32, #tpu.memory_space<vmem>>, vector<16x1xf32>
    %6 = vector.extract_strided_slice %1 {offsets = [0, 0], sizes = [1, 400], strides = [1, 1]} : vector<1x512xf32> to vector<1x400xf32>
    %7 = vector.broadcast %5 : vector<16x1xf32> to vector<16x400xf32>
    %8 = vector.broadcast %6 : vector<1x400xf32> to vector<16x400xf32>
    %9 = arith.mulf %7, %8 : vector<16x400xf32>
    %10 = arith.addf %4, %9 : vector<16x400xf32>
    %c0_8 = arith.constant 0 : index
    %c1 = arith.constant 1 : index
    %11 = vector.load %arg4[%c0_8, %c1] : memref<16x25xf32, #tpu.memory_space<vmem>>, vector<16x1xf32>
    %12 = vector.extract_strided_slice %1 {offsets = [0, 1], sizes = [1, 400], strides = [1, 1]} : vector<1x512xf32> to vector<1x400xf32>
    %13 = vector.broadcast %11 : vector<16x1xf32> to vector<16x400xf32>
    %14 = vector.broadcast %12 : vector<1x400xf32> to vector<16x400xf32>
    %15 = arith.mulf %13, %14 : vector<16x400xf32>
    %16 = arith.addf %10, %15 : vector<16x400xf32>
    %c0_9 = arith.constant 0 : index
    %c2 = arith.constant 2 : index
    %17 = vector.load %arg4[%c0_9, %c2] : memref<16x25xf32, #tpu.memory_space<vmem>>, vector<16x1xf32>
    %18 = vector.extract_strided_slice %1 {offsets = [0, 2], sizes = [1, 400], strides = [1, 1]} : vector<1x512xf32> to vector<1x400xf32>
    %19 = vector.broadcast %17 : vector<16x1xf32> to vector<16x400xf32>
    %20 = vector.broadcast %18 : vector<1x400xf32> to vector<16x400xf32>
    %21 = arith.mulf %19, %20 : vector<16x400xf32>
    %22 = arith.addf %16, %21 : vector<16x400xf32>
    %c0_10 = arith.constant 0 : index
    %c3 = arith.constant 3 : index
    %23 = vector.load %arg4[%c0_10, %c3] : memref<16x25xf32, #tpu.memory_space<vmem>>, vector<16x1xf32>
    %24 = vector.extract_strided_slice %1 {offsets = [0, 3], sizes = [1, 400], strides = [1, 1]} : vector<1x512xf32> to vector<1x400xf32>
    %25 = vector.broadcast %23 : vector<16x1xf32> to vector<16x400xf32>
    %26 = vector.broadcast %24 : vector<1x400xf32> to vector<16x400xf32>
    %27 = arith.mulf %25, %26 : vector<16x400xf32>
    %28 = arith.addf %22, %27 : vector<16x400xf32>
    %c0_11 = arith.constant 0 : index
    %c4 = arith.constant 4 : index
    %29 = vector.load %arg4[%c0_11, %c4] : memref<16x25xf32, #tpu.memory_space<vmem>>, vector<16x1xf32>
    %30 = vector.extract_strided_slice %1 {offsets = [0, 4], sizes = [1, 400], strides = [1, 1]} : vector<1x512xf32> to vector<1x400xf32>
    %31 = vector.broadcast %29 : vector<16x1xf32> to vector<16x400xf32>
    %32 = vector.broadcast %30 : vector<1x400xf32> to vector<16x400xf32>
    %33 = arith.mulf %31, %32 : vector<16x400xf32>
    %34 = arith.addf %28, %33 : vector<16x400xf32>
    %c0_12 = arith.constant 0 : index
    %c5 = arith.constant 5 : index
    %35 = vector.load %arg4[%c0_12, %c5] : memref<16x25xf32, #tpu.memory_space<vmem>>, vector<16x1xf32>
    %36 = vector.extract_strided_slice %1 {offsets = [0, 20], sizes = [1, 400], strides = [1, 1]} : vector<1x512xf32> to vector<1x400xf32>
    %37 = vector.broadcast %35 : vector<16x1xf32> to vector<16x400xf32>
    %38 = vector.broadcast %36 : vector<1x400xf32> to vector<16x400xf32>
    %39 = arith.mulf %37, %38 : vector<16x400xf32>
    %40 = arith.addf %34, %39 : vector<16x400xf32>
    %c0_13 = arith.constant 0 : index
    %c6 = arith.constant 6 : index
    %41 = vector.load %arg4[%c0_13, %c6] : memref<16x25xf32, #tpu.memory_space<vmem>>, vector<16x1xf32>
    %42 = vector.extract_strided_slice %1 {offsets = [0, 21], sizes = [1, 400], strides = [1, 1]} : vector<1x512xf32> to vector<1x400xf32>
    %43 = vector.broadcast %41 : vector<16x1xf32> to vector<16x400xf32>
    %44 = vector.broadcast %42 : vector<1x400xf32> to vector<16x400xf32>
    %45 = arith.mulf %43, %44 : vector<16x400xf32>
    %46 = arith.addf %40, %45 : vector<16x400xf32>
    %c0_14 = arith.constant 0 : index
    %c7 = arith.constant 7 : index
    %47 = vector.load %arg4[%c0_14, %c7] : memref<16x25xf32, #tpu.memory_space<vmem>>, vector<16x1xf32>
    %48 = vector.extract_strided_slice %1 {offsets = [0, 22], sizes = [1, 400], strides = [1, 1]} : vector<1x512xf32> to vector<1x400xf32>
    %49 = vector.broadcast %47 : vector<16x1xf32> to vector<16x400xf32>
    %50 = vector.broadcast %48 : vector<1x400xf32> to vector<16x400xf32>
    %51 = arith.mulf %49, %50 : vector<16x400xf32>
    %52 = arith.addf %46, %51 : vector<16x400xf32>
    %c0_15 = arith.constant 0 : index
    %c8 = arith.constant 8 : index
    %53 = vector.load %arg4[%c0_15, %c8] : memref<16x25xf32, #tpu.memory_space<vmem>>, vector<16x1xf32>
    %54 = vector.extract_strided_slice %1 {offsets = [0, 23], sizes = [1, 400], strides = [1, 1]} : vector<1x512xf32> to vector<1x400xf32>
    %55 = vector.broadcast %53 : vector<16x1xf32> to vector<16x400xf32>
    %56 = vector.broadcast %54 : vector<1x400xf32> to vector<16x400xf32>
    %57 = arith.mulf %55, %56 : vector<16x400xf32>
    %58 = arith.addf %52, %57 : vector<16x400xf32>
    %c0_16 = arith.constant 0 : index
    %c9 = arith.constant 9 : index
    %59 = vector.load %arg4[%c0_16, %c9] : memref<16x25xf32, #tpu.memory_space<vmem>>, vector<16x1xf32>
    %60 = vector.extract_strided_slice %1 {offsets = [0, 24], sizes = [1, 400], strides = [1, 1]} : vector<1x512xf32> to vector<1x400xf32>
    %61 = vector.broadcast %59 : vector<16x1xf32> to vector<16x400xf32>
    %62 = vector.broadcast %60 : vector<1x400xf32> to vector<16x400xf32>
    %63 = arith.mulf %61, %62 : vector<16x400xf32>
    %64 = arith.addf %58, %63 : vector<16x400xf32>
    %c0_17 = arith.constant 0 : index
    %c10 = arith.constant 10 : index
    %65 = vector.load %arg4[%c0_17, %c10] : memref<16x25xf32, #tpu.memory_space<vmem>>, vector<16x1xf32>
    %66 = vector.extract_strided_slice %1 {offsets = [0, 40], sizes = [1, 400], strides = [1, 1]} : vector<1x512xf32> to vector<1x400xf32>
    %67 = vector.broadcast %65 : vector<16x1xf32> to vector<16x400xf32>
    %68 = vector.broadcast %66 : vector<1x400xf32> to vector<16x400xf32>
    %69 = arith.mulf %67, %68 : vector<16x400xf32>
    %70 = arith.addf %64, %69 : vector<16x400xf32>
    %c0_18 = arith.constant 0 : index
    %c11 = arith.constant 11 : index
    %71 = vector.load %arg4[%c0_18, %c11] : memref<16x25xf32, #tpu.memory_space<vmem>>, vector<16x1xf32>
    %72 = vector.extract_strided_slice %1 {offsets = [0, 41], sizes = [1, 400], strides = [1, 1]} : vector<1x512xf32> to vector<1x400xf32>
    %73 = vector.broadcast %71 : vector<16x1xf32> to vector<16x400xf32>
    %74 = vector.broadcast %72 : vector<1x400xf32> to vector<16x400xf32>
    %75 = arith.mulf %73, %74 : vector<16x400xf32>
    %76 = arith.addf %70, %75 : vector<16x400xf32>
    %c0_19 = arith.constant 0 : index
    %c12 = arith.constant 12 : index
    %77 = vector.load %arg4[%c0_19, %c12] : memref<16x25xf32, #tpu.memory_space<vmem>>, vector<16x1xf32>
    %78 = vector.extract_strided_slice %1 {offsets = [0, 42], sizes = [1, 400], strides = [1, 1]} : vector<1x512xf32> to vector<1x400xf32>
    %79 = vector.broadcast %77 : vector<16x1xf32> to vector<16x400xf32>
    %80 = vector.broadcast %78 : vector<1x400xf32> to vector<16x400xf32>
    %81 = arith.mulf %79, %80 : vector<16x400xf32>
    %82 = arith.addf %76, %81 : vector<16x400xf32>
    %c0_20 = arith.constant 0 : index
    %c13 = arith.constant 13 : index
    %83 = vector.load %arg4[%c0_20, %c13] : memref<16x25xf32, #tpu.memory_space<vmem>>, vector<16x1xf32>
    %84 = vector.extract_strided_slice %1 {offsets = [0, 43], sizes = [1, 400], strides = [1, 1]} : vector<1x512xf32> to vector<1x400xf32>
    %85 = vector.broadcast %83 : vector<16x1xf32> to vector<16x400xf32>
    %86 = vector.broadcast %84 : vector<1x400xf32> to vector<16x400xf32>
    %87 = arith.mulf %85, %86 : vector<16x400xf32>
    %88 = arith.addf %82, %87 : vector<16x400xf32>
    %c0_21 = arith.constant 0 : index
    %c14 = arith.constant 14 : index
    %89 = vector.load %arg4[%c0_21, %c14] : memref<16x25xf32, #tpu.memory_space<vmem>>, vector<16x1xf32>
    %90 = vector.extract_strided_slice %1 {offsets = [0, 44], sizes = [1, 400], strides = [1, 1]} : vector<1x512xf32> to vector<1x400xf32>
    %91 = vector.broadcast %89 : vector<16x1xf32> to vector<16x400xf32>
    %92 = vector.broadcast %90 : vector<1x400xf32> to vector<16x400xf32>
    %93 = arith.mulf %91, %92 : vector<16x400xf32>
    %94 = arith.addf %88, %93 : vector<16x400xf32>
    %c0_22 = arith.constant 0 : index
    %c15 = arith.constant 15 : index
    %95 = vector.load %arg4[%c0_22, %c15] : memref<16x25xf32, #tpu.memory_space<vmem>>, vector<16x1xf32>
    %96 = vector.extract_strided_slice %1 {offsets = [0, 60], sizes = [1, 400], strides = [1, 1]} : vector<1x512xf32> to vector<1x400xf32>
    %97 = vector.broadcast %95 : vector<16x1xf32> to vector<16x400xf32>
    %98 = vector.broadcast %96 : vector<1x400xf32> to vector<16x400xf32>
    %99 = arith.mulf %97, %98 : vector<16x400xf32>
    %100 = arith.addf %94, %99 : vector<16x400xf32>
    %c0_23 = arith.constant 0 : index
    %c16 = arith.constant 16 : index
    %101 = vector.load %arg4[%c0_23, %c16] : memref<16x25xf32, #tpu.memory_space<vmem>>, vector<16x1xf32>
    %102 = vector.extract_strided_slice %1 {offsets = [0, 61], sizes = [1, 400], strides = [1, 1]} : vector<1x512xf32> to vector<1x400xf32>
    %103 = vector.broadcast %101 : vector<16x1xf32> to vector<16x400xf32>
    %104 = vector.broadcast %102 : vector<1x400xf32> to vector<16x400xf32>
    %105 = arith.mulf %103, %104 : vector<16x400xf32>
    %106 = arith.addf %100, %105 : vector<16x400xf32>
    %c0_24 = arith.constant 0 : index
    %c17 = arith.constant 17 : index
    %107 = vector.load %arg4[%c0_24, %c17] : memref<16x25xf32, #tpu.memory_space<vmem>>, vector<16x1xf32>
    %108 = vector.extract_strided_slice %1 {offsets = [0, 62], sizes = [1, 400], strides = [1, 1]} : vector<1x512xf32> to vector<1x400xf32>
    %109 = vector.broadcast %107 : vector<16x1xf32> to vector<16x400xf32>
    %110 = vector.broadcast %108 : vector<1x400xf32> to vector<16x400xf32>
    %111 = arith.mulf %109, %110 : vector<16x400xf32>
    %112 = arith.addf %106, %111 : vector<16x400xf32>
    %c0_25 = arith.constant 0 : index
    %c18 = arith.constant 18 : index
    %113 = vector.load %arg4[%c0_25, %c18] : memref<16x25xf32, #tpu.memory_space<vmem>>, vector<16x1xf32>
    %114 = vector.extract_strided_slice %1 {offsets = [0, 63], sizes = [1, 400], strides = [1, 1]} : vector<1x512xf32> to vector<1x400xf32>
    %115 = vector.broadcast %113 : vector<16x1xf32> to vector<16x400xf32>
    %116 = vector.broadcast %114 : vector<1x400xf32> to vector<16x400xf32>
    %117 = arith.mulf %115, %116 : vector<16x400xf32>
    %118 = arith.addf %112, %117 : vector<16x400xf32>
    %c0_26 = arith.constant 0 : index
    %c19 = arith.constant 19 : index
    %119 = vector.load %arg4[%c0_26, %c19] : memref<16x25xf32, #tpu.memory_space<vmem>>, vector<16x1xf32>
    %120 = vector.extract_strided_slice %1 {offsets = [0, 64], sizes = [1, 400], strides = [1, 1]} : vector<1x512xf32> to vector<1x400xf32>
    %121 = vector.broadcast %119 : vector<16x1xf32> to vector<16x400xf32>
    %122 = vector.broadcast %120 : vector<1x400xf32> to vector<16x400xf32>
    %123 = arith.mulf %121, %122 : vector<16x400xf32>
    %124 = arith.addf %118, %123 : vector<16x400xf32>
    %c0_27 = arith.constant 0 : index
    %c20 = arith.constant 20 : index
    %125 = vector.load %arg4[%c0_27, %c20] : memref<16x25xf32, #tpu.memory_space<vmem>>, vector<16x1xf32>
    %126 = vector.extract_strided_slice %1 {offsets = [0, 80], sizes = [1, 400], strides = [1, 1]} : vector<1x512xf32> to vector<1x400xf32>
    %127 = vector.broadcast %125 : vector<16x1xf32> to vector<16x400xf32>
    %128 = vector.broadcast %126 : vector<1x400xf32> to vector<16x400xf32>
    %129 = arith.mulf %127, %128 : vector<16x400xf32>
    %130 = arith.addf %124, %129 : vector<16x400xf32>
    %c0_28 = arith.constant 0 : index
    %c21 = arith.constant 21 : index
    %131 = vector.load %arg4[%c0_28, %c21] : memref<16x25xf32, #tpu.memory_space<vmem>>, vector<16x1xf32>
    %132 = vector.extract_strided_slice %1 {offsets = [0, 81], sizes = [1, 400], strides = [1, 1]} : vector<1x512xf32> to vector<1x400xf32>
    %133 = vector.broadcast %131 : vector<16x1xf32> to vector<16x400xf32>
    %134 = vector.broadcast %132 : vector<1x400xf32> to vector<16x400xf32>
    %135 = arith.mulf %133, %134 : vector<16x400xf32>
    %136 = arith.addf %130, %135 : vector<16x400xf32>
    %c0_29 = arith.constant 0 : index
    %c22 = arith.constant 22 : index
    %137 = vector.load %arg4[%c0_29, %c22] : memref<16x25xf32, #tpu.memory_space<vmem>>, vector<16x1xf32>
    %138 = vector.extract_strided_slice %1 {offsets = [0, 82], sizes = [1, 400], strides = [1, 1]} : vector<1x512xf32> to vector<1x400xf32>
    %139 = vector.broadcast %137 : vector<16x1xf32> to vector<16x400xf32>
    %140 = vector.broadcast %138 : vector<1x400xf32> to vector<16x400xf32>
    %141 = arith.mulf %139, %140 : vector<16x400xf32>
    %142 = arith.addf %136, %141 : vector<16x400xf32>
    %c0_30 = arith.constant 0 : index
    %c23 = arith.constant 23 : index
    %143 = vector.load %arg4[%c0_30, %c23] : memref<16x25xf32, #tpu.memory_space<vmem>>, vector<16x1xf32>
    %144 = vector.extract_strided_slice %1 {offsets = [0, 83], sizes = [1, 400], strides = [1, 1]} : vector<1x512xf32> to vector<1x400xf32>
    %145 = vector.broadcast %143 : vector<16x1xf32> to vector<16x400xf32>
    %146 = vector.broadcast %144 : vector<1x400xf32> to vector<16x400xf32>
    %147 = arith.mulf %145, %146 : vector<16x400xf32>
    %148 = arith.addf %142, %147 : vector<16x400xf32>
    %c0_31 = arith.constant 0 : index
    %c24 = arith.constant 24 : index
    %149 = vector.load %arg4[%c0_31, %c24] : memref<16x25xf32, #tpu.memory_space<vmem>>, vector<16x1xf32>
    %150 = vector.extract_strided_slice %1 {offsets = [0, 84], sizes = [1, 400], strides = [1, 1]} : vector<1x512xf32> to vector<1x400xf32>
    %151 = vector.broadcast %149 : vector<16x1xf32> to vector<16x400xf32>
    %152 = vector.broadcast %150 : vector<1x400xf32> to vector<16x400xf32>
    %153 = arith.mulf %151, %152 : vector<16x400xf32>
    %154 = arith.addf %148, %153 : vector<16x400xf32>
    %c0_32 = arith.constant 0 : index
    %c0_33 = arith.constant 0 : index
    %155 = vector.load %arg5[%c0_32, %c0_33] : memref<16x1xf32, #tpu.memory_space<vmem>>, vector<16x1xf32>
    %156 = vector.broadcast %155 : vector<16x1xf32> to vector<16x400xf32>
    %157 = arith.addf %154, %156 : vector<16x400xf32>
    %158 = vector.broadcast %2 : vector<1x400xf32> to vector<16x400xf32>
    %159 = arith.mulf %157, %158 : vector<16x400xf32>
    %cst_34 = arith.constant dense<0.000000e+00> : vector<16xf32>
    %160 = vector.multi_reduction <add>, %159, %cst_34 [1] : vector<16x400xf32> to vector<16xf32>
    %161 = vector.shape_cast %160 : vector<16xf32> to vector<16x1xf32>
    %162 = arith.mulf %157, %157 : vector<16x400xf32>
    %163 = vector.broadcast %2 : vector<1x400xf32> to vector<16x400xf32>
    %164 = arith.mulf %162, %163 : vector<16x400xf32>
    %cst_35 = arith.constant dense<0.000000e+00> : vector<16xf32>
    %165 = vector.multi_reduction <add>, %164, %cst_35 [1] : vector<16x400xf32> to vector<16xf32>
    %166 = vector.shape_cast %165 : vector<16xf32> to vector<16x1xf32>
    %cst_36 = arith.constant 3.906250e-03 : f32
    %167 = vector.broadcast %cst_36 : f32 to vector<16x1xf32>
    %168 = arith.mulf %161, %167 : vector<16x1xf32>
    %cst_37 = arith.constant 3.906250e-03 : f32
    %169 = vector.broadcast %cst_37 : f32 to vector<16x1xf32>
    %170 = arith.mulf %166, %169 : vector<16x1xf32>
    %171 = arith.mulf %168, %168 : vector<16x1xf32>
    %172 = arith.subf %170, %171 : vector<16x1xf32>
    %173 = vector.broadcast %168 : vector<16x1xf32> to vector<16x400xf32>
    %174 = arith.subf %157, %173 : vector<16x400xf32>
    %cst_38 = arith.constant 9.99999974E-6 : f32
    %175 = vector.broadcast %cst_38 : f32 to vector<16x1xf32>
    %176 = arith.addf %172, %175 : vector<16x1xf32>
    %177 = math.rsqrt %176 : vector<16x1xf32>
    %178 = vector.broadcast %177 : vector<16x1xf32> to vector<16x400xf32>
    %179 = arith.mulf %174, %178 : vector<16x400xf32>
    %cst_39 = arith.constant 0.000000e+00 : f32
    %180 = vector.broadcast %cst_39 : f32 to vector<16x400xf32>
    %181 = arith.cmpf oge, %179, %180 : vector<16x400xf32>
    %cst_40 = arith.constant 2.000000e-01 : f32
    %182 = vector.broadcast %cst_40 : f32 to vector<16x400xf32>
    %183 = arith.mulf %182, %179 : vector<16x400xf32>
    %184 = arith.select %181, %179, %183 : vector<16x400xi1>, vector<16x400xf32>
    %185 = vector.broadcast %2 : vector<1x400xf32> to vector<16x400xf32>
    %186 = arith.mulf %184, %185 : vector<16x400xf32>
    %187 = vector.extract_strided_slice %186 {offsets = [0, 0], sizes = [16, 379], strides = [1, 1]} : vector<16x400xf32> to vector<16x379xf32>
    %188 = vector.extract_strided_slice %186 {offsets = [0, 1], sizes = [16, 379], strides = [1, 1]} : vector<16x400xf32> to vector<16x379xf32>
    %189 = arith.addf %187, %188 : vector<16x379xf32>
    %190 = vector.extract_strided_slice %186 {offsets = [0, 20], sizes = [16, 379], strides = [1, 1]} : vector<16x400xf32> to vector<16x379xf32>
    %191 = arith.addf %189, %190 : vector<16x379xf32>
    %192 = vector.extract_strided_slice %186 {offsets = [0, 21], sizes = [16, 379], strides = [1, 1]} : vector<16x400xf32> to vector<16x379xf32>
    %193 = arith.addf %191, %192 : vector<16x379xf32>
    %cst_41 = arith.constant 2.500000e-01 : f32
    %194 = vector.broadcast %cst_41 : f32 to vector<16x379xf32>
    %195 = arith.mulf %194, %193 : vector<16x379xf32>
    %196 = vector.extract_strided_slice %3 {offsets = [0, 0], sizes = [1, 379], strides = [1, 1]} : vector<1x400xf32> to vector<1x379xf32>
    %197 = vector.broadcast %196 : vector<1x379xf32> to vector<16x379xf32>
    %198 = arith.mulf %195, %197 : vector<16x379xf32>
    %cst_42 = arith.constant 0.000000e+00 : f32
    %199 = vector.broadcast %cst_42 : f32 to vector<16x568xf32>
    %c0_43 = arith.constant 0 : index
    %c0_44 = arith.constant 0 : index
    %200 = vector.load %arg13[%c0_43, %c0_44] : memref<16x568xf32, #tpu.memory_space<vmem>>, vector<16x568xf32>
    tpu.vector_store %arg13[%c0_43, %c0_44], %199 {strides = array<i32>} : memref<16x568xf32, #tpu.memory_space<vmem>>, vector<16x568xf32>,
    %c0_45 = arith.constant 0 : index
    %c84 = arith.constant 84 : index
    %201 = vector.load %arg13[%c0_45, %c84] : memref<16x568xf32, #tpu.memory_space<vmem>>, vector<16x379xf32>
    tpu.vector_store %arg13[%c0_45, %c84], %198 {strides = array<i32>} : memref<16x568xf32, #tpu.memory_space<vmem>>, vector<16x379xf32>,
    %cst_46 = arith.constant 0.000000e+00 : f32
    %202 = vector.broadcast %cst_46 : f32 to vector<32x400xf32>
    %c0_47 = arith.constant 0 : index
    %c0_48 = arith.constant 0 : index
    %203 = vector.load %arg6[%c0_47, %c0_48] : memref<32x400xf32, #tpu.memory_space<vmem>>, vector<32x16xf32>
    %c0_49 = arith.constant 0 : index
    %c0_50 = arith.constant 0 : index
    %204 = vector.load %arg13[%c0_49, %c0_50] : memref<16x568xf32, #tpu.memory_space<vmem>>, vector<16x400xf32>
    %cst_51 = arith.constant dense<0.000000e+00> : vector<32x400xf32>
    %205 = tpu.matmul %203, %204, %cst_51 {dimension_numbers = #tpu.dot_dimension_numbers<[1], [0], [0], [1], [0, 0, 1, 1], [], []>} : vector<32x16xf32>, vector<16x400xf32>, vector<32x400xf32> -> vector<32x400xf32>
    %206 = arith.addf %202, %205 : vector<32x400xf32>
    %c0_52 = arith.constant 0 : index
    %c16_53 = arith.constant 16 : index
    %207 = vector.load %arg6[%c0_52, %c16_53] : memref<32x400xf32, #tpu.memory_space<vmem>>, vector<32x16xf32>
    %c0_54 = arith.constant 0 : index
    %c2_55 = arith.constant 2 : index
    %208 = vector.load %arg13[%c0_54, %c2_55] : memref<16x568xf32, #tpu.memory_space<vmem>>, vector<16x400xf32>
    %cst_56 = arith.constant dense<0.000000e+00> : vector<32x400xf32>
    %209 = tpu.matmul %207, %208, %cst_56 {dimension_numbers = #tpu.dot_dimension_numbers<[1], [0], [0], [1], [0, 0, 1, 1], [], []>} : vector<32x16xf32>, vector<16x400xf32>, vector<32x400xf32> -> vector<32x400xf32>
    %210 = arith.addf %206, %209 : vector<32x400xf32>
    %c0_57 = arith.constant 0 : index
    %c32 = arith.constant 32 : index
    %211 = vector.load %arg6[%c0_57, %c32] : memref<32x400xf32, #tpu.memory_space<vmem>>, vector<32x16xf32>
    %c0_58 = arith.constant 0 : index
    %c4_59 = arith.constant 4 : index
    %212 = vector.load %arg13[%c0_58, %c4_59] : memref<16x568xf32, #tpu.memory_space<vmem>>, vector<16x400xf32>
    %cst_60 = arith.constant dense<0.000000e+00> : vector<32x400xf32>
    %213 = tpu.matmul %211, %212, %cst_60 {dimension_numbers = #tpu.dot_dimension_numbers<[1], [0], [0], [1], [0, 0, 1, 1], [], []>} : vector<32x16xf32>, vector<16x400xf32>, vector<32x400xf32> -> vector<32x400xf32>
    %214 = arith.addf %210, %213 : vector<32x400xf32>
    %c0_61 = arith.constant 0 : index
    %c48 = arith.constant 48 : index
    %215 = vector.load %arg6[%c0_61, %c48] : memref<32x400xf32, #tpu.memory_space<vmem>>, vector<32x16xf32>
    %c0_62 = arith.constant 0 : index
    %c6_63 = arith.constant 6 : index
    %216 = vector.load %arg13[%c0_62, %c6_63] : memref<16x568xf32, #tpu.memory_space<vmem>>, vector<16x400xf32>
    %cst_64 = arith.constant dense<0.000000e+00> : vector<32x400xf32>
    %217 = tpu.matmul %215, %216, %cst_64 {dimension_numbers = #tpu.dot_dimension_numbers<[1], [0], [0], [1], [0, 0, 1, 1], [], []>} : vector<32x16xf32>, vector<16x400xf32>, vector<32x400xf32> -> vector<32x400xf32>
    %218 = arith.addf %214, %217 : vector<32x400xf32>
    %c0_65 = arith.constant 0 : index
    %c64 = arith.constant 64 : index
    %219 = vector.load %arg6[%c0_65, %c64] : memref<32x400xf32, #tpu.memory_space<vmem>>, vector<32x16xf32>
    %c0_66 = arith.constant 0 : index
    %c8_67 = arith.constant 8 : index
    %220 = vector.load %arg13[%c0_66, %c8_67] : memref<16x568xf32, #tpu.memory_space<vmem>>, vector<16x400xf32>
    %cst_68 = arith.constant dense<0.000000e+00> : vector<32x400xf32>
    %221 = tpu.matmul %219, %220, %cst_68 {dimension_numbers = #tpu.dot_dimension_numbers<[1], [0], [0], [1], [0, 0, 1, 1], [], []>} : vector<32x16xf32>, vector<16x400xf32>, vector<32x400xf32> -> vector<32x400xf32>
    %222 = arith.addf %218, %221 : vector<32x400xf32>
    %c0_69 = arith.constant 0 : index
    %c80 = arith.constant 80 : index
    %223 = vector.load %arg6[%c0_69, %c80] : memref<32x400xf32, #tpu.memory_space<vmem>>, vector<32x16xf32>
    %c0_70 = arith.constant 0 : index
    %c40 = arith.constant 40 : index
    %224 = vector.load %arg13[%c0_70, %c40] : memref<16x568xf32, #tpu.memory_space<vmem>>, vector<16x400xf32>
    %cst_71 = arith.constant dense<0.000000e+00> : vector<32x400xf32>
    %225 = tpu.matmul %223, %224, %cst_71 {dimension_numbers = #tpu.dot_dimension_numbers<[1], [0], [0], [1], [0, 0, 1, 1], [], []>} : vector<32x16xf32>, vector<16x400xf32>, vector<32x400xf32> -> vector<32x400xf32>
    %226 = arith.addf %222, %225 : vector<32x400xf32>
    %c0_72 = arith.constant 0 : index
    %c96 = arith.constant 96 : index
    %227 = vector.load %arg6[%c0_72, %c96] : memref<32x400xf32, #tpu.memory_space<vmem>>, vector<32x16xf32>
    %c0_73 = arith.constant 0 : index
    %c42 = arith.constant 42 : index
    %228 = vector.load %arg13[%c0_73, %c42] : memref<16x568xf32, #tpu.memory_space<vmem>>, vector<16x400xf32>
    %cst_74 = arith.constant dense<0.000000e+00> : vector<32x400xf32>
    %229 = tpu.matmul %227, %228, %cst_74 {dimension_numbers = #tpu.dot_dimension_numbers<[1], [0], [0], [1], [0, 0, 1, 1], [], []>} : vector<32x16xf32>, vector<16x400xf32>, vector<32x400xf32> -> vector<32x400xf32>
    %230 = arith.addf %226, %229 : vector<32x400xf32>
    %c0_75 = arith.constant 0 : index
    %c112 = arith.constant 112 : index
    %231 = vector.load %arg6[%c0_75, %c112] : memref<32x400xf32, #tpu.memory_space<vmem>>, vector<32x16xf32>
    %c0_76 = arith.constant 0 : index
    %c44 = arith.constant 44 : index
    %232 = vector.load %arg13[%c0_76, %c44] : memref<16x568xf32, #tpu.memory_space<vmem>>, vector<16x400xf32>
    %cst_77 = arith.constant dense<0.000000e+00> : vector<32x400xf32>
    %233 = tpu.matmul %231, %232, %cst_77 {dimension_numbers = #tpu.dot_dimension_numbers<[1], [0], [0], [1], [0, 0, 1, 1], [], []>} : vector<32x16xf32>, vector<16x400xf32>, vector<32x400xf32> -> vector<32x400xf32>
    %234 = arith.addf %230, %233 : vector<32x400xf32>
    %c0_78 = arith.constant 0 : index
    %c128 = arith.constant 128 : index
    %235 = vector.load %arg6[%c0_78, %c128] : memref<32x400xf32, #tpu.memory_space<vmem>>, vector<32x16xf32>
    %c0_79 = arith.constant 0 : index
    %c46 = arith.constant 46 : index
    %236 = vector.load %arg13[%c0_79, %c46] : memref<16x568xf32, #tpu.memory_space<vmem>>, vector<16x400xf32>
    %cst_80 = arith.constant dense<0.000000e+00> : vector<32x400xf32>
    %237 = tpu.matmul %235, %236, %cst_80 {dimension_numbers = #tpu.dot_dimension_numbers<[1], [0], [0], [1], [0, 0, 1, 1], [], []>} : vector<32x16xf32>, vector<16x400xf32>, vector<32x400xf32> -> vector<32x400xf32>
    %238 = arith.addf %234, %237 : vector<32x400xf32>
    %c0_81 = arith.constant 0 : index
    %c144 = arith.constant 144 : index
    %239 = vector.load %arg6[%c0_81, %c144] : memref<32x400xf32, #tpu.memory_space<vmem>>, vector<32x16xf32>
    %c0_82 = arith.constant 0 : index
    %c48_83 = arith.constant 48 : index
    %240 = vector.load %arg13[%c0_82, %c48_83] : memref<16x568xf32, #tpu.memory_space<vmem>>, vector<16x400xf32>
    %cst_84 = arith.constant dense<0.000000e+00> : vector<32x400xf32>
    %241 = tpu.matmul %239, %240, %cst_84 {dimension_numbers = #tpu.dot_dimension_numbers<[1], [0], [0], [1], [0, 0, 1, 1], [], []>} : vector<32x16xf32>, vector<16x400xf32>, vector<32x400xf32> -> vector<32x400xf32>
    %242 = arith.addf %238, %241 : vector<32x400xf32>
    %c0_85 = arith.constant 0 : index
    %c160 = arith.constant 160 : index
    %243 = vector.load %arg6[%c0_85, %c160] : memref<32x400xf32, #tpu.memory_space<vmem>>, vector<32x16xf32>
    %c0_86 = arith.constant 0 : index
    %c80_87 = arith.constant 80 : index
    %244 = vector.load %arg13[%c0_86, %c80_87] : memref<16x568xf32, #tpu.memory_space<vmem>>, vector<16x400xf32>
    %cst_88 = arith.constant dense<0.000000e+00> : vector<32x400xf32>
    %245 = tpu.matmul %243, %244, %cst_88 {dimension_numbers = #tpu.dot_dimension_numbers<[1], [0], [0], [1], [0, 0, 1, 1], [], []>} : vector<32x16xf32>, vector<16x400xf32>, vector<32x400xf32> -> vector<32x400xf32>
    %246 = arith.addf %242, %245 : vector<32x400xf32>
    %c0_89 = arith.constant 0 : index
    %c176 = arith.constant 176 : index
    %247 = vector.load %arg6[%c0_89, %c176] : memref<32x400xf32, #tpu.memory_space<vmem>>, vector<32x16xf32>
    %c0_90 = arith.constant 0 : index
    %c82 = arith.constant 82 : index
    %248 = vector.load %arg13[%c0_90, %c82] : memref<16x568xf32, #tpu.memory_space<vmem>>, vector<16x400xf32>
    %cst_91 = arith.constant dense<0.000000e+00> : vector<32x400xf32>
    %249 = tpu.matmul %247, %248, %cst_91 {dimension_numbers = #tpu.dot_dimension_numbers<[1], [0], [0], [1], [0, 0, 1, 1], [], []>} : vector<32x16xf32>, vector<16x400xf32>, vector<32x400xf32> -> vector<32x400xf32>
    %250 = arith.addf %246, %249 : vector<32x400xf32>
    %c0_92 = arith.constant 0 : index
    %c192 = arith.constant 192 : index
    %251 = vector.load %arg6[%c0_92, %c192] : memref<32x400xf32, #tpu.memory_space<vmem>>, vector<32x16xf32>
    %c0_93 = arith.constant 0 : index
    %c84_94 = arith.constant 84 : index
    %252 = vector.load %arg13[%c0_93, %c84_94] : memref<16x568xf32, #tpu.memory_space<vmem>>, vector<16x400xf32>
    %cst_95 = arith.constant dense<0.000000e+00> : vector<32x400xf32>
    %253 = tpu.matmul %251, %252, %cst_95 {dimension_numbers = #tpu.dot_dimension_numbers<[1], [0], [0], [1], [0, 0, 1, 1], [], []>} : vector<32x16xf32>, vector<16x400xf32>, vector<32x400xf32> -> vector<32x400xf32>
    %254 = arith.addf %250, %253 : vector<32x400xf32>
    %c0_96 = arith.constant 0 : index
    %c208 = arith.constant 208 : index
    %255 = vector.load %arg6[%c0_96, %c208] : memref<32x400xf32, #tpu.memory_space<vmem>>, vector<32x16xf32>
    %c0_97 = arith.constant 0 : index
    %c86 = arith.constant 86 : index
    %256 = vector.load %arg13[%c0_97, %c86] : memref<16x568xf32, #tpu.memory_space<vmem>>, vector<16x400xf32>
    %cst_98 = arith.constant dense<0.000000e+00> : vector<32x400xf32>
    %257 = tpu.matmul %255, %256, %cst_98 {dimension_numbers = #tpu.dot_dimension_numbers<[1], [0], [0], [1], [0, 0, 1, 1], [], []>} : vector<32x16xf32>, vector<16x400xf32>, vector<32x400xf32> -> vector<32x400xf32>
    %258 = arith.addf %254, %257 : vector<32x400xf32>
    %c0_99 = arith.constant 0 : index
    %c224 = arith.constant 224 : index
    %259 = vector.load %arg6[%c0_99, %c224] : memref<32x400xf32, #tpu.memory_space<vmem>>, vector<32x16xf32>
    %c0_100 = arith.constant 0 : index
    %c88 = arith.constant 88 : index
    %260 = vector.load %arg13[%c0_100, %c88] : memref<16x568xf32, #tpu.memory_space<vmem>>, vector<16x400xf32>
    %cst_101 = arith.constant dense<0.000000e+00> : vector<32x400xf32>
    %261 = tpu.matmul %259, %260, %cst_101 {dimension_numbers = #tpu.dot_dimension_numbers<[1], [0], [0], [1], [0, 0, 1, 1], [], []>} : vector<32x16xf32>, vector<16x400xf32>, vector<32x400xf32> -> vector<32x400xf32>
    %262 = arith.addf %258, %261 : vector<32x400xf32>
    %c0_102 = arith.constant 0 : index
    %c240 = arith.constant 240 : index
    %263 = vector.load %arg6[%c0_102, %c240] : memref<32x400xf32, #tpu.memory_space<vmem>>, vector<32x16xf32>
    %c0_103 = arith.constant 0 : index
    %c120 = arith.constant 120 : index
    %264 = vector.load %arg13[%c0_103, %c120] : memref<16x568xf32, #tpu.memory_space<vmem>>, vector<16x400xf32>
    %cst_104 = arith.constant dense<0.000000e+00> : vector<32x400xf32>
    %265 = tpu.matmul %263, %264, %cst_104 {dimension_numbers = #tpu.dot_dimension_numbers<[1], [0], [0], [1], [0, 0, 1, 1], [], []>} : vector<32x16xf32>, vector<16x400xf32>, vector<32x400xf32> -> vector<32x400xf32>
    %266 = arith.addf %262, %265 : vector<32x400xf32>
    %c0_105 = arith.constant 0 : index
    %c256 = arith.constant 256 : index
    %267 = vector.load %arg6[%c0_105, %c256] : memref<32x400xf32, #tpu.memory_space<vmem>>, vector<32x16xf32>
    %c0_106 = arith.constant 0 : index
    %c122 = arith.constant 122 : index
    %268 = vector.load %arg13[%c0_106, %c122] : memref<16x568xf32, #tpu.memory_space<vmem>>, vector<16x400xf32>
    %cst_107 = arith.constant dense<0.000000e+00> : vector<32x400xf32>
    %269 = tpu.matmul %267, %268, %cst_107 {dimension_numbers = #tpu.dot_dimension_numbers<[1], [0], [0], [1], [0, 0, 1, 1], [], []>} : vector<32x16xf32>, vector<16x400xf32>, vector<32x400xf32> -> vector<32x400xf32>
    %270 = arith.addf %266, %269 : vector<32x400xf32>
    %c0_108 = arith.constant 0 : index
    %c272 = arith.constant 272 : index
    %271 = vector.load %arg6[%c0_108, %c272] : memref<32x400xf32, #tpu.memory_space<vmem>>, vector<32x16xf32>
    %c0_109 = arith.constant 0 : index
    %c124 = arith.constant 124 : index
    %272 = vector.load %arg13[%c0_109, %c124] : memref<16x568xf32, #tpu.memory_space<vmem>>, vector<16x400xf32>
    %cst_110 = arith.constant dense<0.000000e+00> : vector<32x400xf32>
    %273 = tpu.matmul %271, %272, %cst_110 {dimension_numbers = #tpu.dot_dimension_numbers<[1], [0], [0], [1], [0, 0, 1, 1], [], []>} : vector<32x16xf32>, vector<16x400xf32>, vector<32x400xf32> -> vector<32x400xf32>
    %274 = arith.addf %270, %273 : vector<32x400xf32>
    %c0_111 = arith.constant 0 : index
    %c288 = arith.constant 288 : index
    %275 = vector.load %arg6[%c0_111, %c288] : memref<32x400xf32, #tpu.memory_space<vmem>>, vector<32x16xf32>
    %c0_112 = arith.constant 0 : index
    %c126 = arith.constant 126 : index
    %276 = vector.load %arg13[%c0_112, %c126] : memref<16x568xf32, #tpu.memory_space<vmem>>, vector<16x400xf32>
    %cst_113 = arith.constant dense<0.000000e+00> : vector<32x400xf32>
    %277 = tpu.matmul %275, %276, %cst_113 {dimension_numbers = #tpu.dot_dimension_numbers<[1], [0], [0], [1], [0, 0, 1, 1], [], []>} : vector<32x16xf32>, vector<16x400xf32>, vector<32x400xf32> -> vector<32x400xf32>
    %278 = arith.addf %274, %277 : vector<32x400xf32>
    %c0_114 = arith.constant 0 : index
    %c304 = arith.constant 304 : index
    %279 = vector.load %arg6[%c0_114, %c304] : memref<32x400xf32, #tpu.memory_space<vmem>>, vector<32x16xf32>
    %c0_115 = arith.constant 0 : index
    %c128_116 = arith.constant 128 : index
    %280 = vector.load %arg13[%c0_115, %c128_116] : memref<16x568xf32, #tpu.memory_space<vmem>>, vector<16x400xf32>
    %cst_117 = arith.constant dense<0.000000e+00> : vector<32x400xf32>
    %281 = tpu.matmul %279, %280, %cst_117 {dimension_numbers = #tpu.dot_dimension_numbers<[1], [0], [0], [1], [0, 0, 1, 1], [], []>} : vector<32x16xf32>, vector<16x400xf32>, vector<32x400xf32> -> vector<32x400xf32>
    %282 = arith.addf %278, %281 : vector<32x400xf32>
    %c0_118 = arith.constant 0 : index
    %c320 = arith.constant 320 : index
    %283 = vector.load %arg6[%c0_118, %c320] : memref<32x400xf32, #tpu.memory_space<vmem>>, vector<32x16xf32>
    %c0_119 = arith.constant 0 : index
    %c160_120 = arith.constant 160 : index
    %284 = vector.load %arg13[%c0_119, %c160_120] : memref<16x568xf32, #tpu.memory_space<vmem>>, vector<16x400xf32>
    %cst_121 = arith.constant dense<0.000000e+00> : vector<32x400xf32>
    %285 = tpu.matmul %283, %284, %cst_121 {dimension_numbers = #tpu.dot_dimension_numbers<[1], [0], [0], [1], [0, 0, 1, 1], [], []>} : vector<32x16xf32>, vector<16x400xf32>, vector<32x400xf32> -> vector<32x400xf32>
    %286 = arith.addf %282, %285 : vector<32x400xf32>
    %c0_122 = arith.constant 0 : index
    %c336 = arith.constant 336 : index
    %287 = vector.load %arg6[%c0_122, %c336] : memref<32x400xf32, #tpu.memory_space<vmem>>, vector<32x16xf32>
    %c0_123 = arith.constant 0 : index
    %c162 = arith.constant 162 : index
    %288 = vector.load %arg13[%c0_123, %c162] : memref<16x568xf32, #tpu.memory_space<vmem>>, vector<16x400xf32>
    %cst_124 = arith.constant dense<0.000000e+00> : vector<32x400xf32>
    %289 = tpu.matmul %287, %288, %cst_124 {dimension_numbers = #tpu.dot_dimension_numbers<[1], [0], [0], [1], [0, 0, 1, 1], [], []>} : vector<32x16xf32>, vector<16x400xf32>, vector<32x400xf32> -> vector<32x400xf32>
    %290 = arith.addf %286, %289 : vector<32x400xf32>
    %c0_125 = arith.constant 0 : index
    %c352 = arith.constant 352 : index
    %291 = vector.load %arg6[%c0_125, %c352] : memref<32x400xf32, #tpu.memory_space<vmem>>, vector<32x16xf32>
    %c0_126 = arith.constant 0 : index
    %c164 = arith.constant 164 : index
    %292 = vector.load %arg13[%c0_126, %c164] : memref<16x568xf32, #tpu.memory_space<vmem>>, vector<16x400xf32>
    %cst_127 = arith.constant dense<0.000000e+00> : vector<32x400xf32>
    %293 = tpu.matmul %291, %292, %cst_127 {dimension_numbers = #tpu.dot_dimension_numbers<[1], [0], [0], [1], [0, 0, 1, 1], [], []>} : vector<32x16xf32>, vector<16x400xf32>, vector<32x400xf32> -> vector<32x400xf32>
    %294 = arith.addf %290, %293 : vector<32x400xf32>
    %c0_128 = arith.constant 0 : index
    %c368 = arith.constant 368 : index
    %295 = vector.load %arg6[%c0_128, %c368] : memref<32x400xf32, #tpu.memory_space<vmem>>, vector<32x16xf32>
    %c0_129 = arith.constant 0 : index
    %c166 = arith.constant 166 : index
    %296 = vector.load %arg13[%c0_129, %c166] : memref<16x568xf32, #tpu.memory_space<vmem>>, vector<16x400xf32>
    %cst_130 = arith.constant dense<0.000000e+00> : vector<32x400xf32>
    %297 = tpu.matmul %295, %296, %cst_130 {dimension_numbers = #tpu.dot_dimension_numbers<[1], [0], [0], [1], [0, 0, 1, 1], [], []>} : vector<32x16xf32>, vector<16x400xf32>, vector<32x400xf32> -> vector<32x400xf32>
    %298 = arith.addf %294, %297 : vector<32x400xf32>
    %c0_131 = arith.constant 0 : index
    %c384 = arith.constant 384 : index
    %299 = vector.load %arg6[%c0_131, %c384] : memref<32x400xf32, #tpu.memory_space<vmem>>, vector<32x16xf32>
    %c0_132 = arith.constant 0 : index
    %c168 = arith.constant 168 : index
    %300 = vector.load %arg13[%c0_132, %c168] : memref<16x568xf32, #tpu.memory_space<vmem>>, vector<16x400xf32>
    %cst_133 = arith.constant dense<0.000000e+00> : vector<32x400xf32>
    %301 = tpu.matmul %299, %300, %cst_133 {dimension_numbers = #tpu.dot_dimension_numbers<[1], [0], [0], [1], [0, 0, 1, 1], [], []>} : vector<32x16xf32>, vector<16x400xf32>, vector<32x400xf32> -> vector<32x400xf32>
    %302 = arith.addf %298, %301 : vector<32x400xf32>
    %c0_134 = arith.constant 0 : index
    %c0_135 = arith.constant 0 : index
    %303 = vector.load %arg7[%c0_134, %c0_135] : memref<32x1xf32, #tpu.memory_space<vmem>>, vector<32x1xf32>
    %304 = vector.broadcast %303 : vector<32x1xf32> to vector<32x400xf32>
    %305 = arith.addf %302, %304 : vector<32x400xf32>
    %306 = vector.broadcast %3 : vector<1x400xf32> to vector<32x400xf32>
    %307 = arith.mulf %305, %306 : vector<32x400xf32>
    %cst_136 = arith.constant dense<0.000000e+00> : vector<32xf32>
    %308 = vector.multi_reduction <add>, %307, %cst_136 [1] : vector<32x400xf32> to vector<32xf32>
    %309 = vector.shape_cast %308 : vector<32xf32> to vector<32x1xf32>
    %310 = arith.mulf %305, %305 : vector<32x400xf32>
    %311 = vector.broadcast %3 : vector<1x400xf32> to vector<32x400xf32>
    %312 = arith.mulf %310, %311 : vector<32x400xf32>
    %cst_137 = arith.constant dense<0.000000e+00> : vector<32xf32>
    %313 = vector.multi_reduction <add>, %312, %cst_137 [1] : vector<32x400xf32> to vector<32xf32>
    %314 = vector.shape_cast %313 : vector<32xf32> to vector<32x1xf32>
    %cst_138 = arith.constant 1.562500e-02 : f32
    %315 = vector.broadcast %cst_138 : f32 to vector<32x1xf32>
    %316 = arith.mulf %309, %315 : vector<32x1xf32>
    %cst_139 = arith.constant 1.562500e-02 : f32
    %317 = vector.broadcast %cst_139 : f32 to vector<32x1xf32>
    %318 = arith.mulf %314, %317 : vector<32x1xf32>
    %319 = arith.mulf %316, %316 : vector<32x1xf32>
    %320 = arith.subf %318, %319 : vector<32x1xf32>
    %321 = vector.broadcast %316 : vector<32x1xf32> to vector<32x400xf32>
    %322 = arith.subf %305, %321 : vector<32x400xf32>
    %cst_140 = arith.constant 9.99999974E-6 : f32
    %323 = vector.broadcast %cst_140 : f32 to vector<32x1xf32>
    %324 = arith.addf %320, %323 : vector<32x1xf32>
    %325 = math.rsqrt %324 : vector<32x1xf32>
    %326 = vector.broadcast %325 : vector<32x1xf32> to vector<32x400xf32>
    %327 = arith.mulf %322, %326 : vector<32x400xf32>
    %cst_141 = arith.constant 0.000000e+00 : f32
    %328 = vector.broadcast %cst_141 : f32 to vector<32x400xf32>
    %329 = arith.cmpf oge, %327, %328 : vector<32x400xf32>
    %cst_142 = arith.constant 2.000000e-01 : f32
    %330 = vector.broadcast %cst_142 : f32 to vector<32x400xf32>
    %331 = arith.mulf %330, %327 : vector<32x400xf32>
    %332 = arith.select %329, %327, %331 : vector<32x400xi1>, vector<32x400xf32>
    %333 = vector.broadcast %3 : vector<1x400xf32> to vector<32x400xf32>
    %334 = arith.mulf %332, %333 : vector<32x400xf32>
    %cst_143 = arith.constant dense<0.000000e+00> : vector<32xf32>
    %335 = vector.multi_reduction <add>, %334, %cst_143 [1] : vector<32x400xf32> to vector<32xf32>
    %336 = vector.shape_cast %335 : vector<32xf32> to vector<32x1xf32>
    %cst_144 = arith.constant 1.562500e-02 : f32
    %337 = vector.broadcast %cst_144 : f32 to vector<32x1xf32>
    %338 = arith.mulf %336, %337 : vector<32x1xf32>
    %c0_145 = arith.constant 0 : index
    %c0_146 = arith.constant 0 : index
    %339 = vector.load %arg8[%c0_145, %c0_146] : memref<32x32xf32, #tpu.memory_space<vmem>>, vector<32x32xf32>
    %cst_147 = arith.constant dense<0.000000e+00> : vector<32x1xf32>
    %340 = tpu.matmul %339, %338, %cst_147 {dimension_numbers = #tpu.dot_dimension_numbers<[1], [0], [0], [1], [0, 0, 1, 1], [], []>} : vector<32x32xf32>, vector<32x1xf32>, vector<32x1xf32> -> vector<32x1xf32>
    %c0_148 = arith.constant 0 : index
    %c0_149 = arith.constant 0 : index
    %341 = vector.load %arg9[%c0_148, %c0_149] : memref<32x1xf32, #tpu.memory_space<vmem>>, vector<32x1xf32>
    %342 = arith.addf %340, %341 : vector<32x1xf32>
    %cst_150 = arith.constant 0.000000e+00 : f32
    %343 = vector.broadcast %cst_150 : f32 to vector<32x1xf32>
    %344 = arith.cmpf oge, %342, %343 : vector<32x1xf32>
    %cst_151 = arith.constant 2.000000e-01 : f32
    %345 = vector.broadcast %cst_151 : f32 to vector<32x1xf32>
    %346 = arith.mulf %345, %342 : vector<32x1xf32>
    %347 = arith.select %344, %342, %346 : vector<32x1xi1>, vector<32x1xf32>
    %c0_152 = arith.constant 0 : index
    %c0_153 = arith.constant 0 : index
    %348 = vector.load %arg10[%c0_152, %c0_153] : memref<1x32xf32, #tpu.memory_space<vmem>>, vector<1x32xf32>
    %cst_154 = arith.constant dense<0.000000e+00> : vector<1x1xf32>
    %349 = tpu.matmul %348, %347, %cst_154 {dimension_numbers = #tpu.dot_dimension_numbers<[1], [0], [0], [1], [0, 0, 1, 1], [], []>} : vector<1x32xf32>, vector<32x1xf32>, vector<1x1xf32> -> vector<1x1xf32>
    %c0_155 = arith.constant 0 : index
    %c0_156 = arith.constant 0 : index
    %350 = vector.load %arg11[%c0_155, %c0_156] : memref<1x1xf32, #tpu.memory_space<vmem>>, vector<1x1xf32>
    %351 = arith.addf %349, %350 : vector<1x1xf32>
    %352 = vector.shape_cast %351 : vector<1x1xf32> to vector<1x1xf32>
    %353 = vector.broadcast %352 : vector<1x1xf32> to vector<1x128xf32>
    %c0_157 = arith.constant 0 : index
    %c0_158 = arith.constant 0 : index
    %c0_159 = arith.constant 0 : index
    %354 = vector.load %arg12[%c0_157, %c0_158, %c0_159] : memref<1x1x128xf32, #tpu.memory_space<vmem>>, vector<1x1x128xf32>
    %355 = vector.shape_cast %354 : vector<1x1x128xf32> to vector<1x128xf32>
    %356 = vector.shape_cast %353 : vector<1x128xf32> to vector<1x1x128xf32>
    tpu.vector_store %arg12[%c0_157, %c0_158, %c0_159], %356 {strides = array<i32>} : memref<1x1x128xf32, #tpu.memory_space<vmem>>, vector<1x1x128xf32>,
    return
  }
  func.func @transform_0(%arg0: i32) -> (i32, i32, i32) {
    %c0_i32 = arith.constant 0 : i32
    %c0_i32_0 = arith.constant 0 : i32
    %c0_i32_1 = arith.constant 0 : i32
    return %arg0, %c0_i32, %c0_i32_0 : i32, i32, i32
  }
  func.func @transform_1(%arg0: i32) -> (i32, i32) {
    %c0_i32 = arith.constant 0 : i32
    %c0_i32_0 = arith.constant 0 : i32
    %c0_i32_1 = arith.constant 0 : i32
    return %c0_i32, %c0_i32_0 : i32, i32
  }
  func.func @transform_2(%arg0: i32) -> (i32, i32) {
    %c0_i32 = arith.constant 0 : i32
    %c0_i32_0 = arith.constant 0 : i32
    %c0_i32_1 = arith.constant 0 : i32
    return %c0_i32, %c0_i32_0 : i32, i32
  }
  func.func @transform_3(%arg0: i32) -> (i32, i32) {
    %c0_i32 = arith.constant 0 : i32
    %c0_i32_0 = arith.constant 0 : i32
    %c0_i32_1 = arith.constant 0 : i32
    return %c0_i32, %c0_i32_0 : i32, i32
  }
  func.func @transform_4(%arg0: i32) -> (i32, i32) {
    %c0_i32 = arith.constant 0 : i32
    %c0_i32_0 = arith.constant 0 : i32
    %c0_i32_1 = arith.constant 0 : i32
    return %c0_i32, %c0_i32_0 : i32, i32
  }
  func.func @transform_5(%arg0: i32) -> (i32, i32) {
    %c0_i32 = arith.constant 0 : i32
    %c0_i32_0 = arith.constant 0 : i32
    %c0_i32_1 = arith.constant 0 : i32
    return %c0_i32, %c0_i32_0 : i32, i32
  }
  func.func @transform_6(%arg0: i32) -> (i32, i32) {
    %c0_i32 = arith.constant 0 : i32
    %c0_i32_0 = arith.constant 0 : i32
    %c0_i32_1 = arith.constant 0 : i32
    return %c0_i32, %c0_i32_0 : i32, i32
  }
  func.func @transform_7(%arg0: i32) -> (i32, i32) {
    %c0_i32 = arith.constant 0 : i32
    %c0_i32_0 = arith.constant 0 : i32
    %c0_i32_1 = arith.constant 0 : i32
    return %c0_i32, %c0_i32_0 : i32, i32
  }
  func.func @transform_8(%arg0: i32) -> (i32, i32) {
    %c0_i32 = arith.constant 0 : i32
    %c0_i32_0 = arith.constant 0 : i32
    %c0_i32_1 = arith.constant 0 : i32
    return %c0_i32, %c0_i32_0 : i32, i32
  }
  func.func @transform_9(%arg0: i32) -> (i32, i32) {
    %c0_i32 = arith.constant 0 : i32
    %c0_i32_0 = arith.constant 0 : i32
    %c0_i32_1 = arith.constant 0 : i32
    return %c0_i32, %c0_i32_0 : i32, i32
  }
  func.func @transform_10(%arg0: i32) -> (i32, i32) {
    %c0_i32 = arith.constant 0 : i32
    %c0_i32_0 = arith.constant 0 : i32
    %c0_i32_1 = arith.constant 0 : i32
    return %c0_i32, %c0_i32_0 : i32, i32
  }
  func.func @transform_11(%arg0: i32) -> (i32, i32, i32) {
    %c0_i32 = arith.constant 0 : i32
    %c0_i32_0 = arith.constant 0 : i32
    %c0_i32_1 = arith.constant 0 : i32
    return %arg0, %c0_i32, %c0_i32_0 : i32, i32, i32
  }
}

</mosaic_0001>

<llo_original>
// kernel: tpu_custom_call.1
$region0: #{tpu_custom_call.1}
  #allocation0 [shape = 'u32[]', space=smem, size = 0x4, offset = 0x4, fixed_abs, tag = 'smem constant byte address 0x4 - core index']
  #allocation1 [shape = 'u32[72,128]{1,0:T(1,128)}', space=vmem, size = 0x9000, scoped, tag = 'internal scratch']
  #allocation2 [shape = 'f32[16,568]{1,0:T(8,128)}', space=vmem, size = 0xa000, scoped, tag = 'scratch operand']
  #allocation3 [shape = 'f32[1,1]{1,0:T(1,128)S(1)}', space=vmem, size = 0x200, scoped, tag = 'scoped memory for tpu_custom_call.1']
  %s0 = inlined_call_operand.vmem [shape: f32[2,1,512], index: 0, kind: input, shape index: {}]
  %s1 = inlined_call_operand.vmem [shape: f32[1,400], index: 1, kind: input, shape index: {}]
  %s2 = inlined_call_operand.vmem [shape: f32[1,400], index: 2, kind: input, shape index: {}]
  %s3 = inlined_call_operand.vmem [shape: f32[16,25], index: 3, kind: input, shape index: {}]
  %s4 = inlined_call_operand.vmem [shape: f32[16,1], index: 4, kind: input, shape index: {}]
  %s5 = inlined_call_operand.hbm [shape: f32[32,400], index: 5, kind: input, shape index: {}]
  %s6 = inlined_call_operand.vmem [shape: f32[32,1], index: 6, kind: input, shape index: {}]
  %s7 = inlined_call_operand.vmem [shape: f32[32,32], index: 7, kind: input, shape index: {}]
  %s8 = inlined_call_operand.vmem [shape: f32[32,1], index: 8, kind: input, shape index: {}]
  %s9 = inlined_call_operand.vmem [shape: f32[1,32], index: 9, kind: input, shape index: {}]
  %s10 = inlined_call_operand.<no memory space> [shape: f32[1,1], index: 10, kind: input, shape index: {}]
  %s11 = inlined_call_operand.hbm [shape: f32[2,1,128], index: 11, kind: output, shape index: {}]
  %s12 = sld [smem:[#allocation0]]
  $region81: #{tpu_custom_call.1} parent=0
    _
  %s14 = ssub.s32 1, %s12
  %s15 = scalar_select 0, %s14, %s12
  %v16 = vstv %s10
  %17 = vst [vmem:[#allocation3] sm:$0x1] %v16
  $region1: #{tpu_custom_call.1} parent=0
    #allocation4 [shape = 'u8[65536]{0}', space=vmem, size = 0x10000, scoped, tag = 'input window, operand 5, single buffered']
    #allocation5 [shape = 's32[2]{0}', space=sflag, size = 0x8, scoped, tag = 'scoped memory for tpu_custom_call.1']
    #allocation6 [shape = 's32[2]{0}', space=sflag, size = 0x8, scoped, tag = 'scoped memory for tpu_custom_call.1']
    #allocation7 [shape = 'u8[1024]{0}', space=vmem, size = 0x400, scoped, tag = 'output window, operand 0']
    %18 = vsyncpa [#allocation5], 0
    %19 = vsyncpa [#allocation6], 0
    %s20 = scalar_lea.sflag [#allocation6], 1
    %21 = vsyncpa %s20, 0
    loop: start=0, step=1, limit=4
    $region2: #{tpu_custom_call.1} parent=1 // loop_pre_header
      _
    $region3: #{tpu_custom_call.1} parent=1 // loop_header
      %s23 = sphi 0, %s27
      %p24 = scmp.ge.s32.totalorder %s23, 4
      %s33 = sphi 0, %s35
      %s36 = sphi 0, %s33
      %s37 = sphi 0, %s36
      %s53 = sphi 0, %s37
      %s57 = sphi 0, %s57
      %s59 = sphi 0, %s57
      %s60 = sphi 0, %s59
      %s74 = sphi 0, %s60
      %s78 = sphi 0, %s78
      %s80 = sphi 0, %s78
      %s81 = sphi 0, %s80
      %s95 = sphi 0, %s81
      %s99 = sphi 0, %s99
      %s101 = sphi 0, %s99
      %s102 = sphi 0, %s101
      %s116 = sphi 0, %s102
      %s120 = sphi 0, %s120
      %s122 = sphi 0, %s120
      %s123 = sphi 0, %s122
      %s137 = sphi 0, %s123
      %s141 = sphi 0, %s141
      %s143 = sphi 0, %s141
      %s144 = sphi 0, %s143
      %s158 = sphi 0, %s144
      %s162 = sphi 0, %s162
      %s164 = sphi 0, %s162
      %s165 = sphi 0, %s164
      %s179 = sphi 0, %s165
      %s183 = sphi 0, %s183
      %s185 = sphi 0, %s183
      %s186 = sphi 0, %s185
      %s200 = sphi 0, %s186
      %s204 = sphi 0, %s204
      %s206 = sphi 0, %s204
      %s207 = sphi 0, %s206
      %s221 = sphi 0, %s207
      %s225 = sphi 0, %s225
      %s227 = sphi 0, %s225
      %s228 = sphi 0, %s227
      %s242 = sphi 0, %s228
      %s246 = sphi 0, %s246
      %s248 = sphi 0, %s246
      %s249 = sphi 0, %s248
      %s263 = sphi 0, %s249
      %s269 = sphi 0, %s271
      %s272 = sphi 0, %s269
      %s273 = sphi 0, %s272
      %s289 = sphi 0, %s273
    $region4: #{tpu_custom_call.1} parent=1 // loop_header_branch
      %26 = sbr.rel (%p24) target = $region8
    $region5: #{tpu_custom_call.1} parent=1 // loop_body
      %s28 = ssub.s32 %s23, 1
      %s29 = ssub.s32 %s23, 2
      %s30 = sadd.s32 %s23, 1
      %s31 = ssub.s32 %s23, %s30
      %p32 = scmp.eq.s32.totalorder %s31, 0
      %s34 = sadd.s32 %s33, 1
      %s35 = scalar_select %p32, %s33, %s34
      %p38 = pneg %p32
      %p39 = scmp.eq.s32.totalorder %s23, 1
      %p40 = por %p38, %p39
      %p41 = scmp.ne.s32.totalorder %s33, %s36
      %p42 = scmp.eq.s32.totalorder %s23, 0
      %p43 = por %p41, %p42
      %p44 = scmp.ne.s32.totalorder %s33, %s36
      %p45 = scmp.eq.s32.totalorder %s28, 1
      %p46 = por %p44, %p45
      %p47 = scmp.ne.s32.totalorder %s36, %s37
      %p48 = scmp.eq.s32.totalorder %s28, 0
      %p49 = por %p47, %p48
      %p50 = scmp.ne.s32.totalorder %s36, %s37
      %p51 = scmp.eq.s32.totalorder %s29, 1
      %p52 = por %p50, %p51
      %p54 = scmp.ne.s32.totalorder %s37, %s53
      %p55 = scmp.eq.s32.totalorder %s29, 0
      %p56 = por %p54, %p55
      %s58 = sadd.s32 %s57, 1
      %p61 = scmp.eq.s32.totalorder %s23, 1
      %p62 = scmp.ne.s32.totalorder %s57, %s59
      %p63 = scmp.eq.s32.totalorder %s23, 0
      %p64 = por %p62, %p63
      %p65 = scmp.ne.s32.totalorder %s57, %s59
      %p66 = scmp.eq.s32.totalorder %s28, 1
      %p67 = por %p65, %p66
      %p68 = scmp.ne.s32.totalorder %s59, %s60
      %p69 = scmp.eq.s32.totalorder %s28, 0
      %p70 = por %p68, %p69
      %p71 = scmp.ne.s32.totalorder %s59, %s60
      %p72 = scmp.eq.s32.totalorder %s29, 1
      %p73 = por %p71, %p72
      %p75 = scmp.ne.s32.totalorder %s60, %s74
      %p76 = scmp.eq.s32.totalorder %s29, 0
      %p77 = por %p75, %p76
      %s79 = sadd.s32 %s78, 1
      %p82 = scmp.eq.s32.totalorder %s23, 1
      %p83 = scmp.ne.s32.totalorder %s78, %s80
      %p84 = scmp.eq.s32.totalorder %s23, 0
      %p85 = por %p83, %p84
      %p86 = scmp.ne.s32.totalorder %s78, %s80
      %p87 = scmp.eq.s32.totalorder %s28, 1
      %p88 = por %p86, %p87
      %p89 = scmp.ne.s32.totalorder %s80, %s81
      %p90 = scmp.eq.s32.totalorder %s28, 0
      %p91 = por %p89, %p90
      %p92 = scmp.ne.s32.totalorder %s80, %s81
      %p93 = scmp.eq.s32.totalorder %s29, 1
      %p94 = por %p92, %p93
      %p96 = scmp.ne.s32.totalorder %s81, %s95
      %p97 = scmp.eq.s32.totalorder %s29, 0
      %p98 = por %p96, %p97
      %s100 = sadd.s32 %s99, 1
      %p103 = scmp.eq.s32.totalorder %s23, 1
      %p104 = scmp.ne.s32.totalorder %s99, %s101
      %p105 = scmp.eq.s32.totalorder %s23, 0
      %p106 = por %p104, %p105
      %p107 = scmp.ne.s32.totalorder %s99, %s101
      %p108 = scmp.eq.s32.totalorder %s28, 1
      %p109 = por %p107, %p108
      %p110 = scmp.ne.s32.totalorder %s101, %s102
      %p111 = scmp.eq.s32.totalorder %s28, 0
      %p112 = por %p110, %p111
      %p113 = scmp.ne.s32.totalorder %s101, %s102
      %p114 = scmp.eq.s32.totalorder %s29, 1
      %p115 = por %p113, %p114
      %p117 = scmp.ne.s32.totalorder %s102, %s116
      %p118 = scmp.eq.s32.totalorder %s29, 0
      %p119 = por %p117, %p118
      %s121 = sadd.s32 %s120, 1
      %p124 = scmp.eq.s32.totalorder %s23, 1
      %p125 = scmp.ne.s32.totalorder %s120, %s122
      %p126 = scmp.eq.s32.totalorder %s23, 0
      %p127 = por %p125, %p126
      %p128 = scmp.ne.s32.totalorder %s120, %s122
      %p129 = scmp.eq.s32.totalorder %s28, 1
      %p130 = por %p128, %p129
      %p131 = scmp.ne.s32.totalorder %s122, %s123
      %p132 = scmp.eq.s32.totalorder %s28, 0
      %p133 = por %p131, %p132
      %p134 = scmp.ne.s32.totalorder %s122, %s123
      %p135 = scmp.eq.s32.totalorder %s29, 1
      %p136 = por %p134, %p135
      %p138 = scmp.ne.s32.totalorder %s123, %s137
      %p139 = scmp.eq.s32.totalorder %s29, 0
      %p140 = por %p138, %p139
      %s142 = sadd.s32 %s141, 1
      %p145 = scmp.eq.s32.totalorder %s23, 1
      %p146 = scmp.ne.s32.totalorder %s141, %s143
      %p147 = scmp.eq.s32.totalorder %s23, 0
      %p148 = por %p146, %p147
      %p149 = scmp.ne.s32.totalorder %s141, %s143
      %p150 = scmp.eq.s32.totalorder %s28, 1
      %p151 = por %p149, %p150
      %p152 = scmp.ne.s32.totalorder %s143, %s144
      %p153 = scmp.eq.s32.totalorder %s28, 0
      %p154 = por %p152, %p153
      %p155 = scmp.ne.s32.totalorder %s143, %s144
      %p156 = scmp.eq.s32.totalorder %s29, 1
      %p157 = por %p155, %p156
      %p159 = scmp.ne.s32.totalorder %s144, %s158
      %p160 = scmp.eq.s32.totalorder %s29, 0
      %p161 = por %p159, %p160
      %s163 = sadd.s32 %s162, 1
      %p166 = scmp.eq.s32.totalorder %s23, 1
      %p167 = scmp.ne.s32.totalorder %s162, %s164
      %p168 = scmp.eq.s32.totalorder %s23, 0
      %p169 = por %p167, %p168
      %p170 = scmp.ne.s32.totalorder %s162, %s164
      %p171 = scmp.eq.s32.totalorder %s28, 1
      %p172 = por %p170, %p171
      %p173 = scmp.ne.s32.totalorder %s164, %s165
      %p174 = scmp.eq.s32.totalorder %s28, 0
      %p175 = por %p173, %p174
      %p176 = scmp.ne.s32.totalorder %s164, %s165
      %p177 = scmp.eq.s32.totalorder %s29, 1
      %p178 = por %p176, %p177
      %p180 = scmp.ne.s32.totalorder %s165, %s179
      %p181 = scmp.eq.s32.totalorder %s29, 0
      %p182 = por %p180, %p181
      %s184 = sadd.s32 %s183, 1
      %p187 = scmp.eq.s32.totalorder %s23, 1
      %p188 = scmp.ne.s32.totalorder %s183, %s185
      %p189 = scmp.eq.s32.totalorder %s23, 0
      %p190 = por %p188, %p189
      %p191 = scmp.ne.s32.totalorder %s183, %s185
      %p192 = scmp.eq.s32.totalorder %s28, 1
      %p193 = por %p191, %p192
      %p194 = scmp.ne.s32.totalorder %s185, %s186
      %p195 = scmp.eq.s32.totalorder %s28, 0
      %p196 = por %p194, %p195
      %p197 = scmp.ne.s32.totalorder %s185, %s186
      %p198 = scmp.eq.s32.totalorder %s29, 1
      %p199 = por %p197, %p198
      %p201 = scmp.ne.s32.totalorder %s186, %s200
      %p202 = scmp.eq.s32.totalorder %s29, 0
      %p203 = por %p201, %p202
      %s205 = sadd.s32 %s204, 1
      %p208 = scmp.eq.s32.totalorder %s23, 1
      %p209 = scmp.ne.s32.totalorder %s204, %s206
      %p210 = scmp.eq.s32.totalorder %s23, 0
      %p211 = por %p209, %p210
      %p212 = scmp.ne.s32.totalorder %s204, %s206
      %p213 = scmp.eq.s32.totalorder %s28, 1
      %p214 = por %p212, %p213
      %p215 = scmp.ne.s32.totalorder %s206, %s207
      %p216 = scmp.eq.s32.totalorder %s28, 0
      %p217 = por %p215, %p216
      %p218 = scmp.ne.s32.totalorder %s206, %s207
      %p219 = scmp.eq.s32.totalorder %s29, 1
      %p220 = por %p218, %p219
      %p222 = scmp.ne.s32.totalorder %s207, %s221
      %p223 = scmp.eq.s32.totalorder %s29, 0
      %p224 = por %p222, %p223
      %s226 = sadd.s32 %s225, 1
      %p229 = scmp.eq.s32.totalorder %s23, 1
      %p230 = scmp.ne.s32.totalorder %s225, %s227
      %p231 = scmp.eq.s32.totalorder %s23, 0
      %p232 = por %p230, %p231
      %p233 = scmp.ne.s32.totalorder %s225, %s227
      %p234 = scmp.eq.s32.totalorder %s28, 1
      %p235 = por %p233, %p234
      %p236 = scmp.ne.s32.totalorder %s227, %s228
      %p237 = scmp.eq.s32.totalorder %s28, 0
      %p238 = por %p236, %p237
      %p239 = scmp.ne.s32.totalorder %s227, %s228
      %p240 = scmp.eq.s32.totalorder %s29, 1
      %p241 = por %p239, %p240
      %p243 = scmp.ne.s32.totalorder %s228, %s242
      %p244 = scmp.eq.s32.totalorder %s29, 0
      %p245 = por %p243, %p244
      %s247 = sadd.s32 %s246, 1
      %p250 = scmp.eq.s32.totalorder %s23, 1
      %p251 = scmp.ne.s32.totalorder %s246, %s248
      %p252 = scmp.eq.s32.totalorder %s23, 0
      %p253 = por %p251, %p252
      %p254 = scmp.ne.s32.totalorder %s246, %s248
      %p255 = scmp.eq.s32.totalorder %s28, 1
      %p256 = por %p254, %p255
      %p257 = scmp.ne.s32.totalorder %s248, %s249
      %p258 = scmp.eq.s32.totalorder %s28, 0
      %p259 = por %p257, %p258
      %p260 = scmp.ne.s32.totalorder %s248, %s249
      %p261 = scmp.eq.s32.totalorder %s29, 1
      %p262 = por %p260, %p261
      %p264 = scmp.ne.s32.totalorder %s249, %s263
      %p265 = scmp.eq.s32.totalorder %s29, 0
      %p266 = por %p264, %p265
      %s267 = ssub.s32 %s23, %s30
      %p268 = scmp.eq.s32.totalorder %s267, 0
      %s270 = sadd.s32 %s269, 1
      %s271 = scalar_select %p268, %s269, %s270
      %p274 = pneg %p268
      %p275 = scmp.eq.s32.totalorder %s23, 1
      %p276 = por %p274, %p275
      %p277 = scmp.ne.s32.totalorder %s269, %s272
      %p278 = scmp.eq.s32.totalorder %s23, 0
      %p279 = por %p277, %p278
      %p280 = scmp.ne.s32.totalorder %s269, %s272
      %p281 = scmp.eq.s32.totalorder %s28, 1
      %p282 = por %p280, %p281
      %p283 = scmp.ne.s32.totalorder %s272, %s273
      %p284 = scmp.eq.s32.totalorder %s28, 0
      %p285 = por %p283, %p284
      %p286 = scmp.ne.s32.totalorder %s272, %s273
      %p287 = scmp.eq.s32.totalorder %s29, 1
      %p288 = por %p286, %p287
      %p290 = scmp.ne.s32.totalorder %s273, %s289
      %p291 = scmp.eq.s32.totalorder %s29, 0
      %p292 = por %p290, %p291
      %p293 = scmp.le.s32.totalorder 1, %s23
      %p294 = scmp.lt.s32.totalorder %s23, 3
      %p295 = pnand %p293, %p294
      %p296 = pneg %p295
      // Predicated region
      $region9: #{tpu_custom_call.1} parent=5 // pred_check
        _
      $region10: #{tpu_custom_call.1} parent=5 // pred_check_branch
        %298 = sbr.rel (%p295) target = $region12
      $region11: #{tpu_custom_call.1} parent=5 // pred_region
        %s299 = ssub.s32 %s23, 1
        // Predicated region
        $region13: #{tpu_custom_call.1} parent=11 // pred_check
          %p300 = pneg %p70
        $region14: #{tpu_custom_call.1} parent=11 // pred_check_branch
          %302 = sbr.rel (%p300) target = $region16
        $region15: #{tpu_custom_call.1} parent=11 // pred_region
          _
        $region16: #{tpu_custom_call.1} parent=11 // pred_fallthru
          _
        // Predicated region
        $region17: #{tpu_custom_call.1} parent=11 // pred_check
          %p303 = pneg %p91
        $region18: #{tpu_custom_call.1} parent=11 // pred_check_branch
          %305 = sbr.rel (%p303) target = $region20
        $region19: #{tpu_custom_call.1} parent=11 // pred_region
          _
        $region20: #{tpu_custom_call.1} parent=11 // pred_fallthru
          _
        // Predicated region
        $region21: #{tpu_custom_call.1} parent=11 // pred_check
          %p306 = pneg %p112
        $region22: #{tpu_custom_call.1} parent=11 // pred_check_branch
          %308 = sbr.rel (%p306) target = $region24
        $region23: #{tpu_custom_call.1} parent=11 // pred_region
          _
        $region24: #{tpu_custom_call.1} parent=11 // pred_fallthru
          _
        // Predicated region
        $region25: #{tpu_custom_call.1} parent=11 // pred_check
          %p309 = pneg %p133
        $region26: #{tpu_custom_call.1} parent=11 // pred_check_branch
          %311 = sbr.rel (%p309) target = $region28
        $region27: #{tpu_custom_call.1} parent=11 // pred_region
          _
        $region28: #{tpu_custom_call.1} parent=11 // pred_fallthru
          _
        // Predicated region
        $region29: #{tpu_custom_call.1} parent=11 // pred_check
          %p312 = pneg %p154
        $region30: #{tpu_custom_call.1} parent=11 // pred_check_branch
          %314 = sbr.rel (%p312) target = $region32
        $region31: #{tpu_custom_call.1} parent=11 // pred_region
          %316 = vsyncadd [#allocation5], 0
          %s317 = sshll.u32 %s5, 4
          %s318 = int_to_ptr.hbm [resolvable:$true] %s317
          %s319 = sshll.u32 [#allocation4], 4
          %s320 = int_to_ptr.vmem [resolvable:$true] %s319
          %325 = dma.hbm_to_vmem [thread:$0]  %s318, 2048, %s320, [#allocation5], 512, 512, 32
        $region32: #{tpu_custom_call.1} parent=11 // pred_fallthru
          _
        // Predicated region
        $region33: #{tpu_custom_call.1} parent=11 // pred_check
          %p326 = pneg %p175
        $region34: #{tpu_custom_call.1} parent=11 // pred_check_branch
          %328 = sbr.rel (%p326) target = $region36
        $region35: #{tpu_custom_call.1} parent=11 // pred_region
          _
        $region36: #{tpu_custom_call.1} parent=11 // pred_fallthru
          _
        // Predicated region
        $region37: #{tpu_custom_call.1} parent=11 // pred_check
          %p329 = pneg %p196
        $region38: #{tpu_custom_call.1} parent=11 // pred_check_branch
          %331 = sbr.rel (%p329) target = $region40
        $region39: #{tpu_custom_call.1} parent=11 // pred_region
          _
        $region40: #{tpu_custom_call.1} parent=11 // pred_fallthru
          _
        // Predicated region
        $region41: #{tpu_custom_call.1} parent=11 // pred_check
          %p332 = pneg %p217
        $region42: #{tpu_custom_call.1} parent=11 // pred_check_branch
          %334 = sbr.rel (%p332) target = $region44
        $region43: #{tpu_custom_call.1} parent=11 // pred_region
          _
        $region44: #{tpu_custom_call.1} parent=11 // pred_fallthru
          _
        // Predicated region
        $region45: #{tpu_custom_call.1} parent=11 // pred_check
          %p335 = pneg %p238
        $region46: #{tpu_custom_call.1} parent=11 // pred_check_branch
          %337 = sbr.rel (%p335) target = $region48
        $region47: #{tpu_custom_call.1} parent=11 // pred_region
          _
        $region48: #{tpu_custom_call.1} parent=11 // pred_fallthru
          _
        // Predicated region
        $region49: #{tpu_custom_call.1} parent=11 // pred_check
          %p338 = pneg %p259
        $region50: #{tpu_custom_call.1} parent=11 // pred_check_branch
          %340 = sbr.rel (%p338) target = $region52
        $region51: #{tpu_custom_call.1} parent=11 // pred_region
          _
        $region52: #{tpu_custom_call.1} parent=11 // pred_fallthru
          _
      $region12: #{tpu_custom_call.1} parent=5 // pred_fallthru
        _
      %p341 = scmp.lt.s32.totalorder %s23, 2
      // Predicated region
      $region53: #{tpu_custom_call.1} parent=5 // pred_check
        %p342 = pneg %p341
      $region54: #{tpu_custom_call.1} parent=5 // pred_check_branch
        %344 = sbr.rel (%p342) target = $region56
      $region55: #{tpu_custom_call.1} parent=5 // pred_region
        // Predicated region
        $region57: #{tpu_custom_call.1} parent=55 // pred_check
          %p345 = pneg %p43
        $region58: #{tpu_custom_call.1} parent=55 // pred_check_branch
          %347 = sbr.rel (%p345) target = $region60
        $region59: #{tpu_custom_call.1} parent=55 // pred_region
          %p348 = scmp.lt.s32.totalorder %s23, 1
          %s349 = scalar_select %p348, %s23, 1
          %s350 = smul.addr %s349, 4
          %s351 = scalar_lea.vmem %s0, %s350
        $region60: #{tpu_custom_call.1} parent=55 // pred_fallthru
          _
      $region56: #{tpu_custom_call.1} parent=5 // pred_fallthru
        _
      %p352 = scmp.le.s32.totalorder 1, %s23
      %p353 = scmp.lt.s32.totalorder %s23, 3
      %p354 = pnand %p352, %p353
      %p355 = pneg %p354
      // Predicated region
      $region61: #{tpu_custom_call.1} parent=5 // pred_check
        _
      $region62: #{tpu_custom_call.1} parent=5 // pred_check_branch
        %357 = sbr.rel (%p354) target = $region64
      $region63: #{tpu_custom_call.1} parent=5 // pred_region
        %s358 = ssub.s32 %s23, 1
        // Predicated region
        $region65: #{tpu_custom_call.1} parent=63 // pred_check
          %p359 = pneg %p154
        $region66: #{tpu_custom_call.1} parent=63 // pred_check_branch
          %361 = sbr.rel (%p359) target = $region68
        $region67: #{tpu_custom_call.1} parent=63 // pred_region
          %363 = dma.done [#allocation5], 2048
        $region68: #{tpu_custom_call.1} parent=63 // pred_fallthru
          _
        %p364 = scmp.lt.s32.totalorder %s28, 1
        %s365 = scalar_select %p364, %s28, 1
        %s366 = smul.addr %s365, 4
        %s367 = scalar_lea.vmem %s0, %s366
        %p368 = pneg %p49
        %p369 = pneg %p46
        %p370 = pneg %p70
        %p371 = pneg %p67
        %p372 = pneg %p91
        %p373 = pneg %p88
        %p374 = pneg %p112
        %p375 = pneg %p109
        %p376 = pneg %p133
        %p377 = pneg %p130
        %p378 = pneg %p154
        %p379 = pneg %p151
        %p380 = pneg %p175
        %p381 = pneg %p172
        %p382 = pneg %p196
        %p383 = pneg %p193
        %p384 = pneg %p217
        %p385 = pneg %p214
        %p386 = pneg %p238
        %p387 = pneg %p235
        %p388 = pneg %p259
        %p389 = pneg %p256
        %p390 = pneg %p285
        %p391 = pneg %p282
        %s392 = sand.u32 %s272, 1
        %s393 = scalar_lea.sflag [#allocation6], %s392
        %s394 = sand.u32 %s272, 1
        %s395 = scalar_lea.vmem [#allocation7], %s394
        %p396 = scmp.lt.s32.totalorder %s28, 1
        %s397 = scalar_select %p396, %s28, 1
        %s398 = smul.addr %s397, 4
        %s399 = scalar_lea.vmem %s0, %s398
        %v400 = vld [vmem:[%s399] sm:$0xf]
        %v401 = vld [vmem:[%s1] sm:$0xf]
        %v402 = vld [vmem:[%s2] sm:$0xf]
        %v403 = vld [vmem:[%s3] sm:$0xff]
        %v404 = vld [vmem:[%s3 + $0x8] sm:$0xff]
        %406 = vset.pattern.permute.xlu0 0
        %407 = vperm.xlu0 %406, %v403
        %v408 = vpop.permute.xlu0 %407
        %411 = vset.pattern.permute.xlu0 0
        %412 = vperm.xlu0 %411, %v404
        %v413 = vpop.permute.xlu0 %412
        %v416 = vperm.slane %v400, 0
        %v417 = vperm.slane %v400, 1
        %v418 = vperm.slane %v400, 2
        %v419 = vperm.slane %v400, 3
        %v424 = vmul.f32 %v408, %v416
        %v425 = vmul.f32 %v408, %v417
        %v426 = vmul.f32 %v408, %v418
        %v427 = vmul.f32 %v408, %v419
        %v428 = vmul.f32 %v413, %v416
        %v429 = vmul.f32 %v413, %v417
        %v430 = vmul.f32 %v413, %v418
        %v431 = vmul.f32 %v413, %v419
        %v432 = vadd.f32 %v424, 0.0
        %v433 = vadd.f32 %v425, 0.0
        %v434 = vadd.f32 %v426, 0.0
        %v435 = vadd.f32 %v427, 0.0
        %v436 = vadd.f32 %v428, 0.0
        %v437 = vadd.f32 %v429, 0.0
        %v438 = vadd.f32 %v430, 0.0
        %v439 = vadd.f32 %v431, 0.0
        %440 = vset.pattern.permute.xlu0 1
        %441 = vperm.xlu0 %440, %v403
        %v442 = vpop.permute.xlu0 %441
        %444 = vset.pattern.permute.xlu0 1
        %445 = vperm.xlu0 %444, %v404
        %v446 = vpop.permute.xlu0 %445
        %v448 = vmul.f32 %v442, %v416
        %v449 = vmul.f32 %v442, %v417
        %v450 = vmul.f32 %v442, %v418
        %v451 = vmul.f32 %v442, %v419
        %v452 = vmul.f32 %v446, %v416
        %v453 = vmul.f32 %v446, %v417
        %v454 = vmul.f32 %v446, %v418
        %v455 = vmul.f32 %v446, %v419
        %464 = vrot.lane.b32.xlu0 %v448, 127
        %v465 = vpop.permute.xlu0 %464
        %466 = vrot.lane.b32.xlu0 %v449, 127
        %v467 = vpop.permute.xlu0 %466
        %468 = vrot.lane.b32.xlu0 %v450, 127
        %v469 = vpop.permute.xlu0 %468
        %470 = vrot.lane.b32.xlu0 %v451, 127
        %v471 = vpop.permute.xlu0 %470
        %472 = vrot.lane.b32.xlu0 %v452, 127
        %v473 = vpop.permute.xlu0 %472
        %474 = vrot.lane.b32.xlu0 %v453, 127
        %v475 = vpop.permute.xlu0 %474
        %476 = vrot.lane.b32.xlu0 %v454, 127
        %v477 = vpop.permute.xlu0 %476
        %478 = vrot.lane.b32.xlu0 %v455, 127
        %v479 = vpop.permute.xlu0 %478
        %vm480 = vcmask 1039360
        %v481 = vsel %vm480, %v465, %v467
        %v482 = vsel %vm480, %v467, %v469
        %v483 = vsel %vm480, %v469, %v471
        %v484 = vsel %vm480, %v473, %v475
        %v485 = vsel %vm480, %v475, %v477
        %v486 = vsel %vm480, %v477, %v479
        %v495 = vadd.f32 %v432, %v481
        %v496 = vadd.f32 %v433, %v482
        %v497 = vadd.f32 %v434, %v483
        %v498 = vadd.f32 %v435, %v471
        %v499 = vadd.f32 %v436, %v484
        %v500 = vadd.f32 %v437, %v485
        %v501 = vadd.f32 %v438, %v486
        %v502 = vadd.f32 %v439, %v479
        %503 = vset.pattern.permute.xlu0 2
        %504 = vperm.xlu0 %503, %v403
        %v505 = vpop.permute.xlu0 %504
        %507 = vset.pattern.permute.xlu0 2
        %508 = vperm.xlu0 %507, %v404
        %v509 = vpop.permute.xlu0 %508
        %v511 = vmul.f32 %v505, %v416
        %v512 = vmul.f32 %v505, %v417
        %v513 = vmul.f32 %v505, %v418
        %v514 = vmul.f32 %v505, %v419
        %v515 = vmul.f32 %v509, %v416
        %v516 = vmul.f32 %v509, %v417
        %v517 = vmul.f32 %v509, %v418
        %v518 = vmul.f32 %v509, %v419
        %527 = vrot.lane.b32.xlu0 %v511, 126
        %v528 = vpop.permute.xlu0 %527
        %529 = vrot.lane.b32.xlu0 %v512, 126
        %v530 = vpop.permute.xlu0 %529
        %531 = vrot.lane.b32.xlu0 %v513, 126
        %v532 = vpop.permute.xlu0 %531
        %533 = vrot.lane.b32.xlu0 %v514, 126
        %v534 = vpop.permute.xlu0 %533
        %535 = vrot.lane.b32.xlu0 %v515, 126
        %v536 = vpop.permute.xlu0 %535
        %537 = vrot.lane.b32.xlu0 %v516, 126
        %v538 = vpop.permute.xlu0 %537
        %539 = vrot.lane.b32.xlu0 %v517, 126
        %v540 = vpop.permute.xlu0 %539
        %541 = vrot.lane.b32.xlu0 %v518, 126
        %v542 = vpop.permute.xlu0 %541
        %vm543 = vcmask 1031168
        %v544 = vsel %vm543, %v528, %v530
        %v545 = vsel %vm543, %v530, %v532
        %v546 = vsel %vm543, %v532, %v534
        %v547 = vsel %vm543, %v536, %v538
        %v548 = vsel %vm543, %v538, %v540
        %v549 = vsel %vm543, %v540, %v542
        %v558 = vadd.f32 %v495, %v544
        %v559 = vadd.f32 %v496, %v545
        %v560 = vadd.f32 %v497, %v546
        %v561 = vadd.f32 %v498, %v534
        %v562 = vadd.f32 %v499, %v547
        %v563 = vadd.f32 %v500, %v548
        %v564 = vadd.f32 %v501, %v549
        %v565 = vadd.f32 %v502, %v542
        %566 = vset.pattern.permute.xlu0 3
        %567 = vperm.xlu0 %566, %v403
        %v568 = vpop.permute.xlu0 %567
        %570 = vset.pattern.permute.xlu0 3
        %571 = vperm.xlu0 %570, %v404
        %v572 = vpop.permute.xlu0 %571
        %v574 = vmul.f32 %v568, %v416
        %v575 = vmul.f32 %v568, %v417
        %v576 = vmul.f32 %v568, %v418
        %v577 = vmul.f32 %v568, %v419
        %v578 = vmul.f32 %v572, %v416
        %v579 = vmul.f32 %v572, %v417
        %v580 = vmul.f32 %v572, %v418
        %v581 = vmul.f32 %v572, %v419
        %590 = vrot.lane.b32.xlu0 %v574, 125
        %v591 = vpop.permute.xlu0 %590
        %592 = vrot.lane.b32.xlu0 %v575, 125
        %v593 = vpop.permute.xlu0 %592
        %594 = vrot.lane.b32.xlu0 %v576, 125
        %v595 = vpop.permute.xlu0 %594
        %596 = vrot.lane.b32.xlu0 %v577, 125
        %v597 = vpop.permute.xlu0 %596
        %598 = vrot.lane.b32.xlu0 %v578, 125
        %v599 = vpop.permute.xlu0 %598
        %600 = vrot.lane.b32.xlu0 %v579, 125
        %v601 = vpop.permute.xlu0 %600
        %602 = vrot.lane.b32.xlu0 %v580, 125
        %v603 = vpop.permute.xlu0 %602
        %604 = vrot.lane.b32.xlu0 %v581, 125
        %v605 = vpop.permute.xlu0 %604
        %vm606 = vcmask 1022976
        %v607 = vsel %vm606, %v591, %v593
        %v608 = vsel %vm606, %v593, %v595
        %v609 = vsel %vm606, %v595, %v597
        %v610 = vsel %vm606, %v599, %v601
        %v611 = vsel %vm606, %v601, %v603
        %v612 = vsel %vm606, %v603, %v605
        %v621 = vadd.f32 %v558, %v607
        %v622 = vadd.f32 %v559, %v608
        %v623 = vadd.f32 %v560, %v609
        %v624 = vadd.f32 %v561, %v597
        %v625 = vadd.f32 %v562, %v610
        %v626 = vadd.f32 %v563, %v611
        %v627 = vadd.f32 %v564, %v612
        %v628 = vadd.f32 %v565, %v605
        %629 = vset.pattern.permute.xlu0 4
        %630 = vperm.xlu0 %629, %v403
        %v631 = vpop.permute.xlu0 %630
        %633 = vset.pattern.permute.xlu0 4
        %634 = vperm.xlu0 %633, %v404
        %v635 = vpop.permute.xlu0 %634
        %v637 = vmul.f32 %v631, %v416
        %v638 = vmul.f32 %v631, %v417
        %v639 = vmul.f32 %v631, %v418
        %v640 = vmul.f32 %v631, %v419
        %v641 = vmul.f32 %v635, %v416
        %v642 = vmul.f32 %v635, %v417
        %v643 = vmul.f32 %v635, %v418
        %v644 = vmul.f32 %v635, %v419
        %653 = vrot.lane.b32.xlu0 %v637, 124
        %v654 = vpop.permute.xlu0 %653
        %655 = vrot.lane.b32.xlu0 %v638, 124
        %v656 = vpop.permute.xlu0 %655
        %657 = vrot.lane.b32.xlu0 %v639, 124
        %v658 = vpop.permute.xlu0 %657
        %659 = vrot.lane.b32.xlu0 %v640, 124
        %v660 = vpop.permute.xlu0 %659
        %661 = vrot.lane.b32.xlu0 %v641, 124
        %v662 = vpop.permute.xlu0 %661
        %663 = vrot.lane.b32.xlu0 %v642, 124
        %v664 = vpop.permute.xlu0 %663
        %665 = vrot.lane.b32.xlu0 %v643, 124
        %v666 = vpop.permute.xlu0 %665
        %667 = vrot.lane.b32.xlu0 %v644, 124
        %v668 = vpop.permute.xlu0 %667
        %vm669 = vcmask 1014784
        %v670 = vsel %vm669, %v654, %v656
        %v671 = vsel %vm669, %v656, %v658
        %v672 = vsel %vm669, %v658, %v660
        %v673 = vsel %vm669, %v662, %v664
        %v674 = vsel %vm669, %v664, %v666
        %v675 = vsel %vm669, %v666, %v668
        %v684 = vadd.f32 %v621, %v670
        %v685 = vadd.f32 %v622, %v671
        %v686 = vadd.f32 %v623, %v672
        %v687 = vadd.f32 %v624, %v660
        %v688 = vadd.f32 %v625, %v673
        %v689 = vadd.f32 %v626, %v674
        %v690 = vadd.f32 %v627, %v675
        %v691 = vadd.f32 %v628, %v668
        %692 = vset.pattern.permute.xlu0 5
        %693 = vperm.xlu0 %692, %v403
        %v694 = vpop.permute.xlu0 %693
        %696 = vset.pattern.permute.xlu0 5
        %697 = vperm.xlu0 %696, %v404
        %v698 = vpop.permute.xlu0 %697
        %v700 = vmul.f32 %v694, %v416
        %v701 = vmul.f32 %v694, %v417
        %v702 = vmul.f32 %v694, %v418
        %v703 = vmul.f32 %v694, %v419
        %v704 = vmul.f32 %v698, %v416
        %v705 = vmul.f32 %v698, %v417
        %v706 = vmul.f32 %v698, %v418
        %v707 = vmul.f32 %v698, %v419
        %716 = vrot.lane.b32.xlu0 %v700, 108
        %v717 = vpop.permute.xlu0 %716
        %718 = vrot.lane.b32.xlu0 %v701, 108
        %v719 = vpop.permute.xlu0 %718
        %720 = vrot.lane.b32.xlu0 %v702, 108
        %v721 = vpop.permute.xlu0 %720
        %722 = vrot.lane.b32.xlu0 %v703, 108
        %v723 = vpop.permute.xlu0 %722
        %724 = vrot.lane.b32.xlu0 %v704, 108
        %v725 = vpop.permute.xlu0 %724
        %726 = vrot.lane.b32.xlu0 %v705, 108
        %v727 = vpop.permute.xlu0 %726
        %728 = vrot.lane.b32.xlu0 %v706, 108
        %v729 = vpop.permute.xlu0 %728
        %730 = vrot.lane.b32.xlu0 %v707, 108
        %v731 = vpop.permute.xlu0 %730
        %vm732 = vcmask 883712
        %v733 = vsel %vm732, %v717, %v719
        %v734 = vsel %vm732, %v719, %v721
        %v735 = vsel %vm732, %v721, %v723
        %v736 = vsel %vm732, %v725, %v727
        %v737 = vsel %vm732, %v727, %v729
        %v738 = vsel %vm732, %v729, %v731
        %v747 = vadd.f32 %v684, %v733
        %v748 = vadd.f32 %v685, %v734
        %v749 = vadd.f32 %v686, %v735
        %v750 = vadd.f32 %v687, %v723
        %v751 = vadd.f32 %v688, %v736
        %v752 = vadd.f32 %v689, %v737
        %v753 = vadd.f32 %v690, %v738
        %v754 = vadd.f32 %v691, %v731
        %755 = vset.pattern.permute.xlu0 6
        %756 = vperm.xlu0 %755, %v403
        %v757 = vpop.permute.xlu0 %756
        %759 = vset.pattern.permute.xlu0 6
        %760 = vperm.xlu0 %759, %v404
        %v761 = vpop.permute.xlu0 %760
        %v763 = vmul.f32 %v757, %v416
        %v764 = vmul.f32 %v757, %v417
        %v765 = vmul.f32 %v757, %v418
        %v766 = vmul.f32 %v757, %v419
        %v767 = vmul.f32 %v761, %v416
        %v768 = vmul.f32 %v761, %v417
        %v769 = vmul.f32 %v761, %v418
        %v770 = vmul.f32 %v761, %v419
        %779 = vrot.lane.b32.xlu0 %v763, 107
        %v780 = vpop.permute.xlu0 %779
        %781 = vrot.lane.b32.xlu0 %v764, 107
        %v782 = vpop.permute.xlu0 %781
        %783 = vrot.lane.b32.xlu0 %v765, 107
        %v784 = vpop.permute.xlu0 %783
        %785 = vrot.lane.b32.xlu0 %v766, 107
        %v786 = vpop.permute.xlu0 %785
        %787 = vrot.lane.b32.xlu0 %v767, 107
        %v788 = vpop.permute.xlu0 %787
        %789 = vrot.lane.b32.xlu0 %v768, 107
        %v790 = vpop.permute.xlu0 %789
        %791 = vrot.lane.b32.xlu0 %v769, 107
        %v792 = vpop.permute.xlu0 %791
        %793 = vrot.lane.b32.xlu0 %v770, 107
        %v794 = vpop.permute.xlu0 %793
        %vm795 = vcmask 875520
        %v796 = vsel %vm795, %v780, %v782
        %v797 = vsel %vm795, %v782, %v784
        %v798 = vsel %vm795, %v784, %v786
        %v799 = vsel %vm795, %v788, %v790
        %v800 = vsel %vm795, %v790, %v792
        %v801 = vsel %vm795, %v792, %v794
        %v810 = vadd.f32 %v747, %v796
        %v811 = vadd.f32 %v748, %v797
        %v812 = vadd.f32 %v749, %v798
        %v813 = vadd.f32 %v750, %v786
        %v814 = vadd.f32 %v751, %v799
        %v815 = vadd.f32 %v752, %v800
        %v816 = vadd.f32 %v753, %v801
        %v817 = vadd.f32 %v754, %v794
        %818 = vset.pattern.permute.xlu0 7
        %819 = vperm.xlu0 %818, %v403
        %v820 = vpop.permute.xlu0 %819
        %822 = vset.pattern.permute.xlu0 7
        %823 = vperm.xlu0 %822, %v404
        %v824 = vpop.permute.xlu0 %823
        %v826 = vmul.f32 %v820, %v416
        %v827 = vmul.f32 %v820, %v417
        %v828 = vmul.f32 %v820, %v418
        %v829 = vmul.f32 %v820, %v419
        %v830 = vmul.f32 %v824, %v416
        %v831 = vmul.f32 %v824, %v417
        %v832 = vmul.f32 %v824, %v418
        %v833 = vmul.f32 %v824, %v419
        %842 = vrot.lane.b32.xlu0 %v826, 106
        %v843 = vpop.permute.xlu0 %842
        %844 = vrot.lane.b32.xlu0 %v827, 106
        %v845 = vpop.permute.xlu0 %844
        %846 = vrot.lane.b32.xlu0 %v828, 106
        %v847 = vpop.permute.xlu0 %846
        %848 = vrot.lane.b32.xlu0 %v829, 106
        %v849 = vpop.permute.xlu0 %848
        %850 = vrot.lane.b32.xlu0 %v830, 106
        %v851 = vpop.permute.xlu0 %850
        %852 = vrot.lane.b32.xlu0 %v831, 106
        %v853 = vpop.permute.xlu0 %852
        %854 = vrot.lane.b32.xlu0 %v832, 106
        %v855 = vpop.permute.xlu0 %854
        %856 = vrot.lane.b32.xlu0 %v833, 106
        %v857 = vpop.permute.xlu0 %856
        %vm858 = vcmask 867328
        %v859 = vsel %vm858, %v843, %v845
        %v860 = vsel %vm858, %v845, %v847
        %v861 = vsel %vm858, %v847, %v849
        %v862 = vsel %vm858, %v851, %v853
        %v863 = vsel %vm858, %v853, %v855
        %v864 = vsel %vm858, %v855, %v857
        %v873 = vadd.f32 %v810, %v859
        %v874 = vadd.f32 %v811, %v860
        %v875 = vadd.f32 %v812, %v861
        %v876 = vadd.f32 %v813, %v849
        %v877 = vadd.f32 %v814, %v862
        %v878 = vadd.f32 %v815, %v863
        %v879 = vadd.f32 %v816, %v864
        %v880 = vadd.f32 %v817, %v857
        %881 = vset.pattern.permute.xlu0 8
        %882 = vperm.xlu0 %881, %v403
        %v883 = vpop.permute.xlu0 %882
        %885 = vset.pattern.permute.xlu0 8
        %886 = vperm.xlu0 %885, %v404
        %v887 = vpop.permute.xlu0 %886
        %v889 = vmul.f32 %v883, %v416
        %v890 = vmul.f32 %v883, %v417
        %v891 = vmul.f32 %v883, %v418
        %v892 = vmul.f32 %v883, %v419
        %v893 = vmul.f32 %v887, %v416
        %v894 = vmul.f32 %v887, %v417
        %v895 = vmul.f32 %v887, %v418
        %v896 = vmul.f32 %v887, %v419
        %905 = vrot.lane.b32.xlu0 %v889, 105
        %v906 = vpop.permute.xlu0 %905
        %907 = vrot.lane.b32.xlu0 %v890, 105
        %v908 = vpop.permute.xlu0 %907
        %909 = vrot.lane.b32.xlu0 %v891, 105
        %v910 = vpop.permute.xlu0 %909
        %911 = vrot.lane.b32.xlu0 %v892, 105
        %v912 = vpop.permute.xlu0 %911
        %913 = vrot.lane.b32.xlu0 %v893, 105
        %v914 = vpop.permute.xlu0 %913
        %915 = vrot.lane.b32.xlu0 %v894, 105
        %v916 = vpop.permute.xlu0 %915
        %917 = vrot.lane.b32.xlu0 %v895, 105
        %v918 = vpop.permute.xlu0 %917
        %919 = vrot.lane.b32.xlu0 %v896, 105
        %v920 = vpop.permute.xlu0 %919
        %vm921 = vcmask 859136
        %v922 = vsel %vm921, %v906, %v908
        %v923 = vsel %vm921, %v908, %v910
        %v924 = vsel %vm921, %v910, %v912
        %v925 = vsel %vm921, %v914, %v916
        %v926 = vsel %vm921, %v916, %v918
        %v927 = vsel %vm921, %v918, %v920
        %v936 = vadd.f32 %v873, %v922
        %v937 = vadd.f32 %v874, %v923
        %v938 = vadd.f32 %v875, %v924
        %v939 = vadd.f32 %v876, %v912
        %v940 = vadd.f32 %v877, %v925
        %v941 = vadd.f32 %v878, %v926
        %v942 = vadd.f32 %v879, %v927
        %v943 = vadd.f32 %v880, %v920
        %944 = vset.pattern.permute.xlu0 9
        %945 = vperm.xlu0 %944, %v403
        %v946 = vpop.permute.xlu0 %945
        %948 = vset.pattern.permute.xlu0 9
        %949 = vperm.xlu0 %948, %v404
        %v950 = vpop.permute.xlu0 %949
        %v952 = vmul.f32 %v946, %v416
        %v953 = vmul.f32 %v946, %v417
        %v954 = vmul.f32 %v946, %v418
        %v955 = vmul.f32 %v946, %v419
        %v956 = vmul.f32 %v950, %v416
        %v957 = vmul.f32 %v950, %v417
        %v958 = vmul.f32 %v950, %v418
        %v959 = vmul.f32 %v950, %v419
        %968 = vrot.lane.b32.xlu0 %v952, 104
        %v969 = vpop.permute.xlu0 %968
        %970 = vrot.lane.b32.xlu0 %v953, 104
        %v971 = vpop.permute.xlu0 %970
        %972 = vrot.lane.b32.xlu0 %v954, 104
        %v973 = vpop.permute.xlu0 %972
        %974 = vrot.lane.b32.xlu0 %v955, 104
        %v975 = vpop.permute.xlu0 %974
        %976 = vrot.lane.b32.xlu0 %v956, 104
        %v977 = vpop.permute.xlu0 %976
        %978 = vrot.lane.b32.xlu0 %v957, 104
        %v979 = vpop.permute.xlu0 %978
        %980 = vrot.lane.b32.xlu0 %v958, 104
        %v981 = vpop.permute.xlu0 %980
        %982 = vrot.lane.b32.xlu0 %v959, 104
        %v983 = vpop.permute.xlu0 %982
        %vm984 = vcmask 850944
        %v985 = vsel %vm984, %v969, %v971
        %v986 = vsel %vm984, %v971, %v973
        %v987 = vsel %vm984, %v973, %v975
        %v988 = vsel %vm984, %v977, %v979
        %v989 = vsel %vm984, %v979, %v981
        %v990 = vsel %vm984, %v981, %v983
        %v999 = vadd.f32 %v936, %v985
        %v1000 = vadd.f32 %v937, %v986
        %v1001 = vadd.f32 %v938, %v987
        %v1002 = vadd.f32 %v939, %v975
        %v1003 = vadd.f32 %v940, %v988
        %v1004 = vadd.f32 %v941, %v989
        %v1005 = vadd.f32 %v942, %v990
        %v1006 = vadd.f32 %v943, %v983
        %1007 = vset.pattern.permute.xlu0 10
        %1008 = vperm.xlu0 %1007, %v403
        %v1009 = vpop.permute.xlu0 %1008
        %1011 = vset.pattern.permute.xlu0 10
        %1012 = vperm.xlu0 %1011, %v404
        %v1013 = vpop.permute.xlu0 %1012
        %v1015 = vmul.f32 %v1009, %v416
        %v1016 = vmul.f32 %v1009, %v417
        %v1017 = vmul.f32 %v1009, %v418
        %v1018 = vmul.f32 %v1009, %v419
        %v1019 = vmul.f32 %v1013, %v416
        %v1020 = vmul.f32 %v1013, %v417
        %v1021 = vmul.f32 %v1013, %v418
        %v1022 = vmul.f32 %v1013, %v419
        %1031 = vrot.lane.b32.xlu0 %v1015, 88
        %v1032 = vpop.permute.xlu0 %1031
        %1033 = vrot.lane.b32.xlu0 %v1016, 88
        %v1034 = vpop.permute.xlu0 %1033
        %1035 = vrot.lane.b32.xlu0 %v1017, 88
        %v1036 = vpop.permute.xlu0 %1035
        %1037 = vrot.lane.b32.xlu0 %v1018, 88
        %v1038 = vpop.permute.xlu0 %1037
        %1039 = vrot.lane.b32.xlu0 %v1019, 88
        %v1040 = vpop.permute.xlu0 %1039
        %1041 = vrot.lane.b32.xlu0 %v1020, 88
        %v1042 = vpop.permute.xlu0 %1041
        %1043 = vrot.lane.b32.xlu0 %v1021, 88
        %v1044 = vpop.permute.xlu0 %1043
        %1045 = vrot.lane.b32.xlu0 %v1022, 88
        %v1046 = vpop.permute.xlu0 %1045
        %vm1047 = vcmask 719872
        %v1048 = vsel %vm1047, %v1032, %v1034
        %v1049 = vsel %vm1047, %v1034, %v1036
        %v1050 = vsel %vm1047, %v1036, %v1038
        %v1051 = vsel %vm1047, %v1040, %v1042
        %v1052 = vsel %vm1047, %v1042, %v1044
        %v1053 = vsel %vm1047, %v1044, %v1046
        %v1062 = vadd.f32 %v999, %v1048
        %v1063 = vadd.f32 %v1000, %v1049
        %v1064 = vadd.f32 %v1001, %v1050
        %v1065 = vadd.f32 %v1002, %v1038
        %v1066 = vadd.f32 %v1003, %v1051
        %v1067 = vadd.f32 %v1004, %v1052
        %v1068 = vadd.f32 %v1005, %v1053
        %v1069 = vadd.f32 %v1006, %v1046
        %1070 = vset.pattern.permute.xlu0 11
        %1071 = vperm.xlu0 %1070, %v403
        %v1072 = vpop.permute.xlu0 %1071
        %1074 = vset.pattern.permute.xlu0 11
        %1075 = vperm.xlu0 %1074, %v404
        %v1076 = vpop.permute.xlu0 %1075
        %v1078 = vmul.f32 %v1072, %v416
        %v1079 = vmul.f32 %v1072, %v417
        %v1080 = vmul.f32 %v1072, %v418
        %v1081 = vmul.f32 %v1072, %v419
        %v1082 = vmul.f32 %v1076, %v416
        %v1083 = vmul.f32 %v1076, %v417
        %v1084 = vmul.f32 %v1076, %v418
        %v1085 = vmul.f32 %v1076, %v419
        %1094 = vrot.lane.b32.xlu0 %v1078, 87
        %v1095 = vpop.permute.xlu0 %1094
        %1096 = vrot.lane.b32.xlu0 %v1079, 87
        %v1097 = vpop.permute.xlu0 %1096
        %1098 = vrot.lane.b32.xlu0 %v1080, 87
        %v1099 = vpop.permute.xlu0 %1098
        %1100 = vrot.lane.b32.xlu0 %v1081, 87
        %v1101 = vpop.permute.xlu0 %1100
        %1102 = vrot.lane.b32.xlu0 %v1082, 87
        %v1103 = vpop.permute.xlu0 %1102
        %1104 = vrot.lane.b32.xlu0 %v1083, 87
        %v1105 = vpop.permute.xlu0 %1104
        %1106 = vrot.lane.b32.xlu0 %v1084, 87
        %v1107 = vpop.permute.xlu0 %1106
        %1108 = vrot.lane.b32.xlu0 %v1085, 87
        %v1109 = vpop.permute.xlu0 %1108
        %vm1110 = vcmask 711680
        %v1111 = vsel %vm1110, %v1095, %v1097
        %v1112 = vsel %vm1110, %v1097, %v1099
        %v1113 = vsel %vm1110, %v1099, %v1101
        %v1114 = vsel %vm1110, %v1103, %v1105
        %v1115 = vsel %vm1110, %v1105, %v1107
        %v1116 = vsel %vm1110, %v1107, %v1109
        %v1125 = vadd.f32 %v1062, %v1111
        %v1126 = vadd.f32 %v1063, %v1112
        %v1127 = vadd.f32 %v1064, %v1113
        %v1128 = vadd.f32 %v1065, %v1101
        %v1129 = vadd.f32 %v1066, %v1114
        %v1130 = vadd.f32 %v1067, %v1115
        %v1131 = vadd.f32 %v1068, %v1116
        %v1132 = vadd.f32 %v1069, %v1109
        %1133 = vset.pattern.permute.xlu0 12
        %1134 = vperm.xlu0 %1133, %v403
        %v1135 = vpop.permute.xlu0 %1134
        %1137 = vset.pattern.permute.xlu0 12
        %1138 = vperm.xlu0 %1137, %v404
        %v1139 = vpop.permute.xlu0 %1138
        %v1141 = vmul.f32 %v1135, %v416
        %v1142 = vmul.f32 %v1135, %v417
        %v1143 = vmul.f32 %v1135, %v418
        %v1144 = vmul.f32 %v1135, %v419
        %v1145 = vmul.f32 %v1139, %v416
        %v1146 = vmul.f32 %v1139, %v417
        %v1147 = vmul.f32 %v1139, %v418
        %v1148 = vmul.f32 %v1139, %v419
        %1157 = vrot.lane.b32.xlu0 %v1141, 86
        %v1158 = vpop.permute.xlu0 %1157
        %1159 = vrot.lane.b32.xlu0 %v1142, 86
        %v1160 = vpop.permute.xlu0 %1159
        %1161 = vrot.lane.b32.xlu0 %v1143, 86
        %v1162 = vpop.permute.xlu0 %1161
        %1163 = vrot.lane.b32.xlu0 %v1144, 86
        %v1164 = vpop.permute.xlu0 %1163
        %1165 = vrot.lane.b32.xlu0 %v1145, 86
        %v1166 = vpop.permute.xlu0 %1165
        %1167 = vrot.lane.b32.xlu0 %v1146, 86
        %v1168 = vpop.permute.xlu0 %1167
        %1169 = vrot.lane.b32.xlu0 %v1147, 86
        %v1170 = vpop.permute.xlu0 %1169
        %1171 = vrot.lane.b32.xlu0 %v1148, 86
        %v1172 = vpop.permute.xlu0 %1171
        %vm1173 = vcmask 703488
        %v1174 = vsel %vm1173, %v1158, %v1160
        %v1175 = vsel %vm1173, %v1160, %v1162
        %v1176 = vsel %vm1173, %v1162, %v1164
        %v1177 = vsel %vm1173, %v1166, %v1168
        %v1178 = vsel %vm1173, %v1168, %v1170
        %v1179 = vsel %vm1173, %v1170, %v1172
        %v1188 = vadd.f32 %v1125, %v1174
        %v1189 = vadd.f32 %v1126, %v1175
        %v1190 = vadd.f32 %v1127, %v1176
        %v1191 = vadd.f32 %v1128, %v1164
        %v1192 = vadd.f32 %v1129, %v1177
        %v1193 = vadd.f32 %v1130, %v1178
        %v1194 = vadd.f32 %v1131, %v1179
        %v1195 = vadd.f32 %v1132, %v1172
        %1196 = vset.pattern.permute.xlu0 13
        %1197 = vperm.xlu0 %1196, %v403
        %v1198 = vpop.permute.xlu0 %1197
        %1200 = vset.pattern.permute.xlu0 13
        %1201 = vperm.xlu0 %1200, %v404
        %v1202 = vpop.permute.xlu0 %1201
        %v1204 = vmul.f32 %v1198, %v416
        %v1205 = vmul.f32 %v1198, %v417
        %v1206 = vmul.f32 %v1198, %v418
        %v1207 = vmul.f32 %v1198, %v419
        %v1208 = vmul.f32 %v1202, %v416
        %v1209 = vmul.f32 %v1202, %v417
        %v1210 = vmul.f32 %v1202, %v418
        %v1211 = vmul.f32 %v1202, %v419
        %1220 = vrot.lane.b32.xlu0 %v1204, 85
        %v1221 = vpop.permute.xlu0 %1220
        %1222 = vrot.lane.b32.xlu0 %v1205, 85
        %v1223 = vpop.permute.xlu0 %1222
        %1224 = vrot.lane.b32.xlu0 %v1206, 85
        %v1225 = vpop.permute.xlu0 %1224
        %1226 = vrot.lane.b32.xlu0 %v1207, 85
        %v1227 = vpop.permute.xlu0 %1226
        %1228 = vrot.lane.b32.xlu0 %v1208, 85
        %v1229 = vpop.permute.xlu0 %1228
        %1230 = vrot.lane.b32.xlu0 %v1209, 85
        %v1231 = vpop.permute.xlu0 %1230
        %1232 = vrot.lane.b32.xlu0 %v1210, 85
        %v1233 = vpop.permute.xlu0 %1232
        %1234 = vrot.lane.b32.xlu0 %v1211, 85
        %v1235 = vpop.permute.xlu0 %1234
        %vm1236 = vcmask 695296
        %v1237 = vsel %vm1236, %v1221, %v1223
        %v1238 = vsel %vm1236, %v1223, %v1225
        %v1239 = vsel %vm1236, %v1225, %v1227
        %v1240 = vsel %vm1236, %v1229, %v1231
        %v1241 = vsel %vm1236, %v1231, %v1233
        %v1242 = vsel %vm1236, %v1233, %v1235
        %v1251 = vadd.f32 %v1188, %v1237
        %v1252 = vadd.f32 %v1189, %v1238
        %v1253 = vadd.f32 %v1190, %v1239
        %v1254 = vadd.f32 %v1191, %v1227
        %v1255 = vadd.f32 %v1192, %v1240
        %v1256 = vadd.f32 %v1193, %v1241
        %v1257 = vadd.f32 %v1194, %v1242
        %v1258 = vadd.f32 %v1195, %v1235
        %1259 = vset.pattern.permute.xlu0 14
        %1260 = vperm.xlu0 %1259, %v403
        %v1261 = vpop.permute.xlu0 %1260
        %1263 = vset.pattern.permute.xlu0 14
        %1264 = vperm.xlu0 %1263, %v404
        %v1265 = vpop.permute.xlu0 %1264
        %v1267 = vmul.f32 %v1261, %v416
        %v1268 = vmul.f32 %v1261, %v417
        %v1269 = vmul.f32 %v1261, %v418
        %v1270 = vmul.f32 %v1261, %v419
        %v1271 = vmul.f32 %v1265, %v416
        %v1272 = vmul.f32 %v1265, %v417
        %v1273 = vmul.f32 %v1265, %v418
        %v1274 = vmul.f32 %v1265, %v419
        %1283 = vrot.lane.b32.xlu0 %v1267, 84
        %v1284 = vpop.permute.xlu0 %1283
        %1285 = vrot.lane.b32.xlu0 %v1268, 84
        %v1286 = vpop.permute.xlu0 %1285
        %1287 = vrot.lane.b32.xlu0 %v1269, 84
        %v1288 = vpop.permute.xlu0 %1287
        %1289 = vrot.lane.b32.xlu0 %v1270, 84
        %v1290 = vpop.permute.xlu0 %1289
        %1291 = vrot.lane.b32.xlu0 %v1271, 84
        %v1292 = vpop.permute.xlu0 %1291
        %1293 = vrot.lane.b32.xlu0 %v1272, 84
        %v1294 = vpop.permute.xlu0 %1293
        %1295 = vrot.lane.b32.xlu0 %v1273, 84
        %v1296 = vpop.permute.xlu0 %1295
        %1297 = vrot.lane.b32.xlu0 %v1274, 84
        %v1298 = vpop.permute.xlu0 %1297
        %vm1299 = vcmask 687104
        %v1300 = vsel %vm1299, %v1284, %v1286
        %v1301 = vsel %vm1299, %v1286, %v1288
        %v1302 = vsel %vm1299, %v1288, %v1290
        %v1303 = vsel %vm1299, %v1292, %v1294
        %v1304 = vsel %vm1299, %v1294, %v1296
        %v1305 = vsel %vm1299, %v1296, %v1298
        %v1314 = vadd.f32 %v1251, %v1300
        %v1315 = vadd.f32 %v1252, %v1301
        %v1316 = vadd.f32 %v1253, %v1302
        %v1317 = vadd.f32 %v1254, %v1290
        %v1318 = vadd.f32 %v1255, %v1303
        %v1319 = vadd.f32 %v1256, %v1304
        %v1320 = vadd.f32 %v1257, %v1305
        %v1321 = vadd.f32 %v1258, %v1298
        %1322 = vset.pattern.permute.xlu0 15
        %1323 = vperm.xlu0 %1322, %v403
        %v1324 = vpop.permute.xlu0 %1323
        %1326 = vset.pattern.permute.xlu0 15
        %1327 = vperm.xlu0 %1326, %v404
        %v1328 = vpop.permute.xlu0 %1327
        %v1330 = vmul.f32 %v1324, %v416
        %v1331 = vmul.f32 %v1324, %v417
        %v1332 = vmul.f32 %v1324, %v418
        %v1333 = vmul.f32 %v1324, %v419
        %v1334 = vmul.f32 %v1328, %v416
        %v1335 = vmul.f32 %v1328, %v417
        %v1336 = vmul.f32 %v1328, %v418
        %v1337 = vmul.f32 %v1328, %v419
        %1346 = vrot.lane.b32.xlu0 %v1330, 68
        %v1347 = vpop.permute.xlu0 %1346
        %1348 = vrot.lane.b32.xlu0 %v1331, 68
        %v1349 = vpop.permute.xlu0 %1348
        %1350 = vrot.lane.b32.xlu0 %v1332, 68
        %v1351 = vpop.permute.xlu0 %1350
        %1352 = vrot.lane.b32.xlu0 %v1333, 68
        %v1353 = vpop.permute.xlu0 %1352
        %1354 = vrot.lane.b32.xlu0 %v1334, 68
        %v1355 = vpop.permute.xlu0 %1354
        %1356 = vrot.lane.b32.xlu0 %v1335, 68
        %v1357 = vpop.permute.xlu0 %1356
        %1358 = vrot.lane.b32.xlu0 %v1336, 68
        %v1359 = vpop.permute.xlu0 %1358
        %1360 = vrot.lane.b32.xlu0 %v1337, 68
        %v1361 = vpop.permute.xlu0 %1360
        %vm1362 = vcmask 556032
        %v1363 = vsel %vm1362, %v1347, %v1349
        %v1364 = vsel %vm1362, %v1349, %v1351
        %v1365 = vsel %vm1362, %v1351, %v1353
        %v1366 = vsel %vm1362, %v1355, %v1357
        %v1367 = vsel %vm1362, %v1357, %v1359
        %v1368 = vsel %vm1362, %v1359, %v1361
        %v1377 = vadd.f32 %v1314, %v1363
        %v1378 = vadd.f32 %v1315, %v1364
        %v1379 = vadd.f32 %v1316, %v1365
        %v1380 = vadd.f32 %v1317, %v1353
        %v1381 = vadd.f32 %v1318, %v1366
        %v1382 = vadd.f32 %v1319, %v1367
        %v1383 = vadd.f32 %v1320, %v1368
        %v1384 = vadd.f32 %v1321, %v1361
        %1385 = vset.pattern.permute.xlu0 16
        %1386 = vperm.xlu0 %1385, %v403
        %v1387 = vpop.permute.xlu0 %1386
        %1389 = vset.pattern.permute.xlu0 16
        %1390 = vperm.xlu0 %1389, %v404
        %v1391 = vpop.permute.xlu0 %1390
        %v1393 = vmul.f32 %v1387, %v416
        %v1394 = vmul.f32 %v1387, %v417
        %v1395 = vmul.f32 %v1387, %v418
        %v1396 = vmul.f32 %v1387, %v419
        %v1397 = vmul.f32 %v1391, %v416
        %v1398 = vmul.f32 %v1391, %v417
        %v1399 = vmul.f32 %v1391, %v418
        %v1400 = vmul.f32 %v1391, %v419
        %1409 = vrot.lane.b32.xlu0 %v1393, 67
        %v1410 = vpop.permute.xlu0 %1409
        %1411 = vrot.lane.b32.xlu0 %v1394, 67
        %v1412 = vpop.permute.xlu0 %1411
        %1413 = vrot.lane.b32.xlu0 %v1395, 67
        %v1414 = vpop.permute.xlu0 %1413
        %1415 = vrot.lane.b32.xlu0 %v1396, 67
        %v1416 = vpop.permute.xlu0 %1415
        %1417 = vrot.lane.b32.xlu0 %v1397, 67
        %v1418 = vpop.permute.xlu0 %1417
        %1419 = vrot.lane.b32.xlu0 %v1398, 67
        %v1420 = vpop.permute.xlu0 %1419
        %1421 = vrot.lane.b32.xlu0 %v1399, 67
        %v1422 = vpop.permute.xlu0 %1421
        %1423 = vrot.lane.b32.xlu0 %v1400, 67
        %v1424 = vpop.permute.xlu0 %1423
        %vm1425 = vcmask 547840
        %v1426 = vsel %vm1425, %v1410, %v1412
        %v1427 = vsel %vm1425, %v1412, %v1414
        %v1428 = vsel %vm1425, %v1414, %v1416
        %v1429 = vsel %vm1425, %v1418, %v1420
        %v1430 = vsel %vm1425, %v1420, %v1422
        %v1431 = vsel %vm1425, %v1422, %v1424
        %v1440 = vadd.f32 %v1377, %v1426
        %v1441 = vadd.f32 %v1378, %v1427
        %v1442 = vadd.f32 %v1379, %v1428
        %v1443 = vadd.f32 %v1380, %v1416
        %v1444 = vadd.f32 %v1381, %v1429
        %v1445 = vadd.f32 %v1382, %v1430
        %v1446 = vadd.f32 %v1383, %v1431
        %v1447 = vadd.f32 %v1384, %v1424
        %1448 = vset.pattern.permute.xlu0 17
        %1449 = vperm.xlu0 %1448, %v403
        %v1450 = vpop.permute.xlu0 %1449
        %1452 = vset.pattern.permute.xlu0 17
        %1453 = vperm.xlu0 %1452, %v404
        %v1454 = vpop.permute.xlu0 %1453
        %v1456 = vmul.f32 %v1450, %v416
        %v1457 = vmul.f32 %v1450, %v417
        %v1458 = vmul.f32 %v1450, %v418
        %v1459 = vmul.f32 %v1450, %v419
        %v1460 = vmul.f32 %v1454, %v416
        %v1461 = vmul.f32 %v1454, %v417
        %v1462 = vmul.f32 %v1454, %v418
        %v1463 = vmul.f32 %v1454, %v419
        %1472 = vrot.lane.b32.xlu0 %v1456, 66
        %v1473 = vpop.permute.xlu0 %1472
        %1474 = vrot.lane.b32.xlu0 %v1457, 66
        %v1475 = vpop.permute.xlu0 %1474
        %1476 = vrot.lane.b32.xlu0 %v1458, 66
        %v1477 = vpop.permute.xlu0 %1476
        %1478 = vrot.lane.b32.xlu0 %v1459, 66
        %v1479 = vpop.permute.xlu0 %1478
        %1480 = vrot.lane.b32.xlu0 %v1460, 66
        %v1481 = vpop.permute.xlu0 %1480
        %1482 = vrot.lane.b32.xlu0 %v1461, 66
        %v1483 = vpop.permute.xlu0 %1482
        %1484 = vrot.lane.b32.xlu0 %v1462, 66
        %v1485 = vpop.permute.xlu0 %1484
        %1486 = vrot.lane.b32.xlu0 %v1463, 66
        %v1487 = vpop.permute.xlu0 %1486
        %vm1488 = vcmask 539648
        %v1489 = vsel %vm1488, %v1473, %v1475
        %v1490 = vsel %vm1488, %v1475, %v1477
        %v1491 = vsel %vm1488, %v1477, %v1479
        %v1492 = vsel %vm1488, %v1481, %v1483
        %v1493 = vsel %vm1488, %v1483, %v1485
        %v1494 = vsel %vm1488, %v1485, %v1487
        %v1503 = vadd.f32 %v1440, %v1489
        %v1504 = vadd.f32 %v1441, %v1490
        %v1505 = vadd.f32 %v1442, %v1491
        %v1506 = vadd.f32 %v1443, %v1479
        %v1507 = vadd.f32 %v1444, %v1492
        %v1508 = vadd.f32 %v1445, %v1493
        %v1509 = vadd.f32 %v1446, %v1494
        %v1510 = vadd.f32 %v1447, %v1487
        %1511 = vset.pattern.permute.xlu0 18
        %1512 = vperm.xlu0 %1511, %v403
        %v1513 = vpop.permute.xlu0 %1512
        %1515 = vset.pattern.permute.xlu0 18
        %1516 = vperm.xlu0 %1515, %v404
        %v1517 = vpop.permute.xlu0 %1516
        %v1519 = vmul.f32 %v1513, %v416
        %v1520 = vmul.f32 %v1513, %v417
        %v1521 = vmul.f32 %v1513, %v418
        %v1522 = vmul.f32 %v1513, %v419
        %v1523 = vmul.f32 %v1517, %v416
        %v1524 = vmul.f32 %v1517, %v417
        %v1525 = vmul.f32 %v1517, %v418
        %v1526 = vmul.f32 %v1517, %v419
        %1535 = vrot.lane.b32.xlu0 %v1519, 65
        %v1536 = vpop.permute.xlu0 %1535
        %1537 = vrot.lane.b32.xlu0 %v1520, 65
        %v1538 = vpop.permute.xlu0 %1537
        %1539 = vrot.lane.b32.xlu0 %v1521, 65
        %v1540 = vpop.permute.xlu0 %1539
        %1541 = vrot.lane.b32.xlu0 %v1522, 65
        %v1542 = vpop.permute.xlu0 %1541
        %1543 = vrot.lane.b32.xlu0 %v1523, 65
        %v1544 = vpop.permute.xlu0 %1543
        %1545 = vrot.lane.b32.xlu0 %v1524, 65
        %v1546 = vpop.permute.xlu0 %1545
        %1547 = vrot.lane.b32.xlu0 %v1525, 65
        %v1548 = vpop.permute.xlu0 %1547
        %1549 = vrot.lane.b32.xlu0 %v1526, 65
        %v1550 = vpop.permute.xlu0 %1549
        %vm1551 = vcmask 531456
        %v1552 = vsel %vm1551, %v1536, %v1538
        %v1553 = vsel %vm1551, %v1538, %v1540
        %v1554 = vsel %vm1551, %v1540, %v1542
        %v1555 = vsel %vm1551, %v1544, %v1546
        %v1556 = vsel %vm1551, %v1546, %v1548
        %v1557 = vsel %vm1551, %v1548, %v1550
        %v1566 = vadd.f32 %v1503, %v1552
        %v1567 = vadd.f32 %v1504, %v1553
        %v1568 = vadd.f32 %v1505, %v1554
        %v1569 = vadd.f32 %v1506, %v1542
        %v1570 = vadd.f32 %v1507, %v1555
        %v1571 = vadd.f32 %v1508, %v1556
        %v1572 = vadd.f32 %v1509, %v1557
        %v1573 = vadd.f32 %v1510, %v1550
        %1574 = vset.pattern.permute.xlu0 19
        %1575 = vperm.xlu0 %1574, %v403
        %v1576 = vpop.permute.xlu0 %1575
        %1578 = vset.pattern.permute.xlu0 19
        %1579 = vperm.xlu0 %1578, %v404
        %v1580 = vpop.permute.xlu0 %1579
        %v1582 = vmul.f32 %v1576, %v416
        %v1583 = vmul.f32 %v1576, %v417
        %v1584 = vmul.f32 %v1576, %v418
        %v1585 = vmul.f32 %v1576, %v419
        %v1586 = vmul.f32 %v1580, %v416
        %v1587 = vmul.f32 %v1580, %v417
        %v1588 = vmul.f32 %v1580, %v418
        %v1589 = vmul.f32 %v1580, %v419
        %1598 = vrot.lane.b32.xlu0 %v1582, 64
        %v1599 = vpop.permute.xlu0 %1598
        %1600 = vrot.lane.b32.xlu0 %v1583, 64
        %v1601 = vpop.permute.xlu0 %1600
        %1602 = vrot.lane.b32.xlu0 %v1584, 64
        %v1603 = vpop.permute.xlu0 %1602
        %1604 = vrot.lane.b32.xlu0 %v1585, 64
        %v1605 = vpop.permute.xlu0 %1604
        %1606 = vrot.lane.b32.xlu0 %v1586, 64
        %v1607 = vpop.permute.xlu0 %1606
        %1608 = vrot.lane.b32.xlu0 %v1587, 64
        %v1609 = vpop.permute.xlu0 %1608
        %1610 = vrot.lane.b32.xlu0 %v1588, 64
        %v1611 = vpop.permute.xlu0 %1610
        %1612 = vrot.lane.b32.xlu0 %v1589, 64
        %v1613 = vpop.permute.xlu0 %1612
        %vm1614 = vcmask 523264
        %v1615 = vsel %vm1614, %v1599, %v1601
        %v1616 = vsel %vm1614, %v1601, %v1603
        %v1617 = vsel %vm1614, %v1603, %v1605
        %v1618 = vsel %vm1614, %v1607, %v1609
        %v1619 = vsel %vm1614, %v1609, %v1611
        %v1620 = vsel %vm1614, %v1611, %v1613
        %v1629 = vadd.f32 %v1566, %v1615
        %v1630 = vadd.f32 %v1567, %v1616
        %v1631 = vadd.f32 %v1568, %v1617
        %v1632 = vadd.f32 %v1569, %v1605
        %v1633 = vadd.f32 %v1570, %v1618
        %v1634 = vadd.f32 %v1571, %v1619
        %v1635 = vadd.f32 %v1572, %v1620
        %v1636 = vadd.f32 %v1573, %v1613
        %1637 = vset.pattern.permute.xlu0 20
        %1638 = vperm.xlu0 %1637, %v403
        %v1639 = vpop.permute.xlu0 %1638
        %1641 = vset.pattern.permute.xlu0 20
        %1642 = vperm.xlu0 %1641, %v404
        %v1643 = vpop.permute.xlu0 %1642
        %v1645 = vmul.f32 %v1639, %v416
        %v1646 = vmul.f32 %v1639, %v417
        %v1647 = vmul.f32 %v1639, %v418
        %v1648 = vmul.f32 %v1639, %v419
        %v1649 = vmul.f32 %v1643, %v416
        %v1650 = vmul.f32 %v1643, %v417
        %v1651 = vmul.f32 %v1643, %v418
        %v1652 = vmul.f32 %v1643, %v419
        %1661 = vrot.lane.b32.xlu0 %v1645, 48
        %v1662 = vpop.permute.xlu0 %1661
        %1663 = vrot.lane.b32.xlu0 %v1646, 48
        %v1664 = vpop.permute.xlu0 %1663
        %1665 = vrot.lane.b32.xlu0 %v1647, 48
        %v1666 = vpop.permute.xlu0 %1665
        %1667 = vrot.lane.b32.xlu0 %v1648, 48
        %v1668 = vpop.permute.xlu0 %1667
        %1669 = vrot.lane.b32.xlu0 %v1649, 48
        %v1670 = vpop.permute.xlu0 %1669
        %1671 = vrot.lane.b32.xlu0 %v1650, 48
        %v1672 = vpop.permute.xlu0 %1671
        %1673 = vrot.lane.b32.xlu0 %v1651, 48
        %v1674 = vpop.permute.xlu0 %1673
        %1675 = vrot.lane.b32.xlu0 %v1652, 48
        %v1676 = vpop.permute.xlu0 %1675
        %vm1677 = vcmask 392192
        %v1678 = vsel %vm1677, %v1662, %v1664
        %v1679 = vsel %vm1677, %v1664, %v1666
        %v1680 = vsel %vm1677, %v1666, %v1668
        %v1681 = vsel %vm1677, %v1670, %v1672
        %v1682 = vsel %vm1677, %v1672, %v1674
        %v1683 = vsel %vm1677, %v1674, %v1676
        %v1692 = vadd.f32 %v1629, %v1678
        %v1693 = vadd.f32 %v1630, %v1679
        %v1694 = vadd.f32 %v1631, %v1680
        %v1695 = vadd.f32 %v1632, %v1668
        %v1696 = vadd.f32 %v1633, %v1681
        %v1697 = vadd.f32 %v1634, %v1682
        %v1698 = vadd.f32 %v1635, %v1683
        %v1699 = vadd.f32 %v1636, %v1676
        %1700 = vset.pattern.permute.xlu0 21
        %1701 = vperm.xlu0 %1700, %v403
        %v1702 = vpop.permute.xlu0 %1701
        %1704 = vset.pattern.permute.xlu0 21
        %1705 = vperm.xlu0 %1704, %v404
        %v1706 = vpop.permute.xlu0 %1705
        %v1708 = vmul.f32 %v1702, %v416
        %v1709 = vmul.f32 %v1702, %v417
        %v1710 = vmul.f32 %v1702, %v418
        %v1711 = vmul.f32 %v1702, %v419
        %v1712 = vmul.f32 %v1706, %v416
        %v1713 = vmul.f32 %v1706, %v417
        %v1714 = vmul.f32 %v1706, %v418
        %v1715 = vmul.f32 %v1706, %v419
        %1724 = vrot.lane.b32.xlu0 %v1708, 47
        %v1725 = vpop.permute.xlu0 %1724
        %1726 = vrot.lane.b32.xlu0 %v1709, 47
        %v1727 = vpop.permute.xlu0 %1726
        %1728 = vrot.lane.b32.xlu0 %v1710, 47
        %v1729 = vpop.permute.xlu0 %1728
        %1730 = vrot.lane.b32.xlu0 %v1711, 47
        %v1731 = vpop.permute.xlu0 %1730
        %1732 = vrot.lane.b32.xlu0 %v1712, 47
        %v1733 = vpop.permute.xlu0 %1732
        %1734 = vrot.lane.b32.xlu0 %v1713, 47
        %v1735 = vpop.permute.xlu0 %1734
        %1736 = vrot.lane.b32.xlu0 %v1714, 47
        %v1737 = vpop.permute.xlu0 %1736
        %1738 = vrot.lane.b32.xlu0 %v1715, 47
        %v1739 = vpop.permute.xlu0 %1738
        %vm1740 = vcmask 384000
        %v1741 = vsel %vm1740, %v1725, %v1727
        %v1742 = vsel %vm1740, %v1727, %v1729
        %v1743 = vsel %vm1740, %v1729, %v1731
        %v1744 = vsel %vm1740, %v1733, %v1735
        %v1745 = vsel %vm1740, %v1735, %v1737
        %v1746 = vsel %vm1740, %v1737, %v1739
        %v1755 = vadd.f32 %v1692, %v1741
        %v1756 = vadd.f32 %v1693, %v1742
        %v1757 = vadd.f32 %v1694, %v1743
        %v1758 = vadd.f32 %v1695, %v1731
        %v1759 = vadd.f32 %v1696, %v1744
        %v1760 = vadd.f32 %v1697, %v1745
        %v1761 = vadd.f32 %v1698, %v1746
        %v1762 = vadd.f32 %v1699, %v1739
        %1763 = vset.pattern.permute.xlu0 22
        %1764 = vperm.xlu0 %1763, %v403
        %v1765 = vpop.permute.xlu0 %1764
        %1767 = vset.pattern.permute.xlu0 22
        %1768 = vperm.xlu0 %1767, %v404
        %v1769 = vpop.permute.xlu0 %1768
        %v1771 = vmul.f32 %v1765, %v416
        %v1772 = vmul.f32 %v1765, %v417
        %v1773 = vmul.f32 %v1765, %v418
        %v1774 = vmul.f32 %v1765, %v419
        %v1775 = vmul.f32 %v1769, %v416
        %v1776 = vmul.f32 %v1769, %v417
        %v1777 = vmul.f32 %v1769, %v418
        %v1778 = vmul.f32 %v1769, %v419
        %1787 = vrot.lane.b32.xlu0 %v1771, 46
        %v1788 = vpop.permute.xlu0 %1787
        %1789 = vrot.lane.b32.xlu0 %v1772, 46
        %v1790 = vpop.permute.xlu0 %1789
        %1791 = vrot.lane.b32.xlu0 %v1773, 46
        %v1792 = vpop.permute.xlu0 %1791
        %1793 = vrot.lane.b32.xlu0 %v1774, 46
        %v1794 = vpop.permute.xlu0 %1793
        %1795 = vrot.lane.b32.xlu0 %v1775, 46
        %v1796 = vpop.permute.xlu0 %1795
        %1797 = vrot.lane.b32.xlu0 %v1776, 46
        %v1798 = vpop.permute.xlu0 %1797
        %1799 = vrot.lane.b32.xlu0 %v1777, 46
        %v1800 = vpop.permute.xlu0 %1799
        %1801 = vrot.lane.b32.xlu0 %v1778, 46
        %v1802 = vpop.permute.xlu0 %1801
        %vm1803 = vcmask 375808
        %v1804 = vsel %vm1803, %v1788, %v1790
        %v1805 = vsel %vm1803, %v1790, %v1792
        %v1806 = vsel %vm1803, %v1792, %v1794
        %v1807 = vsel %vm1803, %v1796, %v1798
        %v1808 = vsel %vm1803, %v1798, %v1800
        %v1809 = vsel %vm1803, %v1800, %v1802
        %v1818 = vadd.f32 %v1755, %v1804
        %v1819 = vadd.f32 %v1756, %v1805
        %v1820 = vadd.f32 %v1757, %v1806
        %v1821 = vadd.f32 %v1758, %v1794
        %v1822 = vadd.f32 %v1759, %v1807
        %v1823 = vadd.f32 %v1760, %v1808
        %v1824 = vadd.f32 %v1761, %v1809
        %v1825 = vadd.f32 %v1762, %v1802
        %1826 = vset.pattern.permute.xlu0 23
        %1827 = vperm.xlu0 %1826, %v403
        %v1828 = vpop.permute.xlu0 %1827
        %1830 = vset.pattern.permute.xlu0 23
        %1831 = vperm.xlu0 %1830, %v404
        %v1832 = vpop.permute.xlu0 %1831
        %v1834 = vmul.f32 %v1828, %v416
        %v1835 = vmul.f32 %v1828, %v417
        %v1836 = vmul.f32 %v1828, %v418
        %v1837 = vmul.f32 %v1828, %v419
        %v1838 = vmul.f32 %v1832, %v416
        %v1839 = vmul.f32 %v1832, %v417
        %v1840 = vmul.f32 %v1832, %v418
        %v1841 = vmul.f32 %v1832, %v419
        %1850 = vrot.lane.b32.xlu0 %v1834, 45
        %v1851 = vpop.permute.xlu0 %1850
        %1852 = vrot.lane.b32.xlu0 %v1835, 45
        %v1853 = vpop.permute.xlu0 %1852
        %1854 = vrot.lane.b32.xlu0 %v1836, 45
        %v1855 = vpop.permute.xlu0 %1854
        %1856 = vrot.lane.b32.xlu0 %v1837, 45
        %v1857 = vpop.permute.xlu0 %1856
        %1858 = vrot.lane.b32.xlu0 %v1838, 45
        %v1859 = vpop.permute.xlu0 %1858
        %1860 = vrot.lane.b32.xlu0 %v1839, 45
        %v1861 = vpop.permute.xlu0 %1860
        %1862 = vrot.lane.b32.xlu0 %v1840, 45
        %v1863 = vpop.permute.xlu0 %1862
        %1864 = vrot.lane.b32.xlu0 %v1841, 45
        %v1865 = vpop.permute.xlu0 %1864
        %vm1866 = vcmask 367616
        %v1867 = vsel %vm1866, %v1851, %v1853
        %v1868 = vsel %vm1866, %v1853, %v1855
        %v1869 = vsel %vm1866, %v1855, %v1857
        %v1870 = vsel %vm1866, %v1859, %v1861
        %v1871 = vsel %vm1866, %v1861, %v1863
        %v1872 = vsel %vm1866, %v1863, %v1865
        %v1881 = vadd.f32 %v1818, %v1867
        %v1882 = vadd.f32 %v1819, %v1868
        %v1883 = vadd.f32 %v1820, %v1869
        %v1884 = vadd.f32 %v1821, %v1857
        %v1885 = vadd.f32 %v1822, %v1870
        %v1886 = vadd.f32 %v1823, %v1871
        %v1887 = vadd.f32 %v1824, %v1872
        %v1888 = vadd.f32 %v1825, %v1865
        %1889 = vset.pattern.permute.xlu0 24
        %1890 = vperm.xlu0 %1889, %v403
        %v1891 = vpop.permute.xlu0 %1890
        %1893 = vset.pattern.permute.xlu0 24
        %1894 = vperm.xlu0 %1893, %v404
        %v1895 = vpop.permute.xlu0 %1894
        %v1897 = vmul.f32 %v1891, %v416
        %v1898 = vmul.f32 %v1891, %v417
        %v1899 = vmul.f32 %v1891, %v418
        %v1900 = vmul.f32 %v1891, %v419
        %v1901 = vmul.f32 %v1895, %v416
        %v1902 = vmul.f32 %v1895, %v417
        %v1903 = vmul.f32 %v1895, %v418
        %v1904 = vmul.f32 %v1895, %v419
        %1913 = vrot.lane.b32.xlu0 %v1897, 44
        %v1914 = vpop.permute.xlu0 %1913
        %1915 = vrot.lane.b32.xlu0 %v1898, 44
        %v1916 = vpop.permute.xlu0 %1915
        %1917 = vrot.lane.b32.xlu0 %v1899, 44
        %v1918 = vpop.permute.xlu0 %1917
        %1919 = vrot.lane.b32.xlu0 %v1900, 44
        %v1920 = vpop.permute.xlu0 %1919
        %1921 = vrot.lane.b32.xlu0 %v1901, 44
        %v1922 = vpop.permute.xlu0 %1921
        %1923 = vrot.lane.b32.xlu0 %v1902, 44
        %v1924 = vpop.permute.xlu0 %1923
        %1925 = vrot.lane.b32.xlu0 %v1903, 44
        %v1926 = vpop.permute.xlu0 %1925
        %1927 = vrot.lane.b32.xlu0 %v1904, 44
        %v1928 = vpop.permute.xlu0 %1927
        %vm1929 = vcmask 359424
        %v1930 = vsel %vm1929, %v1914, %v1916
        %v1931 = vsel %vm1929, %v1916, %v1918
        %v1932 = vsel %vm1929, %v1918, %v1920
        %v1933 = vsel %vm1929, %v1922, %v1924
        %v1934 = vsel %vm1929, %v1924, %v1926
        %v1935 = vsel %vm1929, %v1926, %v1928
        %v1944 = vadd.f32 %v1881, %v1930
        %v1945 = vadd.f32 %v1882, %v1931
        %v1946 = vadd.f32 %v1883, %v1932
        %v1947 = vadd.f32 %v1884, %v1920
        %v1948 = vadd.f32 %v1885, %v1933
        %v1949 = vadd.f32 %v1886, %v1934
        %v1950 = vadd.f32 %v1887, %v1935
        %v1951 = vadd.f32 %v1888, %v1928
        %v1952 = vld [vmem:[%s4] sm:$0xff]
        %v1953 = vld [vmem:[%s4 + $0x8] sm:$0xff]
        %1955 = vset.pattern.permute.xlu0 0
        %1956 = vperm.xlu0 %1955, %v1952
        %v1957 = vpop.permute.xlu0 %1956
        %1960 = vset.pattern.permute.xlu0 0
        %1961 = vperm.xlu0 %1960, %v1953
        %v1962 = vpop.permute.xlu0 %1961
        %v1964 = vadd.f32 %v1944, %v1957
        %v1965 = vadd.f32 %v1945, %v1957
        %v1966 = vadd.f32 %v1946, %v1957
        %v1967 = vadd.f32 %v1947, %v1957
        %v1968 = vadd.f32 %v1948, %v1962
        %v1969 = vadd.f32 %v1949, %v1962
        %v1970 = vadd.f32 %v1950, %v1962
        %v1971 = vadd.f32 %v1951, %v1962
        %v1973 = vperm.slane %v401, 0
        %v1974 = vperm.slane %v401, 1
        %v1975 = vperm.slane %v401, 2
        %v1976 = vperm.slane %v401, 3
        %v1981 = vmul.f32 %v1964, %v1973
        %v1982 = vmul.f32 %v1965, %v1974
        %v1983 = vmul.f32 %v1966, %v1975
        %v1984 = vmul.f32 %v1967, %v1976
        %v1985 = vmul.f32 %v1968, %v1973
        %v1986 = vmul.f32 %v1969, %v1974
        %v1987 = vmul.f32 %v1970, %v1975
        %v1988 = vmul.f32 %v1971, %v1976
        %v1989 = vadd.f32 %v1981, %v1982
        %v1990 = vadd.f32 %v1989, %v1983
        %vm1991 = vcmask 130048
        %v1992 = vsel %vm1991, %v1984, 0.0
        %v1993 = vadd.f32 %v1990, %v1992
        %1994 = vadd.xlane.f32.xlu0 %v1993
        %v1995 = vpop.xlane.xlu0 %1994
        %v1996 = vadd.f32 %v1985, %v1986
        %v1997 = vadd.f32 %v1996, %v1987
        %v1998 = vsel %vm1991, %v1988, 0.0
        %v1999 = vadd.f32 %v1997, %v1998
        %2000 = vadd.xlane.f32.xlu0 %v1999
        %v2001 = vpop.xlane.xlu0 %2000
        %v2002 = vmul.f32 %v1964, %v1964
        %v2003 = vmul.f32 %v1965, %v1965
        %v2004 = vmul.f32 %v1966, %v1966
        %v2005 = vmul.f32 %v1967, %v1967
        %v2006 = vmul.f32 %v1968, %v1968
        %v2007 = vmul.f32 %v1969, %v1969
        %v2008 = vmul.f32 %v1970, %v1970
        %v2009 = vmul.f32 %v1971, %v1971
        %v2010 = vmul.f32 %v2002, %v1973
        %v2011 = vmul.f32 %v2003, %v1974
        %v2012 = vmul.f32 %v2004, %v1975
        %v2013 = vmul.f32 %v2005, %v1976
        %v2014 = vmul.f32 %v2006, %v1973
        %v2015 = vmul.f32 %v2007, %v1974
        %v2016 = vmul.f32 %v2008, %v1975
        %v2017 = vmul.f32 %v2009, %v1976
        %v2018 = vadd.f32 %v2010, %v2011
        %v2019 = vadd.f32 %v2018, %v2012
        %v2020 = vsel %vm1991, %v2013, 0.0
        %v2021 = vadd.f32 %v2019, %v2020
        %2022 = vadd.xlane.f32.xlu0 %v2021
        %v2023 = vpop.xlane.xlu0 %2022
        %v2024 = vadd.f32 %v2014, %v2015
        %v2025 = vadd.f32 %v2024, %v2016
        %v2026 = vsel %vm1991, %v2017, 0.0
        %v2027 = vadd.f32 %v2025, %v2026
        %2028 = vadd.xlane.f32.xlu0 %v2027
        %v2029 = vpop.xlane.xlu0 %2028
        %v2030 = vmul.f32 %v1995, 0.00390625
        %v2031 = vmul.f32 %v2001, 0.00390625
        %v2032 = vmul.f32 %v2023, 0.00390625
        %v2033 = vmul.f32 %v2029, 0.00390625
        %v2034 = vmul.f32 %v2030, %v2030
        %v2035 = vmul.f32 %v2031, %v2031
        %v2036 = vsub.f32 %v2032, %v2034
        %v2037 = vsub.f32 %v2033, %v2035
        %v2038 = vsub.f32 %v1964, %v2030
        %v2039 = vsub.f32 %v1965, %v2030
        %v2040 = vsub.f32 %v1966, %v2030
        %v2041 = vsub.f32 %v1967, %v2030
        %v2042 = vsub.f32 %v1968, %v2031
        %v2043 = vsub.f32 %v1969, %v2031
        %v2044 = vsub.f32 %v1970, %v2031
        %v2045 = vsub.f32 %v1971, %v2031
        %v2046 = vadd.f32 %v2036, 1e-05
        %v2047 = vadd.f32 %v2037, 1e-05
        %v2048 = vrsqrt.pop %v2046
        %v2049 = vmul.f32 %v2048, %v2046
        %v2050 = vmul.f32 %v2049, %v2048
        %v2051 = vmul.f32 0.5, %v2050
        %v2052 = vsub.f32 1.5, %v2051
        %v2053 = vmul.f32 %v2048, %v2052
        %vm2054 = vweird.f32 %v2046
        %vm2055 = vweird.f32 %v2048
        %vm2056 = vmor %vm2054, %vm2055
        %v2057 = vsel %vm2056, %v2048, %v2053
        %v2058 = vrsqrt.pop %v2047
        %v2059 = vmul.f32 %v2058, %v2047
        %v2060 = vmul.f32 %v2059, %v2058
        %v2061 = vmul.f32 0.5, %v2060
        %v2062 = vsub.f32 1.5, %v2061
        %v2063 = vmul.f32 %v2058, %v2062
        %vm2064 = vweird.f32 %v2047
        %vm2065 = vweird.f32 %v2058
        %vm2066 = vmor %vm2064, %vm2065
        %v2067 = vsel %vm2066, %v2058, %v2063
        %v2068 = vmul.f32 %v2038, %v2057
        %v2069 = vmul.f32 %v2039, %v2057
        %v2070 = vmul.f32 %v2040, %v2057
        %v2071 = vmul.f32 %v2041, %v2057
        %v2072 = vmul.f32 %v2042, %v2067
        %v2073 = vmul.f32 %v2043, %v2067
        %v2074 = vmul.f32 %v2044, %v2067
        %v2075 = vmul.f32 %v2045, %v2067
        %vm2076 = vcmp.ge.f32.partialorder %v2068, 0.0
        %vm2077 = vcmp.ge.f32.partialorder %v2069, 0.0
        %vm2078 = vcmp.ge.f32.partialorder %v2070, 0.0
        %vm2079 = vcmp.ge.f32.partialorder %v2071, 0.0
        %vm2080 = vcmp.ge.f32.partialorder %v2072, 0.0
        %vm2081 = vcmp.ge.f32.partialorder %v2073, 0.0
        %vm2082 = vcmp.ge.f32.partialorder %v2074, 0.0
        %vm2083 = vcmp.ge.f32.partialorder %v2075, 0.0
        %v2084 = vmul.f32 %v2068, 0.2
        %v2085 = vmul.f32 %v2069, 0.2
        %v2086 = vmul.f32 %v2070, 0.2
        %v2087 = vmul.f32 %v2071, 0.2
        %v2088 = vmul.f32 %v2072, 0.2
        %v2089 = vmul.f32 %v2073, 0.2
        %v2090 = vmul.f32 %v2074, 0.2
        %v2091 = vmul.f32 %v2075, 0.2
        %v2092 = vsel %vm2076, %v2068, %v2084
        %v2093 = vsel %vm2077, %v2069, %v2085
        %v2094 = vsel %vm2078, %v2070, %v2086
        %v2095 = vsel %vm2079, %v2071, %v2087
        %v2096 = vsel %vm2080, %v2072, %v2088
        %v2097 = vsel %vm2081, %v2073, %v2089
        %v2098 = vsel %vm2082, %v2074, %v2090
        %v2099 = vsel %vm2083, %v2075, %v2091
        %v2100 = vmul.f32 %v2092, %v1973
        %v2101 = vmul.f32 %v2093, %v1974
        %v2102 = vmul.f32 %v2094, %v1975
        %v2103 = vmul.f32 %v2095, %v1976
        %v2104 = vmul.f32 %v2096, %v1973
        %v2105 = vmul.f32 %v2097, %v1974
        %v2106 = vmul.f32 %v2098, %v1975
        %v2107 = vmul.f32 %v2099, %v1976
        %2114 = vrot.lane.b32.xlu0 %v2100, 127
        %v2115 = vpop.permute.xlu0 %2114
        %2116 = vrot.lane.b32.xlu0 %v2101, 127
        %v2117 = vpop.permute.xlu0 %2116
        %2118 = vrot.lane.b32.xlu0 %v2102, 127
        %v2119 = vpop.permute.xlu0 %2118
        %2120 = vrot.lane.b32.xlu0 %v2104, 127
        %v2121 = vpop.permute.xlu0 %2120
        %2122 = vrot.lane.b32.xlu0 %v2105, 127
        %v2123 = vpop.permute.xlu0 %2122
        %2124 = vrot.lane.b32.xlu0 %v2106, 127
        %v2125 = vpop.permute.xlu0 %2124
        %v2126 = vsel %vm480, %v2115, %v2117
        %v2127 = vsel %vm480, %v2117, %v2119
        %v2128 = vsel %vm480, %v2121, %v2123
        %v2129 = vsel %vm480, %v2123, %v2125
        %v2136 = vadd.f32 %v2100, %v2126
        %v2137 = vadd.f32 %v2101, %v2127
        %v2138 = vadd.f32 %v2102, %v2119
        %v2139 = vadd.f32 %v2104, %v2128
        %v2140 = vadd.f32 %v2105, %v2129
        %v2141 = vadd.f32 %v2106, %v2125
        %2144 = vrot.lane.b32.xlu0 %v2100, 108
        %v2145 = vpop.permute.xlu0 %2144
        %2146 = vrot.lane.b32.xlu0 %v2101, 108
        %v2147 = vpop.permute.xlu0 %2146
        %2148 = vrot.lane.b32.xlu0 %v2102, 108
        %v2149 = vpop.permute.xlu0 %2148
        %2150 = vrot.lane.b32.xlu0 %v2103, 108
        %v2151 = vpop.permute.xlu0 %2150
        %2152 = vrot.lane.b32.xlu0 %v2104, 108
        %v2153 = vpop.permute.xlu0 %2152
        %2154 = vrot.lane.b32.xlu0 %v2105, 108
        %v2155 = vpop.permute.xlu0 %2154
        %2156 = vrot.lane.b32.xlu0 %v2106, 108
        %v2157 = vpop.permute.xlu0 %2156
        %2158 = vrot.lane.b32.xlu0 %v2107, 108
        %v2159 = vpop.permute.xlu0 %2158
        %v2160 = vsel %vm732, %v2145, %v2147
        %v2161 = vsel %vm732, %v2147, %v2149
        %v2162 = vsel %vm732, %v2149, %v2151
        %v2163 = vsel %vm732, %v2153, %v2155
        %v2164 = vsel %vm732, %v2155, %v2157
        %v2165 = vsel %vm732, %v2157, %v2159
        %v2172 = vadd.f32 %v2136, %v2160
        %v2173 = vadd.f32 %v2137, %v2161
        %v2174 = vadd.f32 %v2138, %v2162
        %v2175 = vadd.f32 %v2139, %v2163
        %v2176 = vadd.f32 %v2140, %v2164
        %v2177 = vadd.f32 %v2141, %v2165
        %2178 = vrot.lane.b32.xlu0 %v2100, 107
        %v2179 = vpop.permute.xlu0 %2178
        %2180 = vrot.lane.b32.xlu0 %v2101, 107
        %v2181 = vpop.permute.xlu0 %2180
        %2182 = vrot.lane.b32.xlu0 %v2102, 107
        %v2183 = vpop.permute.xlu0 %2182
        %2184 = vrot.lane.b32.xlu0 %v2103, 107
        %v2185 = vpop.permute.xlu0 %2184
        %2186 = vrot.lane.b32.xlu0 %v2104, 107
        %v2187 = vpop.permute.xlu0 %2186
        %2188 = vrot.lane.b32.xlu0 %v2105, 107
        %v2189 = vpop.permute.xlu0 %2188
        %2190 = vrot.lane.b32.xlu0 %v2106, 107
        %v2191 = vpop.permute.xlu0 %2190
        %2192 = vrot.lane.b32.xlu0 %v2107, 107
        %v2193 = vpop.permute.xlu0 %2192
        %v2194 = vsel %vm795, %v2179, %v2181
        %v2195 = vsel %vm795, %v2181, %v2183
        %v2196 = vsel %vm795, %v2183, %v2185
        %v2197 = vsel %vm795, %v2187, %v2189
        %v2198 = vsel %vm795, %v2189, %v2191
        %v2199 = vsel %vm795, %v2191, %v2193
        %v2206 = vadd.f32 %v2172, %v2194
        %v2207 = vadd.f32 %v2173, %v2195
        %v2208 = vadd.f32 %v2174, %v2196
        %v2209 = vadd.f32 %v2175, %v2197
        %v2210 = vadd.f32 %v2176, %v2198
        %v2211 = vadd.f32 %v2177, %v2199
        %v2212 = vmul.f32 %v2206, 0.25
        %v2213 = vmul.f32 %v2207, 0.25
        %v2214 = vmul.f32 %v2208, 0.25
        %v2215 = vmul.f32 %v2209, 0.25
        %v2216 = vmul.f32 %v2210, 0.25
        %v2217 = vmul.f32 %v2211, 0.25
        %v2219 = vperm.slane %v402, 0
        %v2220 = vperm.slane %v402, 1
        %v2221 = vperm.slane %v402, 2
        %v2225 = vmul.f32 %v2212, %v2219
        %v2226 = vmul.f32 %v2213, %v2220
        %v2227 = vmul.f32 %v2214, %v2221
        %v2228 = vmul.f32 %v2215, %v2219
        %v2229 = vmul.f32 %v2216, %v2220
        %v2230 = vmul.f32 %v2217, %v2221
        %2231 = vst [vmem:[#allocation2] sm:$0xff] 0.0
        %2232 = vst [vmem:[#allocation2 + $0x8] sm:$0xff] 0.0
        %2233 = vst [vmem:[#allocation2 + $0x10] sm:$0xff] 0.0
        %2234 = vst [vmem:[#allocation2 + $0x18] sm:$0xff] 0.0
        %vm2235 = vcmask 457728
        %2236 = vst.msk [vmem:[#allocation2 + $0x20] sm:$0xff] %vm2235, 0.0
        %2237 = vst [vmem:[#allocation2 + $0x28] sm:$0xff] 0.0
        %2238 = vst [vmem:[#allocation2 + $0x30] sm:$0xff] 0.0
        %2239 = vst [vmem:[#allocation2 + $0x38] sm:$0xff] 0.0
        %2240 = vst [vmem:[#allocation2 + $0x40] sm:$0xff] 0.0
        %2241 = vst.msk [vmem:[#allocation2 + $0x48] sm:$0xff] %vm2235, 0.0
        %2248 = vrot.lane.b32.xlu0 %v2225, 84
        %v2249 = vpop.permute.xlu0 %2248
        %2250 = vrot.lane.b32.xlu0 %v2226, 84
        %v2251 = vpop.permute.xlu0 %2250
        %2252 = vrot.lane.b32.xlu0 %v2227, 84
        %v2253 = vpop.permute.xlu0 %2252
        %2254 = vrot.lane.b32.xlu0 %v2228, 84
        %v2255 = vpop.permute.xlu0 %2254
        %2256 = vrot.lane.b32.xlu0 %v2229, 84
        %v2257 = vpop.permute.xlu0 %2256
        %2258 = vrot.lane.b32.xlu0 %v2230, 84
        %v2259 = vpop.permute.xlu0 %2258
        %v2260 = vsel %vm1299, %v2249, %v2251
        %v2261 = vsel %vm1299, %v2251, %v2253
        %v2262 = vsel %vm1299, %v2255, %v2257
        %v2263 = vsel %vm1299, %v2257, %v2259
        %vm2272 = vcmask 1048224
        %2273 = vst.msk [vmem:[#allocation2] sm:$0xff] %vm2272, %v2249
        %2274 = vst [vmem:[#allocation2 + $0x8] sm:$0xff] %v2260
        %2275 = vst [vmem:[#allocation2 + $0x10] sm:$0xff] %v2261
        %vm2276 = vcmask 646144
        %2277 = vst.msk [vmem:[#allocation2 + $0x18] sm:$0xff] %vm2276, %v2253
        %2278 = vst.msk [vmem:[#allocation2 + $0x28] sm:$0xff] %vm2272, %v2255
        %2279 = vst [vmem:[#allocation2 + $0x30] sm:$0xff] %v2262
        %2280 = vst [vmem:[#allocation2 + $0x38] sm:$0xff] %v2263
        %2281 = vst.msk [vmem:[#allocation2 + $0x40] sm:$0xff] %vm2276, %v2259
        %v2282 = vld [vmem:[#allocation4] sm:$0xff]
        %v2283 = vld [vmem:[#allocation4 + $0x20] sm:$0xff]
        %v2284 = vld [vmem:[#allocation4 + $0x40] sm:$0xff]
        %v2285 = vld [vmem:[#allocation4 + $0x60] sm:$0xff]
        %v2286 = vld [vmem:[#allocation2] sm:$0xff]
        %v2287 = vld [vmem:[#allocation2 + $0x8] sm:$0xff]
        %v2288 = vld [vmem:[#allocation2 + $0x10] sm:$0xff]
        %v2289 = vld [vmem:[#allocation2 + $0x18] sm:$0xff]
        %v2290 = vld [vmem:[#allocation2 + $0x28] sm:$0xff]
        %v2291 = vld [vmem:[#allocation2 + $0x30] sm:$0xff]
        %v2292 = vld [vmem:[#allocation2 + $0x38] sm:$0xff]
        %v2293 = vld [vmem:[#allocation2 + $0x40] sm:$0xff]
        %2298 = vrot.lane.b32.xlu0 %v2282, 112
        %v2299 = vpop.permute.xlu0 %2298
        %2300 = vrot.lane.b32.xlu0 %v2283, 112
        %v2301 = vpop.permute.xlu0 %2300
        %2302 = vrot.lane.b32.xlu0 %v2284, 112
        %v2303 = vpop.permute.xlu0 %2302
        %2304 = vrot.lane.b32.xlu0 %v2285, 112
        %v2305 = vpop.permute.xlu0 %2304
        %2314 = vrot.lane.b32.xlu0 %v2286, 126
        %v2315 = vpop.permute.xlu0 %2314
        %2316 = vrot.lane.b32.xlu0 %v2287, 126
        %v2317 = vpop.permute.xlu0 %2316
        %2318 = vrot.lane.b32.xlu0 %v2288, 126
        %v2319 = vpop.permute.xlu0 %2318
        %2320 = vrot.lane.b32.xlu0 %v2289, 126
        %v2321 = vpop.permute.xlu0 %2320
        %2322 = vrot.lane.b32.xlu0 %v2290, 126
        %v2323 = vpop.permute.xlu0 %2322
        %2324 = vrot.lane.b32.xlu0 %v2291, 126
        %v2325 = vpop.permute.xlu0 %2324
        %2326 = vrot.lane.b32.xlu0 %v2292, 126
        %v2327 = vpop.permute.xlu0 %2326
        %2328 = vrot.lane.b32.xlu0 %v2293, 126
        %v2329 = vpop.permute.xlu0 %2328
        %v2330 = vsel %vm543, %v2315, %v2317
        %v2331 = vsel %vm543, %v2317, %v2319
        %v2332 = vsel %vm543, %v2319, %v2321
        %v2333 = vsel %vm543, %v2323, %v2325
        %v2334 = vsel %vm543, %v2325, %v2327
        %v2335 = vsel %vm543, %v2327, %v2329
        %v2344 = vsel %vm1991, %v2299, 0
        %v2346 = vsel %vm1991, %v2301, 0
        %v2348 = vsel %vm1991, %v2303, 0
        %v2350 = vsel %vm1991, %v2305, 0
        %2352 = vmatpush.msra.mxu0 0.0
        %2353 = vmatpush.msra.mxu0 0.0
        %2354 = vmatpush.msra.mxu0 0.0
        %2355 = vmatpush.msra.mxu0 0.0
        %2356 = vmatpush.msra.mxu0 0.0
        %2357 = vmatpush.msra.mxu0 0.0
        %2358 = vmatpush.msra.mxu0 0.0
        %2359 = vmatpush.msra.mxu0 0.0
        %2360 = vmatpush.msra.mxu0 0.0
        %2361 = vmatpush.msra.mxu0 0.0
        %2362 = vmatpush.msra.mxu0 0.0
        %2363 = vmatpush.msra.mxu0 0.0
        %2364 = vmatpush.msra.mxu0 0.0
        %2365 = vmatpush.msra.mxu0 0.0
        %2366 = vmatpush.msra.mxu0 %v2333
        %2367 = vmatpush.msra.mxu0 %v2330
        %2368 = vmatmul.f32.gmra.mxu0 %v2344
        %v2369 = vpop.f32.mrf.mxu0
        %v2370 = vadd.f32 0.0, %v2369
        %2371 = vmatmul.f32.gmra.mxu0 %v2346
        %v2372 = vpop.f32.mrf.mxu0
        %v2373 = vadd.f32 0.0, %v2372
        %2374 = vmatmul.f32.gmra.mxu0 %v2348
        %v2375 = vpop.f32.mrf.mxu0
        %v2376 = vadd.f32 0.0, %v2375
        %2377 = vmatmul.f32.gmra.mxu0 %v2350
        %v2378 = vpop.f32.mrf.mxu0
        %v2379 = vadd.f32 0.0, %v2378
        %2380 = vdwg.mxu0
        %2381 = vmatpush.msra.mxu0 0.0
        %2382 = vmatpush.msra.mxu0 0.0
        %2383 = vmatpush.msra.mxu0 0.0
        %2384 = vmatpush.msra.mxu0 0.0
        %2385 = vmatpush.msra.mxu0 0.0
        %2386 = vmatpush.msra.mxu0 0.0
        %2387 = vmatpush.msra.mxu0 0.0
        %2388 = vmatpush.msra.mxu0 0.0
        %2389 = vmatpush.msra.mxu0 0.0
        %2390 = vmatpush.msra.mxu0 0.0
        %2391 = vmatpush.msra.mxu0 0.0
        %2392 = vmatpush.msra.mxu0 0.0
        %2393 = vmatpush.msra.mxu0 0.0
        %2394 = vmatpush.msra.mxu0 0.0
        %2395 = vmatpush.msra.mxu0 %v2334
        %2396 = vmatpush.msra.mxu0 %v2331
        %2397 = vmatmul.f32.gmra.mxu0 %v2344
        %v2398 = vpop.f32.mrf.mxu0
        %v2399 = vadd.f32 0.0, %v2398
        %2400 = vmatmul.f32.gmra.mxu0 %v2346
        %v2401 = vpop.f32.mrf.mxu0
        %v2402 = vadd.f32 0.0, %v2401
        %2403 = vmatmul.f32.gmra.mxu0 %v2348
        %v2404 = vpop.f32.mrf.mxu0
        %v2405 = vadd.f32 0.0, %v2404
        %2406 = vmatmul.f32.gmra.mxu0 %v2350
        %v2407 = vpop.f32.mrf.mxu0
        %v2408 = vadd.f32 0.0, %v2407
        %2409 = vdwg.mxu0
        %2410 = vmatpush.msra.mxu0 0.0
        %2411 = vmatpush.msra.mxu0 0.0
        %2412 = vmatpush.msra.mxu0 0.0
        %2413 = vmatpush.msra.mxu0 0.0
        %2414 = vmatpush.msra.mxu0 0.0
        %2415 = vmatpush.msra.mxu0 0.0
        %2416 = vmatpush.msra.mxu0 0.0
        %2417 = vmatpush.msra.mxu0 0.0
        %2418 = vmatpush.msra.mxu0 0.0
        %2419 = vmatpush.msra.mxu0 0.0
        %2420 = vmatpush.msra.mxu0 0.0
        %2421 = vmatpush.msra.mxu0 0.0
        %2422 = vmatpush.msra.mxu0 0.0
        %2423 = vmatpush.msra.mxu0 0.0
        %2424 = vmatpush.msra.mxu0 %v2335
        %2425 = vmatpush.msra.mxu0 %v2332
        %2426 = vmatmul.f32.gmra.mxu0 %v2344
        %v2427 = vpop.f32.mrf.mxu0
        %v2428 = vadd.f32 0.0, %v2427
        %2429 = vmatmul.f32.gmra.mxu0 %v2346
        %v2430 = vpop.f32.mrf.mxu0
        %v2431 = vadd.f32 0.0, %v2430
        %2432 = vmatmul.f32.gmra.mxu0 %v2348
        %v2433 = vpop.f32.mrf.mxu0
        %v2434 = vadd.f32 0.0, %v2433
        %2435 = vmatmul.f32.gmra.mxu0 %v2350
        %v2436 = vpop.f32.mrf.mxu0
        %v2437 = vadd.f32 0.0, %v2436
        %2438 = vdwg.mxu0
        %2439 = vmatpush.msra.mxu0 0.0
        %2440 = vmatpush.msra.mxu0 0.0
        %2441 = vmatpush.msra.mxu0 0.0
        %2442 = vmatpush.msra.mxu0 0.0
        %2443 = vmatpush.msra.mxu0 0.0
        %2444 = vmatpush.msra.mxu0 0.0
        %2445 = vmatpush.msra.mxu0 0.0
        %2446 = vmatpush.msra.mxu0 0.0
        %2447 = vmatpush.msra.mxu0 0.0
        %2448 = vmatpush.msra.mxu0 0.0
        %2449 = vmatpush.msra.mxu0 0.0
        %2450 = vmatpush.msra.mxu0 0.0
        %2451 = vmatpush.msra.mxu0 0.0
        %2452 = vmatpush.msra.mxu0 0.0
        %2453 = vmatpush.msra.mxu0 %v2329
        %2454 = vmatpush.msra.mxu0 %v2321
        %2455 = vmatmul.f32.gmra.mxu0 %v2344
        %v2456 = vpop.f32.mrf.mxu0
        %v2457 = vadd.f32 0.0, %v2456
        %2458 = vmatmul.f32.gmra.mxu0 %v2346
        %v2459 = vpop.f32.mrf.mxu0
        %v2460 = vadd.f32 0.0, %v2459
        %2461 = vmatmul.f32.gmra.mxu0 %v2348
        %v2462 = vpop.f32.mrf.mxu0
        %v2463 = vadd.f32 0.0, %v2462
        %2464 = vmatmul.f32.gmra.mxu0 %v2350
        %v2465 = vpop.f32.mrf.mxu0
        %v2466 = vadd.f32 0.0, %v2465
        %2467 = vdwg.mxu0
        %v2468 = vsel %vm1991, %v2282, 0
        %v2470 = vsel %vm1991, %v2283, 0
        %v2472 = vsel %vm1991, %v2284, 0
        %v2474 = vsel %vm1991, %v2285, 0
        %2476 = vmatpush.msra.mxu0 0.0
        %2477 = vmatpush.msra.mxu0 0.0
        %2478 = vmatpush.msra.mxu0 0.0
        %2479 = vmatpush.msra.mxu0 0.0
        %2480 = vmatpush.msra.mxu0 0.0
        %2481 = vmatpush.msra.mxu0 0.0
        %2482 = vmatpush.msra.mxu0 0.0
        %2483 = vmatpush.msra.mxu0 0.0
        %2484 = vmatpush.msra.mxu0 0.0
        %2485 = vmatpush.msra.mxu0 0.0
        %2486 = vmatpush.msra.mxu0 0.0
        %2487 = vmatpush.msra.mxu0 0.0
        %2488 = vmatpush.msra.mxu0 0.0
        %2489 = vmatpush.msra.mxu0 0.0
        %2490 = vmatpush.msra.mxu0 %v2290
        %2491 = vmatpush.msra.mxu0 %v2286
        %2492 = vmatmul.f32.gmra.mxu0 %v2468
        %v2493 = vpop.f32.mrf.mxu0
        %v2494 = vadd.f32 %v2370, %v2493
        %2495 = vmatmul.f32.gmra.mxu0 %v2470
        %v2496 = vpop.f32.mrf.mxu0
        %v2497 = vadd.f32 %v2373, %v2496
        %2498 = vmatmul.f32.gmra.mxu0 %v2472
        %v2499 = vpop.f32.mrf.mxu0
        %v2500 = vadd.f32 %v2376, %v2499
        %2501 = vmatmul.f32.gmra.mxu0 %v2474
        %v2502 = vpop.f32.mrf.mxu0
        %v2503 = vadd.f32 %v2379, %v2502
        %2504 = vdwg.mxu0
        %2505 = vmatpush.msra.mxu0 0.0
        %2506 = vmatpush.msra.mxu0 0.0
        %2507 = vmatpush.msra.mxu0 0.0
        %2508 = vmatpush.msra.mxu0 0.0
        %2509 = vmatpush.msra.mxu0 0.0
        %2510 = vmatpush.msra.mxu0 0.0
        %2511 = vmatpush.msra.mxu0 0.0
        %2512 = vmatpush.msra.mxu0 0.0
        %2513 = vmatpush.msra.mxu0 0.0
        %2514 = vmatpush.msra.mxu0 0.0
        %2515 = vmatpush.msra.mxu0 0.0
        %2516 = vmatpush.msra.mxu0 0.0
        %2517 = vmatpush.msra.mxu0 0.0
        %2518 = vmatpush.msra.mxu0 0.0
        %2519 = vmatpush.msra.mxu0 %v2291
        %2520 = vmatpush.msra.mxu0 %v2287
        %2521 = vmatmul.f32.gmra.mxu0 %v2468
        %v2522 = vpop.f32.mrf.mxu0
        %v2523 = vadd.f32 %v2399, %v2522
        %2524 = vmatmul.f32.gmra.mxu0 %v2470
        %v2525 = vpop.f32.mrf.mxu0
        %v2526 = vadd.f32 %v2402, %v2525
        %2527 = vmatmul.f32.gmra.mxu0 %v2472
        %v2528 = vpop.f32.mrf.mxu0
        %v2529 = vadd.f32 %v2405, %v2528
        %2530 = vmatmul.f32.gmra.mxu0 %v2474
        %v2531 = vpop.f32.mrf.mxu0
        %v2532 = vadd.f32 %v2408, %v2531
        %2533 = vdwg.mxu0
        %2534 = vmatpush.msra.mxu0 0.0
        %2535 = vmatpush.msra.mxu0 0.0
        %2536 = vmatpush.msra.mxu0 0.0
        %2537 = vmatpush.msra.mxu0 0.0
        %2538 = vmatpush.msra.mxu0 0.0
        %2539 = vmatpush.msra.mxu0 0.0
        %2540 = vmatpush.msra.mxu0 0.0
        %2541 = vmatpush.msra.mxu0 0.0
        %2542 = vmatpush.msra.mxu0 0.0
        %2543 = vmatpush.msra.mxu0 0.0
        %2544 = vmatpush.msra.mxu0 0.0
        %2545 = vmatpush.msra.mxu0 0.0
        %2546 = vmatpush.msra.mxu0 0.0
        %2547 = vmatpush.msra.mxu0 0.0
        %2548 = vmatpush.msra.mxu0 %v2292
        %2549 = vmatpush.msra.mxu0 %v2288
        %2550 = vmatmul.f32.gmra.mxu0 %v2468
        %v2551 = vpop.f32.mrf.mxu0
        %v2552 = vadd.f32 %v2428, %v2551
        %2553 = vmatmul.f32.gmra.mxu0 %v2470
        %v2554 = vpop.f32.mrf.mxu0
        %v2555 = vadd.f32 %v2431, %v2554
        %2556 = vmatmul.f32.gmra.mxu0 %v2472
        %v2557 = vpop.f32.mrf.mxu0
        %v2558 = vadd.f32 %v2434, %v2557
        %2559 = vmatmul.f32.gmra.mxu0 %v2474
        %v2560 = vpop.f32.mrf.mxu0
        %v2561 = vadd.f32 %v2437, %v2560
        %2562 = vdwg.mxu0
        %2563 = vmatpush.msra.mxu0 0.0
        %2564 = vmatpush.msra.mxu0 0.0
        %2565 = vmatpush.msra.mxu0 0.0
        %2566 = vmatpush.msra.mxu0 0.0
        %2567 = vmatpush.msra.mxu0 0.0
        %2568 = vmatpush.msra.mxu0 0.0
        %2569 = vmatpush.msra.mxu0 0.0
        %2570 = vmatpush.msra.mxu0 0.0
        %2571 = vmatpush.msra.mxu0 0.0
        %2572 = vmatpush.msra.mxu0 0.0
        %2573 = vmatpush.msra.mxu0 0.0
        %2574 = vmatpush.msra.mxu0 0.0
        %2575 = vmatpush.msra.mxu0 0.0
        %2576 = vmatpush.msra.mxu0 0.0
        %2577 = vmatpush.msra.mxu0 %v2293
        %2578 = vmatpush.msra.mxu0 %v2289
        %2579 = vmatmul.f32.gmra.mxu0 %v2468
        %v2580 = vpop.f32.mrf.mxu0
        %v2581 = vadd.f32 %v2457, %v2580
        %2582 = vmatmul.f32.gmra.mxu0 %v2470
        %v2583 = vpop.f32.mrf.mxu0
        %v2584 = vadd.f32 %v2460, %v2583
        %2585 = vmatmul.f32.gmra.mxu0 %v2472
        %v2586 = vpop.f32.mrf.mxu0
        %v2587 = vadd.f32 %v2463, %v2586
        %2588 = vmatmul.f32.gmra.mxu0 %v2474
        %v2589 = vpop.f32.mrf.mxu0
        %v2590 = vadd.f32 %v2466, %v2589
        %2591 = vdwg.mxu0
        %2592 = vrot.lane.b32.xlu0 %v2282, 96
        %v2593 = vpop.permute.xlu0 %2592
        %2594 = vrot.lane.b32.xlu0 %v2283, 96
        %v2595 = vpop.permute.xlu0 %2594
        %2596 = vrot.lane.b32.xlu0 %v2284, 96
        %v2597 = vpop.permute.xlu0 %2596
        %2598 = vrot.lane.b32.xlu0 %v2285, 96
        %v2599 = vpop.permute.xlu0 %2598
        %2600 = vrot.lane.b32.xlu0 %v2286, 124
        %v2601 = vpop.permute.xlu0 %2600
        %2602 = vrot.lane.b32.xlu0 %v2287, 124
        %v2603 = vpop.permute.xlu0 %2602
        %2604 = vrot.lane.b32.xlu0 %v2288, 124
        %v2605 = vpop.permute.xlu0 %2604
        %2606 = vrot.lane.b32.xlu0 %v2289, 124
        %v2607 = vpop.permute.xlu0 %2606
        %2608 = vrot.lane.b32.xlu0 %v2290, 124
        %v2609 = vpop.permute.xlu0 %2608
        %2610 = vrot.lane.b32.xlu0 %v2291, 124
        %v2611 = vpop.permute.xlu0 %2610
        %2612 = vrot.lane.b32.xlu0 %v2292, 124
        %v2613 = vpop.permute.xlu0 %2612
        %2614 = vrot.lane.b32.xlu0 %v2293, 124
        %v2615 = vpop.permute.xlu0 %2614
        %v2616 = vsel %vm669, %v2601, %v2603
        %v2617 = vsel %vm669, %v2603, %v2605
        %v2618 = vsel %vm669, %v2605, %v2607
        %v2619 = vsel %vm669, %v2609, %v2611
        %v2620 = vsel %vm669, %v2611, %v2613
        %v2621 = vsel %vm669, %v2613, %v2615
        %v2630 = vsel %vm1991, %v2593, 0
        %v2632 = vsel %vm1991, %v2595, 0
        %v2634 = vsel %vm1991, %v2597, 0
        %v2636 = vsel %vm1991, %v2599, 0
        %2638 = vmatpush.msra.mxu0 0.0
        %2639 = vmatpush.msra.mxu0 0.0
        %2640 = vmatpush.msra.mxu0 0.0
        %2641 = vmatpush.msra.mxu0 0.0
        %2642 = vmatpush.msra.mxu0 0.0
        %2643 = vmatpush.msra.mxu0 0.0
        %2644 = vmatpush.msra.mxu0 0.0
        %2645 = vmatpush.msra.mxu0 0.0
        %2646 = vmatpush.msra.mxu0 0.0
        %2647 = vmatpush.msra.mxu0 0.0
        %2648 = vmatpush.msra.mxu0 0.0
        %2649 = vmatpush.msra.mxu0 0.0
        %2650 = vmatpush.msra.mxu0 0.0
        %2651 = vmatpush.msra.mxu0 0.0
        %2652 = vmatpush.msra.mxu0 %v2619
        %2653 = vmatpush.msra.mxu0 %v2616
        %2654 = vmatmul.f32.gmra.mxu0 %v2630
        %v2655 = vpop.f32.mrf.mxu0
        %v2656 = vadd.f32 0.0, %v2655
        %2657 = vmatmul.f32.gmra.mxu0 %v2632
        %v2658 = vpop.f32.mrf.mxu0
        %v2659 = vadd.f32 0.0, %v2658
        %2660 = vmatmul.f32.gmra.mxu0 %v2634
        %v2661 = vpop.f32.mrf.mxu0
        %v2662 = vadd.f32 0.0, %v2661
        %2663 = vmatmul.f32.gmra.mxu0 %v2636
        %v2664 = vpop.f32.mrf.mxu0
        %v2665 = vadd.f32 0.0, %v2664
        %2666 = vdwg.mxu0
        %2667 = vmatpush.msra.mxu0 0.0
        %2668 = vmatpush.msra.mxu0 0.0
        %2669 = vmatpush.msra.mxu0 0.0
        %2670 = vmatpush.msra.mxu0 0.0
        %2671 = vmatpush.msra.mxu0 0.0
        %2672 = vmatpush.msra.mxu0 0.0
        %2673 = vmatpush.msra.mxu0 0.0
        %2674 = vmatpush.msra.mxu0 0.0
        %2675 = vmatpush.msra.mxu0 0.0
        %2676 = vmatpush.msra.mxu0 0.0
        %2677 = vmatpush.msra.mxu0 0.0
        %2678 = vmatpush.msra.mxu0 0.0
        %2679 = vmatpush.msra.mxu0 0.0
        %2680 = vmatpush.msra.mxu0 0.0
        %2681 = vmatpush.msra.mxu0 %v2620
        %2682 = vmatpush.msra.mxu0 %v2617
        %2683 = vmatmul.f32.gmra.mxu0 %v2630
        %v2684 = vpop.f32.mrf.mxu0
        %v2685 = vadd.f32 0.0, %v2684
        %2686 = vmatmul.f32.gmra.mxu0 %v2632
        %v2687 = vpop.f32.mrf.mxu0
        %v2688 = vadd.f32 0.0, %v2687
        %2689 = vmatmul.f32.gmra.mxu0 %v2634
        %v2690 = vpop.f32.mrf.mxu0
        %v2691 = vadd.f32 0.0, %v2690
        %2692 = vmatmul.f32.gmra.mxu0 %v2636
        %v2693 = vpop.f32.mrf.mxu0
        %v2694 = vadd.f32 0.0, %v2693
        %2695 = vdwg.mxu0
        %2696 = vmatpush.msra.mxu0 0.0
        %2697 = vmatpush.msra.mxu0 0.0
        %2698 = vmatpush.msra.mxu0 0.0
        %2699 = vmatpush.msra.mxu0 0.0
        %2700 = vmatpush.msra.mxu0 0.0
        %2701 = vmatpush.msra.mxu0 0.0
        %2702 = vmatpush.msra.mxu0 0.0
        %2703 = vmatpush.msra.mxu0 0.0
        %2704 = vmatpush.msra.mxu0 0.0
        %2705 = vmatpush.msra.mxu0 0.0
        %2706 = vmatpush.msra.mxu0 0.0
        %2707 = vmatpush.msra.mxu0 0.0
        %2708 = vmatpush.msra.mxu0 0.0
        %2709 = vmatpush.msra.mxu0 0.0
        %2710 = vmatpush.msra.mxu0 %v2621
        %2711 = vmatpush.msra.mxu0 %v2618
        %2712 = vmatmul.f32.gmra.mxu0 %v2630
        %v2713 = vpop.f32.mrf.mxu0
        %v2714 = vadd.f32 0.0, %v2713
        %2715 = vmatmul.f32.gmra.mxu0 %v2632
        %v2716 = vpop.f32.mrf.mxu0
        %v2717 = vadd.f32 0.0, %v2716
        %2718 = vmatmul.f32.gmra.mxu0 %v2634
        %v2719 = vpop.f32.mrf.mxu0
        %v2720 = vadd.f32 0.0, %v2719
        %2721 = vmatmul.f32.gmra.mxu0 %v2636
        %v2722 = vpop.f32.mrf.mxu0
        %v2723 = vadd.f32 0.0, %v2722
        %2724 = vdwg.mxu0
        %2725 = vmatpush.msra.mxu0 0.0
        %2726 = vmatpush.msra.mxu0 0.0
        %2727 = vmatpush.msra.mxu0 0.0
        %2728 = vmatpush.msra.mxu0 0.0
        %2729 = vmatpush.msra.mxu0 0.0
        %2730 = vmatpush.msra.mxu0 0.0
        %2731 = vmatpush.msra.mxu0 0.0
        %2732 = vmatpush.msra.mxu0 0.0
        %2733 = vmatpush.msra.mxu0 0.0
        %2734 = vmatpush.msra.mxu0 0.0
        %2735 = vmatpush.msra.mxu0 0.0
        %2736 = vmatpush.msra.mxu0 0.0
        %2737 = vmatpush.msra.mxu0 0.0
        %2738 = vmatpush.msra.mxu0 0.0
        %2739 = vmatpush.msra.mxu0 %v2615
        %2740 = vmatpush.msra.mxu0 %v2607
        %2741 = vmatmul.f32.gmra.mxu0 %v2630
        %v2742 = vpop.f32.mrf.mxu0
        %v2743 = vadd.f32 0.0, %v2742
        %2744 = vmatmul.f32.gmra.mxu0 %v2632
        %v2745 = vpop.f32.mrf.mxu0
        %v2746 = vadd.f32 0.0, %v2745
        %2747 = vmatmul.f32.gmra.mxu0 %v2634
        %v2748 = vpop.f32.mrf.mxu0
        %v2749 = vadd.f32 0.0, %v2748
        %2750 = vmatmul.f32.gmra.mxu0 %v2636
        %v2751 = vpop.f32.mrf.mxu0
        %v2752 = vadd.f32 0.0, %v2751
        %2753 = vdwg.mxu0
        %v2754 = vadd.f32 %v2494, %v2656
        %v2755 = vadd.f32 %v2523, %v2685
        %v2756 = vadd.f32 %v2552, %v2714
        %v2757 = vadd.f32 %v2581, %v2743
        %v2758 = vadd.f32 %v2497, %v2659
        %v2759 = vadd.f32 %v2526, %v2688
        %v2760 = vadd.f32 %v2555, %v2717
        %v2761 = vadd.f32 %v2584, %v2746
        %v2762 = vadd.f32 %v2500, %v2662
        %v2763 = vadd.f32 %v2529, %v2691
        %v2764 = vadd.f32 %v2558, %v2720
        %v2765 = vadd.f32 %v2587, %v2749
        %v2766 = vadd.f32 %v2503, %v2665
        %v2767 = vadd.f32 %v2532, %v2694
        %v2768 = vadd.f32 %v2561, %v2723
        %v2769 = vadd.f32 %v2590, %v2752
        %2770 = vrot.lane.b32.xlu0 %v2282, 80
        %v2771 = vpop.permute.xlu0 %2770
        %2772 = vrot.lane.b32.xlu0 %v2283, 80
        %v2773 = vpop.permute.xlu0 %2772
        %2774 = vrot.lane.b32.xlu0 %v2284, 80
        %v2775 = vpop.permute.xlu0 %2774
        %2776 = vrot.lane.b32.xlu0 %v2285, 80
        %v2777 = vpop.permute.xlu0 %2776
        %2778 = vrot.lane.b32.xlu0 %v2286, 122
        %v2779 = vpop.permute.xlu0 %2778
        %2780 = vrot.lane.b32.xlu0 %v2287, 122
        %v2781 = vpop.permute.xlu0 %2780
        %2782 = vrot.lane.b32.xlu0 %v2288, 122
        %v2783 = vpop.permute.xlu0 %2782
        %2784 = vrot.lane.b32.xlu0 %v2289, 122
        %v2785 = vpop.permute.xlu0 %2784
        %2786 = vrot.lane.b32.xlu0 %v2290, 122
        %v2787 = vpop.permute.xlu0 %2786
        %2788 = vrot.lane.b32.xlu0 %v2291, 122
        %v2789 = vpop.permute.xlu0 %2788
        %2790 = vrot.lane.b32.xlu0 %v2292, 122
        %v2791 = vpop.permute.xlu0 %2790
        %2792 = vrot.lane.b32.xlu0 %v2293, 122
        %v2793 = vpop.permute.xlu0 %2792
        %vm2794 = vcmask 998400
        %v2795 = vsel %vm2794, %v2779, %v2781
        %v2796 = vsel %vm2794, %v2781, %v2783
        %v2797 = vsel %vm2794, %v2783, %v2785
        %v2798 = vsel %vm2794, %v2787, %v2789
        %v2799 = vsel %vm2794, %v2789, %v2791
        %v2800 = vsel %vm2794, %v2791, %v2793
        %v2809 = vsel %vm1991, %v2771, 0
        %v2811 = vsel %vm1991, %v2773, 0
        %v2813 = vsel %vm1991, %v2775, 0
        %v2815 = vsel %vm1991, %v2777, 0
        %2817 = vmatpush.msra.mxu0 0.0
        %2818 = vmatpush.msra.mxu0 0.0
        %2819 = vmatpush.msra.mxu0 0.0
        %2820 = vmatpush.msra.mxu0 0.0
        %2821 = vmatpush.msra.mxu0 0.0
        %2822 = vmatpush.msra.mxu0 0.0
        %2823 = vmatpush.msra.mxu0 0.0
        %2824 = vmatpush.msra.mxu0 0.0
        %2825 = vmatpush.msra.mxu0 0.0
        %2826 = vmatpush.msra.mxu0 0.0
        %2827 = vmatpush.msra.mxu0 0.0
        %2828 = vmatpush.msra.mxu0 0.0
        %2829 = vmatpush.msra.mxu0 0.0
        %2830 = vmatpush.msra.mxu0 0.0
        %2831 = vmatpush.msra.mxu0 %v2798
        %2832 = vmatpush.msra.mxu0 %v2795
        %2833 = vmatmul.f32.gmra.mxu0 %v2809
        %v2834 = vpop.f32.mrf.mxu0
        %v2835 = vadd.f32 0.0, %v2834
        %2836 = vmatmul.f32.gmra.mxu0 %v2811
        %v2837 = vpop.f32.mrf.mxu0
        %v2838 = vadd.f32 0.0, %v2837
        %2839 = vmatmul.f32.gmra.mxu0 %v2813
        %v2840 = vpop.f32.mrf.mxu0
        %v2841 = vadd.f32 0.0, %v2840
        %2842 = vmatmul.f32.gmra.mxu0 %v2815
        %v2843 = vpop.f32.mrf.mxu0
        %v2844 = vadd.f32 0.0, %v2843
        %2845 = vdwg.mxu0
        %2846 = vmatpush.msra.mxu0 0.0
        %2847 = vmatpush.msra.mxu0 0.0
        %2848 = vmatpush.msra.mxu0 0.0
        %2849 = vmatpush.msra.mxu0 0.0
        %2850 = vmatpush.msra.mxu0 0.0
        %2851 = vmatpush.msra.mxu0 0.0
        %2852 = vmatpush.msra.mxu0 0.0
        %2853 = vmatpush.msra.mxu0 0.0
        %2854 = vmatpush.msra.mxu0 0.0
        %2855 = vmatpush.msra.mxu0 0.0
        %2856 = vmatpush.msra.mxu0 0.0
        %2857 = vmatpush.msra.mxu0 0.0
        %2858 = vmatpush.msra.mxu0 0.0
        %2859 = vmatpush.msra.mxu0 0.0
        %2860 = vmatpush.msra.mxu0 %v2799
        %2861 = vmatpush.msra.mxu0 %v2796
        %2862 = vmatmul.f32.gmra.mxu0 %v2809
        %v2863 = vpop.f32.mrf.mxu0
        %v2864 = vadd.f32 0.0, %v2863
        %2865 = vmatmul.f32.gmra.mxu0 %v2811
        %v2866 = vpop.f32.mrf.mxu0
        %v2867 = vadd.f32 0.0, %v2866
        %2868 = vmatmul.f32.gmra.mxu0 %v2813
        %v2869 = vpop.f32.mrf.mxu0
        %v2870 = vadd.f32 0.0, %v2869
        %2871 = vmatmul.f32.gmra.mxu0 %v2815
        %v2872 = vpop.f32.mrf.mxu0
        %v2873 = vadd.f32 0.0, %v2872
        %2874 = vdwg.mxu0
        %2875 = vmatpush.msra.mxu0 0.0
        %2876 = vmatpush.msra.mxu0 0.0
        %2877 = vmatpush.msra.mxu0 0.0
        %2878 = vmatpush.msra.mxu0 0.0
        %2879 = vmatpush.msra.mxu0 0.0
        %2880 = vmatpush.msra.mxu0 0.0
        %2881 = vmatpush.msra.mxu0 0.0
        %2882 = vmatpush.msra.mxu0 0.0
        %2883 = vmatpush.msra.mxu0 0.0
        %2884 = vmatpush.msra.mxu0 0.0
        %2885 = vmatpush.msra.mxu0 0.0
        %2886 = vmatpush.msra.mxu0 0.0
        %2887 = vmatpush.msra.mxu0 0.0
        %2888 = vmatpush.msra.mxu0 0.0
        %2889 = vmatpush.msra.mxu0 %v2800
        %2890 = vmatpush.msra.mxu0 %v2797
        %2891 = vmatmul.f32.gmra.mxu0 %v2809
        %v2892 = vpop.f32.mrf.mxu0
        %v2893 = vadd.f32 0.0, %v2892
        %2894 = vmatmul.f32.gmra.mxu0 %v2811
        %v2895 = vpop.f32.mrf.mxu0
        %v2896 = vadd.f32 0.0, %v2895
        %2897 = vmatmul.f32.gmra.mxu0 %v2813
        %v2898 = vpop.f32.mrf.mxu0
        %v2899 = vadd.f32 0.0, %v2898
        %2900 = vmatmul.f32.gmra.mxu0 %v2815
        %v2901 = vpop.f32.mrf.mxu0
        %v2902 = vadd.f32 0.0, %v2901
        %2903 = vdwg.mxu0
        %2904 = vmatpush.msra.mxu0 0.0
        %2905 = vmatpush.msra.mxu0 0.0
        %2906 = vmatpush.msra.mxu0 0.0
        %2907 = vmatpush.msra.mxu0 0.0
        %2908 = vmatpush.msra.mxu0 0.0
        %2909 = vmatpush.msra.mxu0 0.0
        %2910 = vmatpush.msra.mxu0 0.0
        %2911 = vmatpush.msra.mxu0 0.0
        %2912 = vmatpush.msra.mxu0 0.0
        %2913 = vmatpush.msra.mxu0 0.0
        %2914 = vmatpush.msra.mxu0 0.0
        %2915 = vmatpush.msra.mxu0 0.0
        %2916 = vmatpush.msra.mxu0 0.0
        %2917 = vmatpush.msra.mxu0 0.0
        %2918 = vmatpush.msra.mxu0 %v2793
        %2919 = vmatpush.msra.mxu0 %v2785
        %2920 = vmatmul.f32.gmra.mxu0 %v2809
        %v2921 = vpop.f32.mrf.mxu0
        %v2922 = vadd.f32 0.0, %v2921
        %2923 = vmatmul.f32.gmra.mxu0 %v2811
        %v2924 = vpop.f32.mrf.mxu0
        %v2925 = vadd.f32 0.0, %v2924
        %2926 = vmatmul.f32.gmra.mxu0 %v2813
        %v2927 = vpop.f32.mrf.mxu0
        %v2928 = vadd.f32 0.0, %v2927
        %2929 = vmatmul.f32.gmra.mxu0 %v2815
        %v2930 = vpop.f32.mrf.mxu0
        %v2931 = vadd.f32 0.0, %v2930
        %2932 = vdwg.mxu0
        %v2933 = vadd.f32 %v2754, %v2835
        %v2934 = vadd.f32 %v2755, %v2864
        %v2935 = vadd.f32 %v2756, %v2893
        %v2936 = vadd.f32 %v2757, %v2922
        %v2937 = vadd.f32 %v2758, %v2838
        %v2938 = vadd.f32 %v2759, %v2867
        %v2939 = vadd.f32 %v2760, %v2896
        %v2940 = vadd.f32 %v2761, %v2925
        %v2941 = vadd.f32 %v2762, %v2841
        %v2942 = vadd.f32 %v2763, %v2870
        %v2943 = vadd.f32 %v2764, %v2899
        %v2944 = vadd.f32 %v2765, %v2928
        %v2945 = vadd.f32 %v2766, %v2844
        %v2946 = vadd.f32 %v2767, %v2873
        %v2947 = vadd.f32 %v2768, %v2902
        %v2948 = vadd.f32 %v2769, %v2931
        %2949 = vrot.lane.b32.xlu0 %v2282, 64
        %v2950 = vpop.permute.xlu0 %2949
        %2951 = vrot.lane.b32.xlu0 %v2283, 64
        %v2952 = vpop.permute.xlu0 %2951
        %2953 = vrot.lane.b32.xlu0 %v2284, 64
        %v2954 = vpop.permute.xlu0 %2953
        %2955 = vrot.lane.b32.xlu0 %v2285, 64
        %v2956 = vpop.permute.xlu0 %2955
        %2957 = vrot.lane.b32.xlu0 %v2286, 120
        %v2958 = vpop.permute.xlu0 %2957
        %2959 = vrot.lane.b32.xlu0 %v2287, 120
        %v2960 = vpop.permute.xlu0 %2959
        %2961 = vrot.lane.b32.xlu0 %v2288, 120
        %v2962 = vpop.permute.xlu0 %2961
        %2963 = vrot.lane.b32.xlu0 %v2289, 120
        %v2964 = vpop.permute.xlu0 %2963
        %2965 = vrot.lane.b32.xlu0 %v2290, 120
        %v2966 = vpop.permute.xlu0 %2965
        %2967 = vrot.lane.b32.xlu0 %v2291, 120
        %v2968 = vpop.permute.xlu0 %2967
        %2969 = vrot.lane.b32.xlu0 %v2292, 120
        %v2970 = vpop.permute.xlu0 %2969
        %2971 = vrot.lane.b32.xlu0 %v2293, 120
        %v2972 = vpop.permute.xlu0 %2971
        %vm2973 = vcmask 982016
        %v2974 = vsel %vm2973, %v2958, %v2960
        %v2975 = vsel %vm2973, %v2960, %v2962
        %v2976 = vsel %vm2973, %v2962, %v2964
        %v2977 = vsel %vm2973, %v2966, %v2968
        %v2978 = vsel %vm2973, %v2968, %v2970
        %v2979 = vsel %vm2973, %v2970, %v2972
        %v2988 = vsel %vm1991, %v2950, 0
        %v2990 = vsel %vm1991, %v2952, 0
        %v2992 = vsel %vm1991, %v2954, 0
        %v2994 = vsel %vm1991, %v2956, 0
        %2996 = vmatpush.msra.mxu0 0.0
        %2997 = vmatpush.msra.mxu0 0.0
        %2998 = vmatpush.msra.mxu0 0.0
        %2999 = vmatpush.msra.mxu0 0.0
        %3000 = vmatpush.msra.mxu0 0.0
        %3001 = vmatpush.msra.mxu0 0.0
        %3002 = vmatpush.msra.mxu0 0.0
        %3003 = vmatpush.msra.mxu0 0.0
        %3004 = vmatpush.msra.mxu0 0.0
        %3005 = vmatpush.msra.mxu0 0.0
        %3006 = vmatpush.msra.mxu0 0.0
        %3007 = vmatpush.msra.mxu0 0.0
        %3008 = vmatpush.msra.mxu0 0.0
        %3009 = vmatpush.msra.mxu0 0.0
        %3010 = vmatpush.msra.mxu0 %v2977
        %3011 = vmatpush.msra.mxu0 %v2974
        %3012 = vmatmul.f32.gmra.mxu0 %v2988
        %v3013 = vpop.f32.mrf.mxu0
        %v3014 = vadd.f32 0.0, %v3013
        %3015 = vmatmul.f32.gmra.mxu0 %v2990
        %v3016 = vpop.f32.mrf.mxu0
        %v3017 = vadd.f32 0.0, %v3016
        %3018 = vmatmul.f32.gmra.mxu0 %v2992
        %v3019 = vpop.f32.mrf.mxu0
        %v3020 = vadd.f32 0.0, %v3019
        %3021 = vmatmul.f32.gmra.mxu0 %v2994
        %v3022 = vpop.f32.mrf.mxu0
        %v3023 = vadd.f32 0.0, %v3022
        %3024 = vdwg.mxu0
        %3025 = vmatpush.msra.mxu0 0.0
        %3026 = vmatpush.msra.mxu0 0.0
        %3027 = vmatpush.msra.mxu0 0.0
        %3028 = vmatpush.msra.mxu0 0.0
        %3029 = vmatpush.msra.mxu0 0.0
        %3030 = vmatpush.msra.mxu0 0.0
        %3031 = vmatpush.msra.mxu0 0.0
        %3032 = vmatpush.msra.mxu0 0.0
        %3033 = vmatpush.msra.mxu0 0.0
        %3034 = vmatpush.msra.mxu0 0.0
        %3035 = vmatpush.msra.mxu0 0.0
        %3036 = vmatpush.msra.mxu0 0.0
        %3037 = vmatpush.msra.mxu0 0.0
        %3038 = vmatpush.msra.mxu0 0.0
        %3039 = vmatpush.msra.mxu0 %v2978
        %3040 = vmatpush.msra.mxu0 %v2975
        %3041 = vmatmul.f32.gmra.mxu0 %v2988
        %v3042 = vpop.f32.mrf.mxu0
        %v3043 = vadd.f32 0.0, %v3042
        %3044 = vmatmul.f32.gmra.mxu0 %v2990
        %v3045 = vpop.f32.mrf.mxu0
        %v3046 = vadd.f32 0.0, %v3045
        %3047 = vmatmul.f32.gmra.mxu0 %v2992
        %v3048 = vpop.f32.mrf.mxu0
        %v3049 = vadd.f32 0.0, %v3048
        %3050 = vmatmul.f32.gmra.mxu0 %v2994
        %v3051 = vpop.f32.mrf.mxu0
        %v3052 = vadd.f32 0.0, %v3051
        %3053 = vdwg.mxu0
        %3054 = vmatpush.msra.mxu0 0.0
        %3055 = vmatpush.msra.mxu0 0.0
        %3056 = vmatpush.msra.mxu0 0.0
        %3057 = vmatpush.msra.mxu0 0.0
        %3058 = vmatpush.msra.mxu0 0.0
        %3059 = vmatpush.msra.mxu0 0.0
        %3060 = vmatpush.msra.mxu0 0.0
        %3061 = vmatpush.msra.mxu0 0.0
        %3062 = vmatpush.msra.mxu0 0.0
        %3063 = vmatpush.msra.mxu0 0.0
        %3064 = vmatpush.msra.mxu0 0.0
        %3065 = vmatpush.msra.mxu0 0.0
        %3066 = vmatpush.msra.mxu0 0.0
        %3067 = vmatpush.msra.mxu0 0.0
        %3068 = vmatpush.msra.mxu0 %v2979
        %3069 = vmatpush.msra.mxu0 %v2976
        %3070 = vmatmul.f32.gmra.mxu0 %v2988
        %v3071 = vpop.f32.mrf.mxu0
        %v3072 = vadd.f32 0.0, %v3071
        %3073 = vmatmul.f32.gmra.mxu0 %v2990
        %v3074 = vpop.f32.mrf.mxu0
        %v3075 = vadd.f32 0.0, %v3074
        %3076 = vmatmul.f32.gmra.mxu0 %v2992
        %v3077 = vpop.f32.mrf.mxu0
        %v3078 = vadd.f32 0.0, %v3077
        %3079 = vmatmul.f32.gmra.mxu0 %v2994
        %v3080 = vpop.f32.mrf.mxu0
        %v3081 = vadd.f32 0.0, %v3080
        %3082 = vdwg.mxu0
        %3083 = vmatpush.msra.mxu0 0.0
        %3084 = vmatpush.msra.mxu0 0.0
        %3085 = vmatpush.msra.mxu0 0.0
        %3086 = vmatpush.msra.mxu0 0.0
        %3087 = vmatpush.msra.mxu0 0.0
        %3088 = vmatpush.msra.mxu0 0.0
        %3089 = vmatpush.msra.mxu0 0.0
        %3090 = vmatpush.msra.mxu0 0.0
        %3091 = vmatpush.msra.mxu0 0.0
        %3092 = vmatpush.msra.mxu0 0.0
        %3093 = vmatpush.msra.mxu0 0.0
        %3094 = vmatpush.msra.mxu0 0.0
        %3095 = vmatpush.msra.mxu0 0.0
        %3096 = vmatpush.msra.mxu0 0.0
        %3097 = vmatpush.msra.mxu0 %v2972
        %3098 = vmatpush.msra.mxu0 %v2964
        %3099 = vmatmul.f32.gmra.mxu0 %v2988
        %v3100 = vpop.f32.mrf.mxu0
        %v3101 = vadd.f32 0.0, %v3100
        %3102 = vmatmul.f32.gmra.mxu0 %v2990
        %v3103 = vpop.f32.mrf.mxu0
        %v3104 = vadd.f32 0.0, %v3103
        %3105 = vmatmul.f32.gmra.mxu0 %v2992
        %v3106 = vpop.f32.mrf.mxu0
        %v3107 = vadd.f32 0.0, %v3106
        %3108 = vmatmul.f32.gmra.mxu0 %v2994
        %v3109 = vpop.f32.mrf.mxu0
        %v3110 = vadd.f32 0.0, %v3109
        %3111 = vdwg.mxu0
        %v3112 = vadd.f32 %v2933, %v3014
        %v3113 = vadd.f32 %v2934, %v3043
        %v3114 = vadd.f32 %v2935, %v3072
        %v3115 = vadd.f32 %v2936, %v3101
        %v3116 = vadd.f32 %v2937, %v3017
        %v3117 = vadd.f32 %v2938, %v3046
        %v3118 = vadd.f32 %v2939, %v3075
        %v3119 = vadd.f32 %v2940, %v3104
        %v3120 = vadd.f32 %v2941, %v3020
        %v3121 = vadd.f32 %v2942, %v3049
        %v3122 = vadd.f32 %v2943, %v3078
        %v3123 = vadd.f32 %v2944, %v3107
        %v3124 = vadd.f32 %v2945, %v3023
        %v3125 = vadd.f32 %v2946, %v3052
        %v3126 = vadd.f32 %v2947, %v3081
        %v3127 = vadd.f32 %v2948, %v3110
        %3128 = vrot.lane.b32.xlu0 %v2282, 48
        %v3129 = vpop.permute.xlu0 %3128
        %3130 = vrot.lane.b32.xlu0 %v2283, 48
        %v3131 = vpop.permute.xlu0 %3130
        %3132 = vrot.lane.b32.xlu0 %v2284, 48
        %v3133 = vpop.permute.xlu0 %3132
        %3134 = vrot.lane.b32.xlu0 %v2285, 48
        %v3135 = vpop.permute.xlu0 %3134
        %3136 = vrot.lane.b32.xlu0 %v2286, 88
        %v3137 = vpop.permute.xlu0 %3136
        %3138 = vrot.lane.b32.xlu0 %v2287, 88
        %v3139 = vpop.permute.xlu0 %3138
        %3140 = vrot.lane.b32.xlu0 %v2288, 88
        %v3141 = vpop.permute.xlu0 %3140
        %3142 = vrot.lane.b32.xlu0 %v2289, 88
        %v3143 = vpop.permute.xlu0 %3142
        %3144 = vrot.lane.b32.xlu0 %v2290, 88
        %v3145 = vpop.permute.xlu0 %3144
        %3146 = vrot.lane.b32.xlu0 %v2291, 88
        %v3147 = vpop.permute.xlu0 %3146
        %3148 = vrot.lane.b32.xlu0 %v2292, 88
        %v3149 = vpop.permute.xlu0 %3148
        %3150 = vrot.lane.b32.xlu0 %v2293, 88
        %v3151 = vpop.permute.xlu0 %3150
        %v3152 = vsel %vm1047, %v3137, %v3139
        %v3153 = vsel %vm1047, %v3139, %v3141
        %v3154 = vsel %vm1047, %v3141, %v3143
        %v3155 = vsel %vm1047, %v3145, %v3147
        %v3156 = vsel %vm1047, %v3147, %v3149
        %v3157 = vsel %vm1047, %v3149, %v3151
        %v3166 = vsel %vm1991, %v3129, 0
        %v3168 = vsel %vm1991, %v3131, 0
        %v3170 = vsel %vm1991, %v3133, 0
        %v3172 = vsel %vm1991, %v3135, 0
        %3174 = vmatpush.msra.mxu0 0.0
        %3175 = vmatpush.msra.mxu0 0.0
        %3176 = vmatpush.msra.mxu0 0.0
        %3177 = vmatpush.msra.mxu0 0.0
        %3178 = vmatpush.msra.mxu0 0.0
        %3179 = vmatpush.msra.mxu0 0.0
        %3180 = vmatpush.msra.mxu0 0.0
        %3181 = vmatpush.msra.mxu0 0.0
        %3182 = vmatpush.msra.mxu0 0.0
        %3183 = vmatpush.msra.mxu0 0.0
        %3184 = vmatpush.msra.mxu0 0.0
        %3185 = vmatpush.msra.mxu0 0.0
        %3186 = vmatpush.msra.mxu0 0.0
        %3187 = vmatpush.msra.mxu0 0.0
        %3188 = vmatpush.msra.mxu0 %v3155
        %3189 = vmatpush.msra.mxu0 %v3152
        %3190 = vmatmul.f32.gmra.mxu0 %v3166
        %v3191 = vpop.f32.mrf.mxu0
        %v3192 = vadd.f32 0.0, %v3191
        %3193 = vmatmul.f32.gmra.mxu0 %v3168
        %v3194 = vpop.f32.mrf.mxu0
        %v3195 = vadd.f32 0.0, %v3194
        %3196 = vmatmul.f32.gmra.mxu0 %v3170
        %v3197 = vpop.f32.mrf.mxu0
        %v3198 = vadd.f32 0.0, %v3197
        %3199 = vmatmul.f32.gmra.mxu0 %v3172
        %v3200 = vpop.f32.mrf.mxu0
        %v3201 = vadd.f32 0.0, %v3200
        %3202 = vdwg.mxu0
        %3203 = vmatpush.msra.mxu0 0.0
        %3204 = vmatpush.msra.mxu0 0.0
        %3205 = vmatpush.msra.mxu0 0.0
        %3206 = vmatpush.msra.mxu0 0.0
        %3207 = vmatpush.msra.mxu0 0.0
        %3208 = vmatpush.msra.mxu0 0.0
        %3209 = vmatpush.msra.mxu0 0.0
        %3210 = vmatpush.msra.mxu0 0.0
        %3211 = vmatpush.msra.mxu0 0.0
        %3212 = vmatpush.msra.mxu0 0.0
        %3213 = vmatpush.msra.mxu0 0.0
        %3214 = vmatpush.msra.mxu0 0.0
        %3215 = vmatpush.msra.mxu0 0.0
        %3216 = vmatpush.msra.mxu0 0.0
        %3217 = vmatpush.msra.mxu0 %v3156
        %3218 = vmatpush.msra.mxu0 %v3153
        %3219 = vmatmul.f32.gmra.mxu0 %v3166
        %v3220 = vpop.f32.mrf.mxu0
        %v3221 = vadd.f32 0.0, %v3220
        %3222 = vmatmul.f32.gmra.mxu0 %v3168
        %v3223 = vpop.f32.mrf.mxu0
        %v3224 = vadd.f32 0.0, %v3223
        %3225 = vmatmul.f32.gmra.mxu0 %v3170
        %v3226 = vpop.f32.mrf.mxu0
        %v3227 = vadd.f32 0.0, %v3226
        %3228 = vmatmul.f32.gmra.mxu0 %v3172
        %v3229 = vpop.f32.mrf.mxu0
        %v3230 = vadd.f32 0.0, %v3229
        %3231 = vdwg.mxu0
        %3232 = vmatpush.msra.mxu0 0.0
        %3233 = vmatpush.msra.mxu0 0.0
        %3234 = vmatpush.msra.mxu0 0.0
        %3235 = vmatpush.msra.mxu0 0.0
        %3236 = vmatpush.msra.mxu0 0.0
        %3237 = vmatpush.msra.mxu0 0.0
        %3238 = vmatpush.msra.mxu0 0.0
        %3239 = vmatpush.msra.mxu0 0.0
        %3240 = vmatpush.msra.mxu0 0.0
        %3241 = vmatpush.msra.mxu0 0.0
        %3242 = vmatpush.msra.mxu0 0.0
        %3243 = vmatpush.msra.mxu0 0.0
        %3244 = vmatpush.msra.mxu0 0.0
        %3245 = vmatpush.msra.mxu0 0.0
        %3246 = vmatpush.msra.mxu0 %v3157
        %3247 = vmatpush.msra.mxu0 %v3154
        %3248 = vmatmul.f32.gmra.mxu0 %v3166
        %v3249 = vpop.f32.mrf.mxu0
        %v3250 = vadd.f32 0.0, %v3249
        %3251 = vmatmul.f32.gmra.mxu0 %v3168
        %v3252 = vpop.f32.mrf.mxu0
        %v3253 = vadd.f32 0.0, %v3252
        %3254 = vmatmul.f32.gmra.mxu0 %v3170
        %v3255 = vpop.f32.mrf.mxu0
        %v3256 = vadd.f32 0.0, %v3255
        %3257 = vmatmul.f32.gmra.mxu0 %v3172
        %v3258 = vpop.f32.mrf.mxu0
        %v3259 = vadd.f32 0.0, %v3258
        %3260 = vdwg.mxu0
        %3261 = vmatpush.msra.mxu0 0.0
        %3262 = vmatpush.msra.mxu0 0.0
        %3263 = vmatpush.msra.mxu0 0.0
        %3264 = vmatpush.msra.mxu0 0.0
        %3265 = vmatpush.msra.mxu0 0.0
        %3266 = vmatpush.msra.mxu0 0.0
        %3267 = vmatpush.msra.mxu0 0.0
        %3268 = vmatpush.msra.mxu0 0.0
        %3269 = vmatpush.msra.mxu0 0.0
        %3270 = vmatpush.msra.mxu0 0.0
        %3271 = vmatpush.msra.mxu0 0.0
        %3272 = vmatpush.msra.mxu0 0.0
        %3273 = vmatpush.msra.mxu0 0.0
        %3274 = vmatpush.msra.mxu0 0.0
        %3275 = vmatpush.msra.mxu0 %v3151
        %3276 = vmatpush.msra.mxu0 %v3143
        %3277 = vmatmul.f32.gmra.mxu0 %v3166
        %v3278 = vpop.f32.mrf.mxu0
        %v3279 = vadd.f32 0.0, %v3278
        %3280 = vmatmul.f32.gmra.mxu0 %v3168
        %v3281 = vpop.f32.mrf.mxu0
        %v3282 = vadd.f32 0.0, %v3281
        %3283 = vmatmul.f32.gmra.mxu0 %v3170
        %v3284 = vpop.f32.mrf.mxu0
        %v3285 = vadd.f32 0.0, %v3284
        %3286 = vmatmul.f32.gmra.mxu0 %v3172
        %v3287 = vpop.f32.mrf.mxu0
        %v3288 = vadd.f32 0.0, %v3287
        %3289 = vdwg.mxu0
        %v3290 = vadd.f32 %v3112, %v3192
        %v3291 = vadd.f32 %v3113, %v3221
        %v3292 = vadd.f32 %v3114, %v3250
        %v3293 = vadd.f32 %v3115, %v3279
        %v3294 = vadd.f32 %v3116, %v3195
        %v3295 = vadd.f32 %v3117, %v3224
        %v3296 = vadd.f32 %v3118, %v3253
        %v3297 = vadd.f32 %v3119, %v3282
        %v3298 = vadd.f32 %v3120, %v3198
        %v3299 = vadd.f32 %v3121, %v3227
        %v3300 = vadd.f32 %v3122, %v3256
        %v3301 = vadd.f32 %v3123, %v3285
        %v3302 = vadd.f32 %v3124, %v3201
        %v3303 = vadd.f32 %v3125, %v3230
        %v3304 = vadd.f32 %v3126, %v3259
        %v3305 = vadd.f32 %v3127, %v3288
        %3306 = vrot.lane.b32.xlu0 %v2282, 32
        %v3307 = vpop.permute.xlu0 %3306
        %3308 = vrot.lane.b32.xlu0 %v2283, 32
        %v3309 = vpop.permute.xlu0 %3308
        %3310 = vrot.lane.b32.xlu0 %v2284, 32
        %v3311 = vpop.permute.xlu0 %3310
        %3312 = vrot.lane.b32.xlu0 %v2285, 32
        %v3313 = vpop.permute.xlu0 %3312
        %3314 = vrot.lane.b32.xlu0 %v2286, 86
        %v3315 = vpop.permute.xlu0 %3314
        %3316 = vrot.lane.b32.xlu0 %v2287, 86
        %v3317 = vpop.permute.xlu0 %3316
        %3318 = vrot.lane.b32.xlu0 %v2288, 86
        %v3319 = vpop.permute.xlu0 %3318
        %3320 = vrot.lane.b32.xlu0 %v2289, 86
        %v3321 = vpop.permute.xlu0 %3320
        %3322 = vrot.lane.b32.xlu0 %v2290, 86
        %v3323 = vpop.permute.xlu0 %3322
        %3324 = vrot.lane.b32.xlu0 %v2291, 86
        %v3325 = vpop.permute.xlu0 %3324
        %3326 = vrot.lane.b32.xlu0 %v2292, 86
        %v3327 = vpop.permute.xlu0 %3326
        %3328 = vrot.lane.b32.xlu0 %v2293, 86
        %v3329 = vpop.permute.xlu0 %3328
        %v3330 = vsel %vm1173, %v3315, %v3317
        %v3331 = vsel %vm1173, %v3317, %v3319
        %v3332 = vsel %vm1173, %v3319, %v3321
        %v3333 = vsel %vm1173, %v3323, %v3325
        %v3334 = vsel %vm1173, %v3325, %v3327
        %v3335 = vsel %vm1173, %v3327, %v3329
        %v3344 = vsel %vm1991, %v3307, 0
        %v3346 = vsel %vm1991, %v3309, 0
        %v3348 = vsel %vm1991, %v3311, 0
        %v3350 = vsel %vm1991, %v3313, 0
        %3352 = vmatpush.msra.mxu0 0.0
        %3353 = vmatpush.msra.mxu0 0.0
        %3354 = vmatpush.msra.mxu0 0.0
        %3355 = vmatpush.msra.mxu0 0.0
        %3356 = vmatpush.msra.mxu0 0.0
        %3357 = vmatpush.msra.mxu0 0.0
        %3358 = vmatpush.msra.mxu0 0.0
        %3359 = vmatpush.msra.mxu0 0.0
        %3360 = vmatpush.msra.mxu0 0.0
        %3361 = vmatpush.msra.mxu0 0.0
        %3362 = vmatpush.msra.mxu0 0.0
        %3363 = vmatpush.msra.mxu0 0.0
        %3364 = vmatpush.msra.mxu0 0.0
        %3365 = vmatpush.msra.mxu0 0.0
        %3366 = vmatpush.msra.mxu0 %v3333
        %3367 = vmatpush.msra.mxu0 %v3330
        %3368 = vmatmul.f32.gmra.mxu0 %v3344
        %v3369 = vpop.f32.mrf.mxu0
        %v3370 = vadd.f32 0.0, %v3369
        %3371 = vmatmul.f32.gmra.mxu0 %v3346
        %v3372 = vpop.f32.mrf.mxu0
        %v3373 = vadd.f32 0.0, %v3372
        %3374 = vmatmul.f32.gmra.mxu0 %v3348
        %v3375 = vpop.f32.mrf.mxu0
        %v3376 = vadd.f32 0.0, %v3375
        %3377 = vmatmul.f32.gmra.mxu0 %v3350
        %v3378 = vpop.f32.mrf.mxu0
        %v3379 = vadd.f32 0.0, %v3378
        %3380 = vdwg.mxu0
        %3381 = vmatpush.msra.mxu0 0.0
        %3382 = vmatpush.msra.mxu0 0.0
        %3383 = vmatpush.msra.mxu0 0.0
        %3384 = vmatpush.msra.mxu0 0.0
        %3385 = vmatpush.msra.mxu0 0.0
        %3386 = vmatpush.msra.mxu0 0.0
        %3387 = vmatpush.msra.mxu0 0.0
        %3388 = vmatpush.msra.mxu0 0.0
        %3389 = vmatpush.msra.mxu0 0.0
        %3390 = vmatpush.msra.mxu0 0.0
        %3391 = vmatpush.msra.mxu0 0.0
        %3392 = vmatpush.msra.mxu0 0.0
        %3393 = vmatpush.msra.mxu0 0.0
        %3394 = vmatpush.msra.mxu0 0.0
        %3395 = vmatpush.msra.mxu0 %v3334
        %3396 = vmatpush.msra.mxu0 %v3331
        %3397 = vmatmul.f32.gmra.mxu0 %v3344
        %v3398 = vpop.f32.mrf.mxu0
        %v3399 = vadd.f32 0.0, %v3398
        %3400 = vmatmul.f32.gmra.mxu0 %v3346
        %v3401 = vpop.f32.mrf.mxu0
        %v3402 = vadd.f32 0.0, %v3401
        %3403 = vmatmul.f32.gmra.mxu0 %v3348
        %v3404 = vpop.f32.mrf.mxu0
        %v3405 = vadd.f32 0.0, %v3404
        %3406 = vmatmul.f32.gmra.mxu0 %v3350
        %v3407 = vpop.f32.mrf.mxu0
        %v3408 = vadd.f32 0.0, %v3407
        %3409 = vdwg.mxu0
        %3410 = vmatpush.msra.mxu0 0.0
        %3411 = vmatpush.msra.mxu0 0.0
        %3412 = vmatpush.msra.mxu0 0.0
        %3413 = vmatpush.msra.mxu0 0.0
        %3414 = vmatpush.msra.mxu0 0.0
        %3415 = vmatpush.msra.mxu0 0.0
        %3416 = vmatpush.msra.mxu0 0.0
        %3417 = vmatpush.msra.mxu0 0.0
        %3418 = vmatpush.msra.mxu0 0.0
        %3419 = vmatpush.msra.mxu0 0.0
        %3420 = vmatpush.msra.mxu0 0.0
        %3421 = vmatpush.msra.mxu0 0.0
        %3422 = vmatpush.msra.mxu0 0.0
        %3423 = vmatpush.msra.mxu0 0.0
        %3424 = vmatpush.msra.mxu0 %v3335
        %3425 = vmatpush.msra.mxu0 %v3332
        %3426 = vmatmul.f32.gmra.mxu0 %v3344
        %v3427 = vpop.f32.mrf.mxu0
        %v3428 = vadd.f32 0.0, %v3427
        %3429 = vmatmul.f32.gmra.mxu0 %v3346
        %v3430 = vpop.f32.mrf.mxu0
        %v3431 = vadd.f32 0.0, %v3430
        %3432 = vmatmul.f32.gmra.mxu0 %v3348
        %v3433 = vpop.f32.mrf.mxu0
        %v3434 = vadd.f32 0.0, %v3433
        %3435 = vmatmul.f32.gmra.mxu0 %v3350
        %v3436 = vpop.f32.mrf.mxu0
        %v3437 = vadd.f32 0.0, %v3436
        %3438 = vdwg.mxu0
        %3439 = vmatpush.msra.mxu0 0.0
        %3440 = vmatpush.msra.mxu0 0.0
        %3441 = vmatpush.msra.mxu0 0.0
        %3442 = vmatpush.msra.mxu0 0.0
        %3443 = vmatpush.msra.mxu0 0.0
        %3444 = vmatpush.msra.mxu0 0.0
        %3445 = vmatpush.msra.mxu0 0.0
        %3446 = vmatpush.msra.mxu0 0.0
        %3447 = vmatpush.msra.mxu0 0.0
        %3448 = vmatpush.msra.mxu0 0.0
        %3449 = vmatpush.msra.mxu0 0.0
        %3450 = vmatpush.msra.mxu0 0.0
        %3451 = vmatpush.msra.mxu0 0.0
        %3452 = vmatpush.msra.mxu0 0.0
        %3453 = vmatpush.msra.mxu0 %v3329
        %3454 = vmatpush.msra.mxu0 %v3321
        %3455 = vmatmul.f32.gmra.mxu0 %v3344
        %v3456 = vpop.f32.mrf.mxu0
        %v3457 = vadd.f32 0.0, %v3456
        %3458 = vmatmul.f32.gmra.mxu0 %v3346
        %v3459 = vpop.f32.mrf.mxu0
        %v3460 = vadd.f32 0.0, %v3459
        %3461 = vmatmul.f32.gmra.mxu0 %v3348
        %v3462 = vpop.f32.mrf.mxu0
        %v3463 = vadd.f32 0.0, %v3462
        %3464 = vmatmul.f32.gmra.mxu0 %v3350
        %v3465 = vpop.f32.mrf.mxu0
        %v3466 = vadd.f32 0.0, %v3465
        %3467 = vdwg.mxu0
        %v3468 = vadd.f32 %v3290, %v3370
        %v3469 = vadd.f32 %v3291, %v3399
        %v3470 = vadd.f32 %v3292, %v3428
        %v3471 = vadd.f32 %v3293, %v3457
        %v3472 = vadd.f32 %v3294, %v3373
        %v3473 = vadd.f32 %v3295, %v3402
        %v3474 = vadd.f32 %v3296, %v3431
        %v3475 = vadd.f32 %v3297, %v3460
        %v3476 = vadd.f32 %v3298, %v3376
        %v3477 = vadd.f32 %v3299, %v3405
        %v3478 = vadd.f32 %v3300, %v3434
        %v3479 = vadd.f32 %v3301, %v3463
        %v3480 = vadd.f32 %v3302, %v3379
        %v3481 = vadd.f32 %v3303, %v3408
        %v3482 = vadd.f32 %v3304, %v3437
        %v3483 = vadd.f32 %v3305, %v3466
        %3484 = vrot.lane.b32.xlu0 %v2282, 16
        %v3485 = vpop.permute.xlu0 %3484
        %3486 = vrot.lane.b32.xlu0 %v2283, 16
        %v3487 = vpop.permute.xlu0 %3486
        %3488 = vrot.lane.b32.xlu0 %v2284, 16
        %v3489 = vpop.permute.xlu0 %3488
        %3490 = vrot.lane.b32.xlu0 %v2285, 16
        %v3491 = vpop.permute.xlu0 %3490
        %3492 = vrot.lane.b32.xlu0 %v2286, 84
        %v3493 = vpop.permute.xlu0 %3492
        %3494 = vrot.lane.b32.xlu0 %v2287, 84
        %v3495 = vpop.permute.xlu0 %3494
        %3496 = vrot.lane.b32.xlu0 %v2288, 84
        %v3497 = vpop.permute.xlu0 %3496
        %3498 = vrot.lane.b32.xlu0 %v2289, 84
        %v3499 = vpop.permute.xlu0 %3498
        %3500 = vrot.lane.b32.xlu0 %v2290, 84
        %v3501 = vpop.permute.xlu0 %3500
        %3502 = vrot.lane.b32.xlu0 %v2291, 84
        %v3503 = vpop.permute.xlu0 %3502
        %3504 = vrot.lane.b32.xlu0 %v2292, 84
        %v3505 = vpop.permute.xlu0 %3504
        %3506 = vrot.lane.b32.xlu0 %v2293, 84
        %v3507 = vpop.permute.xlu0 %3506
        %v3508 = vsel %vm1299, %v3493, %v3495
        %v3509 = vsel %vm1299, %v3495, %v3497
        %v3510 = vsel %vm1299, %v3497, %v3499
        %v3511 = vsel %vm1299, %v3501, %v3503
        %v3512 = vsel %vm1299, %v3503, %v3505
        %v3513 = vsel %vm1299, %v3505, %v3507
        %v3522 = vsel %vm1991, %v3485, 0
        %v3524 = vsel %vm1991, %v3487, 0
        %v3526 = vsel %vm1991, %v3489, 0
        %v3528 = vsel %vm1991, %v3491, 0
        %3530 = vmatpush.msra.mxu0 0.0
        %3531 = vmatpush.msra.mxu0 0.0
        %3532 = vmatpush.msra.mxu0 0.0
        %3533 = vmatpush.msra.mxu0 0.0
        %3534 = vmatpush.msra.mxu0 0.0
        %3535 = vmatpush.msra.mxu0 0.0
        %3536 = vmatpush.msra.mxu0 0.0
        %3537 = vmatpush.msra.mxu0 0.0
        %3538 = vmatpush.msra.mxu0 0.0
        %3539 = vmatpush.msra.mxu0 0.0
        %3540 = vmatpush.msra.mxu0 0.0
        %3541 = vmatpush.msra.mxu0 0.0
        %3542 = vmatpush.msra.mxu0 0.0
        %3543 = vmatpush.msra.mxu0 0.0
        %3544 = vmatpush.msra.mxu0 %v3511
        %3545 = vmatpush.msra.mxu0 %v3508
        %3546 = vmatmul.f32.gmra.mxu0 %v3522
        %v3547 = vpop.f32.mrf.mxu0
        %v3548 = vadd.f32 0.0, %v3547
        %3549 = vmatmul.f32.gmra.mxu0 %v3524
        %v3550 = vpop.f32.mrf.mxu0
        %v3551 = vadd.f32 0.0, %v3550
        %3552 = vmatmul.f32.gmra.mxu0 %v3526
        %v3553 = vpop.f32.mrf.mxu0
        %v3554 = vadd.f32 0.0, %v3553
        %3555 = vmatmul.f32.gmra.mxu0 %v3528
        %v3556 = vpop.f32.mrf.mxu0
        %v3557 = vadd.f32 0.0, %v3556
        %3558 = vdwg.mxu0
        %3559 = vmatpush.msra.mxu0 0.0
        %3560 = vmatpush.msra.mxu0 0.0
        %3561 = vmatpush.msra.mxu0 0.0
        %3562 = vmatpush.msra.mxu0 0.0
        %3563 = vmatpush.msra.mxu0 0.0
        %3564 = vmatpush.msra.mxu0 0.0
        %3565 = vmatpush.msra.mxu0 0.0
        %3566 = vmatpush.msra.mxu0 0.0
        %3567 = vmatpush.msra.mxu0 0.0
        %3568 = vmatpush.msra.mxu0 0.0
        %3569 = vmatpush.msra.mxu0 0.0
        %3570 = vmatpush.msra.mxu0 0.0
        %3571 = vmatpush.msra.mxu0 0.0
        %3572 = vmatpush.msra.mxu0 0.0
        %3573 = vmatpush.msra.mxu0 %v3512
        %3574 = vmatpush.msra.mxu0 %v3509
        %3575 = vmatmul.f32.gmra.mxu0 %v3522
        %v3576 = vpop.f32.mrf.mxu0
        %v3577 = vadd.f32 0.0, %v3576
        %3578 = vmatmul.f32.gmra.mxu0 %v3524
        %v3579 = vpop.f32.mrf.mxu0
        %v3580 = vadd.f32 0.0, %v3579
        %3581 = vmatmul.f32.gmra.mxu0 %v3526
        %v3582 = vpop.f32.mrf.mxu0
        %v3583 = vadd.f32 0.0, %v3582
        %3584 = vmatmul.f32.gmra.mxu0 %v3528
        %v3585 = vpop.f32.mrf.mxu0
        %v3586 = vadd.f32 0.0, %v3585
        %3587 = vdwg.mxu0
        %3588 = vmatpush.msra.mxu0 0.0
        %3589 = vmatpush.msra.mxu0 0.0
        %3590 = vmatpush.msra.mxu0 0.0
        %3591 = vmatpush.msra.mxu0 0.0
        %3592 = vmatpush.msra.mxu0 0.0
        %3593 = vmatpush.msra.mxu0 0.0
        %3594 = vmatpush.msra.mxu0 0.0
        %3595 = vmatpush.msra.mxu0 0.0
        %3596 = vmatpush.msra.mxu0 0.0
        %3597 = vmatpush.msra.mxu0 0.0
        %3598 = vmatpush.msra.mxu0 0.0
        %3599 = vmatpush.msra.mxu0 0.0
        %3600 = vmatpush.msra.mxu0 0.0
        %3601 = vmatpush.msra.mxu0 0.0
        %3602 = vmatpush.msra.mxu0 %v3513
        %3603 = vmatpush.msra.mxu0 %v3510
        %3604 = vmatmul.f32.gmra.mxu0 %v3522
        %v3605 = vpop.f32.mrf.mxu0
        %v3606 = vadd.f32 0.0, %v3605
        %3607 = vmatmul.f32.gmra.mxu0 %v3524
        %v3608 = vpop.f32.mrf.mxu0
        %v3609 = vadd.f32 0.0, %v3608
        %3610 = vmatmul.f32.gmra.mxu0 %v3526
        %v3611 = vpop.f32.mrf.mxu0
        %v3612 = vadd.f32 0.0, %v3611
        %3613 = vmatmul.f32.gmra.mxu0 %v3528
        %v3614 = vpop.f32.mrf.mxu0
        %v3615 = vadd.f32 0.0, %v3614
        %3616 = vdwg.mxu0
        %3617 = vmatpush.msra.mxu0 0.0
        %3618 = vmatpush.msra.mxu0 0.0
        %3619 = vmatpush.msra.mxu0 0.0
        %3620 = vmatpush.msra.mxu0 0.0
        %3621 = vmatpush.msra.mxu0 0.0
        %3622 = vmatpush.msra.mxu0 0.0
        %3623 = vmatpush.msra.mxu0 0.0
        %3624 = vmatpush.msra.mxu0 0.0
        %3625 = vmatpush.msra.mxu0 0.0
        %3626 = vmatpush.msra.mxu0 0.0
        %3627 = vmatpush.msra.mxu0 0.0
        %3628 = vmatpush.msra.mxu0 0.0
        %3629 = vmatpush.msra.mxu0 0.0
        %3630 = vmatpush.msra.mxu0 0.0
        %3631 = vmatpush.msra.mxu0 %v3507
        %3632 = vmatpush.msra.mxu0 %v3499
        %3633 = vmatmul.f32.gmra.mxu0 %v3522
        %v3634 = vpop.f32.mrf.mxu0
        %v3635 = vadd.f32 0.0, %v3634
        %3636 = vmatmul.f32.gmra.mxu0 %v3524
        %v3637 = vpop.f32.mrf.mxu0
        %v3638 = vadd.f32 0.0, %v3637
        %3639 = vmatmul.f32.gmra.mxu0 %v3526
        %v3640 = vpop.f32.mrf.mxu0
        %v3641 = vadd.f32 0.0, %v3640
        %3642 = vmatmul.f32.gmra.mxu0 %v3528
        %v3643 = vpop.f32.mrf.mxu0
        %v3644 = vadd.f32 0.0, %v3643
        %3645 = vdwg.mxu0
        %v3646 = vadd.f32 %v3468, %v3548
        %v3647 = vadd.f32 %v3469, %v3577
        %v3648 = vadd.f32 %v3470, %v3606
        %v3649 = vadd.f32 %v3471, %v3635
        %v3650 = vadd.f32 %v3472, %v3551
        %v3651 = vadd.f32 %v3473, %v3580
        %v3652 = vadd.f32 %v3474, %v3609
        %v3653 = vadd.f32 %v3475, %v3638
        %v3654 = vadd.f32 %v3476, %v3554
        %v3655 = vadd.f32 %v3477, %v3583
        %v3656 = vadd.f32 %v3478, %v3612
        %v3657 = vadd.f32 %v3479, %v3641
        %v3658 = vadd.f32 %v3480, %v3557
        %v3659 = vadd.f32 %v3481, %v3586
        %v3660 = vadd.f32 %v3482, %v3615
        %v3661 = vadd.f32 %v3483, %v3644
        %v3662 = vld [vmem:[#allocation4 + $0x8] sm:$0xff]
        %v3663 = vld [vmem:[#allocation4 + $0x28] sm:$0xff]
        %v3664 = vld [vmem:[#allocation4 + $0x48] sm:$0xff]
        %v3665 = vld [vmem:[#allocation4 + $0x68] sm:$0xff]
        %3666 = vrot.lane.b32.xlu0 %v2286, 82
        %v3667 = vpop.permute.xlu0 %3666
        %3668 = vrot.lane.b32.xlu0 %v2287, 82
        %v3669 = vpop.permute.xlu0 %3668
        %3670 = vrot.lane.b32.xlu0 %v2288, 82
        %v3671 = vpop.permute.xlu0 %3670
        %3672 = vrot.lane.b32.xlu0 %v2289, 82
        %v3673 = vpop.permute.xlu0 %3672
        %3674 = vrot.lane.b32.xlu0 %v2290, 82
        %v3675 = vpop.permute.xlu0 %3674
        %3676 = vrot.lane.b32.xlu0 %v2291, 82
        %v3677 = vpop.permute.xlu0 %3676
        %3678 = vrot.lane.b32.xlu0 %v2292, 82
        %v3679 = vpop.permute.xlu0 %3678
        %3680 = vrot.lane.b32.xlu0 %v2293, 82
        %v3681 = vpop.permute.xlu0 %3680
        %vm3682 = vcmask 670720
        %v3683 = vsel %vm3682, %v3667, %v3669
        %v3684 = vsel %vm3682, %v3669, %v3671
        %v3685 = vsel %vm3682, %v3671, %v3673
        %v3686 = vsel %vm3682, %v3675, %v3677
        %v3687 = vsel %vm3682, %v3677, %v3679
        %v3688 = vsel %vm3682, %v3679, %v3681
        %v3698 = vsel %vm1991, %v3662, 0
        %v3701 = vsel %vm1991, %v3663, 0
        %v3704 = vsel %vm1991, %v3664, 0
        %v3707 = vsel %vm1991, %v3665, 0
        %3709 = vmatpush.msra.mxu0 0.0
        %3710 = vmatpush.msra.mxu0 0.0
        %3711 = vmatpush.msra.mxu0 0.0
        %3712 = vmatpush.msra.mxu0 0.0
        %3713 = vmatpush.msra.mxu0 0.0
        %3714 = vmatpush.msra.mxu0 0.0
        %3715 = vmatpush.msra.mxu0 0.0
        %3716 = vmatpush.msra.mxu0 0.0
        %3717 = vmatpush.msra.mxu0 0.0
        %3718 = vmatpush.msra.mxu0 0.0
        %3719 = vmatpush.msra.mxu0 0.0
        %3720 = vmatpush.msra.mxu0 0.0
        %3721 = vmatpush.msra.mxu0 0.0
        %3722 = vmatpush.msra.mxu0 0.0
        %3723 = vmatpush.msra.mxu0 %v3686
        %3724 = vmatpush.msra.mxu0 %v3683
        %3725 = vmatmul.f32.gmra.mxu0 %v3698
        %v3726 = vpop.f32.mrf.mxu0
        %v3727 = vadd.f32 0.0, %v3726
        %3728 = vmatmul.f32.gmra.mxu0 %v3701
        %v3729 = vpop.f32.mrf.mxu0
        %v3730 = vadd.f32 0.0, %v3729
        %3731 = vmatmul.f32.gmra.mxu0 %v3704
        %v3732 = vpop.f32.mrf.mxu0
        %v3733 = vadd.f32 0.0, %v3732
        %3734 = vmatmul.f32.gmra.mxu0 %v3707
        %v3735 = vpop.f32.mrf.mxu0
        %v3736 = vadd.f32 0.0, %v3735
        %3737 = vdwg.mxu0
        %3738 = vmatpush.msra.mxu0 0.0
        %3739 = vmatpush.msra.mxu0 0.0
        %3740 = vmatpush.msra.mxu0 0.0
        %3741 = vmatpush.msra.mxu0 0.0
        %3742 = vmatpush.msra.mxu0 0.0
        %3743 = vmatpush.msra.mxu0 0.0
        %3744 = vmatpush.msra.mxu0 0.0
        %3745 = vmatpush.msra.mxu0 0.0
        %3746 = vmatpush.msra.mxu0 0.0
        %3747 = vmatpush.msra.mxu0 0.0
        %3748 = vmatpush.msra.mxu0 0.0
        %3749 = vmatpush.msra.mxu0 0.0
        %3750 = vmatpush.msra.mxu0 0.0
        %3751 = vmatpush.msra.mxu0 0.0
        %3752 = vmatpush.msra.mxu0 %v3687
        %3753 = vmatpush.msra.mxu0 %v3684
        %3754 = vmatmul.f32.gmra.mxu0 %v3698
        %v3755 = vpop.f32.mrf.mxu0
        %v3756 = vadd.f32 0.0, %v3755
        %3757 = vmatmul.f32.gmra.mxu0 %v3701
        %v3758 = vpop.f32.mrf.mxu0
        %v3759 = vadd.f32 0.0, %v3758
        %3760 = vmatmul.f32.gmra.mxu0 %v3704
        %v3761 = vpop.f32.mrf.mxu0
        %v3762 = vadd.f32 0.0, %v3761
        %3763 = vmatmul.f32.gmra.mxu0 %v3707
        %v3764 = vpop.f32.mrf.mxu0
        %v3765 = vadd.f32 0.0, %v3764
        %3766 = vdwg.mxu0
        %3767 = vmatpush.msra.mxu0 0.0
        %3768 = vmatpush.msra.mxu0 0.0
        %3769 = vmatpush.msra.mxu0 0.0
        %3770 = vmatpush.msra.mxu0 0.0
        %3771 = vmatpush.msra.mxu0 0.0
        %3772 = vmatpush.msra.mxu0 0.0
        %3773 = vmatpush.msra.mxu0 0.0
        %3774 = vmatpush.msra.mxu0 0.0
        %3775 = vmatpush.msra.mxu0 0.0
        %3776 = vmatpush.msra.mxu0 0.0
        %3777 = vmatpush.msra.mxu0 0.0
        %3778 = vmatpush.msra.mxu0 0.0
        %3779 = vmatpush.msra.mxu0 0.0
        %3780 = vmatpush.msra.mxu0 0.0
        %3781 = vmatpush.msra.mxu0 %v3688
        %3782 = vmatpush.msra.mxu0 %v3685
        %3783 = vmatmul.f32.gmra.mxu0 %v3698
        %v3784 = vpop.f32.mrf.mxu0
        %v3785 = vadd.f32 0.0, %v3784
        %3786 = vmatmul.f32.gmra.mxu0 %v3701
        %v3787 = vpop.f32.mrf.mxu0
        %v3788 = vadd.f32 0.0, %v3787
        %3789 = vmatmul.f32.gmra.mxu0 %v3704
        %v3790 = vpop.f32.mrf.mxu0
        %v3791 = vadd.f32 0.0, %v3790
        %3792 = vmatmul.f32.gmra.mxu0 %v3707
        %v3793 = vpop.f32.mrf.mxu0
        %v3794 = vadd.f32 0.0, %v3793
        %3795 = vdwg.mxu0
        %3796 = vmatpush.msra.mxu0 0.0
        %3797 = vmatpush.msra.mxu0 0.0
        %3798 = vmatpush.msra.mxu0 0.0
        %3799 = vmatpush.msra.mxu0 0.0
        %3800 = vmatpush.msra.mxu0 0.0
        %3801 = vmatpush.msra.mxu0 0.0
        %3802 = vmatpush.msra.mxu0 0.0
        %3803 = vmatpush.msra.mxu0 0.0
        %3804 = vmatpush.msra.mxu0 0.0
        %3805 = vmatpush.msra.mxu0 0.0
        %3806 = vmatpush.msra.mxu0 0.0
        %3807 = vmatpush.msra.mxu0 0.0
        %3808 = vmatpush.msra.mxu0 0.0
        %3809 = vmatpush.msra.mxu0 0.0
        %3810 = vmatpush.msra.mxu0 %v3681
        %3811 = vmatpush.msra.mxu0 %v3673
        %3812 = vmatmul.f32.gmra.mxu0 %v3698
        %v3813 = vpop.f32.mrf.mxu0
        %v3814 = vadd.f32 0.0, %v3813
        %3815 = vmatmul.f32.gmra.mxu0 %v3701
        %v3816 = vpop.f32.mrf.mxu0
        %v3817 = vadd.f32 0.0, %v3816
        %3818 = vmatmul.f32.gmra.mxu0 %v3704
        %v3819 = vpop.f32.mrf.mxu0
        %v3820 = vadd.f32 0.0, %v3819
        %3821 = vmatmul.f32.gmra.mxu0 %v3707
        %v3822 = vpop.f32.mrf.mxu0
        %v3823 = vadd.f32 0.0, %v3822
        %3824 = vdwg.mxu0
        %v3825 = vadd.f32 %v3646, %v3727
        %v3826 = vadd.f32 %v3647, %v3756
        %v3827 = vadd.f32 %v3648, %v3785
        %v3828 = vadd.f32 %v3649, %v3814
        %v3829 = vadd.f32 %v3650, %v3730
        %v3830 = vadd.f32 %v3651, %v3759
        %v3831 = vadd.f32 %v3652, %v3788
        %v3832 = vadd.f32 %v3653, %v3817
        %v3833 = vadd.f32 %v3654, %v3733
        %v3834 = vadd.f32 %v3655, %v3762
        %v3835 = vadd.f32 %v3656, %v3791
        %v3836 = vadd.f32 %v3657, %v3820
        %v3837 = vadd.f32 %v3658, %v3736
        %v3838 = vadd.f32 %v3659, %v3765
        %v3839 = vadd.f32 %v3660, %v3794
        %v3840 = vadd.f32 %v3661, %v3823
        %3841 = vrot.lane.b32.xlu0 %v3662, 112
        %v3842 = vpop.permute.xlu0 %3841
        %3843 = vrot.lane.b32.xlu0 %v3663, 112
        %v3844 = vpop.permute.xlu0 %3843
        %3845 = vrot.lane.b32.xlu0 %v3664, 112
        %v3846 = vpop.permute.xlu0 %3845
        %3847 = vrot.lane.b32.xlu0 %v3665, 112
        %v3848 = vpop.permute.xlu0 %3847
        %3849 = vrot.lane.b32.xlu0 %v2286, 80
        %v3850 = vpop.permute.xlu0 %3849
        %3851 = vrot.lane.b32.xlu0 %v2287, 80
        %v3852 = vpop.permute.xlu0 %3851
        %3853 = vrot.lane.b32.xlu0 %v2288, 80
        %v3854 = vpop.permute.xlu0 %3853
        %3855 = vrot.lane.b32.xlu0 %v2289, 80
        %v3856 = vpop.permute.xlu0 %3855
        %3857 = vrot.lane.b32.xlu0 %v2290, 80
        %v3858 = vpop.permute.xlu0 %3857
        %3859 = vrot.lane.b32.xlu0 %v2291, 80
        %v3860 = vpop.permute.xlu0 %3859
        %3861 = vrot.lane.b32.xlu0 %v2292, 80
        %v3862 = vpop.permute.xlu0 %3861
        %3863 = vrot.lane.b32.xlu0 %v2293, 80
        %v3864 = vpop.permute.xlu0 %3863
        %vm3865 = vcmask 654336
        %v3866 = vsel %vm3865, %v3850, %v3852
        %v3867 = vsel %vm3865, %v3852, %v3854
        %v3868 = vsel %vm3865, %v3854, %v3856
        %v3869 = vsel %vm3865, %v3858, %v3860
        %v3870 = vsel %vm3865, %v3860, %v3862
        %v3871 = vsel %vm3865, %v3862, %v3864
        %v3880 = vsel %vm1991, %v3842, 0
        %v3882 = vsel %vm1991, %v3844, 0
        %v3884 = vsel %vm1991, %v3846, 0
        %v3886 = vsel %vm1991, %v3848, 0
        %3888 = vmatpush.msra.mxu0 0.0
        %3889 = vmatpush.msra.mxu0 0.0
        %3890 = vmatpush.msra.mxu0 0.0
        %3891 = vmatpush.msra.mxu0 0.0
        %3892 = vmatpush.msra.mxu0 0.0
        %3893 = vmatpush.msra.mxu0 0.0
        %3894 = vmatpush.msra.mxu0 0.0
        %3895 = vmatpush.msra.mxu0 0.0
        %3896 = vmatpush.msra.mxu0 0.0
        %3897 = vmatpush.msra.mxu0 0.0
        %3898 = vmatpush.msra.mxu0 0.0
        %3899 = vmatpush.msra.mxu0 0.0
        %3900 = vmatpush.msra.mxu0 0.0
        %3901 = vmatpush.msra.mxu0 0.0
        %3902 = vmatpush.msra.mxu0 %v3869
        %3903 = vmatpush.msra.mxu0 %v3866
        %3904 = vmatmul.f32.gmra.mxu0 %v3880
        %v3905 = vpop.f32.mrf.mxu0
        %v3906 = vadd.f32 0.0, %v3905
        %3907 = vmatmul.f32.gmra.mxu0 %v3882
        %v3908 = vpop.f32.mrf.mxu0
        %v3909 = vadd.f32 0.0, %v3908
        %3910 = vmatmul.f32.gmra.mxu0 %v3884
        %v3911 = vpop.f32.mrf.mxu0
        %v3912 = vadd.f32 0.0, %v3911
        %3913 = vmatmul.f32.gmra.mxu0 %v3886
        %v3914 = vpop.f32.mrf.mxu0
        %v3915 = vadd.f32 0.0, %v3914
        %3916 = vdwg.mxu0
        %3917 = vmatpush.msra.mxu0 0.0
        %3918 = vmatpush.msra.mxu0 0.0
        %3919 = vmatpush.msra.mxu0 0.0
        %3920 = vmatpush.msra.mxu0 0.0
        %3921 = vmatpush.msra.mxu0 0.0
        %3922 = vmatpush.msra.mxu0 0.0
        %3923 = vmatpush.msra.mxu0 0.0
        %3924 = vmatpush.msra.mxu0 0.0
        %3925 = vmatpush.msra.mxu0 0.0
        %3926 = vmatpush.msra.mxu0 0.0
        %3927 = vmatpush.msra.mxu0 0.0
        %3928 = vmatpush.msra.mxu0 0.0
        %3929 = vmatpush.msra.mxu0 0.0
        %3930 = vmatpush.msra.mxu0 0.0
        %3931 = vmatpush.msra.mxu0 %v3870
        %3932 = vmatpush.msra.mxu0 %v3867
        %3933 = vmatmul.f32.gmra.mxu0 %v3880
        %v3934 = vpop.f32.mrf.mxu0
        %v3935 = vadd.f32 0.0, %v3934
        %3936 = vmatmul.f32.gmra.mxu0 %v3882
        %v3937 = vpop.f32.mrf.mxu0
        %v3938 = vadd.f32 0.0, %v3937
        %3939 = vmatmul.f32.gmra.mxu0 %v3884
        %v3940 = vpop.f32.mrf.mxu0
        %v3941 = vadd.f32 0.0, %v3940
        %3942 = vmatmul.f32.gmra.mxu0 %v3886
        %v3943 = vpop.f32.mrf.mxu0
        %v3944 = vadd.f32 0.0, %v3943
        %3945 = vdwg.mxu0
        %3946 = vmatpush.msra.mxu0 0.0
        %3947 = vmatpush.msra.mxu0 0.0
        %3948 = vmatpush.msra.mxu0 0.0
        %3949 = vmatpush.msra.mxu0 0.0
        %3950 = vmatpush.msra.mxu0 0.0
        %3951 = vmatpush.msra.mxu0 0.0
        %3952 = vmatpush.msra.mxu0 0.0
        %3953 = vmatpush.msra.mxu0 0.0
        %3954 = vmatpush.msra.mxu0 0.0
        %3955 = vmatpush.msra.mxu0 0.0
        %3956 = vmatpush.msra.mxu0 0.0
        %3957 = vmatpush.msra.mxu0 0.0
        %3958 = vmatpush.msra.mxu0 0.0
        %3959 = vmatpush.msra.mxu0 0.0
        %3960 = vmatpush.msra.mxu0 %v3871
        %3961 = vmatpush.msra.mxu0 %v3868
        %3962 = vmatmul.f32.gmra.mxu0 %v3880
        %v3963 = vpop.f32.mrf.mxu0
        %v3964 = vadd.f32 0.0, %v3963
        %3965 = vmatmul.f32.gmra.mxu0 %v3882
        %v3966 = vpop.f32.mrf.mxu0
        %v3967 = vadd.f32 0.0, %v3966
        %3968 = vmatmul.f32.gmra.mxu0 %v3884
        %v3969 = vpop.f32.mrf.mxu0
        %v3970 = vadd.f32 0.0, %v3969
        %3971 = vmatmul.f32.gmra.mxu0 %v3886
        %v3972 = vpop.f32.mrf.mxu0
        %v3973 = vadd.f32 0.0, %v3972
        %3974 = vdwg.mxu0
        %3975 = vmatpush.msra.mxu0 0.0
        %3976 = vmatpush.msra.mxu0 0.0
        %3977 = vmatpush.msra.mxu0 0.0
        %3978 = vmatpush.msra.mxu0 0.0
        %3979 = vmatpush.msra.mxu0 0.0
        %3980 = vmatpush.msra.mxu0 0.0
        %3981 = vmatpush.msra.mxu0 0.0
        %3982 = vmatpush.msra.mxu0 0.0
        %3983 = vmatpush.msra.mxu0 0.0
        %3984 = vmatpush.msra.mxu0 0.0
        %3985 = vmatpush.msra.mxu0 0.0
        %3986 = vmatpush.msra.mxu0 0.0
        %3987 = vmatpush.msra.mxu0 0.0
        %3988 = vmatpush.msra.mxu0 0.0
        %3989 = vmatpush.msra.mxu0 %v3864
        %3990 = vmatpush.msra.mxu0 %v3856
        %3991 = vmatmul.f32.gmra.mxu0 %v3880
        %v3992 = vpop.f32.mrf.mxu0
        %v3993 = vadd.f32 0.0, %v3992
        %3994 = vmatmul.f32.gmra.mxu0 %v3882
        %v3995 = vpop.f32.mrf.mxu0
        %v3996 = vadd.f32 0.0, %v3995
        %3997 = vmatmul.f32.gmra.mxu0 %v3884
        %v3998 = vpop.f32.mrf.mxu0
        %v3999 = vadd.f32 0.0, %v3998
        %4000 = vmatmul.f32.gmra.mxu0 %v3886
        %v4001 = vpop.f32.mrf.mxu0
        %v4002 = vadd.f32 0.0, %v4001
        %4003 = vdwg.mxu0
        %v4004 = vadd.f32 %v3825, %v3906
        %v4005 = vadd.f32 %v3826, %v3935
        %v4006 = vadd.f32 %v3827, %v3964
        %v4007 = vadd.f32 %v3828, %v3993
        %v4008 = vadd.f32 %v3829, %v3909
        %v4009 = vadd.f32 %v3830, %v3938
        %v4010 = vadd.f32 %v3831, %v3967
        %v4011 = vadd.f32 %v3832, %v3996
        %v4012 = vadd.f32 %v3833, %v3912
        %v4013 = vadd.f32 %v3834, %v3941
        %v4014 = vadd.f32 %v3835, %v3970
        %v4015 = vadd.f32 %v3836, %v3999
        %v4016 = vadd.f32 %v3837, %v3915
        %v4017 = vadd.f32 %v3838, %v3944
        %v4018 = vadd.f32 %v3839, %v3973
        %v4019 = vadd.f32 %v3840, %v4002
        %4020 = vrot.lane.b32.xlu0 %v3662, 96
        %v4021 = vpop.permute.xlu0 %4020
        %4022 = vrot.lane.b32.xlu0 %v3663, 96
        %v4023 = vpop.permute.xlu0 %4022
        %4024 = vrot.lane.b32.xlu0 %v3664, 96
        %v4025 = vpop.permute.xlu0 %4024
        %4026 = vrot.lane.b32.xlu0 %v3665, 96
        %v4027 = vpop.permute.xlu0 %4026
        %4028 = vrot.lane.b32.xlu0 %v2286, 48
        %v4029 = vpop.permute.xlu0 %4028
        %4030 = vrot.lane.b32.xlu0 %v2287, 48
        %v4031 = vpop.permute.xlu0 %4030
        %4032 = vrot.lane.b32.xlu0 %v2288, 48
        %v4033 = vpop.permute.xlu0 %4032
        %4034 = vrot.lane.b32.xlu0 %v2289, 48
        %v4035 = vpop.permute.xlu0 %4034
        %4036 = vrot.lane.b32.xlu0 %v2290, 48
        %v4037 = vpop.permute.xlu0 %4036
        %4038 = vrot.lane.b32.xlu0 %v2291, 48
        %v4039 = vpop.permute.xlu0 %4038
        %4040 = vrot.lane.b32.xlu0 %v2292, 48
        %v4041 = vpop.permute.xlu0 %4040
        %4042 = vrot.lane.b32.xlu0 %v2293, 48
        %v4043 = vpop.permute.xlu0 %4042
        %v4044 = vsel %vm1677, %v4029, %v4031
        %v4045 = vsel %vm1677, %v4031, %v4033
        %v4046 = vsel %vm1677, %v4033, %v4035
        %v4047 = vsel %vm1677, %v4037, %v4039
        %v4048 = vsel %vm1677, %v4039, %v4041
        %v4049 = vsel %vm1677, %v4041, %v4043
        %v4058 = vsel %vm1991, %v4021, 0
        %v4060 = vsel %vm1991, %v4023, 0
        %v4062 = vsel %vm1991, %v4025, 0
        %v4064 = vsel %vm1991, %v4027, 0
        %4066 = vmatpush.msra.mxu0 0.0
        %4067 = vmatpush.msra.mxu0 0.0
        %4068 = vmatpush.msra.mxu0 0.0
        %4069 = vmatpush.msra.mxu0 0.0
        %4070 = vmatpush.msra.mxu0 0.0
        %4071 = vmatpush.msra.mxu0 0.0
        %4072 = vmatpush.msra.mxu0 0.0
        %4073 = vmatpush.msra.mxu0 0.0
        %4074 = vmatpush.msra.mxu0 0.0
        %4075 = vmatpush.msra.mxu0 0.0
        %4076 = vmatpush.msra.mxu0 0.0
        %4077 = vmatpush.msra.mxu0 0.0
        %4078 = vmatpush.msra.mxu0 0.0
        %4079 = vmatpush.msra.mxu0 0.0
        %4080 = vmatpush.msra.mxu0 %v4047
        %4081 = vmatpush.msra.mxu0 %v4044
        %4082 = vmatmul.f32.gmra.mxu0 %v4058
        %v4083 = vpop.f32.mrf.mxu0
        %v4084 = vadd.f32 0.0, %v4083
        %4085 = vmatmul.f32.gmra.mxu0 %v4060
        %v4086 = vpop.f32.mrf.mxu0
        %v4087 = vadd.f32 0.0, %v4086
        %4088 = vmatmul.f32.gmra.mxu0 %v4062
        %v4089 = vpop.f32.mrf.mxu0
        %v4090 = vadd.f32 0.0, %v4089
        %4091 = vmatmul.f32.gmra.mxu0 %v4064
        %v4092 = vpop.f32.mrf.mxu0
        %v4093 = vadd.f32 0.0, %v4092
        %4094 = vdwg.mxu0
        %4095 = vmatpush.msra.mxu0 0.0
        %4096 = vmatpush.msra.mxu0 0.0
        %4097 = vmatpush.msra.mxu0 0.0
        %4098 = vmatpush.msra.mxu0 0.0
        %4099 = vmatpush.msra.mxu0 0.0
        %4100 = vmatpush.msra.mxu0 0.0
        %4101 = vmatpush.msra.mxu0 0.0
        %4102 = vmatpush.msra.mxu0 0.0
        %4103 = vmatpush.msra.mxu0 0.0
        %4104 = vmatpush.msra.mxu0 0.0
        %4105 = vmatpush.msra.mxu0 0.0
        %4106 = vmatpush.msra.mxu0 0.0
        %4107 = vmatpush.msra.mxu0 0.0
        %4108 = vmatpush.msra.mxu0 0.0
        %4109 = vmatpush.msra.mxu0 %v4048
        %4110 = vmatpush.msra.mxu0 %v4045
        %4111 = vmatmul.f32.gmra.mxu0 %v4058
        %v4112 = vpop.f32.mrf.mxu0
        %v4113 = vadd.f32 0.0, %v4112
        %4114 = vmatmul.f32.gmra.mxu0 %v4060
        %v4115 = vpop.f32.mrf.mxu0
        %v4116 = vadd.f32 0.0, %v4115
        %4117 = vmatmul.f32.gmra.mxu0 %v4062
        %v4118 = vpop.f32.mrf.mxu0
        %v4119 = vadd.f32 0.0, %v4118
        %4120 = vmatmul.f32.gmra.mxu0 %v4064
        %v4121 = vpop.f32.mrf.mxu0
        %v4122 = vadd.f32 0.0, %v4121
        %4123 = vdwg.mxu0
        %4124 = vmatpush.msra.mxu0 0.0
        %4125 = vmatpush.msra.mxu0 0.0
        %4126 = vmatpush.msra.mxu0 0.0
        %4127 = vmatpush.msra.mxu0 0.0
        %4128 = vmatpush.msra.mxu0 0.0
        %4129 = vmatpush.msra.mxu0 0.0
        %4130 = vmatpush.msra.mxu0 0.0
        %4131 = vmatpush.msra.mxu0 0.0
        %4132 = vmatpush.msra.mxu0 0.0
        %4133 = vmatpush.msra.mxu0 0.0
        %4134 = vmatpush.msra.mxu0 0.0
        %4135 = vmatpush.msra.mxu0 0.0
        %4136 = vmatpush.msra.mxu0 0.0
        %4137 = vmatpush.msra.mxu0 0.0
        %4138 = vmatpush.msra.mxu0 %v4049
        %4139 = vmatpush.msra.mxu0 %v4046
        %4140 = vmatmul.f32.gmra.mxu0 %v4058
        %v4141 = vpop.f32.mrf.mxu0
        %v4142 = vadd.f32 0.0, %v4141
        %4143 = vmatmul.f32.gmra.mxu0 %v4060
        %v4144 = vpop.f32.mrf.mxu0
        %v4145 = vadd.f32 0.0, %v4144
        %4146 = vmatmul.f32.gmra.mxu0 %v4062
        %v4147 = vpop.f32.mrf.mxu0
        %v4148 = vadd.f32 0.0, %v4147
        %4149 = vmatmul.f32.gmra.mxu0 %v4064
        %v4150 = vpop.f32.mrf.mxu0
        %v4151 = vadd.f32 0.0, %v4150
        %4152 = vdwg.mxu0
        %4153 = vmatpush.msra.mxu0 0.0
        %4154 = vmatpush.msra.mxu0 0.0
        %4155 = vmatpush.msra.mxu0 0.0
        %4156 = vmatpush.msra.mxu0 0.0
        %4157 = vmatpush.msra.mxu0 0.0
        %4158 = vmatpush.msra.mxu0 0.0
        %4159 = vmatpush.msra.mxu0 0.0
        %4160 = vmatpush.msra.mxu0 0.0
        %4161 = vmatpush.msra.mxu0 0.0
        %4162 = vmatpush.msra.mxu0 0.0
        %4163 = vmatpush.msra.mxu0 0.0
        %4164 = vmatpush.msra.mxu0 0.0
        %4165 = vmatpush.msra.mxu0 0.0
        %4166 = vmatpush.msra.mxu0 0.0
        %4167 = vmatpush.msra.mxu0 %v4043
        %4168 = vmatpush.msra.mxu0 %v4035
        %4169 = vmatmul.f32.gmra.mxu0 %v4058
        %v4170 = vpop.f32.mrf.mxu0
        %v4171 = vadd.f32 0.0, %v4170
        %4172 = vmatmul.f32.gmra.mxu0 %v4060
        %v4173 = vpop.f32.mrf.mxu0
        %v4174 = vadd.f32 0.0, %v4173
        %4175 = vmatmul.f32.gmra.mxu0 %v4062
        %v4176 = vpop.f32.mrf.mxu0
        %v4177 = vadd.f32 0.0, %v4176
        %4178 = vmatmul.f32.gmra.mxu0 %v4064
        %v4179 = vpop.f32.mrf.mxu0
        %v4180 = vadd.f32 0.0, %v4179
        %4181 = vdwg.mxu0
        %v4182 = vadd.f32 %v4004, %v4084
        %v4183 = vadd.f32 %v4005, %v4113
        %v4184 = vadd.f32 %v4006, %v4142
        %v4185 = vadd.f32 %v4007, %v4171
        %v4186 = vadd.f32 %v4008, %v4087
        %v4187 = vadd.f32 %v4009, %v4116
        %v4188 = vadd.f32 %v4010, %v4145
        %v4189 = vadd.f32 %v4011, %v4174
        %v4190 = vadd.f32 %v4012, %v4090
        %v4191 = vadd.f32 %v4013, %v4119
        %v4192 = vadd.f32 %v4014, %v4148
        %v4193 = vadd.f32 %v4015, %v4177
        %v4194 = vadd.f32 %v4016, %v4093
        %v4195 = vadd.f32 %v4017, %v4122
        %v4196 = vadd.f32 %v4018, %v4151
        %v4197 = vadd.f32 %v4019, %v4180
        %4198 = vrot.lane.b32.xlu0 %v3662, 80
        %v4199 = vpop.permute.xlu0 %4198
        %4200 = vrot.lane.b32.xlu0 %v3663, 80
        %v4201 = vpop.permute.xlu0 %4200
        %4202 = vrot.lane.b32.xlu0 %v3664, 80
        %v4203 = vpop.permute.xlu0 %4202
        %4204 = vrot.lane.b32.xlu0 %v3665, 80
        %v4205 = vpop.permute.xlu0 %4204
        %4206 = vrot.lane.b32.xlu0 %v2286, 46
        %v4207 = vpop.permute.xlu0 %4206
        %4208 = vrot.lane.b32.xlu0 %v2287, 46
        %v4209 = vpop.permute.xlu0 %4208
        %4210 = vrot.lane.b32.xlu0 %v2288, 46
        %v4211 = vpop.permute.xlu0 %4210
        %4212 = vrot.lane.b32.xlu0 %v2289, 46
        %v4213 = vpop.permute.xlu0 %4212
        %4214 = vrot.lane.b32.xlu0 %v2290, 46
        %v4215 = vpop.permute.xlu0 %4214
        %4216 = vrot.lane.b32.xlu0 %v2291, 46
        %v4217 = vpop.permute.xlu0 %4216
        %4218 = vrot.lane.b32.xlu0 %v2292, 46
        %v4219 = vpop.permute.xlu0 %4218
        %4220 = vrot.lane.b32.xlu0 %v2293, 46
        %v4221 = vpop.permute.xlu0 %4220
        %v4222 = vsel %vm1803, %v4207, %v4209
        %v4223 = vsel %vm1803, %v4209, %v4211
        %v4224 = vsel %vm1803, %v4211, %v4213
        %v4225 = vsel %vm1803, %v4215, %v4217
        %v4226 = vsel %vm1803, %v4217, %v4219
        %v4227 = vsel %vm1803, %v4219, %v4221
        %v4236 = vsel %vm1991, %v4199, 0
        %v4238 = vsel %vm1991, %v4201, 0
        %v4240 = vsel %vm1991, %v4203, 0
        %v4242 = vsel %vm1991, %v4205, 0
        %4244 = vmatpush.msra.mxu0 0.0
        %4245 = vmatpush.msra.mxu0 0.0
        %4246 = vmatpush.msra.mxu0 0.0
        %4247 = vmatpush.msra.mxu0 0.0
        %4248 = vmatpush.msra.mxu0 0.0
        %4249 = vmatpush.msra.mxu0 0.0
        %4250 = vmatpush.msra.mxu0 0.0
        %4251 = vmatpush.msra.mxu0 0.0
        %4252 = vmatpush.msra.mxu0 0.0
        %4253 = vmatpush.msra.mxu0 0.0
        %4254 = vmatpush.msra.mxu0 0.0
        %4255 = vmatpush.msra.mxu0 0.0
        %4256 = vmatpush.msra.mxu0 0.0
        %4257 = vmatpush.msra.mxu0 0.0
        %4258 = vmatpush.msra.mxu0 %v4225
        %4259 = vmatpush.msra.mxu0 %v4222
        %4260 = vmatmul.f32.gmra.mxu0 %v4236
        %v4261 = vpop.f32.mrf.mxu0
        %v4262 = vadd.f32 0.0, %v4261
        %4263 = vmatmul.f32.gmra.mxu0 %v4238
        %v4264 = vpop.f32.mrf.mxu0
        %v4265 = vadd.f32 0.0, %v4264
        %4266 = vmatmul.f32.gmra.mxu0 %v4240
        %v4267 = vpop.f32.mrf.mxu0
        %v4268 = vadd.f32 0.0, %v4267
        %4269 = vmatmul.f32.gmra.mxu0 %v4242
        %v4270 = vpop.f32.mrf.mxu0
        %v4271 = vadd.f32 0.0, %v4270
        %4272 = vdwg.mxu0
        %4273 = vmatpush.msra.mxu0 0.0
        %4274 = vmatpush.msra.mxu0 0.0
        %4275 = vmatpush.msra.mxu0 0.0
        %4276 = vmatpush.msra.mxu0 0.0
        %4277 = vmatpush.msra.mxu0 0.0
        %4278 = vmatpush.msra.mxu0 0.0
        %4279 = vmatpush.msra.mxu0 0.0
        %4280 = vmatpush.msra.mxu0 0.0
        %4281 = vmatpush.msra.mxu0 0.0
        %4282 = vmatpush.msra.mxu0 0.0
        %4283 = vmatpush.msra.mxu0 0.0
        %4284 = vmatpush.msra.mxu0 0.0
        %4285 = vmatpush.msra.mxu0 0.0
        %4286 = vmatpush.msra.mxu0 0.0
        %4287 = vmatpush.msra.mxu0 %v4226
        %4288 = vmatpush.msra.mxu0 %v4223
        %4289 = vmatmul.f32.gmra.mxu0 %v4236
        %v4290 = vpop.f32.mrf.mxu0
        %v4291 = vadd.f32 0.0, %v4290
        %4292 = vmatmul.f32.gmra.mxu0 %v4238
        %v4293 = vpop.f32.mrf.mxu0
        %v4294 = vadd.f32 0.0, %v4293
        %4295 = vmatmul.f32.gmra.mxu0 %v4240
        %v4296 = vpop.f32.mrf.mxu0
        %v4297 = vadd.f32 0.0, %v4296
        %4298 = vmatmul.f32.gmra.mxu0 %v4242
        %v4299 = vpop.f32.mrf.mxu0
        %v4300 = vadd.f32 0.0, %v4299
        %4301 = vdwg.mxu0
        %4302 = vmatpush.msra.mxu0 0.0
        %4303 = vmatpush.msra.mxu0 0.0
        %4304 = vmatpush.msra.mxu0 0.0
        %4305 = vmatpush.msra.mxu0 0.0
        %4306 = vmatpush.msra.mxu0 0.0
        %4307 = vmatpush.msra.mxu0 0.0
        %4308 = vmatpush.msra.mxu0 0.0
        %4309 = vmatpush.msra.mxu0 0.0
        %4310 = vmatpush.msra.mxu0 0.0
        %4311 = vmatpush.msra.mxu0 0.0
        %4312 = vmatpush.msra.mxu0 0.0
        %4313 = vmatpush.msra.mxu0 0.0
        %4314 = vmatpush.msra.mxu0 0.0
        %4315 = vmatpush.msra.mxu0 0.0
        %4316 = vmatpush.msra.mxu0 %v4227
        %4317 = vmatpush.msra.mxu0 %v4224
        %4318 = vmatmul.f32.gmra.mxu0 %v4236
        %v4319 = vpop.f32.mrf.mxu0
        %v4320 = vadd.f32 0.0, %v4319
        %4321 = vmatmul.f32.gmra.mxu0 %v4238
        %v4322 = vpop.f32.mrf.mxu0
        %v4323 = vadd.f32 0.0, %v4322
        %4324 = vmatmul.f32.gmra.mxu0 %v4240
        %v4325 = vpop.f32.mrf.mxu0
        %v4326 = vadd.f32 0.0, %v4325
        %4327 = vmatmul.f32.gmra.mxu0 %v4242
        %v4328 = vpop.f32.mrf.mxu0
        %v4329 = vadd.f32 0.0, %v4328
        %4330 = vdwg.mxu0
        %4331 = vmatpush.msra.mxu0 0.0
        %4332 = vmatpush.msra.mxu0 0.0
        %4333 = vmatpush.msra.mxu0 0.0
        %4334 = vmatpush.msra.mxu0 0.0
        %4335 = vmatpush.msra.mxu0 0.0
        %4336 = vmatpush.msra.mxu0 0.0
        %4337 = vmatpush.msra.mxu0 0.0
        %4338 = vmatpush.msra.mxu0 0.0
        %4339 = vmatpush.msra.mxu0 0.0
        %4340 = vmatpush.msra.mxu0 0.0
        %4341 = vmatpush.msra.mxu0 0.0
        %4342 = vmatpush.msra.mxu0 0.0
        %4343 = vmatpush.msra.mxu0 0.0
        %4344 = vmatpush.msra.mxu0 0.0
        %4345 = vmatpush.msra.mxu0 %v4221
        %4346 = vmatpush.msra.mxu0 %v4213
        %4347 = vmatmul.f32.gmra.mxu0 %v4236
        %v4348 = vpop.f32.mrf.mxu0
        %v4349 = vadd.f32 0.0, %v4348
        %4350 = vmatmul.f32.gmra.mxu0 %v4238
        %v4351 = vpop.f32.mrf.mxu0
        %v4352 = vadd.f32 0.0, %v4351
        %4353 = vmatmul.f32.gmra.mxu0 %v4240
        %v4354 = vpop.f32.mrf.mxu0
        %v4355 = vadd.f32 0.0, %v4354
        %4356 = vmatmul.f32.gmra.mxu0 %v4242
        %v4357 = vpop.f32.mrf.mxu0
        %v4358 = vadd.f32 0.0, %v4357
        %4359 = vdwg.mxu0
        %v4360 = vadd.f32 %v4182, %v4262
        %v4361 = vadd.f32 %v4183, %v4291
        %v4362 = vadd.f32 %v4184, %v4320
        %v4363 = vadd.f32 %v4185, %v4349
        %v4364 = vadd.f32 %v4186, %v4265
        %v4365 = vadd.f32 %v4187, %v4294
        %v4366 = vadd.f32 %v4188, %v4323
        %v4367 = vadd.f32 %v4189, %v4352
        %v4368 = vadd.f32 %v4190, %v4268
        %v4369 = vadd.f32 %v4191, %v4297
        %v4370 = vadd.f32 %v4192, %v4326
        %v4371 = vadd.f32 %v4193, %v4355
        %v4372 = vadd.f32 %v4194, %v4271
        %v4373 = vadd.f32 %v4195, %v4300
        %v4374 = vadd.f32 %v4196, %v4329
        %v4375 = vadd.f32 %v4197, %v4358
        %4376 = vrot.lane.b32.xlu0 %v3662, 64
        %v4377 = vpop.permute.xlu0 %4376
        %4378 = vrot.lane.b32.xlu0 %v3663, 64
        %v4379 = vpop.permute.xlu0 %4378
        %4380 = vrot.lane.b32.xlu0 %v3664, 64
        %v4381 = vpop.permute.xlu0 %4380
        %4382 = vrot.lane.b32.xlu0 %v3665, 64
        %v4383 = vpop.permute.xlu0 %4382
        %4384 = vrot.lane.b32.xlu0 %v2286, 44
        %v4385 = vpop.permute.xlu0 %4384
        %4386 = vrot.lane.b32.xlu0 %v2287, 44
        %v4387 = vpop.permute.xlu0 %4386
        %4388 = vrot.lane.b32.xlu0 %v2288, 44
        %v4389 = vpop.permute.xlu0 %4388
        %4390 = vrot.lane.b32.xlu0 %v2289, 44
        %v4391 = vpop.permute.xlu0 %4390
        %4392 = vrot.lane.b32.xlu0 %v2290, 44
        %v4393 = vpop.permute.xlu0 %4392
        %4394 = vrot.lane.b32.xlu0 %v2291, 44
        %v4395 = vpop.permute.xlu0 %4394
        %4396 = vrot.lane.b32.xlu0 %v2292, 44
        %v4397 = vpop.permute.xlu0 %4396
        %4398 = vrot.lane.b32.xlu0 %v2293, 44
        %v4399 = vpop.permute.xlu0 %4398
        %v4400 = vsel %vm1929, %v4385, %v4387
        %v4401 = vsel %vm1929, %v4387, %v4389
        %v4402 = vsel %vm1929, %v4389, %v4391
        %v4403 = vsel %vm1929, %v4393, %v4395
        %v4404 = vsel %vm1929, %v4395, %v4397
        %v4405 = vsel %vm1929, %v4397, %v4399
        %v4414 = vsel %vm1991, %v4377, 0
        %v4416 = vsel %vm1991, %v4379, 0
        %v4418 = vsel %vm1991, %v4381, 0
        %v4420 = vsel %vm1991, %v4383, 0
        %4422 = vmatpush.msra.mxu0 0.0
        %4423 = vmatpush.msra.mxu0 0.0
        %4424 = vmatpush.msra.mxu0 0.0
        %4425 = vmatpush.msra.mxu0 0.0
        %4426 = vmatpush.msra.mxu0 0.0
        %4427 = vmatpush.msra.mxu0 0.0
        %4428 = vmatpush.msra.mxu0 0.0
        %4429 = vmatpush.msra.mxu0 0.0
        %4430 = vmatpush.msra.mxu0 0.0
        %4431 = vmatpush.msra.mxu0 0.0
        %4432 = vmatpush.msra.mxu0 0.0
        %4433 = vmatpush.msra.mxu0 0.0
        %4434 = vmatpush.msra.mxu0 0.0
        %4435 = vmatpush.msra.mxu0 0.0
        %4436 = vmatpush.msra.mxu0 %v4403
        %4437 = vmatpush.msra.mxu0 %v4400
        %4438 = vmatmul.f32.gmra.mxu0 %v4414
        %v4439 = vpop.f32.mrf.mxu0
        %v4440 = vadd.f32 0.0, %v4439
        %4441 = vmatmul.f32.gmra.mxu0 %v4416
        %v4442 = vpop.f32.mrf.mxu0
        %v4443 = vadd.f32 0.0, %v4442
        %4444 = vmatmul.f32.gmra.mxu0 %v4418
        %v4445 = vpop.f32.mrf.mxu0
        %v4446 = vadd.f32 0.0, %v4445
        %4447 = vmatmul.f32.gmra.mxu0 %v4420
        %v4448 = vpop.f32.mrf.mxu0
        %v4449 = vadd.f32 0.0, %v4448
        %4450 = vdwg.mxu0
        %4451 = vmatpush.msra.mxu0 0.0
        %4452 = vmatpush.msra.mxu0 0.0
        %4453 = vmatpush.msra.mxu0 0.0
        %4454 = vmatpush.msra.mxu0 0.0
        %4455 = vmatpush.msra.mxu0 0.0
        %4456 = vmatpush.msra.mxu0 0.0
        %4457 = vmatpush.msra.mxu0 0.0
        %4458 = vmatpush.msra.mxu0 0.0
        %4459 = vmatpush.msra.mxu0 0.0
        %4460 = vmatpush.msra.mxu0 0.0
        %4461 = vmatpush.msra.mxu0 0.0
        %4462 = vmatpush.msra.mxu0 0.0
        %4463 = vmatpush.msra.mxu0 0.0
        %4464 = vmatpush.msra.mxu0 0.0
        %4465 = vmatpush.msra.mxu0 %v4404
        %4466 = vmatpush.msra.mxu0 %v4401
        %4467 = vmatmul.f32.gmra.mxu0 %v4414
        %v4468 = vpop.f32.mrf.mxu0
        %v4469 = vadd.f32 0.0, %v4468
        %4470 = vmatmul.f32.gmra.mxu0 %v4416
        %v4471 = vpop.f32.mrf.mxu0
        %v4472 = vadd.f32 0.0, %v4471
        %4473 = vmatmul.f32.gmra.mxu0 %v4418
        %v4474 = vpop.f32.mrf.mxu0
        %v4475 = vadd.f32 0.0, %v4474
        %4476 = vmatmul.f32.gmra.mxu0 %v4420
        %v4477 = vpop.f32.mrf.mxu0
        %v4478 = vadd.f32 0.0, %v4477
        %4479 = vdwg.mxu0
        %4480 = vmatpush.msra.mxu0 0.0
        %4481 = vmatpush.msra.mxu0 0.0
        %4482 = vmatpush.msra.mxu0 0.0
        %4483 = vmatpush.msra.mxu0 0.0
        %4484 = vmatpush.msra.mxu0 0.0
        %4485 = vmatpush.msra.mxu0 0.0
        %4486 = vmatpush.msra.mxu0 0.0
        %4487 = vmatpush.msra.mxu0 0.0
        %4488 = vmatpush.msra.mxu0 0.0
        %4489 = vmatpush.msra.mxu0 0.0
        %4490 = vmatpush.msra.mxu0 0.0
        %4491 = vmatpush.msra.mxu0 0.0
        %4492 = vmatpush.msra.mxu0 0.0
        %4493 = vmatpush.msra.mxu0 0.0
        %4494 = vmatpush.msra.mxu0 %v4405
        %4495 = vmatpush.msra.mxu0 %v4402
        %4496 = vmatmul.f32.gmra.mxu0 %v4414
        %v4497 = vpop.f32.mrf.mxu0
        %v4498 = vadd.f32 0.0, %v4497
        %4499 = vmatmul.f32.gmra.mxu0 %v4416
        %v4500 = vpop.f32.mrf.mxu0
        %v4501 = vadd.f32 0.0, %v4500
        %4502 = vmatmul.f32.gmra.mxu0 %v4418
        %v4503 = vpop.f32.mrf.mxu0
        %v4504 = vadd.f32 0.0, %v4503
        %4505 = vmatmul.f32.gmra.mxu0 %v4420
        %v4506 = vpop.f32.mrf.mxu0
        %v4507 = vadd.f32 0.0, %v4506
        %4508 = vdwg.mxu0
        %4509 = vmatpush.msra.mxu0 0.0
        %4510 = vmatpush.msra.mxu0 0.0
        %4511 = vmatpush.msra.mxu0 0.0
        %4512 = vmatpush.msra.mxu0 0.0
        %4513 = vmatpush.msra.mxu0 0.0
        %4514 = vmatpush.msra.mxu0 0.0
        %4515 = vmatpush.msra.mxu0 0.0
        %4516 = vmatpush.msra.mxu0 0.0
        %4517 = vmatpush.msra.mxu0 0.0
        %4518 = vmatpush.msra.mxu0 0.0
        %4519 = vmatpush.msra.mxu0 0.0
        %4520 = vmatpush.msra.mxu0 0.0
        %4521 = vmatpush.msra.mxu0 0.0
        %4522 = vmatpush.msra.mxu0 0.0
        %4523 = vmatpush.msra.mxu0 %v4399
        %4524 = vmatpush.msra.mxu0 %v4391
        %4525 = vmatmul.f32.gmra.mxu0 %v4414
        %v4526 = vpop.f32.mrf.mxu0
        %v4527 = vadd.f32 0.0, %v4526
        %4528 = vmatmul.f32.gmra.mxu0 %v4416
        %v4529 = vpop.f32.mrf.mxu0
        %v4530 = vadd.f32 0.0, %v4529
        %4531 = vmatmul.f32.gmra.mxu0 %v4418
        %v4532 = vpop.f32.mrf.mxu0
        %v4533 = vadd.f32 0.0, %v4532
        %4534 = vmatmul.f32.gmra.mxu0 %v4420
        %v4535 = vpop.f32.mrf.mxu0
        %v4536 = vadd.f32 0.0, %v4535
        %4537 = vdwg.mxu0
        %v4538 = vadd.f32 %v4360, %v4440
        %v4539 = vadd.f32 %v4361, %v4469
        %v4540 = vadd.f32 %v4362, %v4498
        %v4541 = vadd.f32 %v4363, %v4527
        %v4542 = vadd.f32 %v4364, %v4443
        %v4543 = vadd.f32 %v4365, %v4472
        %v4544 = vadd.f32 %v4366, %v4501
        %v4545 = vadd.f32 %v4367, %v4530
        %v4546 = vadd.f32 %v4368, %v4446
        %v4547 = vadd.f32 %v4369, %v4475
        %v4548 = vadd.f32 %v4370, %v4504
        %v4549 = vadd.f32 %v4371, %v4533
        %v4550 = vadd.f32 %v4372, %v4449
        %v4551 = vadd.f32 %v4373, %v4478
        %v4552 = vadd.f32 %v4374, %v4507
        %v4553 = vadd.f32 %v4375, %v4536
        %4554 = vrot.lane.b32.xlu0 %v3662, 48
        %v4555 = vpop.permute.xlu0 %4554
        %4556 = vrot.lane.b32.xlu0 %v3663, 48
        %v4557 = vpop.permute.xlu0 %4556
        %4558 = vrot.lane.b32.xlu0 %v3664, 48
        %v4559 = vpop.permute.xlu0 %4558
        %4560 = vrot.lane.b32.xlu0 %v3665, 48
        %v4561 = vpop.permute.xlu0 %4560
        %4562 = vrot.lane.b32.xlu0 %v2286, 42
        %v4563 = vpop.permute.xlu0 %4562
        %4564 = vrot.lane.b32.xlu0 %v2287, 42
        %v4565 = vpop.permute.xlu0 %4564
        %4566 = vrot.lane.b32.xlu0 %v2288, 42
        %v4567 = vpop.permute.xlu0 %4566
        %4568 = vrot.lane.b32.xlu0 %v2289, 42
        %v4569 = vpop.permute.xlu0 %4568
        %4570 = vrot.lane.b32.xlu0 %v2290, 42
        %v4571 = vpop.permute.xlu0 %4570
        %4572 = vrot.lane.b32.xlu0 %v2291, 42
        %v4573 = vpop.permute.xlu0 %4572
        %4574 = vrot.lane.b32.xlu0 %v2292, 42
        %v4575 = vpop.permute.xlu0 %4574
        %4576 = vrot.lane.b32.xlu0 %v2293, 42
        %v4577 = vpop.permute.xlu0 %4576
        %vm4578 = vcmask 343040
        %v4579 = vsel %vm4578, %v4563, %v4565
        %v4580 = vsel %vm4578, %v4565, %v4567
        %v4581 = vsel %vm4578, %v4567, %v4569
        %v4582 = vsel %vm4578, %v4571, %v4573
        %v4583 = vsel %vm4578, %v4573, %v4575
        %v4584 = vsel %vm4578, %v4575, %v4577
        %v4593 = vsel %vm1991, %v4555, 0
        %v4595 = vsel %vm1991, %v4557, 0
        %v4597 = vsel %vm1991, %v4559, 0
        %v4599 = vsel %vm1991, %v4561, 0
        %4601 = vmatpush.msra.mxu0 0.0
        %4602 = vmatpush.msra.mxu0 0.0
        %4603 = vmatpush.msra.mxu0 0.0
        %4604 = vmatpush.msra.mxu0 0.0
        %4605 = vmatpush.msra.mxu0 0.0
        %4606 = vmatpush.msra.mxu0 0.0
        %4607 = vmatpush.msra.mxu0 0.0
        %4608 = vmatpush.msra.mxu0 0.0
        %4609 = vmatpush.msra.mxu0 0.0
        %4610 = vmatpush.msra.mxu0 0.0
        %4611 = vmatpush.msra.mxu0 0.0
        %4612 = vmatpush.msra.mxu0 0.0
        %4613 = vmatpush.msra.mxu0 0.0
        %4614 = vmatpush.msra.mxu0 0.0
        %4615 = vmatpush.msra.mxu0 %v4582
        %4616 = vmatpush.msra.mxu0 %v4579
        %4617 = vmatmul.f32.gmra.mxu0 %v4593
        %v4618 = vpop.f32.mrf.mxu0
        %v4619 = vadd.f32 0.0, %v4618
        %4620 = vmatmul.f32.gmra.mxu0 %v4595
        %v4621 = vpop.f32.mrf.mxu0
        %v4622 = vadd.f32 0.0, %v4621
        %4623 = vmatmul.f32.gmra.mxu0 %v4597
        %v4624 = vpop.f32.mrf.mxu0
        %v4625 = vadd.f32 0.0, %v4624
        %4626 = vmatmul.f32.gmra.mxu0 %v4599
        %v4627 = vpop.f32.mrf.mxu0
        %v4628 = vadd.f32 0.0, %v4627
        %4629 = vdwg.mxu0
        %4630 = vmatpush.msra.mxu0 0.0
        %4631 = vmatpush.msra.mxu0 0.0
        %4632 = vmatpush.msra.mxu0 0.0
        %4633 = vmatpush.msra.mxu0 0.0
        %4634 = vmatpush.msra.mxu0 0.0
        %4635 = vmatpush.msra.mxu0 0.0
        %4636 = vmatpush.msra.mxu0 0.0
        %4637 = vmatpush.msra.mxu0 0.0
        %4638 = vmatpush.msra.mxu0 0.0
        %4639 = vmatpush.msra.mxu0 0.0
        %4640 = vmatpush.msra.mxu0 0.0
        %4641 = vmatpush.msra.mxu0 0.0
        %4642 = vmatpush.msra.mxu0 0.0
        %4643 = vmatpush.msra.mxu0 0.0
        %4644 = vmatpush.msra.mxu0 %v4583
        %4645 = vmatpush.msra.mxu0 %v4580
        %4646 = vmatmul.f32.gmra.mxu0 %v4593
        %v4647 = vpop.f32.mrf.mxu0
        %v4648 = vadd.f32 0.0, %v4647
        %4649 = vmatmul.f32.gmra.mxu0 %v4595
        %v4650 = vpop.f32.mrf.mxu0
        %v4651 = vadd.f32 0.0, %v4650
        %4652 = vmatmul.f32.gmra.mxu0 %v4597
        %v4653 = vpop.f32.mrf.mxu0
        %v4654 = vadd.f32 0.0, %v4653
        %4655 = vmatmul.f32.gmra.mxu0 %v4599
        %v4656 = vpop.f32.mrf.mxu0
        %v4657 = vadd.f32 0.0, %v4656
        %4658 = vdwg.mxu0
        %4659 = vmatpush.msra.mxu0 0.0
        %4660 = vmatpush.msra.mxu0 0.0
        %4661 = vmatpush.msra.mxu0 0.0
        %4662 = vmatpush.msra.mxu0 0.0
        %4663 = vmatpush.msra.mxu0 0.0
        %4664 = vmatpush.msra.mxu0 0.0
        %4665 = vmatpush.msra.mxu0 0.0
        %4666 = vmatpush.msra.mxu0 0.0
        %4667 = vmatpush.msra.mxu0 0.0
        %4668 = vmatpush.msra.mxu0 0.0
        %4669 = vmatpush.msra.mxu0 0.0
        %4670 = vmatpush.msra.mxu0 0.0
        %4671 = vmatpush.msra.mxu0 0.0
        %4672 = vmatpush.msra.mxu0 0.0
        %4673 = vmatpush.msra.mxu0 %v4584
        %4674 = vmatpush.msra.mxu0 %v4581
        %4675 = vmatmul.f32.gmra.mxu0 %v4593
        %v4676 = vpop.f32.mrf.mxu0
        %v4677 = vadd.f32 0.0, %v4676
        %4678 = vmatmul.f32.gmra.mxu0 %v4595
        %v4679 = vpop.f32.mrf.mxu0
        %v4680 = vadd.f32 0.0, %v4679
        %4681 = vmatmul.f32.gmra.mxu0 %v4597
        %v4682 = vpop.f32.mrf.mxu0
        %v4683 = vadd.f32 0.0, %v4682
        %4684 = vmatmul.f32.gmra.mxu0 %v4599
        %v4685 = vpop.f32.mrf.mxu0
        %v4686 = vadd.f32 0.0, %v4685
        %4687 = vdwg.mxu0
        %4688 = vmatpush.msra.mxu0 0.0
        %4689 = vmatpush.msra.mxu0 0.0
        %4690 = vmatpush.msra.mxu0 0.0
        %4691 = vmatpush.msra.mxu0 0.0
        %4692 = vmatpush.msra.mxu0 0.0
        %4693 = vmatpush.msra.mxu0 0.0
        %4694 = vmatpush.msra.mxu0 0.0
        %4695 = vmatpush.msra.mxu0 0.0
        %4696 = vmatpush.msra.mxu0 0.0
        %4697 = vmatpush.msra.mxu0 0.0
        %4698 = vmatpush.msra.mxu0 0.0
        %4699 = vmatpush.msra.mxu0 0.0
        %4700 = vmatpush.msra.mxu0 0.0
        %4701 = vmatpush.msra.mxu0 0.0
        %4702 = vmatpush.msra.mxu0 %v4577
        %4703 = vmatpush.msra.mxu0 %v4569
        %4704 = vmatmul.f32.gmra.mxu0 %v4593
        %v4705 = vpop.f32.mrf.mxu0
        %v4706 = vadd.f32 0.0, %v4705
        %4707 = vmatmul.f32.gmra.mxu0 %v4595
        %v4708 = vpop.f32.mrf.mxu0
        %v4709 = vadd.f32 0.0, %v4708
        %4710 = vmatmul.f32.gmra.mxu0 %v4597
        %v4711 = vpop.f32.mrf.mxu0
        %v4712 = vadd.f32 0.0, %v4711
        %4713 = vmatmul.f32.gmra.mxu0 %v4599
        %v4714 = vpop.f32.mrf.mxu0
        %v4715 = vadd.f32 0.0, %v4714
        %4716 = vdwg.mxu0
        %v4717 = vadd.f32 %v4538, %v4619
        %v4718 = vadd.f32 %v4539, %v4648
        %v4719 = vadd.f32 %v4540, %v4677
        %v4720 = vadd.f32 %v4541, %v4706
        %v4721 = vadd.f32 %v4542, %v4622
        %v4722 = vadd.f32 %v4543, %v4651
        %v4723 = vadd.f32 %v4544, %v4680
        %v4724 = vadd.f32 %v4545, %v4709
        %v4725 = vadd.f32 %v4546, %v4625
        %v4726 = vadd.f32 %v4547, %v4654
        %v4727 = vadd.f32 %v4548, %v4683
        %v4728 = vadd.f32 %v4549, %v4712
        %v4729 = vadd.f32 %v4550, %v4628
        %v4730 = vadd.f32 %v4551, %v4657
        %v4731 = vadd.f32 %v4552, %v4686
        %v4732 = vadd.f32 %v4553, %v4715
        %4733 = vrot.lane.b32.xlu0 %v3662, 32
        %v4734 = vpop.permute.xlu0 %4733
        %4735 = vrot.lane.b32.xlu0 %v3663, 32
        %v4736 = vpop.permute.xlu0 %4735
        %4737 = vrot.lane.b32.xlu0 %v3664, 32
        %v4738 = vpop.permute.xlu0 %4737
        %4739 = vrot.lane.b32.xlu0 %v3665, 32
        %v4740 = vpop.permute.xlu0 %4739
        %4741 = vrot.lane.b32.xlu0 %v2286, 40
        %v4742 = vpop.permute.xlu0 %4741
        %4743 = vrot.lane.b32.xlu0 %v2287, 40
        %v4744 = vpop.permute.xlu0 %4743
        %4745 = vrot.lane.b32.xlu0 %v2288, 40
        %v4746 = vpop.permute.xlu0 %4745
        %4747 = vrot.lane.b32.xlu0 %v2289, 40
        %v4748 = vpop.permute.xlu0 %4747
        %4749 = vrot.lane.b32.xlu0 %v2290, 40
        %v4750 = vpop.permute.xlu0 %4749
        %4751 = vrot.lane.b32.xlu0 %v2291, 40
        %v4752 = vpop.permute.xlu0 %4751
        %4753 = vrot.lane.b32.xlu0 %v2292, 40
        %v4754 = vpop.permute.xlu0 %4753
        %4755 = vrot.lane.b32.xlu0 %v2293, 40
        %v4756 = vpop.permute.xlu0 %4755
        %vm4757 = vcmask 326656
        %v4758 = vsel %vm4757, %v4742, %v4744
        %v4759 = vsel %vm4757, %v4744, %v4746
        %v4760 = vsel %vm4757, %v4746, %v4748
        %v4761 = vsel %vm4757, %v4750, %v4752
        %v4762 = vsel %vm4757, %v4752, %v4754
        %v4763 = vsel %vm4757, %v4754, %v4756
        %v4772 = vsel %vm1991, %v4734, 0
        %v4774 = vsel %vm1991, %v4736, 0
        %v4776 = vsel %vm1991, %v4738, 0
        %v4778 = vsel %vm1991, %v4740, 0
        %4780 = vmatpush.msra.mxu0 0.0
        %4781 = vmatpush.msra.mxu0 0.0
        %4782 = vmatpush.msra.mxu0 0.0
        %4783 = vmatpush.msra.mxu0 0.0
        %4784 = vmatpush.msra.mxu0 0.0
        %4785 = vmatpush.msra.mxu0 0.0
        %4786 = vmatpush.msra.mxu0 0.0
        %4787 = vmatpush.msra.mxu0 0.0
        %4788 = vmatpush.msra.mxu0 0.0
        %4789 = vmatpush.msra.mxu0 0.0
        %4790 = vmatpush.msra.mxu0 0.0
        %4791 = vmatpush.msra.mxu0 0.0
        %4792 = vmatpush.msra.mxu0 0.0
        %4793 = vmatpush.msra.mxu0 0.0
        %4794 = vmatpush.msra.mxu0 %v4761
        %4795 = vmatpush.msra.mxu0 %v4758
        %4796 = vmatmul.f32.gmra.mxu0 %v4772
        %v4797 = vpop.f32.mrf.mxu0
        %v4798 = vadd.f32 0.0, %v4797
        %4799 = vmatmul.f32.gmra.mxu0 %v4774
        %v4800 = vpop.f32.mrf.mxu0
        %v4801 = vadd.f32 0.0, %v4800
        %4802 = vmatmul.f32.gmra.mxu0 %v4776
        %v4803 = vpop.f32.mrf.mxu0
        %v4804 = vadd.f32 0.0, %v4803
        %4805 = vmatmul.f32.gmra.mxu0 %v4778
        %v4806 = vpop.f32.mrf.mxu0
        %v4807 = vadd.f32 0.0, %v4806
        %4808 = vdwg.mxu0
        %4809 = vmatpush.msra.mxu0 0.0
        %4810 = vmatpush.msra.mxu0 0.0
        %4811 = vmatpush.msra.mxu0 0.0
        %4812 = vmatpush.msra.mxu0 0.0
        %4813 = vmatpush.msra.mxu0 0.0
        %4814 = vmatpush.msra.mxu0 0.0
        %4815 = vmatpush.msra.mxu0 0.0
        %4816 = vmatpush.msra.mxu0 0.0
        %4817 = vmatpush.msra.mxu0 0.0
        %4818 = vmatpush.msra.mxu0 0.0
        %4819 = vmatpush.msra.mxu0 0.0
        %4820 = vmatpush.msra.mxu0 0.0
        %4821 = vmatpush.msra.mxu0 0.0
        %4822 = vmatpush.msra.mxu0 0.0
        %4823 = vmatpush.msra.mxu0 %v4762
        %4824 = vmatpush.msra.mxu0 %v4759
        %4825 = vmatmul.f32.gmra.mxu0 %v4772
        %v4826 = vpop.f32.mrf.mxu0
        %v4827 = vadd.f32 0.0, %v4826
        %4828 = vmatmul.f32.gmra.mxu0 %v4774
        %v4829 = vpop.f32.mrf.mxu0
        %v4830 = vadd.f32 0.0, %v4829
        %4831 = vmatmul.f32.gmra.mxu0 %v4776
        %v4832 = vpop.f32.mrf.mxu0
        %v4833 = vadd.f32 0.0, %v4832
        %4834 = vmatmul.f32.gmra.mxu0 %v4778
        %v4835 = vpop.f32.mrf.mxu0
        %v4836 = vadd.f32 0.0, %v4835
        %4837 = vdwg.mxu0
        %4838 = vmatpush.msra.mxu0 0.0
        %4839 = vmatpush.msra.mxu0 0.0
        %4840 = vmatpush.msra.mxu0 0.0
        %4841 = vmatpush.msra.mxu0 0.0
        %4842 = vmatpush.msra.mxu0 0.0
        %4843 = vmatpush.msra.mxu0 0.0
        %4844 = vmatpush.msra.mxu0 0.0
        %4845 = vmatpush.msra.mxu0 0.0
        %4846 = vmatpush.msra.mxu0 0.0
        %4847 = vmatpush.msra.mxu0 0.0
        %4848 = vmatpush.msra.mxu0 0.0
        %4849 = vmatpush.msra.mxu0 0.0
        %4850 = vmatpush.msra.mxu0 0.0
        %4851 = vmatpush.msra.mxu0 0.0
        %4852 = vmatpush.msra.mxu0 %v4763
        %4853 = vmatpush.msra.mxu0 %v4760
        %4854 = vmatmul.f32.gmra.mxu0 %v4772
        %v4855 = vpop.f32.mrf.mxu0
        %v4856 = vadd.f32 0.0, %v4855
        %4857 = vmatmul.f32.gmra.mxu0 %v4774
        %v4858 = vpop.f32.mrf.mxu0
        %v4859 = vadd.f32 0.0, %v4858
        %4860 = vmatmul.f32.gmra.mxu0 %v4776
        %v4861 = vpop.f32.mrf.mxu0
        %v4862 = vadd.f32 0.0, %v4861
        %4863 = vmatmul.f32.gmra.mxu0 %v4778
        %v4864 = vpop.f32.mrf.mxu0
        %v4865 = vadd.f32 0.0, %v4864
        %4866 = vdwg.mxu0
        %4867 = vmatpush.msra.mxu0 0.0
        %4868 = vmatpush.msra.mxu0 0.0
        %4869 = vmatpush.msra.mxu0 0.0
        %4870 = vmatpush.msra.mxu0 0.0
        %4871 = vmatpush.msra.mxu0 0.0
        %4872 = vmatpush.msra.mxu0 0.0
        %4873 = vmatpush.msra.mxu0 0.0
        %4874 = vmatpush.msra.mxu0 0.0
        %4875 = vmatpush.msra.mxu0 0.0
        %4876 = vmatpush.msra.mxu0 0.0
        %4877 = vmatpush.msra.mxu0 0.0
        %4878 = vmatpush.msra.mxu0 0.0
        %4879 = vmatpush.msra.mxu0 0.0
        %4880 = vmatpush.msra.mxu0 0.0
        %4881 = vmatpush.msra.mxu0 %v4756
        %4882 = vmatpush.msra.mxu0 %v4748
        %4883 = vmatmul.f32.gmra.mxu0 %v4772
        %v4884 = vpop.f32.mrf.mxu0
        %v4885 = vadd.f32 0.0, %v4884
        %4886 = vmatmul.f32.gmra.mxu0 %v4774
        %v4887 = vpop.f32.mrf.mxu0
        %v4888 = vadd.f32 0.0, %v4887
        %4889 = vmatmul.f32.gmra.mxu0 %v4776
        %v4890 = vpop.f32.mrf.mxu0
        %v4891 = vadd.f32 0.0, %v4890
        %4892 = vmatmul.f32.gmra.mxu0 %v4778
        %v4893 = vpop.f32.mrf.mxu0
        %v4894 = vadd.f32 0.0, %v4893
        %4895 = vdwg.mxu0
        %v4896 = vadd.f32 %v4717, %v4798
        %v4897 = vadd.f32 %v4718, %v4827
        %v4898 = vadd.f32 %v4719, %v4856
        %v4899 = vadd.f32 %v4720, %v4885
        %v4900 = vadd.f32 %v4721, %v4801
        %v4901 = vadd.f32 %v4722, %v4830
        %v4902 = vadd.f32 %v4723, %v4859
        %v4903 = vadd.f32 %v4724, %v4888
        %v4904 = vadd.f32 %v4725, %v4804
        %v4905 = vadd.f32 %v4726, %v4833
        %v4906 = vadd.f32 %v4727, %v4862
        %v4907 = vadd.f32 %v4728, %v4891
        %v4908 = vadd.f32 %v4729, %v4807
        %v4909 = vadd.f32 %v4730, %v4836
        %v4910 = vadd.f32 %v4731, %v4865
        %v4911 = vadd.f32 %v4732, %v4894
        %v4912 = vld [vmem:[#allocation2] sm:$0xff]
        %v4913 = vld [vmem:[#allocation2 + $0x8] sm:$0xff]
        %v4914 = vld [vmem:[#allocation2 + $0x10] sm:$0xff]
        %v4915 = vld [vmem:[#allocation2 + $0x18] sm:$0xff]
        %v4916 = vld [vmem:[#allocation2 + $0x20] sm:$0xff]
        %v4917 = vld [vmem:[#allocation2 + $0x28] sm:$0xff]
        %v4918 = vld [vmem:[#allocation2 + $0x30] sm:$0xff]
        %v4919 = vld [vmem:[#allocation2 + $0x38] sm:$0xff]
        %v4920 = vld [vmem:[#allocation2 + $0x40] sm:$0xff]
        %v4921 = vld [vmem:[#allocation2 + $0x48] sm:$0xff]
        %4922 = vrot.lane.b32.xlu0 %v3662, 16
        %v4923 = vpop.permute.xlu0 %4922
        %4924 = vrot.lane.b32.xlu0 %v3663, 16
        %v4925 = vpop.permute.xlu0 %4924
        %4926 = vrot.lane.b32.xlu0 %v3664, 16
        %v4927 = vpop.permute.xlu0 %4926
        %4928 = vrot.lane.b32.xlu0 %v3665, 16
        %v4929 = vpop.permute.xlu0 %4928
        %4940 = vrot.lane.b32.xlu0 %v4912, 8
        %v4941 = vpop.permute.xlu0 %4940
        %4942 = vrot.lane.b32.xlu0 %v4913, 8
        %v4943 = vpop.permute.xlu0 %4942
        %4944 = vrot.lane.b32.xlu0 %v4914, 8
        %v4945 = vpop.permute.xlu0 %4944
        %4946 = vrot.lane.b32.xlu0 %v4915, 8
        %v4947 = vpop.permute.xlu0 %4946
        %4948 = vrot.lane.b32.xlu0 %v4916, 8
        %v4949 = vpop.permute.xlu0 %4948
        %4950 = vrot.lane.b32.xlu0 %v4917, 8
        %v4951 = vpop.permute.xlu0 %4950
        %4952 = vrot.lane.b32.xlu0 %v4918, 8
        %v4953 = vpop.permute.xlu0 %4952
        %4954 = vrot.lane.b32.xlu0 %v4919, 8
        %v4955 = vpop.permute.xlu0 %4954
        %4956 = vrot.lane.b32.xlu0 %v4920, 8
        %v4957 = vpop.permute.xlu0 %4956
        %4958 = vrot.lane.b32.xlu0 %v4921, 8
        %v4959 = vpop.permute.xlu0 %4958
        %vm4960 = vcmask 64512
        %v4961 = vsel %vm4960, %v4941, %v4943
        %v4962 = vsel %vm4960, %v4943, %v4945
        %v4963 = vsel %vm4960, %v4945, %v4947
        %v4964 = vsel %vm4960, %v4947, %v4949
        %v4965 = vsel %vm4960, %v4951, %v4953
        %v4966 = vsel %vm4960, %v4953, %v4955
        %v4967 = vsel %vm4960, %v4955, %v4957
        %v4968 = vsel %vm4960, %v4957, %v4959
        %v4977 = vsel %vm1991, %v4923, 0
        %v4979 = vsel %vm1991, %v4925, 0
        %v4981 = vsel %vm1991, %v4927, 0
        %v4983 = vsel %vm1991, %v4929, 0
        %4985 = vmatpush.msra.mxu0 0.0
        %4986 = vmatpush.msra.mxu0 0.0
        %4987 = vmatpush.msra.mxu0 0.0
        %4988 = vmatpush.msra.mxu0 0.0
        %4989 = vmatpush.msra.mxu0 0.0
        %4990 = vmatpush.msra.mxu0 0.0
        %4991 = vmatpush.msra.mxu0 0.0
        %4992 = vmatpush.msra.mxu0 0.0
        %4993 = vmatpush.msra.mxu0 0.0
        %4994 = vmatpush.msra.mxu0 0.0
        %4995 = vmatpush.msra.mxu0 0.0
        %4996 = vmatpush.msra.mxu0 0.0
        %4997 = vmatpush.msra.mxu0 0.0
        %4998 = vmatpush.msra.mxu0 0.0
        %4999 = vmatpush.msra.mxu0 %v4965
        %5000 = vmatpush.msra.mxu0 %v4961
        %5001 = vmatmul.f32.gmra.mxu0 %v4977
        %v5002 = vpop.f32.mrf.mxu0
        %v5003 = vadd.f32 0.0, %v5002
        %5004 = vmatmul.f32.gmra.mxu0 %v4979
        %v5005 = vpop.f32.mrf.mxu0
        %v5006 = vadd.f32 0.0, %v5005
        %5007 = vmatmul.f32.gmra.mxu0 %v4981
        %v5008 = vpop.f32.mrf.mxu0
        %v5009 = vadd.f32 0.0, %v5008
        %5010 = vmatmul.f32.gmra.mxu0 %v4983
        %v5011 = vpop.f32.mrf.mxu0
        %v5012 = vadd.f32 0.0, %v5011
        %5013 = vdwg.mxu0
        %5014 = vmatpush.msra.mxu0 0.0
        %5015 = vmatpush.msra.mxu0 0.0
        %5016 = vmatpush.msra.mxu0 0.0
        %5017 = vmatpush.msra.mxu0 0.0
        %5018 = vmatpush.msra.mxu0 0.0
        %5019 = vmatpush.msra.mxu0 0.0
        %5020 = vmatpush.msra.mxu0 0.0
        %5021 = vmatpush.msra.mxu0 0.0
        %5022 = vmatpush.msra.mxu0 0.0
        %5023 = vmatpush.msra.mxu0 0.0
        %5024 = vmatpush.msra.mxu0 0.0
        %5025 = vmatpush.msra.mxu0 0.0
        %5026 = vmatpush.msra.mxu0 0.0
        %5027 = vmatpush.msra.mxu0 0.0
        %5028 = vmatpush.msra.mxu0 %v4966
        %5029 = vmatpush.msra.mxu0 %v4962
        %5030 = vmatmul.f32.gmra.mxu0 %v4977
        %v5031 = vpop.f32.mrf.mxu0
        %v5032 = vadd.f32 0.0, %v5031
        %5033 = vmatmul.f32.gmra.mxu0 %v4979
        %v5034 = vpop.f32.mrf.mxu0
        %v5035 = vadd.f32 0.0, %v5034
        %5036 = vmatmul.f32.gmra.mxu0 %v4981
        %v5037 = vpop.f32.mrf.mxu0
        %v5038 = vadd.f32 0.0, %v5037
        %5039 = vmatmul.f32.gmra.mxu0 %v4983
        %v5040 = vpop.f32.mrf.mxu0
        %v5041 = vadd.f32 0.0, %v5040
        %5042 = vdwg.mxu0
        %5043 = vmatpush.msra.mxu0 0.0
        %5044 = vmatpush.msra.mxu0 0.0
        %5045 = vmatpush.msra.mxu0 0.0
        %5046 = vmatpush.msra.mxu0 0.0
        %5047 = vmatpush.msra.mxu0 0.0
        %5048 = vmatpush.msra.mxu0 0.0
        %5049 = vmatpush.msra.mxu0 0.0
        %5050 = vmatpush.msra.mxu0 0.0
        %5051 = vmatpush.msra.mxu0 0.0
        %5052 = vmatpush.msra.mxu0 0.0
        %5053 = vmatpush.msra.mxu0 0.0
        %5054 = vmatpush.msra.mxu0 0.0
        %5055 = vmatpush.msra.mxu0 0.0
        %5056 = vmatpush.msra.mxu0 0.0
        %5057 = vmatpush.msra.mxu0 %v4967
        %5058 = vmatpush.msra.mxu0 %v4963
        %5059 = vmatmul.f32.gmra.mxu0 %v4977
        %v5060 = vpop.f32.mrf.mxu0
        %v5061 = vadd.f32 0.0, %v5060
        %5062 = vmatmul.f32.gmra.mxu0 %v4979
        %v5063 = vpop.f32.mrf.mxu0
        %v5064 = vadd.f32 0.0, %v5063
        %5065 = vmatmul.f32.gmra.mxu0 %v4981
        %v5066 = vpop.f32.mrf.mxu0
        %v5067 = vadd.f32 0.0, %v5066
        %5068 = vmatmul.f32.gmra.mxu0 %v4983
        %v5069 = vpop.f32.mrf.mxu0
        %v5070 = vadd.f32 0.0, %v5069
        %5071 = vdwg.mxu0
        %5072 = vmatpush.msra.mxu0 0.0
        %5073 = vmatpush.msra.mxu0 0.0
        %5074 = vmatpush.msra.mxu0 0.0
        %5075 = vmatpush.msra.mxu0 0.0
        %5076 = vmatpush.msra.mxu0 0.0
        %5077 = vmatpush.msra.mxu0 0.0
        %5078 = vmatpush.msra.mxu0 0.0
        %5079 = vmatpush.msra.mxu0 0.0
        %5080 = vmatpush.msra.mxu0 0.0
        %5081 = vmatpush.msra.mxu0 0.0
        %5082 = vmatpush.msra.mxu0 0.0
        %5083 = vmatpush.msra.mxu0 0.0
        %5084 = vmatpush.msra.mxu0 0.0
        %5085 = vmatpush.msra.mxu0 0.0
        %5086 = vmatpush.msra.mxu0 %v4968
        %5087 = vmatpush.msra.mxu0 %v4964
        %5088 = vmatmul.f32.gmra.mxu0 %v4977
        %v5089 = vpop.f32.mrf.mxu0
        %v5090 = vadd.f32 0.0, %v5089
        %5091 = vmatmul.f32.gmra.mxu0 %v4979
        %v5092 = vpop.f32.mrf.mxu0
        %v5093 = vadd.f32 0.0, %v5092
        %5094 = vmatmul.f32.gmra.mxu0 %v4981
        %v5095 = vpop.f32.mrf.mxu0
        %v5096 = vadd.f32 0.0, %v5095
        %5097 = vmatmul.f32.gmra.mxu0 %v4983
        %v5098 = vpop.f32.mrf.mxu0
        %v5099 = vadd.f32 0.0, %v5098
        %5100 = vdwg.mxu0
        %v5101 = vadd.f32 %v4896, %v5003
        %v5102 = vadd.f32 %v4897, %v5032
        %v5103 = vadd.f32 %v4898, %v5061
        %v5104 = vadd.f32 %v4899, %v5090
        %v5105 = vadd.f32 %v4900, %v5006
        %v5106 = vadd.f32 %v4901, %v5035
        %v5107 = vadd.f32 %v4902, %v5064
        %v5108 = vadd.f32 %v4903, %v5093
        %v5109 = vadd.f32 %v4904, %v5009
        %v5110 = vadd.f32 %v4905, %v5038
        %v5111 = vadd.f32 %v4906, %v5067
        %v5112 = vadd.f32 %v4907, %v5096
        %v5113 = vadd.f32 %v4908, %v5012
        %v5114 = vadd.f32 %v4909, %v5041
        %v5115 = vadd.f32 %v4910, %v5070
        %v5116 = vadd.f32 %v4911, %v5099
        %v5117 = vld [vmem:[#allocation4 + $0x10] sm:$0xff]
        %v5118 = vld [vmem:[#allocation4 + $0x30] sm:$0xff]
        %v5119 = vld [vmem:[#allocation4 + $0x50] sm:$0xff]
        %v5120 = vld [vmem:[#allocation4 + $0x70] sm:$0xff]
        %5121 = vrot.lane.b32.xlu0 %v4912, 6
        %v5122 = vpop.permute.xlu0 %5121
        %5123 = vrot.lane.b32.xlu0 %v4913, 6
        %v5124 = vpop.permute.xlu0 %5123
        %5125 = vrot.lane.b32.xlu0 %v4914, 6
        %v5126 = vpop.permute.xlu0 %5125
        %5127 = vrot.lane.b32.xlu0 %v4915, 6
        %v5128 = vpop.permute.xlu0 %5127
        %5129 = vrot.lane.b32.xlu0 %v4916, 6
        %v5130 = vpop.permute.xlu0 %5129
        %5131 = vrot.lane.b32.xlu0 %v4917, 6
        %v5132 = vpop.permute.xlu0 %5131
        %5133 = vrot.lane.b32.xlu0 %v4918, 6
        %v5134 = vpop.permute.xlu0 %5133
        %5135 = vrot.lane.b32.xlu0 %v4919, 6
        %v5136 = vpop.permute.xlu0 %5135
        %5137 = vrot.lane.b32.xlu0 %v4920, 6
        %v5138 = vpop.permute.xlu0 %5137
        %5139 = vrot.lane.b32.xlu0 %v4921, 6
        %v5140 = vpop.permute.xlu0 %5139
        %vm5141 = vcmask 48128
        %v5142 = vsel %vm5141, %v5122, %v5124
        %v5143 = vsel %vm5141, %v5124, %v5126
        %v5144 = vsel %vm5141, %v5126, %v5128
        %v5145 = vsel %vm5141, %v5128, %v5130
        %v5146 = vsel %vm5141, %v5132, %v5134
        %v5147 = vsel %vm5141, %v5134, %v5136
        %v5148 = vsel %vm5141, %v5136, %v5138
        %v5149 = vsel %vm5141, %v5138, %v5140
        %v5159 = vsel %vm1991, %v5117, 0
        %v5162 = vsel %vm1991, %v5118, 0
        %v5165 = vsel %vm1991, %v5119, 0
        %v5168 = vsel %vm1991, %v5120, 0
        %5170 = vmatpush.msra.mxu0 0.0
        %5171 = vmatpush.msra.mxu0 0.0
        %5172 = vmatpush.msra.mxu0 0.0
        %5173 = vmatpush.msra.mxu0 0.0
        %5174 = vmatpush.msra.mxu0 0.0
        %5175 = vmatpush.msra.mxu0 0.0
        %5176 = vmatpush.msra.mxu0 0.0
        %5177 = vmatpush.msra.mxu0 0.0
        %5178 = vmatpush.msra.mxu0 0.0
        %5179 = vmatpush.msra.mxu0 0.0
        %5180 = vmatpush.msra.mxu0 0.0
        %5181 = vmatpush.msra.mxu0 0.0
        %5182 = vmatpush.msra.mxu0 0.0
        %5183 = vmatpush.msra.mxu0 0.0
        %5184 = vmatpush.msra.mxu0 %v5146
        %5185 = vmatpush.msra.mxu0 %v5142
        %5186 = vmatmul.f32.gmra.mxu0 %v5159
        %v5187 = vpop.f32.mrf.mxu0
        %v5188 = vadd.f32 0.0, %v5187
        %5189 = vmatmul.f32.gmra.mxu0 %v5162
        %v5190 = vpop.f32.mrf.mxu0
        %v5191 = vadd.f32 0.0, %v5190
        %5192 = vmatmul.f32.gmra.mxu0 %v5165
        %v5193 = vpop.f32.mrf.mxu0
        %v5194 = vadd.f32 0.0, %v5193
        %5195 = vmatmul.f32.gmra.mxu0 %v5168
        %v5196 = vpop.f32.mrf.mxu0
        %v5197 = vadd.f32 0.0, %v5196
        %5198 = vdwg.mxu0
        %5199 = vmatpush.msra.mxu0 0.0
        %5200 = vmatpush.msra.mxu0 0.0
        %5201 = vmatpush.msra.mxu0 0.0
        %5202 = vmatpush.msra.mxu0 0.0
        %5203 = vmatpush.msra.mxu0 0.0
        %5204 = vmatpush.msra.mxu0 0.0
        %5205 = vmatpush.msra.mxu0 0.0
        %5206 = vmatpush.msra.mxu0 0.0
        %5207 = vmatpush.msra.mxu0 0.0
        %5208 = vmatpush.msra.mxu0 0.0
        %5209 = vmatpush.msra.mxu0 0.0
        %5210 = vmatpush.msra.mxu0 0.0
        %5211 = vmatpush.msra.mxu0 0.0
        %5212 = vmatpush.msra.mxu0 0.0
        %5213 = vmatpush.msra.mxu0 %v5147
        %5214 = vmatpush.msra.mxu0 %v5143
        %5215 = vmatmul.f32.gmra.mxu0 %v5159
        %v5216 = vpop.f32.mrf.mxu0
        %v5217 = vadd.f32 0.0, %v5216
        %5218 = vmatmul.f32.gmra.mxu0 %v5162
        %v5219 = vpop.f32.mrf.mxu0
        %v5220 = vadd.f32 0.0, %v5219
        %5221 = vmatmul.f32.gmra.mxu0 %v5165
        %v5222 = vpop.f32.mrf.mxu0
        %v5223 = vadd.f32 0.0, %v5222
        %5224 = vmatmul.f32.gmra.mxu0 %v5168
        %v5225 = vpop.f32.mrf.mxu0
        %v5226 = vadd.f32 0.0, %v5225
        %5227 = vdwg.mxu0
        %5228 = vmatpush.msra.mxu0 0.0
        %5229 = vmatpush.msra.mxu0 0.0
        %5230 = vmatpush.msra.mxu0 0.0
        %5231 = vmatpush.msra.mxu0 0.0
        %5232 = vmatpush.msra.mxu0 0.0
        %5233 = vmatpush.msra.mxu0 0.0
        %5234 = vmatpush.msra.mxu0 0.0
        %5235 = vmatpush.msra.mxu0 0.0
        %5236 = vmatpush.msra.mxu0 0.0
        %5237 = vmatpush.msra.mxu0 0.0
        %5238 = vmatpush.msra.mxu0 0.0
        %5239 = vmatpush.msra.mxu0 0.0
        %5240 = vmatpush.msra.mxu0 0.0
        %5241 = vmatpush.msra.mxu0 0.0
        %5242 = vmatpush.msra.mxu0 %v5148
        %5243 = vmatpush.msra.mxu0 %v5144
        %5244 = vmatmul.f32.gmra.mxu0 %v5159
        %v5245 = vpop.f32.mrf.mxu0
        %v5246 = vadd.f32 0.0, %v5245
        %5247 = vmatmul.f32.gmra.mxu0 %v5162
        %v5248 = vpop.f32.mrf.mxu0
        %v5249 = vadd.f32 0.0, %v5248
        %5250 = vmatmul.f32.gmra.mxu0 %v5165
        %v5251 = vpop.f32.mrf.mxu0
        %v5252 = vadd.f32 0.0, %v5251
        %5253 = vmatmul.f32.gmra.mxu0 %v5168
        %v5254 = vpop.f32.mrf.mxu0
        %v5255 = vadd.f32 0.0, %v5254
        %5256 = vdwg.mxu0
        %5257 = vmatpush.msra.mxu0 0.0
        %5258 = vmatpush.msra.mxu0 0.0
        %5259 = vmatpush.msra.mxu0 0.0
        %5260 = vmatpush.msra.mxu0 0.0
        %5261 = vmatpush.msra.mxu0 0.0
        %5262 = vmatpush.msra.mxu0 0.0
        %5263 = vmatpush.msra.mxu0 0.0
        %5264 = vmatpush.msra.mxu0 0.0
        %5265 = vmatpush.msra.mxu0 0.0
        %5266 = vmatpush.msra.mxu0 0.0
        %5267 = vmatpush.msra.mxu0 0.0
        %5268 = vmatpush.msra.mxu0 0.0
        %5269 = vmatpush.msra.mxu0 0.0
        %5270 = vmatpush.msra.mxu0 0.0
        %5271 = vmatpush.msra.mxu0 %v5149
        %5272 = vmatpush.msra.mxu0 %v5145
        %5273 = vmatmul.f32.gmra.mxu0 %v5159
        %v5274 = vpop.f32.mrf.mxu0
        %v5275 = vadd.f32 0.0, %v5274
        %5276 = vmatmul.f32.gmra.mxu0 %v5162
        %v5277 = vpop.f32.mrf.mxu0
        %v5278 = vadd.f32 0.0, %v5277
        %5279 = vmatmul.f32.gmra.mxu0 %v5165
        %v5280 = vpop.f32.mrf.mxu0
        %v5281 = vadd.f32 0.0, %v5280
        %5282 = vmatmul.f32.gmra.mxu0 %v5168
        %v5283 = vpop.f32.mrf.mxu0
        %v5284 = vadd.f32 0.0, %v5283
        %5285 = vdwg.mxu0
        %v5286 = vadd.f32 %v5101, %v5188
        %v5287 = vadd.f32 %v5102, %v5217
        %v5288 = vadd.f32 %v5103, %v5246
        %v5289 = vadd.f32 %v5104, %v5275
        %v5290 = vadd.f32 %v5105, %v5191
        %v5291 = vadd.f32 %v5106, %v5220
        %v5292 = vadd.f32 %v5107, %v5249
        %v5293 = vadd.f32 %v5108, %v5278
        %v5294 = vadd.f32 %v5109, %v5194
        %v5295 = vadd.f32 %v5110, %v5223
        %v5296 = vadd.f32 %v5111, %v5252
        %v5297 = vadd.f32 %v5112, %v5281
        %v5298 = vadd.f32 %v5113, %v5197
        %v5299 = vadd.f32 %v5114, %v5226
        %v5300 = vadd.f32 %v5115, %v5255
        %v5301 = vadd.f32 %v5116, %v5284
        %5302 = vrot.lane.b32.xlu0 %v5117, 112
        %v5303 = vpop.permute.xlu0 %5302
        %5304 = vrot.lane.b32.xlu0 %v5118, 112
        %v5305 = vpop.permute.xlu0 %5304
        %5306 = vrot.lane.b32.xlu0 %v5119, 112
        %v5307 = vpop.permute.xlu0 %5306
        %5308 = vrot.lane.b32.xlu0 %v5120, 112
        %v5309 = vpop.permute.xlu0 %5308
        %5310 = vrot.lane.b32.xlu0 %v4912, 4
        %v5311 = vpop.permute.xlu0 %5310
        %5312 = vrot.lane.b32.xlu0 %v4913, 4
        %v5313 = vpop.permute.xlu0 %5312
        %5314 = vrot.lane.b32.xlu0 %v4914, 4
        %v5315 = vpop.permute.xlu0 %5314
        %5316 = vrot.lane.b32.xlu0 %v4915, 4
        %v5317 = vpop.permute.xlu0 %5316
        %5318 = vrot.lane.b32.xlu0 %v4916, 4
        %v5319 = vpop.permute.xlu0 %5318
        %5320 = vrot.lane.b32.xlu0 %v4917, 4
        %v5321 = vpop.permute.xlu0 %5320
        %5322 = vrot.lane.b32.xlu0 %v4918, 4
        %v5323 = vpop.permute.xlu0 %5322
        %5324 = vrot.lane.b32.xlu0 %v4919, 4
        %v5325 = vpop.permute.xlu0 %5324
        %5326 = vrot.lane.b32.xlu0 %v4920, 4
        %v5327 = vpop.permute.xlu0 %5326
        %5328 = vrot.lane.b32.xlu0 %v4921, 4
        %v5329 = vpop.permute.xlu0 %5328
        %vm5330 = vcmask 31744
        %v5331 = vsel %vm5330, %v5311, %v5313
        %v5332 = vsel %vm5330, %v5313, %v5315
        %v5333 = vsel %vm5330, %v5315, %v5317
        %v5334 = vsel %vm5330, %v5317, %v5319
        %v5335 = vsel %vm5330, %v5321, %v5323
        %v5336 = vsel %vm5330, %v5323, %v5325
        %v5337 = vsel %vm5330, %v5325, %v5327
        %v5338 = vsel %vm5330, %v5327, %v5329
        %v5347 = vsel %vm1991, %v5303, 0
        %v5349 = vsel %vm1991, %v5305, 0
        %v5351 = vsel %vm1991, %v5307, 0
        %v5353 = vsel %vm1991, %v5309, 0
        %5355 = vmatpush.msra.mxu0 0.0
        %5356 = vmatpush.msra.mxu0 0.0
        %5357 = vmatpush.msra.mxu0 0.0
        %5358 = vmatpush.msra.mxu0 0.0
        %5359 = vmatpush.msra.mxu0 0.0
        %5360 = vmatpush.msra.mxu0 0.0
        %5361 = vmatpush.msra.mxu0 0.0
        %5362 = vmatpush.msra.mxu0 0.0
        %5363 = vmatpush.msra.mxu0 0.0
        %5364 = vmatpush.msra.mxu0 0.0
        %5365 = vmatpush.msra.mxu0 0.0
        %5366 = vmatpush.msra.mxu0 0.0
        %5367 = vmatpush.msra.mxu0 0.0
        %5368 = vmatpush.msra.mxu0 0.0
        %5369 = vmatpush.msra.mxu0 %v5335
        %5370 = vmatpush.msra.mxu0 %v5331
        %5371 = vmatmul.f32.gmra.mxu0 %v5347
        %v5372 = vpop.f32.mrf.mxu0
        %v5373 = vadd.f32 0.0, %v5372
        %5374 = vmatmul.f32.gmra.mxu0 %v5349
        %v5375 = vpop.f32.mrf.mxu0
        %v5376 = vadd.f32 0.0, %v5375
        %5377 = vmatmul.f32.gmra.mxu0 %v5351
        %v5378 = vpop.f32.mrf.mxu0
        %v5379 = vadd.f32 0.0, %v5378
        %5380 = vmatmul.f32.gmra.mxu0 %v5353
        %v5381 = vpop.f32.mrf.mxu0
        %v5382 = vadd.f32 0.0, %v5381
        %5383 = vdwg.mxu0
        %5384 = vmatpush.msra.mxu0 0.0
        %5385 = vmatpush.msra.mxu0 0.0
        %5386 = vmatpush.msra.mxu0 0.0
        %5387 = vmatpush.msra.mxu0 0.0
        %5388 = vmatpush.msra.mxu0 0.0
        %5389 = vmatpush.msra.mxu0 0.0
        %5390 = vmatpush.msra.mxu0 0.0
        %5391 = vmatpush.msra.mxu0 0.0
        %5392 = vmatpush.msra.mxu0 0.0
        %5393 = vmatpush.msra.mxu0 0.0
        %5394 = vmatpush.msra.mxu0 0.0
        %5395 = vmatpush.msra.mxu0 0.0
        %5396 = vmatpush.msra.mxu0 0.0
        %5397 = vmatpush.msra.mxu0 0.0
        %5398 = vmatpush.msra.mxu0 %v5336
        %5399 = vmatpush.msra.mxu0 %v5332
        %5400 = vmatmul.f32.gmra.mxu0 %v5347
        %v5401 = vpop.f32.mrf.mxu0
        %v5402 = vadd.f32 0.0, %v5401
        %5403 = vmatmul.f32.gmra.mxu0 %v5349
        %v5404 = vpop.f32.mrf.mxu0
        %v5405 = vadd.f32 0.0, %v5404
        %5406 = vmatmul.f32.gmra.mxu0 %v5351
        %v5407 = vpop.f32.mrf.mxu0
        %v5408 = vadd.f32 0.0, %v5407
        %5409 = vmatmul.f32.gmra.mxu0 %v5353
        %v5410 = vpop.f32.mrf.mxu0
        %v5411 = vadd.f32 0.0, %v5410
        %5412 = vdwg.mxu0
        %5413 = vmatpush.msra.mxu0 0.0
        %5414 = vmatpush.msra.mxu0 0.0
        %5415 = vmatpush.msra.mxu0 0.0
        %5416 = vmatpush.msra.mxu0 0.0
        %5417 = vmatpush.msra.mxu0 0.0
        %5418 = vmatpush.msra.mxu0 0.0
        %5419 = vmatpush.msra.mxu0 0.0
        %5420 = vmatpush.msra.mxu0 0.0
        %5421 = vmatpush.msra.mxu0 0.0
        %5422 = vmatpush.msra.mxu0 0.0
        %5423 = vmatpush.msra.mxu0 0.0
        %5424 = vmatpush.msra.mxu0 0.0
        %5425 = vmatpush.msra.mxu0 0.0
        %5426 = vmatpush.msra.mxu0 0.0
        %5427 = vmatpush.msra.mxu0 %v5337
        %5428 = vmatpush.msra.mxu0 %v5333
        %5429 = vmatmul.f32.gmra.mxu0 %v5347
        %v5430 = vpop.f32.mrf.mxu0
        %v5431 = vadd.f32 0.0, %v5430
        %5432 = vmatmul.f32.gmra.mxu0 %v5349
        %v5433 = vpop.f32.mrf.mxu0
        %v5434 = vadd.f32 0.0, %v5433
        %5435 = vmatmul.f32.gmra.mxu0 %v5351
        %v5436 = vpop.f32.mrf.mxu0
        %v5437 = vadd.f32 0.0, %v5436
        %5438 = vmatmul.f32.gmra.mxu0 %v5353
        %v5439 = vpop.f32.mrf.mxu0
        %v5440 = vadd.f32 0.0, %v5439
        %5441 = vdwg.mxu0
        %5442 = vmatpush.msra.mxu0 0.0
        %5443 = vmatpush.msra.mxu0 0.0
        %5444 = vmatpush.msra.mxu0 0.0
        %5445 = vmatpush.msra.mxu0 0.0
        %5446 = vmatpush.msra.mxu0 0.0
        %5447 = vmatpush.msra.mxu0 0.0
        %5448 = vmatpush.msra.mxu0 0.0
        %5449 = vmatpush.msra.mxu0 0.0
        %5450 = vmatpush.msra.mxu0 0.0
        %5451 = vmatpush.msra.mxu0 0.0
        %5452 = vmatpush.msra.mxu0 0.0
        %5453 = vmatpush.msra.mxu0 0.0
        %5454 = vmatpush.msra.mxu0 0.0
        %5455 = vmatpush.msra.mxu0 0.0
        %5456 = vmatpush.msra.mxu0 %v5338
        %5457 = vmatpush.msra.mxu0 %v5334
        %5458 = vmatmul.f32.gmra.mxu0 %v5347
        %v5459 = vpop.f32.mrf.mxu0
        %v5460 = vadd.f32 0.0, %v5459
        %5461 = vmatmul.f32.gmra.mxu0 %v5349
        %v5462 = vpop.f32.mrf.mxu0
        %v5463 = vadd.f32 0.0, %v5462
        %5464 = vmatmul.f32.gmra.mxu0 %v5351
        %v5465 = vpop.f32.mrf.mxu0
        %v5466 = vadd.f32 0.0, %v5465
        %5467 = vmatmul.f32.gmra.mxu0 %v5353
        %v5468 = vpop.f32.mrf.mxu0
        %v5469 = vadd.f32 0.0, %v5468
        %5470 = vdwg.mxu0
        %v5471 = vadd.f32 %v5286, %v5373
        %v5472 = vadd.f32 %v5287, %v5402
        %v5473 = vadd.f32 %v5288, %v5431
        %v5474 = vadd.f32 %v5289, %v5460
        %v5475 = vadd.f32 %v5290, %v5376
        %v5476 = vadd.f32 %v5291, %v5405
        %v5477 = vadd.f32 %v5292, %v5434
        %v5478 = vadd.f32 %v5293, %v5463
        %v5479 = vadd.f32 %v5294, %v5379
        %v5480 = vadd.f32 %v5295, %v5408
        %v5481 = vadd.f32 %v5296, %v5437
        %v5482 = vadd.f32 %v5297, %v5466
        %v5483 = vadd.f32 %v5298, %v5382
        %v5484 = vadd.f32 %v5299, %v5411
        %v5485 = vadd.f32 %v5300, %v5440
        %v5486 = vadd.f32 %v5301, %v5469
        %5487 = vrot.lane.b32.xlu0 %v5117, 96
        %v5488 = vpop.permute.xlu0 %5487
        %5489 = vrot.lane.b32.xlu0 %v5118, 96
        %v5490 = vpop.permute.xlu0 %5489
        %5491 = vrot.lane.b32.xlu0 %v5119, 96
        %v5492 = vpop.permute.xlu0 %5491
        %5493 = vrot.lane.b32.xlu0 %v5120, 96
        %v5494 = vpop.permute.xlu0 %5493
        %5495 = vrot.lane.b32.xlu0 %v4912, 2
        %v5496 = vpop.permute.xlu0 %5495
        %5497 = vrot.lane.b32.xlu0 %v4913, 2
        %v5498 = vpop.permute.xlu0 %5497
        %5499 = vrot.lane.b32.xlu0 %v4914, 2
        %v5500 = vpop.permute.xlu0 %5499
        %5501 = vrot.lane.b32.xlu0 %v4915, 2
        %v5502 = vpop.permute.xlu0 %5501
        %5503 = vrot.lane.b32.xlu0 %v4916, 2
        %v5504 = vpop.permute.xlu0 %5503
        %5505 = vrot.lane.b32.xlu0 %v4917, 2
        %v5506 = vpop.permute.xlu0 %5505
        %5507 = vrot.lane.b32.xlu0 %v4918, 2
        %v5508 = vpop.permute.xlu0 %5507
        %5509 = vrot.lane.b32.xlu0 %v4919, 2
        %v5510 = vpop.permute.xlu0 %5509
        %5511 = vrot.lane.b32.xlu0 %v4920, 2
        %v5512 = vpop.permute.xlu0 %5511
        %5513 = vrot.lane.b32.xlu0 %v4921, 2
        %v5514 = vpop.permute.xlu0 %5513
        %vm5515 = vcmask 15360
        %v5516 = vsel %vm5515, %v5496, %v5498
        %v5517 = vsel %vm5515, %v5498, %v5500
        %v5518 = vsel %vm5515, %v5500, %v5502
        %v5519 = vsel %vm5515, %v5502, %v5504
        %v5520 = vsel %vm5515, %v5506, %v5508
        %v5521 = vsel %vm5515, %v5508, %v5510
        %v5522 = vsel %vm5515, %v5510, %v5512
        %v5523 = vsel %vm5515, %v5512, %v5514
        %v5532 = vsel %vm1991, %v5488, 0
        %v5534 = vsel %vm1991, %v5490, 0
        %v5536 = vsel %vm1991, %v5492, 0
        %v5538 = vsel %vm1991, %v5494, 0
        %5540 = vmatpush.msra.mxu0 0.0
        %5541 = vmatpush.msra.mxu0 0.0
        %5542 = vmatpush.msra.mxu0 0.0
        %5543 = vmatpush.msra.mxu0 0.0
        %5544 = vmatpush.msra.mxu0 0.0
        %5545 = vmatpush.msra.mxu0 0.0
        %5546 = vmatpush.msra.mxu0 0.0
        %5547 = vmatpush.msra.mxu0 0.0
        %5548 = vmatpush.msra.mxu0 0.0
        %5549 = vmatpush.msra.mxu0 0.0
        %5550 = vmatpush.msra.mxu0 0.0
        %5551 = vmatpush.msra.mxu0 0.0
        %5552 = vmatpush.msra.mxu0 0.0
        %5553 = vmatpush.msra.mxu0 0.0
        %5554 = vmatpush.msra.mxu0 %v5520
        %5555 = vmatpush.msra.mxu0 %v5516
        %5556 = vmatmul.f32.gmra.mxu0 %v5532
        %v5557 = vpop.f32.mrf.mxu0
        %v5558 = vadd.f32 0.0, %v5557
        %5559 = vmatmul.f32.gmra.mxu0 %v5534
        %v5560 = vpop.f32.mrf.mxu0
        %v5561 = vadd.f32 0.0, %v5560
        %5562 = vmatmul.f32.gmra.mxu0 %v5536
        %v5563 = vpop.f32.mrf.mxu0
        %v5564 = vadd.f32 0.0, %v5563
        %5565 = vmatmul.f32.gmra.mxu0 %v5538
        %v5566 = vpop.f32.mrf.mxu0
        %v5567 = vadd.f32 0.0, %v5566
        %5568 = vdwg.mxu0
        %5569 = vmatpush.msra.mxu0 0.0
        %5570 = vmatpush.msra.mxu0 0.0
        %5571 = vmatpush.msra.mxu0 0.0
        %5572 = vmatpush.msra.mxu0 0.0
        %5573 = vmatpush.msra.mxu0 0.0
        %5574 = vmatpush.msra.mxu0 0.0
        %5575 = vmatpush.msra.mxu0 0.0
        %5576 = vmatpush.msra.mxu0 0.0
        %5577 = vmatpush.msra.mxu0 0.0
        %5578 = vmatpush.msra.mxu0 0.0
        %5579 = vmatpush.msra.mxu0 0.0
        %5580 = vmatpush.msra.mxu0 0.0
        %5581 = vmatpush.msra.mxu0 0.0
        %5582 = vmatpush.msra.mxu0 0.0
        %5583 = vmatpush.msra.mxu0 %v5521
        %5584 = vmatpush.msra.mxu0 %v5517
        %5585 = vmatmul.f32.gmra.mxu0 %v5532
        %v5586 = vpop.f32.mrf.mxu0
        %v5587 = vadd.f32 0.0, %v5586
        %5588 = vmatmul.f32.gmra.mxu0 %v5534
        %v5589 = vpop.f32.mrf.mxu0
        %v5590 = vadd.f32 0.0, %v5589
        %5591 = vmatmul.f32.gmra.mxu0 %v5536
        %v5592 = vpop.f32.mrf.mxu0
        %v5593 = vadd.f32 0.0, %v5592
        %5594 = vmatmul.f32.gmra.mxu0 %v5538
        %v5595 = vpop.f32.mrf.mxu0
        %v5596 = vadd.f32 0.0, %v5595
        %5597 = vdwg.mxu0
        %5598 = vmatpush.msra.mxu0 0.0
        %5599 = vmatpush.msra.mxu0 0.0
        %5600 = vmatpush.msra.mxu0 0.0
        %5601 = vmatpush.msra.mxu0 0.0
        %5602 = vmatpush.msra.mxu0 0.0
        %5603 = vmatpush.msra.mxu0 0.0
        %5604 = vmatpush.msra.mxu0 0.0
        %5605 = vmatpush.msra.mxu0 0.0
        %5606 = vmatpush.msra.mxu0 0.0
        %5607 = vmatpush.msra.mxu0 0.0
        %5608 = vmatpush.msra.mxu0 0.0
        %5609 = vmatpush.msra.mxu0 0.0
        %5610 = vmatpush.msra.mxu0 0.0
        %5611 = vmatpush.msra.mxu0 0.0
        %5612 = vmatpush.msra.mxu0 %v5522
        %5613 = vmatpush.msra.mxu0 %v5518
        %5614 = vmatmul.f32.gmra.mxu0 %v5532
        %v5615 = vpop.f32.mrf.mxu0
        %v5616 = vadd.f32 0.0, %v5615
        %5617 = vmatmul.f32.gmra.mxu0 %v5534
        %v5618 = vpop.f32.mrf.mxu0
        %v5619 = vadd.f32 0.0, %v5618
        %5620 = vmatmul.f32.gmra.mxu0 %v5536
        %v5621 = vpop.f32.mrf.mxu0
        %v5622 = vadd.f32 0.0, %v5621
        %5623 = vmatmul.f32.gmra.mxu0 %v5538
        %v5624 = vpop.f32.mrf.mxu0
        %v5625 = vadd.f32 0.0, %v5624
        %5626 = vdwg.mxu0
        %5627 = vmatpush.msra.mxu0 0.0
        %5628 = vmatpush.msra.mxu0 0.0
        %5629 = vmatpush.msra.mxu0 0.0
        %5630 = vmatpush.msra.mxu0 0.0
        %5631 = vmatpush.msra.mxu0 0.0
        %5632 = vmatpush.msra.mxu0 0.0
        %5633 = vmatpush.msra.mxu0 0.0
        %5634 = vmatpush.msra.mxu0 0.0
        %5635 = vmatpush.msra.mxu0 0.0
        %5636 = vmatpush.msra.mxu0 0.0
        %5637 = vmatpush.msra.mxu0 0.0
        %5638 = vmatpush.msra.mxu0 0.0
        %5639 = vmatpush.msra.mxu0 0.0
        %5640 = vmatpush.msra.mxu0 0.0
        %5641 = vmatpush.msra.mxu0 %v5523
        %5642 = vmatpush.msra.mxu0 %v5519
        %5643 = vmatmul.f32.gmra.mxu0 %v5532
        %v5644 = vpop.f32.mrf.mxu0
        %v5645 = vadd.f32 0.0, %v5644
        %5646 = vmatmul.f32.gmra.mxu0 %v5534
        %v5647 = vpop.f32.mrf.mxu0
        %v5648 = vadd.f32 0.0, %v5647
        %5649 = vmatmul.f32.gmra.mxu0 %v5536
        %v5650 = vpop.f32.mrf.mxu0
        %v5651 = vadd.f32 0.0, %v5650
        %5652 = vmatmul.f32.gmra.mxu0 %v5538
        %v5653 = vpop.f32.mrf.mxu0
        %v5654 = vadd.f32 0.0, %v5653
        %5655 = vdwg.mxu0
        %v5656 = vadd.f32 %v5471, %v5558
        %v5657 = vadd.f32 %v5472, %v5587
        %v5658 = vadd.f32 %v5473, %v5616
        %v5659 = vadd.f32 %v5474, %v5645
        %v5660 = vadd.f32 %v5475, %v5561
        %v5661 = vadd.f32 %v5476, %v5590
        %v5662 = vadd.f32 %v5477, %v5619
        %v5663 = vadd.f32 %v5478, %v5648
        %v5664 = vadd.f32 %v5479, %v5564
        %v5665 = vadd.f32 %v5480, %v5593
        %v5666 = vadd.f32 %v5481, %v5622
        %v5667 = vadd.f32 %v5482, %v5651
        %v5668 = vadd.f32 %v5483, %v5567
        %v5669 = vadd.f32 %v5484, %v5596
        %v5670 = vadd.f32 %v5485, %v5625
        %v5671 = vadd.f32 %v5486, %v5654
        %5672 = vrot.lane.b32.xlu0 %v5117, 80
        %v5673 = vpop.permute.xlu0 %5672
        %5674 = vrot.lane.b32.xlu0 %v5118, 80
        %v5675 = vpop.permute.xlu0 %5674
        %5676 = vrot.lane.b32.xlu0 %v5119, 80
        %v5677 = vpop.permute.xlu0 %5676
        %5678 = vrot.lane.b32.xlu0 %v5120, 80
        %v5679 = vpop.permute.xlu0 %5678
        %v5680 = vsel %vm1991, %v5673, 0
        %v5682 = vsel %vm1991, %v5675, 0
        %v5684 = vsel %vm1991, %v5677, 0
        %v5686 = vsel %vm1991, %v5679, 0
        %5688 = vmatpush.msra.mxu0 0.0
        %5689 = vmatpush.msra.mxu0 0.0
        %5690 = vmatpush.msra.mxu0 0.0
        %5691 = vmatpush.msra.mxu0 0.0
        %5692 = vmatpush.msra.mxu0 0.0
        %5693 = vmatpush.msra.mxu0 0.0
        %5694 = vmatpush.msra.mxu0 0.0
        %5695 = vmatpush.msra.mxu0 0.0
        %5696 = vmatpush.msra.mxu0 0.0
        %5697 = vmatpush.msra.mxu0 0.0
        %5698 = vmatpush.msra.mxu0 0.0
        %5699 = vmatpush.msra.mxu0 0.0
        %5700 = vmatpush.msra.mxu0 0.0
        %5701 = vmatpush.msra.mxu0 0.0
        %5702 = vmatpush.msra.mxu0 %v4918
        %5703 = vmatpush.msra.mxu0 %v4913
        %5704 = vmatmul.f32.gmra.mxu0 %v5680
        %v5705 = vpop.f32.mrf.mxu0
        %v5706 = vadd.f32 0.0, %v5705
        %5707 = vmatmul.f32.gmra.mxu0 %v5682
        %v5708 = vpop.f32.mrf.mxu0
        %v5709 = vadd.f32 0.0, %v5708
        %5710 = vmatmul.f32.gmra.mxu0 %v5684
        %v5711 = vpop.f32.mrf.mxu0
        %v5712 = vadd.f32 0.0, %v5711
        %5713 = vmatmul.f32.gmra.mxu0 %v5686
        %v5714 = vpop.f32.mrf.mxu0
        %v5715 = vadd.f32 0.0, %v5714
        %5716 = vdwg.mxu0
        %5717 = vmatpush.msra.mxu0 0.0
        %5718 = vmatpush.msra.mxu0 0.0
        %5719 = vmatpush.msra.mxu0 0.0
        %5720 = vmatpush.msra.mxu0 0.0
        %5721 = vmatpush.msra.mxu0 0.0
        %5722 = vmatpush.msra.mxu0 0.0
        %5723 = vmatpush.msra.mxu0 0.0
        %5724 = vmatpush.msra.mxu0 0.0
        %5725 = vmatpush.msra.mxu0 0.0
        %5726 = vmatpush.msra.mxu0 0.0
        %5727 = vmatpush.msra.mxu0 0.0
        %5728 = vmatpush.msra.mxu0 0.0
        %5729 = vmatpush.msra.mxu0 0.0
        %5730 = vmatpush.msra.mxu0 0.0
        %5731 = vmatpush.msra.mxu0 %v4919
        %5732 = vmatpush.msra.mxu0 %v4914
        %5733 = vmatmul.f32.gmra.mxu0 %v5680
        %v5734 = vpop.f32.mrf.mxu0
        %v5735 = vadd.f32 0.0, %v5734
        %5736 = vmatmul.f32.gmra.mxu0 %v5682
        %v5737 = vpop.f32.mrf.mxu0
        %v5738 = vadd.f32 0.0, %v5737
        %5739 = vmatmul.f32.gmra.mxu0 %v5684
        %v5740 = vpop.f32.mrf.mxu0
        %v5741 = vadd.f32 0.0, %v5740
        %5742 = vmatmul.f32.gmra.mxu0 %v5686
        %v5743 = vpop.f32.mrf.mxu0
        %v5744 = vadd.f32 0.0, %v5743
        %5745 = vdwg.mxu0
        %5746 = vmatpush.msra.mxu0 0.0
        %5747 = vmatpush.msra.mxu0 0.0
        %5748 = vmatpush.msra.mxu0 0.0
        %5749 = vmatpush.msra.mxu0 0.0
        %5750 = vmatpush.msra.mxu0 0.0
        %5751 = vmatpush.msra.mxu0 0.0
        %5752 = vmatpush.msra.mxu0 0.0
        %5753 = vmatpush.msra.mxu0 0.0
        %5754 = vmatpush.msra.mxu0 0.0
        %5755 = vmatpush.msra.mxu0 0.0
        %5756 = vmatpush.msra.mxu0 0.0
        %5757 = vmatpush.msra.mxu0 0.0
        %5758 = vmatpush.msra.mxu0 0.0
        %5759 = vmatpush.msra.mxu0 0.0
        %5760 = vmatpush.msra.mxu0 %v4920
        %5761 = vmatpush.msra.mxu0 %v4915
        %5762 = vmatmul.f32.gmra.mxu0 %v5680
        %v5763 = vpop.f32.mrf.mxu0
        %v5764 = vadd.f32 0.0, %v5763
        %5765 = vmatmul.f32.gmra.mxu0 %v5682
        %v5766 = vpop.f32.mrf.mxu0
        %v5767 = vadd.f32 0.0, %v5766
        %5768 = vmatmul.f32.gmra.mxu0 %v5684
        %v5769 = vpop.f32.mrf.mxu0
        %v5770 = vadd.f32 0.0, %v5769
        %5771 = vmatmul.f32.gmra.mxu0 %v5686
        %v5772 = vpop.f32.mrf.mxu0
        %v5773 = vadd.f32 0.0, %v5772
        %5774 = vdwg.mxu0
        %5775 = vmatpush.msra.mxu0 0.0
        %5776 = vmatpush.msra.mxu0 0.0
        %5777 = vmatpush.msra.mxu0 0.0
        %5778 = vmatpush.msra.mxu0 0.0
        %5779 = vmatpush.msra.mxu0 0.0
        %5780 = vmatpush.msra.mxu0 0.0
        %5781 = vmatpush.msra.mxu0 0.0
        %5782 = vmatpush.msra.mxu0 0.0
        %5783 = vmatpush.msra.mxu0 0.0
        %5784 = vmatpush.msra.mxu0 0.0
        %5785 = vmatpush.msra.mxu0 0.0
        %5786 = vmatpush.msra.mxu0 0.0
        %5787 = vmatpush.msra.mxu0 0.0
        %5788 = vmatpush.msra.mxu0 0.0
        %5789 = vmatpush.msra.mxu0 %v4921
        %5790 = vmatpush.msra.mxu0 %v4916
        %5791 = vmatmul.f32.gmra.mxu0 %v5680
        %v5792 = vpop.f32.mrf.mxu0
        %v5793 = vadd.f32 0.0, %v5792
        %5794 = vmatmul.f32.gmra.mxu0 %v5682
        %v5795 = vpop.f32.mrf.mxu0
        %v5796 = vadd.f32 0.0, %v5795
        %5797 = vmatmul.f32.gmra.mxu0 %v5684
        %v5798 = vpop.f32.mrf.mxu0
        %v5799 = vadd.f32 0.0, %v5798
        %5800 = vmatmul.f32.gmra.mxu0 %v5686
        %v5801 = vpop.f32.mrf.mxu0
        %v5802 = vadd.f32 0.0, %v5801
        %5803 = vdwg.mxu0
        %v5804 = vadd.f32 %v5656, %v5706
        %v5805 = vadd.f32 %v5657, %v5735
        %v5806 = vadd.f32 %v5658, %v5764
        %v5807 = vadd.f32 %v5659, %v5793
        %v5808 = vadd.f32 %v5660, %v5709
        %v5809 = vadd.f32 %v5661, %v5738
        %v5810 = vadd.f32 %v5662, %v5767
        %v5811 = vadd.f32 %v5663, %v5796
        %v5812 = vadd.f32 %v5664, %v5712
        %v5813 = vadd.f32 %v5665, %v5741
        %v5814 = vadd.f32 %v5666, %v5770
        %v5815 = vadd.f32 %v5667, %v5799
        %v5816 = vadd.f32 %v5668, %v5715
        %v5817 = vadd.f32 %v5669, %v5744
        %v5818 = vadd.f32 %v5670, %v5773
        %v5819 = vadd.f32 %v5671, %v5802
        %5820 = vrot.lane.b32.xlu0 %v5117, 64
        %v5821 = vpop.permute.xlu0 %5820
        %5822 = vrot.lane.b32.xlu0 %v5118, 64
        %v5823 = vpop.permute.xlu0 %5822
        %5824 = vrot.lane.b32.xlu0 %v5119, 64
        %v5825 = vpop.permute.xlu0 %5824
        %5826 = vrot.lane.b32.xlu0 %v5120, 64
        %v5827 = vpop.permute.xlu0 %5826
        %5828 = vrot.lane.b32.xlu0 %v4913, 96
        %v5829 = vpop.permute.xlu0 %5828
        %5830 = vrot.lane.b32.xlu0 %v4914, 96
        %v5831 = vpop.permute.xlu0 %5830
        %5832 = vrot.lane.b32.xlu0 %v4915, 96
        %v5833 = vpop.permute.xlu0 %5832
        %5834 = vrot.lane.b32.xlu0 %v4916, 96
        %v5835 = vpop.permute.xlu0 %5834
        %5836 = vrot.lane.b32.xlu0 %v4918, 96
        %v5837 = vpop.permute.xlu0 %5836
        %5838 = vrot.lane.b32.xlu0 %v4919, 96
        %v5839 = vpop.permute.xlu0 %5838
        %5840 = vrot.lane.b32.xlu0 %v4920, 96
        %v5841 = vpop.permute.xlu0 %5840
        %5842 = vrot.lane.b32.xlu0 %v4921, 96
        %v5843 = vpop.permute.xlu0 %5842
        %vm5844 = vcmask 785408
        %v5845 = vsel %vm5844, %v5829, %v5831
        %v5846 = vsel %vm5844, %v5831, %v5833
        %v5847 = vsel %vm5844, %v5833, %v5835
        %v5848 = vsel %vm5844, %v5837, %v5839
        %v5849 = vsel %vm5844, %v5839, %v5841
        %v5850 = vsel %vm5844, %v5841, %v5843
        %v5859 = vsel %vm1991, %v5821, 0
        %v5861 = vsel %vm1991, %v5823, 0
        %v5863 = vsel %vm1991, %v5825, 0
        %v5865 = vsel %vm1991, %v5827, 0
        %5867 = vmatpush.msra.mxu0 0.0
        %5868 = vmatpush.msra.mxu0 0.0
        %5869 = vmatpush.msra.mxu0 0.0
        %5870 = vmatpush.msra.mxu0 0.0
        %5871 = vmatpush.msra.mxu0 0.0
        %5872 = vmatpush.msra.mxu0 0.0
        %5873 = vmatpush.msra.mxu0 0.0
        %5874 = vmatpush.msra.mxu0 0.0
        %5875 = vmatpush.msra.mxu0 0.0
        %5876 = vmatpush.msra.mxu0 0.0
        %5877 = vmatpush.msra.mxu0 0.0
        %5878 = vmatpush.msra.mxu0 0.0
        %5879 = vmatpush.msra.mxu0 0.0
        %5880 = vmatpush.msra.mxu0 0.0
        %5881 = vmatpush.msra.mxu0 %v5848
        %5882 = vmatpush.msra.mxu0 %v5845
        %5883 = vmatmul.f32.gmra.mxu0 %v5859
        %v5884 = vpop.f32.mrf.mxu0
        %v5885 = vadd.f32 0.0, %v5884
        %5886 = vmatmul.f32.gmra.mxu0 %v5861
        %v5887 = vpop.f32.mrf.mxu0
        %v5888 = vadd.f32 0.0, %v5887
        %5889 = vmatmul.f32.gmra.mxu0 %v5863
        %v5890 = vpop.f32.mrf.mxu0
        %v5891 = vadd.f32 0.0, %v5890
        %5892 = vmatmul.f32.gmra.mxu0 %v5865
        %v5893 = vpop.f32.mrf.mxu0
        %v5894 = vadd.f32 0.0, %v5893
        %5895 = vdwg.mxu0
        %5896 = vmatpush.msra.mxu0 0.0
        %5897 = vmatpush.msra.mxu0 0.0
        %5898 = vmatpush.msra.mxu0 0.0
        %5899 = vmatpush.msra.mxu0 0.0
        %5900 = vmatpush.msra.mxu0 0.0
        %5901 = vmatpush.msra.mxu0 0.0
        %5902 = vmatpush.msra.mxu0 0.0
        %5903 = vmatpush.msra.mxu0 0.0
        %5904 = vmatpush.msra.mxu0 0.0
        %5905 = vmatpush.msra.mxu0 0.0
        %5906 = vmatpush.msra.mxu0 0.0
        %5907 = vmatpush.msra.mxu0 0.0
        %5908 = vmatpush.msra.mxu0 0.0
        %5909 = vmatpush.msra.mxu0 0.0
        %5910 = vmatpush.msra.mxu0 %v5849
        %5911 = vmatpush.msra.mxu0 %v5846
        %5912 = vmatmul.f32.gmra.mxu0 %v5859
        %v5913 = vpop.f32.mrf.mxu0
        %v5914 = vadd.f32 0.0, %v5913
        %5915 = vmatmul.f32.gmra.mxu0 %v5861
        %v5916 = vpop.f32.mrf.mxu0
        %v5917 = vadd.f32 0.0, %v5916
        %5918 = vmatmul.f32.gmra.mxu0 %v5863
        %v5919 = vpop.f32.mrf.mxu0
        %v5920 = vadd.f32 0.0, %v5919
        %5921 = vmatmul.f32.gmra.mxu0 %v5865
        %v5922 = vpop.f32.mrf.mxu0
        %v5923 = vadd.f32 0.0, %v5922
        %5924 = vdwg.mxu0
        %5925 = vmatpush.msra.mxu0 0.0
        %5926 = vmatpush.msra.mxu0 0.0
        %5927 = vmatpush.msra.mxu0 0.0
        %5928 = vmatpush.msra.mxu0 0.0
        %5929 = vmatpush.msra.mxu0 0.0
        %5930 = vmatpush.msra.mxu0 0.0
        %5931 = vmatpush.msra.mxu0 0.0
        %5932 = vmatpush.msra.mxu0 0.0
        %5933 = vmatpush.msra.mxu0 0.0
        %5934 = vmatpush.msra.mxu0 0.0
        %5935 = vmatpush.msra.mxu0 0.0
        %5936 = vmatpush.msra.mxu0 0.0
        %5937 = vmatpush.msra.mxu0 0.0
        %5938 = vmatpush.msra.mxu0 0.0
        %5939 = vmatpush.msra.mxu0 %v5850
        %5940 = vmatpush.msra.mxu0 %v5847
        %5941 = vmatmul.f32.gmra.mxu0 %v5859
        %v5942 = vpop.f32.mrf.mxu0
        %v5943 = vadd.f32 0.0, %v5942
        %5944 = vmatmul.f32.gmra.mxu0 %v5861
        %v5945 = vpop.f32.mrf.mxu0
        %v5946 = vadd.f32 0.0, %v5945
        %5947 = vmatmul.f32.gmra.mxu0 %v5863
        %v5948 = vpop.f32.mrf.mxu0
        %v5949 = vadd.f32 0.0, %v5948
        %5950 = vmatmul.f32.gmra.mxu0 %v5865
        %v5951 = vpop.f32.mrf.mxu0
        %v5952 = vadd.f32 0.0, %v5951
        %5953 = vdwg.mxu0
        %5954 = vmatpush.msra.mxu0 0.0
        %5955 = vmatpush.msra.mxu0 0.0
        %5956 = vmatpush.msra.mxu0 0.0
        %5957 = vmatpush.msra.mxu0 0.0
        %5958 = vmatpush.msra.mxu0 0.0
        %5959 = vmatpush.msra.mxu0 0.0
        %5960 = vmatpush.msra.mxu0 0.0
        %5961 = vmatpush.msra.mxu0 0.0
        %5962 = vmatpush.msra.mxu0 0.0
        %5963 = vmatpush.msra.mxu0 0.0
        %5964 = vmatpush.msra.mxu0 0.0
        %5965 = vmatpush.msra.mxu0 0.0
        %5966 = vmatpush.msra.mxu0 0.0
        %5967 = vmatpush.msra.mxu0 0.0
        %5968 = vmatpush.msra.mxu0 %v5843
        %5969 = vmatpush.msra.mxu0 %v5835
        %5970 = vmatmul.f32.gmra.mxu0 %v5859
        %v5971 = vpop.f32.mrf.mxu0
        %v5972 = vadd.f32 0.0, %v5971
        %5973 = vmatmul.f32.gmra.mxu0 %v5861
        %v5974 = vpop.f32.mrf.mxu0
        %v5975 = vadd.f32 0.0, %v5974
        %5976 = vmatmul.f32.gmra.mxu0 %v5863
        %v5977 = vpop.f32.mrf.mxu0
        %v5978 = vadd.f32 0.0, %v5977
        %5979 = vmatmul.f32.gmra.mxu0 %v5865
        %v5980 = vpop.f32.mrf.mxu0
        %v5981 = vadd.f32 0.0, %v5980
        %5982 = vdwg.mxu0
        %v5983 = vadd.f32 %v5804, %v5885
        %v5984 = vadd.f32 %v5805, %v5914
        %v5985 = vadd.f32 %v5806, %v5943
        %v5986 = vadd.f32 %v5807, %v5972
        %v5987 = vadd.f32 %v5808, %v5888
        %v5988 = vadd.f32 %v5809, %v5917
        %v5989 = vadd.f32 %v5810, %v5946
        %v5990 = vadd.f32 %v5811, %v5975
        %v5991 = vadd.f32 %v5812, %v5891
        %v5992 = vadd.f32 %v5813, %v5920
        %v5993 = vadd.f32 %v5814, %v5949
        %v5994 = vadd.f32 %v5815, %v5978
        %v5995 = vadd.f32 %v5816, %v5894
        %v5996 = vadd.f32 %v5817, %v5923
        %v5997 = vadd.f32 %v5818, %v5952
        %v5998 = vadd.f32 %v5819, %v5981
        %5999 = vrot.lane.b32.xlu0 %v5117, 48
        %v6000 = vpop.permute.xlu0 %5999
        %6001 = vrot.lane.b32.xlu0 %v5118, 48
        %v6002 = vpop.permute.xlu0 %6001
        %6003 = vrot.lane.b32.xlu0 %v5119, 48
        %v6004 = vpop.permute.xlu0 %6003
        %6005 = vrot.lane.b32.xlu0 %v5120, 48
        %v6006 = vpop.permute.xlu0 %6005
        %6007 = vrot.lane.b32.xlu0 %v4913, 94
        %v6008 = vpop.permute.xlu0 %6007
        %6009 = vrot.lane.b32.xlu0 %v4914, 94
        %v6010 = vpop.permute.xlu0 %6009
        %6011 = vrot.lane.b32.xlu0 %v4915, 94
        %v6012 = vpop.permute.xlu0 %6011
        %6013 = vrot.lane.b32.xlu0 %v4916, 94
        %v6014 = vpop.permute.xlu0 %6013
        %6015 = vrot.lane.b32.xlu0 %v4918, 94
        %v6016 = vpop.permute.xlu0 %6015
        %6017 = vrot.lane.b32.xlu0 %v4919, 94
        %v6018 = vpop.permute.xlu0 %6017
        %6019 = vrot.lane.b32.xlu0 %v4920, 94
        %v6020 = vpop.permute.xlu0 %6019
        %6021 = vrot.lane.b32.xlu0 %v4921, 94
        %v6022 = vpop.permute.xlu0 %6021
        %vm6023 = vcmask 769024
        %v6024 = vsel %vm6023, %v6008, %v6010
        %v6025 = vsel %vm6023, %v6010, %v6012
        %v6026 = vsel %vm6023, %v6012, %v6014
        %v6027 = vsel %vm6023, %v6016, %v6018
        %v6028 = vsel %vm6023, %v6018, %v6020
        %v6029 = vsel %vm6023, %v6020, %v6022
        %v6038 = vsel %vm1991, %v6000, 0
        %v6040 = vsel %vm1991, %v6002, 0
        %v6042 = vsel %vm1991, %v6004, 0
        %v6044 = vsel %vm1991, %v6006, 0
        %6046 = vmatpush.msra.mxu0 0.0
        %6047 = vmatpush.msra.mxu0 0.0
        %6048 = vmatpush.msra.mxu0 0.0
        %6049 = vmatpush.msra.mxu0 0.0
        %6050 = vmatpush.msra.mxu0 0.0
        %6051 = vmatpush.msra.mxu0 0.0
        %6052 = vmatpush.msra.mxu0 0.0
        %6053 = vmatpush.msra.mxu0 0.0
        %6054 = vmatpush.msra.mxu0 0.0
        %6055 = vmatpush.msra.mxu0 0.0
        %6056 = vmatpush.msra.mxu0 0.0
        %6057 = vmatpush.msra.mxu0 0.0
        %6058 = vmatpush.msra.mxu0 0.0
        %6059 = vmatpush.msra.mxu0 0.0
        %6060 = vmatpush.msra.mxu0 %v6027
        %6061 = vmatpush.msra.mxu0 %v6024
        %6062 = vmatmul.f32.gmra.mxu0 %v6038
        %v6063 = vpop.f32.mrf.mxu0
        %v6064 = vadd.f32 0.0, %v6063
        %6065 = vmatmul.f32.gmra.mxu0 %v6040
        %v6066 = vpop.f32.mrf.mxu0
        %v6067 = vadd.f32 0.0, %v6066
        %6068 = vmatmul.f32.gmra.mxu0 %v6042
        %v6069 = vpop.f32.mrf.mxu0
        %v6070 = vadd.f32 0.0, %v6069
        %6071 = vmatmul.f32.gmra.mxu0 %v6044
        %v6072 = vpop.f32.mrf.mxu0
        %v6073 = vadd.f32 0.0, %v6072
        %6074 = vdwg.mxu0
        %6075 = vmatpush.msra.mxu0 0.0
        %6076 = vmatpush.msra.mxu0 0.0
        %6077 = vmatpush.msra.mxu0 0.0
        %6078 = vmatpush.msra.mxu0 0.0
        %6079 = vmatpush.msra.mxu0 0.0
        %6080 = vmatpush.msra.mxu0 0.0
        %6081 = vmatpush.msra.mxu0 0.0
        %6082 = vmatpush.msra.mxu0 0.0
        %6083 = vmatpush.msra.mxu0 0.0
        %6084 = vmatpush.msra.mxu0 0.0
        %6085 = vmatpush.msra.mxu0 0.0
        %6086 = vmatpush.msra.mxu0 0.0
        %6087 = vmatpush.msra.mxu0 0.0
        %6088 = vmatpush.msra.mxu0 0.0
        %6089 = vmatpush.msra.mxu0 %v6028
        %6090 = vmatpush.msra.mxu0 %v6025
        %6091 = vmatmul.f32.gmra.mxu0 %v6038
        %v6092 = vpop.f32.mrf.mxu0
        %v6093 = vadd.f32 0.0, %v6092
        %6094 = vmatmul.f32.gmra.mxu0 %v6040
        %v6095 = vpop.f32.mrf.mxu0
        %v6096 = vadd.f32 0.0, %v6095
        %6097 = vmatmul.f32.gmra.mxu0 %v6042
        %v6098 = vpop.f32.mrf.mxu0
        %v6099 = vadd.f32 0.0, %v6098
        %6100 = vmatmul.f32.gmra.mxu0 %v6044
        %v6101 = vpop.f32.mrf.mxu0
        %v6102 = vadd.f32 0.0, %v6101
        %6103 = vdwg.mxu0
        %6104 = vmatpush.msra.mxu0 0.0
        %6105 = vmatpush.msra.mxu0 0.0
        %6106 = vmatpush.msra.mxu0 0.0
        %6107 = vmatpush.msra.mxu0 0.0
        %6108 = vmatpush.msra.mxu0 0.0
        %6109 = vmatpush.msra.mxu0 0.0
        %6110 = vmatpush.msra.mxu0 0.0
        %6111 = vmatpush.msra.mxu0 0.0
        %6112 = vmatpush.msra.mxu0 0.0
        %6113 = vmatpush.msra.mxu0 0.0
        %6114 = vmatpush.msra.mxu0 0.0
        %6115 = vmatpush.msra.mxu0 0.0
        %6116 = vmatpush.msra.mxu0 0.0
        %6117 = vmatpush.msra.mxu0 0.0
        %6118 = vmatpush.msra.mxu0 %v6029
        %6119 = vmatpush.msra.mxu0 %v6026
        %6120 = vmatmul.f32.gmra.mxu0 %v6038
        %v6121 = vpop.f32.mrf.mxu0
        %v6122 = vadd.f32 0.0, %v6121
        %6123 = vmatmul.f32.gmra.mxu0 %v6040
        %v6124 = vpop.f32.mrf.mxu0
        %v6125 = vadd.f32 0.0, %v6124
        %6126 = vmatmul.f32.gmra.mxu0 %v6042
        %v6127 = vpop.f32.mrf.mxu0
        %v6128 = vadd.f32 0.0, %v6127
        %6129 = vmatmul.f32.gmra.mxu0 %v6044
        %v6130 = vpop.f32.mrf.mxu0
        %v6131 = vadd.f32 0.0, %v6130
        %6132 = vdwg.mxu0
        %6133 = vmatpush.msra.mxu0 0.0
        %6134 = vmatpush.msra.mxu0 0.0
        %6135 = vmatpush.msra.mxu0 0.0
        %6136 = vmatpush.msra.mxu0 0.0
        %6137 = vmatpush.msra.mxu0 0.0
        %6138 = vmatpush.msra.mxu0 0.0
        %6139 = vmatpush.msra.mxu0 0.0
        %6140 = vmatpush.msra.mxu0 0.0
        %6141 = vmatpush.msra.mxu0 0.0
        %6142 = vmatpush.msra.mxu0 0.0
        %6143 = vmatpush.msra.mxu0 0.0
        %6144 = vmatpush.msra.mxu0 0.0
        %6145 = vmatpush.msra.mxu0 0.0
        %6146 = vmatpush.msra.mxu0 0.0
        %6147 = vmatpush.msra.mxu0 %v6022
        %6148 = vmatpush.msra.mxu0 %v6014
        %6149 = vmatmul.f32.gmra.mxu0 %v6038
        %v6150 = vpop.f32.mrf.mxu0
        %v6151 = vadd.f32 0.0, %v6150
        %6152 = vmatmul.f32.gmra.mxu0 %v6040
        %v6153 = vpop.f32.mrf.mxu0
        %v6154 = vadd.f32 0.0, %v6153
        %6155 = vmatmul.f32.gmra.mxu0 %v6042
        %v6156 = vpop.f32.mrf.mxu0
        %v6157 = vadd.f32 0.0, %v6156
        %6158 = vmatmul.f32.gmra.mxu0 %v6044
        %v6159 = vpop.f32.mrf.mxu0
        %v6160 = vadd.f32 0.0, %v6159
        %6161 = vdwg.mxu0
        %v6162 = vadd.f32 %v5983, %v6064
        %v6163 = vadd.f32 %v5984, %v6093
        %v6164 = vadd.f32 %v5985, %v6122
        %v6165 = vadd.f32 %v5986, %v6151
        %v6166 = vadd.f32 %v5987, %v6067
        %v6167 = vadd.f32 %v5988, %v6096
        %v6168 = vadd.f32 %v5989, %v6125
        %v6169 = vadd.f32 %v5990, %v6154
        %v6170 = vadd.f32 %v5991, %v6070
        %v6171 = vadd.f32 %v5992, %v6099
        %v6172 = vadd.f32 %v5993, %v6128
        %v6173 = vadd.f32 %v5994, %v6157
        %v6174 = vadd.f32 %v5995, %v6073
        %v6175 = vadd.f32 %v5996, %v6102
        %v6176 = vadd.f32 %v5997, %v6131
        %v6177 = vadd.f32 %v5998, %v6160
        %6178 = vrot.lane.b32.xlu0 %v5117, 32
        %v6179 = vpop.permute.xlu0 %6178
        %6180 = vrot.lane.b32.xlu0 %v5118, 32
        %v6181 = vpop.permute.xlu0 %6180
        %6182 = vrot.lane.b32.xlu0 %v5119, 32
        %v6183 = vpop.permute.xlu0 %6182
        %6184 = vrot.lane.b32.xlu0 %v5120, 32
        %v6185 = vpop.permute.xlu0 %6184
        %6186 = vrot.lane.b32.xlu0 %v4913, 92
        %v6187 = vpop.permute.xlu0 %6186
        %6188 = vrot.lane.b32.xlu0 %v4914, 92
        %v6189 = vpop.permute.xlu0 %6188
        %6190 = vrot.lane.b32.xlu0 %v4915, 92
        %v6191 = vpop.permute.xlu0 %6190
        %6192 = vrot.lane.b32.xlu0 %v4916, 92
        %v6193 = vpop.permute.xlu0 %6192
        %6194 = vrot.lane.b32.xlu0 %v4918, 92
        %v6195 = vpop.permute.xlu0 %6194
        %6196 = vrot.lane.b32.xlu0 %v4919, 92
        %v6197 = vpop.permute.xlu0 %6196
        %6198 = vrot.lane.b32.xlu0 %v4920, 92
        %v6199 = vpop.permute.xlu0 %6198
        %6200 = vrot.lane.b32.xlu0 %v4921, 92
        %v6201 = vpop.permute.xlu0 %6200
        %vm6202 = vcmask 752640
        %v6203 = vsel %vm6202, %v6187, %v6189
        %v6204 = vsel %vm6202, %v6189, %v6191
        %v6205 = vsel %vm6202, %v6191, %v6193
        %v6206 = vsel %vm6202, %v6195, %v6197
        %v6207 = vsel %vm6202, %v6197, %v6199
        %v6208 = vsel %vm6202, %v6199, %v6201
        %v6217 = vsel %vm1991, %v6179, 0
        %v6219 = vsel %vm1991, %v6181, 0
        %v6221 = vsel %vm1991, %v6183, 0
        %v6223 = vsel %vm1991, %v6185, 0
        %6225 = vmatpush.msra.mxu0 0.0
        %6226 = vmatpush.msra.mxu0 0.0
        %6227 = vmatpush.msra.mxu0 0.0
        %6228 = vmatpush.msra.mxu0 0.0
        %6229 = vmatpush.msra.mxu0 0.0
        %6230 = vmatpush.msra.mxu0 0.0
        %6231 = vmatpush.msra.mxu0 0.0
        %6232 = vmatpush.msra.mxu0 0.0
        %6233 = vmatpush.msra.mxu0 0.0
        %6234 = vmatpush.msra.mxu0 0.0
        %6235 = vmatpush.msra.mxu0 0.0
        %6236 = vmatpush.msra.mxu0 0.0
        %6237 = vmatpush.msra.mxu0 0.0
        %6238 = vmatpush.msra.mxu0 0.0
        %6239 = vmatpush.msra.mxu0 %v6206
        %6240 = vmatpush.msra.mxu0 %v6203
        %6241 = vmatmul.f32.gmra.mxu0 %v6217
        %v6242 = vpop.f32.mrf.mxu0
        %v6243 = vadd.f32 0.0, %v6242
        %6244 = vmatmul.f32.gmra.mxu0 %v6219
        %v6245 = vpop.f32.mrf.mxu0
        %v6246 = vadd.f32 0.0, %v6245
        %6247 = vmatmul.f32.gmra.mxu0 %v6221
        %v6248 = vpop.f32.mrf.mxu0
        %v6249 = vadd.f32 0.0, %v6248
        %6250 = vmatmul.f32.gmra.mxu0 %v6223
        %v6251 = vpop.f32.mrf.mxu0
        %v6252 = vadd.f32 0.0, %v6251
        %6253 = vdwg.mxu0
        %6254 = vmatpush.msra.mxu0 0.0
        %6255 = vmatpush.msra.mxu0 0.0
        %6256 = vmatpush.msra.mxu0 0.0
        %6257 = vmatpush.msra.mxu0 0.0
        %6258 = vmatpush.msra.mxu0 0.0
        %6259 = vmatpush.msra.mxu0 0.0
        %6260 = vmatpush.msra.mxu0 0.0
        %6261 = vmatpush.msra.mxu0 0.0
        %6262 = vmatpush.msra.mxu0 0.0
        %6263 = vmatpush.msra.mxu0 0.0
        %6264 = vmatpush.msra.mxu0 0.0
        %6265 = vmatpush.msra.mxu0 0.0
        %6266 = vmatpush.msra.mxu0 0.0
        %6267 = vmatpush.msra.mxu0 0.0
        %6268 = vmatpush.msra.mxu0 %v6207
        %6269 = vmatpush.msra.mxu0 %v6204
        %6270 = vmatmul.f32.gmra.mxu0 %v6217
        %v6271 = vpop.f32.mrf.mxu0
        %v6272 = vadd.f32 0.0, %v6271
        %6273 = vmatmul.f32.gmra.mxu0 %v6219
        %v6274 = vpop.f32.mrf.mxu0
        %v6275 = vadd.f32 0.0, %v6274
        %6276 = vmatmul.f32.gmra.mxu0 %v6221
        %v6277 = vpop.f32.mrf.mxu0
        %v6278 = vadd.f32 0.0, %v6277
        %6279 = vmatmul.f32.gmra.mxu0 %v6223
        %v6280 = vpop.f32.mrf.mxu0
        %v6281 = vadd.f32 0.0, %v6280
        %6282 = vdwg.mxu0
        %6283 = vmatpush.msra.mxu0 0.0
        %6284 = vmatpush.msra.mxu0 0.0
        %6285 = vmatpush.msra.mxu0 0.0
        %6286 = vmatpush.msra.mxu0 0.0
        %6287 = vmatpush.msra.mxu0 0.0
        %6288 = vmatpush.msra.mxu0 0.0
        %6289 = vmatpush.msra.mxu0 0.0
        %6290 = vmatpush.msra.mxu0 0.0
        %6291 = vmatpush.msra.mxu0 0.0
        %6292 = vmatpush.msra.mxu0 0.0
        %6293 = vmatpush.msra.mxu0 0.0
        %6294 = vmatpush.msra.mxu0 0.0
        %6295 = vmatpush.msra.mxu0 0.0
        %6296 = vmatpush.msra.mxu0 0.0
        %6297 = vmatpush.msra.mxu0 %v6208
        %6298 = vmatpush.msra.mxu0 %v6205
        %6299 = vmatmul.f32.gmra.mxu0 %v6217
        %v6300 = vpop.f32.mrf.mxu0
        %v6301 = vadd.f32 0.0, %v6300
        %6302 = vmatmul.f32.gmra.mxu0 %v6219
        %v6303 = vpop.f32.mrf.mxu0
        %v6304 = vadd.f32 0.0, %v6303
        %6305 = vmatmul.f32.gmra.mxu0 %v6221
        %v6306 = vpop.f32.mrf.mxu0
        %v6307 = vadd.f32 0.0, %v6306
        %6308 = vmatmul.f32.gmra.mxu0 %v6223
        %v6309 = vpop.f32.mrf.mxu0
        %v6310 = vadd.f32 0.0, %v6309
        %6311 = vdwg.mxu0
        %6312 = vmatpush.msra.mxu0 0.0
        %6313 = vmatpush.msra.mxu0 0.0
        %6314 = vmatpush.msra.mxu0 0.0
        %6315 = vmatpush.msra.mxu0 0.0
        %6316 = vmatpush.msra.mxu0 0.0
        %6317 = vmatpush.msra.mxu0 0.0
        %6318 = vmatpush.msra.mxu0 0.0
        %6319 = vmatpush.msra.mxu0 0.0
        %6320 = vmatpush.msra.mxu0 0.0
        %6321 = vmatpush.msra.mxu0 0.0
        %6322 = vmatpush.msra.mxu0 0.0
        %6323 = vmatpush.msra.mxu0 0.0
        %6324 = vmatpush.msra.mxu0 0.0
        %6325 = vmatpush.msra.mxu0 0.0
        %6326 = vmatpush.msra.mxu0 %v6201
        %6327 = vmatpush.msra.mxu0 %v6193
        %6328 = vmatmul.f32.gmra.mxu0 %v6217
        %v6329 = vpop.f32.mrf.mxu0
        %v6330 = vadd.f32 0.0, %v6329
        %6331 = vmatmul.f32.gmra.mxu0 %v6219
        %v6332 = vpop.f32.mrf.mxu0
        %v6333 = vadd.f32 0.0, %v6332
        %6334 = vmatmul.f32.gmra.mxu0 %v6221
        %v6335 = vpop.f32.mrf.mxu0
        %v6336 = vadd.f32 0.0, %v6335
        %6337 = vmatmul.f32.gmra.mxu0 %v6223
        %v6338 = vpop.f32.mrf.mxu0
        %v6339 = vadd.f32 0.0, %v6338
        %6340 = vdwg.mxu0
        %v6341 = vadd.f32 %v6162, %v6243
        %v6342 = vadd.f32 %v6163, %v6272
        %v6343 = vadd.f32 %v6164, %v6301
        %v6344 = vadd.f32 %v6165, %v6330
        %v6345 = vadd.f32 %v6166, %v6246
        %v6346 = vadd.f32 %v6167, %v6275
        %v6347 = vadd.f32 %v6168, %v6304
        %v6348 = vadd.f32 %v6169, %v6333
        %v6349 = vadd.f32 %v6170, %v6249
        %v6350 = vadd.f32 %v6171, %v6278
        %v6351 = vadd.f32 %v6172, %v6307
        %v6352 = vadd.f32 %v6173, %v6336
        %v6353 = vadd.f32 %v6174, %v6252
        %v6354 = vadd.f32 %v6175, %v6281
        %v6355 = vadd.f32 %v6176, %v6310
        %v6356 = vadd.f32 %v6177, %v6339
        %6357 = vrot.lane.b32.xlu0 %v5117, 16
        %v6358 = vpop.permute.xlu0 %6357
        %6359 = vrot.lane.b32.xlu0 %v5118, 16
        %v6360 = vpop.permute.xlu0 %6359
        %6361 = vrot.lane.b32.xlu0 %v5119, 16
        %v6362 = vpop.permute.xlu0 %6361
        %6363 = vrot.lane.b32.xlu0 %v5120, 16
        %v6364 = vpop.permute.xlu0 %6363
        %6365 = vrot.lane.b32.xlu0 %v4913, 90
        %v6366 = vpop.permute.xlu0 %6365
        %6367 = vrot.lane.b32.xlu0 %v4914, 90
        %v6368 = vpop.permute.xlu0 %6367
        %6369 = vrot.lane.b32.xlu0 %v4915, 90
        %v6370 = vpop.permute.xlu0 %6369
        %6371 = vrot.lane.b32.xlu0 %v4916, 90
        %v6372 = vpop.permute.xlu0 %6371
        %6373 = vrot.lane.b32.xlu0 %v4918, 90
        %v6374 = vpop.permute.xlu0 %6373
        %6375 = vrot.lane.b32.xlu0 %v4919, 90
        %v6376 = vpop.permute.xlu0 %6375
        %6377 = vrot.lane.b32.xlu0 %v4920, 90
        %v6378 = vpop.permute.xlu0 %6377
        %6379 = vrot.lane.b32.xlu0 %v4921, 90
        %v6380 = vpop.permute.xlu0 %6379
        %vm6381 = vcmask 736256
        %v6382 = vsel %vm6381, %v6366, %v6368
        %v6383 = vsel %vm6381, %v6368, %v6370
        %v6384 = vsel %vm6381, %v6370, %v6372
        %v6385 = vsel %vm6381, %v6374, %v6376
        %v6386 = vsel %vm6381, %v6376, %v6378
        %v6387 = vsel %vm6381, %v6378, %v6380
        %v6396 = vsel %vm1991, %v6358, 0
        %v6398 = vsel %vm1991, %v6360, 0
        %v6400 = vsel %vm1991, %v6362, 0
        %v6402 = vsel %vm1991, %v6364, 0
        %6404 = vmatpush.msra.mxu0 0.0
        %6405 = vmatpush.msra.mxu0 0.0
        %6406 = vmatpush.msra.mxu0 0.0
        %6407 = vmatpush.msra.mxu0 0.0
        %6408 = vmatpush.msra.mxu0 0.0
        %6409 = vmatpush.msra.mxu0 0.0
        %6410 = vmatpush.msra.mxu0 0.0
        %6411 = vmatpush.msra.mxu0 0.0
        %6412 = vmatpush.msra.mxu0 0.0
        %6413 = vmatpush.msra.mxu0 0.0
        %6414 = vmatpush.msra.mxu0 0.0
        %6415 = vmatpush.msra.mxu0 0.0
        %6416 = vmatpush.msra.mxu0 0.0
        %6417 = vmatpush.msra.mxu0 0.0
        %6418 = vmatpush.msra.mxu0 %v6385
        %6419 = vmatpush.msra.mxu0 %v6382
        %6420 = vmatmul.f32.gmra.mxu0 %v6396
        %v6421 = vpop.f32.mrf.mxu0
        %v6422 = vadd.f32 0.0, %v6421
        %6423 = vmatmul.f32.gmra.mxu0 %v6398
        %v6424 = vpop.f32.mrf.mxu0
        %v6425 = vadd.f32 0.0, %v6424
        %6426 = vmatmul.f32.gmra.mxu0 %v6400
        %v6427 = vpop.f32.mrf.mxu0
        %v6428 = vadd.f32 0.0, %v6427
        %6429 = vmatmul.f32.gmra.mxu0 %v6402
        %v6430 = vpop.f32.mrf.mxu0
        %v6431 = vadd.f32 0.0, %v6430
        %6432 = vdwg.mxu0
        %6433 = vmatpush.msra.mxu0 0.0
        %6434 = vmatpush.msra.mxu0 0.0
        %6435 = vmatpush.msra.mxu0 0.0
        %6436 = vmatpush.msra.mxu0 0.0
        %6437 = vmatpush.msra.mxu0 0.0
        %6438 = vmatpush.msra.mxu0 0.0
        %6439 = vmatpush.msra.mxu0 0.0
        %6440 = vmatpush.msra.mxu0 0.0
        %6441 = vmatpush.msra.mxu0 0.0
        %6442 = vmatpush.msra.mxu0 0.0
        %6443 = vmatpush.msra.mxu0 0.0
        %6444 = vmatpush.msra.mxu0 0.0
        %6445 = vmatpush.msra.mxu0 0.0
        %6446 = vmatpush.msra.mxu0 0.0
        %6447 = vmatpush.msra.mxu0 %v6386
        %6448 = vmatpush.msra.mxu0 %v6383
        %6449 = vmatmul.f32.gmra.mxu0 %v6396
        %v6450 = vpop.f32.mrf.mxu0
        %v6451 = vadd.f32 0.0, %v6450
        %6452 = vmatmul.f32.gmra.mxu0 %v6398
        %v6453 = vpop.f32.mrf.mxu0
        %v6454 = vadd.f32 0.0, %v6453
        %6455 = vmatmul.f32.gmra.mxu0 %v6400
        %v6456 = vpop.f32.mrf.mxu0
        %v6457 = vadd.f32 0.0, %v6456
        %6458 = vmatmul.f32.gmra.mxu0 %v6402
        %v6459 = vpop.f32.mrf.mxu0
        %v6460 = vadd.f32 0.0, %v6459
        %6461 = vdwg.mxu0
        %6462 = vmatpush.msra.mxu0 0.0
        %6463 = vmatpush.msra.mxu0 0.0
        %6464 = vmatpush.msra.mxu0 0.0
        %6465 = vmatpush.msra.mxu0 0.0
        %6466 = vmatpush.msra.mxu0 0.0
        %6467 = vmatpush.msra.mxu0 0.0
        %6468 = vmatpush.msra.mxu0 0.0
        %6469 = vmatpush.msra.mxu0 0.0
        %6470 = vmatpush.msra.mxu0 0.0
        %6471 = vmatpush.msra.mxu0 0.0
        %6472 = vmatpush.msra.mxu0 0.0
        %6473 = vmatpush.msra.mxu0 0.0
        %6474 = vmatpush.msra.mxu0 0.0
        %6475 = vmatpush.msra.mxu0 0.0
        %6476 = vmatpush.msra.mxu0 %v6387
        %6477 = vmatpush.msra.mxu0 %v6384
        %6478 = vmatmul.f32.gmra.mxu0 %v6396
        %v6479 = vpop.f32.mrf.mxu0
        %v6480 = vadd.f32 0.0, %v6479
        %6481 = vmatmul.f32.gmra.mxu0 %v6398
        %v6482 = vpop.f32.mrf.mxu0
        %v6483 = vadd.f32 0.0, %v6482
        %6484 = vmatmul.f32.gmra.mxu0 %v6400
        %v6485 = vpop.f32.mrf.mxu0
        %v6486 = vadd.f32 0.0, %v6485
        %6487 = vmatmul.f32.gmra.mxu0 %v6402
        %v6488 = vpop.f32.mrf.mxu0
        %v6489 = vadd.f32 0.0, %v6488
        %6490 = vdwg.mxu0
        %6491 = vmatpush.msra.mxu0 0.0
        %6492 = vmatpush.msra.mxu0 0.0
        %6493 = vmatpush.msra.mxu0 0.0
        %6494 = vmatpush.msra.mxu0 0.0
        %6495 = vmatpush.msra.mxu0 0.0
        %6496 = vmatpush.msra.mxu0 0.0
        %6497 = vmatpush.msra.mxu0 0.0
        %6498 = vmatpush.msra.mxu0 0.0
        %6499 = vmatpush.msra.mxu0 0.0
        %6500 = vmatpush.msra.mxu0 0.0
        %6501 = vmatpush.msra.mxu0 0.0
        %6502 = vmatpush.msra.mxu0 0.0
        %6503 = vmatpush.msra.mxu0 0.0
        %6504 = vmatpush.msra.mxu0 0.0
        %6505 = vmatpush.msra.mxu0 %v6380
        %6506 = vmatpush.msra.mxu0 %v6372
        %6507 = vmatmul.f32.gmra.mxu0 %v6396
        %v6508 = vpop.f32.mrf.mxu0
        %v6509 = vadd.f32 0.0, %v6508
        %6510 = vmatmul.f32.gmra.mxu0 %v6398
        %v6511 = vpop.f32.mrf.mxu0
        %v6512 = vadd.f32 0.0, %v6511
        %6513 = vmatmul.f32.gmra.mxu0 %v6400
        %v6514 = vpop.f32.mrf.mxu0
        %v6515 = vadd.f32 0.0, %v6514
        %6516 = vmatmul.f32.gmra.mxu0 %v6402
        %v6517 = vpop.f32.mrf.mxu0
        %v6518 = vadd.f32 0.0, %v6517
        %6519 = vdwg.mxu0
        %v6520 = vadd.f32 %v6341, %v6422
        %v6521 = vadd.f32 %v6342, %v6451
        %v6522 = vadd.f32 %v6343, %v6480
        %v6523 = vadd.f32 %v6344, %v6509
        %v6524 = vadd.f32 %v6345, %v6425
        %v6525 = vadd.f32 %v6346, %v6454
        %v6526 = vadd.f32 %v6347, %v6483
        %v6527 = vadd.f32 %v6348, %v6512
        %v6528 = vadd.f32 %v6349, %v6428
        %v6529 = vadd.f32 %v6350, %v6457
        %v6530 = vadd.f32 %v6351, %v6486
        %v6531 = vadd.f32 %v6352, %v6515
        %v6532 = vadd.f32 %v6353, %v6431
        %v6533 = vadd.f32 %v6354, %v6460
        %v6534 = vadd.f32 %v6355, %v6489
        %v6535 = vadd.f32 %v6356, %v6518
        %v6536 = vld [vmem:[#allocation4 + $0x18] sm:$0xff]
        %v6537 = vld [vmem:[#allocation4 + $0x38] sm:$0xff]
        %v6538 = vld [vmem:[#allocation4 + $0x58] sm:$0xff]
        %v6539 = vld [vmem:[#allocation4 + $0x78] sm:$0xff]
        %6540 = vrot.lane.b32.xlu0 %v4913, 88
        %v6541 = vpop.permute.xlu0 %6540
        %6542 = vrot.lane.b32.xlu0 %v4914, 88
        %v6543 = vpop.permute.xlu0 %6542
        %6544 = vrot.lane.b32.xlu0 %v4915, 88
        %v6545 = vpop.permute.xlu0 %6544
        %6546 = vrot.lane.b32.xlu0 %v4916, 88
        %v6547 = vpop.permute.xlu0 %6546
        %6548 = vrot.lane.b32.xlu0 %v4918, 88
        %v6549 = vpop.permute.xlu0 %6548
        %6550 = vrot.lane.b32.xlu0 %v4919, 88
        %v6551 = vpop.permute.xlu0 %6550
        %6552 = vrot.lane.b32.xlu0 %v4920, 88
        %v6553 = vpop.permute.xlu0 %6552
        %6554 = vrot.lane.b32.xlu0 %v4921, 88
        %v6555 = vpop.permute.xlu0 %6554
        %v6556 = vsel %vm1047, %v6541, %v6543
        %v6557 = vsel %vm1047, %v6543, %v6545
        %v6558 = vsel %vm1047, %v6545, %v6547
        %v6559 = vsel %vm1047, %v6549, %v6551
        %v6560 = vsel %vm1047, %v6551, %v6553
        %v6561 = vsel %vm1047, %v6553, %v6555
        %v6571 = vsel %vm1991, %v6536, 0
        %v6574 = vsel %vm1991, %v6537, 0
        %v6577 = vsel %vm1991, %v6538, 0
        %v6580 = vsel %vm1991, %v6539, 0
        %6582 = vmatpush.msra.mxu0 0.0
        %6583 = vmatpush.msra.mxu0 0.0
        %6584 = vmatpush.msra.mxu0 0.0
        %6585 = vmatpush.msra.mxu0 0.0
        %6586 = vmatpush.msra.mxu0 0.0
        %6587 = vmatpush.msra.mxu0 0.0
        %6588 = vmatpush.msra.mxu0 0.0
        %6589 = vmatpush.msra.mxu0 0.0
        %6590 = vmatpush.msra.mxu0 0.0
        %6591 = vmatpush.msra.mxu0 0.0
        %6592 = vmatpush.msra.mxu0 0.0
        %6593 = vmatpush.msra.mxu0 0.0
        %6594 = vmatpush.msra.mxu0 0.0
        %6595 = vmatpush.msra.mxu0 0.0
        %6596 = vmatpush.msra.mxu0 %v6559
        %6597 = vmatpush.msra.mxu0 %v6556
        %6598 = vmatmul.f32.gmra.mxu0 %v6571
        %v6599 = vpop.f32.mrf.mxu0
        %v6600 = vadd.f32 0.0, %v6599
        %6601 = vmatmul.f32.gmra.mxu0 %v6574
        %v6602 = vpop.f32.mrf.mxu0
        %v6603 = vadd.f32 0.0, %v6602
        %6604 = vmatmul.f32.gmra.mxu0 %v6577
        %v6605 = vpop.f32.mrf.mxu0
        %v6606 = vadd.f32 0.0, %v6605
        %6607 = vmatmul.f32.gmra.mxu0 %v6580
        %v6608 = vpop.f32.mrf.mxu0
        %v6609 = vadd.f32 0.0, %v6608
        %6610 = vdwg.mxu0
        %6611 = vmatpush.msra.mxu0 0.0
        %6612 = vmatpush.msra.mxu0 0.0
        %6613 = vmatpush.msra.mxu0 0.0
        %6614 = vmatpush.msra.mxu0 0.0
        %6615 = vmatpush.msra.mxu0 0.0
        %6616 = vmatpush.msra.mxu0 0.0
        %6617 = vmatpush.msra.mxu0 0.0
        %6618 = vmatpush.msra.mxu0 0.0
        %6619 = vmatpush.msra.mxu0 0.0
        %6620 = vmatpush.msra.mxu0 0.0
        %6621 = vmatpush.msra.mxu0 0.0
        %6622 = vmatpush.msra.mxu0 0.0
        %6623 = vmatpush.msra.mxu0 0.0
        %6624 = vmatpush.msra.mxu0 0.0
        %6625 = vmatpush.msra.mxu0 %v6560
        %6626 = vmatpush.msra.mxu0 %v6557
        %6627 = vmatmul.f32.gmra.mxu0 %v6571
        %v6628 = vpop.f32.mrf.mxu0
        %v6629 = vadd.f32 0.0, %v6628
        %6630 = vmatmul.f32.gmra.mxu0 %v6574
        %v6631 = vpop.f32.mrf.mxu0
        %v6632 = vadd.f32 0.0, %v6631
        %6633 = vmatmul.f32.gmra.mxu0 %v6577
        %v6634 = vpop.f32.mrf.mxu0
        %v6635 = vadd.f32 0.0, %v6634
        %6636 = vmatmul.f32.gmra.mxu0 %v6580
        %v6637 = vpop.f32.mrf.mxu0
        %v6638 = vadd.f32 0.0, %v6637
        %6639 = vdwg.mxu0
        %6640 = vmatpush.msra.mxu0 0.0
        %6641 = vmatpush.msra.mxu0 0.0
        %6642 = vmatpush.msra.mxu0 0.0
        %6643 = vmatpush.msra.mxu0 0.0
        %6644 = vmatpush.msra.mxu0 0.0
        %6645 = vmatpush.msra.mxu0 0.0
        %6646 = vmatpush.msra.mxu0 0.0
        %6647 = vmatpush.msra.mxu0 0.0
        %6648 = vmatpush.msra.mxu0 0.0
        %6649 = vmatpush.msra.mxu0 0.0
        %6650 = vmatpush.msra.mxu0 0.0
        %6651 = vmatpush.msra.mxu0 0.0
        %6652 = vmatpush.msra.mxu0 0.0
        %6653 = vmatpush.msra.mxu0 0.0
        %6654 = vmatpush.msra.mxu0 %v6561
        %6655 = vmatpush.msra.mxu0 %v6558
        %6656 = vmatmul.f32.gmra.mxu0 %v6571
        %v6657 = vpop.f32.mrf.mxu0
        %v6658 = vadd.f32 0.0, %v6657
        %6659 = vmatmul.f32.gmra.mxu0 %v6574
        %v6660 = vpop.f32.mrf.mxu0
        %v6661 = vadd.f32 0.0, %v6660
        %6662 = vmatmul.f32.gmra.mxu0 %v6577
        %v6663 = vpop.f32.mrf.mxu0
        %v6664 = vadd.f32 0.0, %v6663
        %6665 = vmatmul.f32.gmra.mxu0 %v6580
        %v6666 = vpop.f32.mrf.mxu0
        %v6667 = vadd.f32 0.0, %v6666
        %6668 = vdwg.mxu0
        %6669 = vmatpush.msra.mxu0 0.0
        %6670 = vmatpush.msra.mxu0 0.0
        %6671 = vmatpush.msra.mxu0 0.0
        %6672 = vmatpush.msra.mxu0 0.0
        %6673 = vmatpush.msra.mxu0 0.0
        %6674 = vmatpush.msra.mxu0 0.0
        %6675 = vmatpush.msra.mxu0 0.0
        %6676 = vmatpush.msra.mxu0 0.0
        %6677 = vmatpush.msra.mxu0 0.0
        %6678 = vmatpush.msra.mxu0 0.0
        %6679 = vmatpush.msra.mxu0 0.0
        %6680 = vmatpush.msra.mxu0 0.0
        %6681 = vmatpush.msra.mxu0 0.0
        %6682 = vmatpush.msra.mxu0 0.0
        %6683 = vmatpush.msra.mxu0 %v6555
        %6684 = vmatpush.msra.mxu0 %v6547
        %6685 = vmatmul.f32.gmra.mxu0 %v6571
        %v6686 = vpop.f32.mrf.mxu0
        %v6687 = vadd.f32 0.0, %v6686
        %6688 = vmatmul.f32.gmra.mxu0 %v6574
        %v6689 = vpop.f32.mrf.mxu0
        %v6690 = vadd.f32 0.0, %v6689
        %6691 = vmatmul.f32.gmra.mxu0 %v6577
        %v6692 = vpop.f32.mrf.mxu0
        %v6693 = vadd.f32 0.0, %v6692
        %6694 = vmatmul.f32.gmra.mxu0 %v6580
        %v6695 = vpop.f32.mrf.mxu0
        %v6696 = vadd.f32 0.0, %v6695
        %6697 = vdwg.mxu0
        %v6698 = vadd.f32 %v6520, %v6600
        %v6699 = vadd.f32 %v6521, %v6629
        %v6700 = vadd.f32 %v6522, %v6658
        %v6701 = vadd.f32 %v6523, %v6687
        %v6702 = vadd.f32 %v6524, %v6603
        %v6703 = vadd.f32 %v6525, %v6632
        %v6704 = vadd.f32 %v6526, %v6661
        %v6705 = vadd.f32 %v6527, %v6690
        %v6706 = vadd.f32 %v6528, %v6606
        %v6707 = vadd.f32 %v6529, %v6635
        %v6708 = vadd.f32 %v6530, %v6664
        %v6709 = vadd.f32 %v6531, %v6693
        %v6710 = vadd.f32 %v6532, %v6609
        %v6711 = vadd.f32 %v6533, %v6638
        %v6712 = vadd.f32 %v6534, %v6667
        %v6713 = vadd.f32 %v6535, %v6696
        %v6714 = vld [vmem:[%s6] sm:$0xff]
        %v6715 = vld [vmem:[%s6 + $0x8] sm:$0xff]
        %v6716 = vld [vmem:[%s6 + $0x10] sm:$0xff]
        %v6717 = vld [vmem:[%s6 + $0x18] sm:$0xff]
        %6719 = vset.pattern.permute.xlu0 0
        %6720 = vperm.xlu0 %6719, %v6714
        %v6721 = vpop.permute.xlu0 %6720
        %6724 = vset.pattern.permute.xlu0 0
        %6725 = vperm.xlu0 %6724, %v6715
        %v6726 = vpop.permute.xlu0 %6725
        %6729 = vset.pattern.permute.xlu0 0
        %6730 = vperm.xlu0 %6729, %v6716
        %v6731 = vpop.permute.xlu0 %6730
        %6734 = vset.pattern.permute.xlu0 0
        %6735 = vperm.xlu0 %6734, %v6717
        %v6736 = vpop.permute.xlu0 %6735
        %v6738 = vadd.f32 %v6698, %v6721
        %v6739 = vadd.f32 %v6699, %v6721
        %v6740 = vadd.f32 %v6700, %v6721
        %v6741 = vadd.f32 %v6701, %v6721
        %v6742 = vadd.f32 %v6702, %v6726
        %v6743 = vadd.f32 %v6703, %v6726
        %v6744 = vadd.f32 %v6704, %v6726
        %v6745 = vadd.f32 %v6705, %v6726
        %v6746 = vadd.f32 %v6706, %v6731
        %v6747 = vadd.f32 %v6707, %v6731
        %v6748 = vadd.f32 %v6708, %v6731
        %v6749 = vadd.f32 %v6709, %v6731
        %v6750 = vadd.f32 %v6710, %v6736
        %v6751 = vadd.f32 %v6711, %v6736
        %v6752 = vadd.f32 %v6712, %v6736
        %v6753 = vadd.f32 %v6713, %v6736
        %v6754 = vperm.slane %v402, 3
        %v6756 = vmul.f32 %v6738, %v2219
        %v6757 = vmul.f32 %v6739, %v2220
        %v6758 = vmul.f32 %v6740, %v2221
        %v6759 = vmul.f32 %v6741, %v6754
        %v6760 = vmul.f32 %v6742, %v2219
        %v6761 = vmul.f32 %v6743, %v2220
        %v6762 = vmul.f32 %v6744, %v2221
        %v6763 = vmul.f32 %v6745, %v6754
        %v6764 = vmul.f32 %v6746, %v2219
        %v6765 = vmul.f32 %v6747, %v2220
        %v6766 = vmul.f32 %v6748, %v2221
        %v6767 = vmul.f32 %v6749, %v6754
        %v6768 = vmul.f32 %v6750, %v2219
        %v6769 = vmul.f32 %v6751, %v2220
        %v6770 = vmul.f32 %v6752, %v2221
        %v6771 = vmul.f32 %v6753, %v6754
        %v6772 = vadd.f32 %v6756, %v6757
        %v6773 = vadd.f32 %v6772, %v6758
        %v6774 = vsel %vm1991, %v6759, 0.0
        %v6775 = vadd.f32 %v6773, %v6774
        %6776 = vadd.xlane.f32.xlu0 %v6775
        %v6777 = vpop.xlane.xlu0 %6776
        %v6778 = vadd.f32 %v6760, %v6761
        %v6779 = vadd.f32 %v6778, %v6762
        %v6780 = vsel %vm1991, %v6763, 0.0
        %v6781 = vadd.f32 %v6779, %v6780
        %6782 = vadd.xlane.f32.xlu0 %v6781
        %v6783 = vpop.xlane.xlu0 %6782
        %v6784 = vadd.f32 %v6764, %v6765
        %v6785 = vadd.f32 %v6784, %v6766
        %v6786 = vsel %vm1991, %v6767, 0.0
        %v6787 = vadd.f32 %v6785, %v6786
        %6788 = vadd.xlane.f32.xlu0 %v6787
        %v6789 = vpop.xlane.xlu0 %6788
        %v6790 = vadd.f32 %v6768, %v6769
        %v6791 = vadd.f32 %v6790, %v6770
        %v6792 = vsel %vm1991, %v6771, 0.0
        %v6793 = vadd.f32 %v6791, %v6792
        %6794 = vadd.xlane.f32.xlu0 %v6793
        %v6795 = vpop.xlane.xlu0 %6794
        %v6796 = vmul.f32 %v6738, %v6738
        %v6797 = vmul.f32 %v6739, %v6739
        %v6798 = vmul.f32 %v6740, %v6740
        %v6799 = vmul.f32 %v6741, %v6741
        %v6800 = vmul.f32 %v6742, %v6742
        %v6801 = vmul.f32 %v6743, %v6743
        %v6802 = vmul.f32 %v6744, %v6744
        %v6803 = vmul.f32 %v6745, %v6745
        %v6804 = vmul.f32 %v6746, %v6746
        %v6805 = vmul.f32 %v6747, %v6747
        %v6806 = vmul.f32 %v6748, %v6748
        %v6807 = vmul.f32 %v6749, %v6749
        %v6808 = vmul.f32 %v6750, %v6750
        %v6809 = vmul.f32 %v6751, %v6751
        %v6810 = vmul.f32 %v6752, %v6752
        %v6811 = vmul.f32 %v6753, %v6753
        %v6812 = vmul.f32 %v6796, %v2219
        %v6813 = vmul.f32 %v6797, %v2220
        %v6814 = vmul.f32 %v6798, %v2221
        %v6815 = vmul.f32 %v6799, %v6754
        %v6816 = vmul.f32 %v6800, %v2219
        %v6817 = vmul.f32 %v6801, %v2220
        %v6818 = vmul.f32 %v6802, %v2221
        %v6819 = vmul.f32 %v6803, %v6754
        %v6820 = vmul.f32 %v6804, %v2219
        %v6821 = vmul.f32 %v6805, %v2220
        %v6822 = vmul.f32 %v6806, %v2221
        %v6823 = vmul.f32 %v6807, %v6754
        %v6824 = vmul.f32 %v6808, %v2219
        %v6825 = vmul.f32 %v6809, %v2220
        %v6826 = vmul.f32 %v6810, %v2221
        %v6827 = vmul.f32 %v6811, %v6754
        %v6828 = vadd.f32 %v6812, %v6813
        %v6829 = vadd.f32 %v6828, %v6814
        %v6830 = vsel %vm1991, %v6815, 0.0
        %v6831 = vadd.f32 %v6829, %v6830
        %6832 = vadd.xlane.f32.xlu0 %v6831
        %v6833 = vpop.xlane.xlu0 %6832
        %v6834 = vadd.f32 %v6816, %v6817
        %v6835 = vadd.f32 %v6834, %v6818
        %v6836 = vsel %vm1991, %v6819, 0.0
        %v6837 = vadd.f32 %v6835, %v6836
        %6838 = vadd.xlane.f32.xlu0 %v6837
        %v6839 = vpop.xlane.xlu0 %6838
        %v6840 = vadd.f32 %v6820, %v6821
        %v6841 = vadd.f32 %v6840, %v6822
        %v6842 = vsel %vm1991, %v6823, 0.0
        %v6843 = vadd.f32 %v6841, %v6842
        %6844 = vadd.xlane.f32.xlu0 %v6843
        %v6845 = vpop.xlane.xlu0 %6844
        %v6846 = vadd.f32 %v6824, %v6825
        %v6847 = vadd.f32 %v6846, %v6826
        %v6848 = vsel %vm1991, %v6827, 0.0
        %v6849 = vadd.f32 %v6847, %v6848
        %6850 = vadd.xlane.f32.xlu0 %v6849
        %v6851 = vpop.xlane.xlu0 %6850
        %v6852 = vmul.f32 %v6777, 0.015625
        %v6853 = vmul.f32 %v6783, 0.015625
        %v6854 = vmul.f32 %v6789, 0.015625
        %v6855 = vmul.f32 %v6795, 0.015625
        %v6856 = vmul.f32 %v6833, 0.015625
        %v6857 = vmul.f32 %v6839, 0.015625
        %v6858 = vmul.f32 %v6845, 0.015625
        %v6859 = vmul.f32 %v6851, 0.015625
        %v6860 = vmul.f32 %v6852, %v6852
        %v6861 = vmul.f32 %v6853, %v6853
        %v6862 = vmul.f32 %v6854, %v6854
        %v6863 = vmul.f32 %v6855, %v6855
        %v6864 = vsub.f32 %v6856, %v6860
        %v6865 = vsub.f32 %v6857, %v6861
        %v6866 = vsub.f32 %v6858, %v6862
        %v6867 = vsub.f32 %v6859, %v6863
        %v6868 = vsub.f32 %v6738, %v6852
        %v6869 = vsub.f32 %v6739, %v6852
        %v6870 = vsub.f32 %v6740, %v6852
        %v6871 = vsub.f32 %v6741, %v6852
        %v6872 = vsub.f32 %v6742, %v6853
        %v6873 = vsub.f32 %v6743, %v6853
        %v6874 = vsub.f32 %v6744, %v6853
        %v6875 = vsub.f32 %v6745, %v6853
        %v6876 = vsub.f32 %v6746, %v6854
        %v6877 = vsub.f32 %v6747, %v6854
        %v6878 = vsub.f32 %v6748, %v6854
        %v6879 = vsub.f32 %v6749, %v6854
        %v6880 = vsub.f32 %v6750, %v6855
        %v6881 = vsub.f32 %v6751, %v6855
        %v6882 = vsub.f32 %v6752, %v6855
        %v6883 = vsub.f32 %v6753, %v6855
        %v6884 = vadd.f32 %v6864, 1e-05
        %v6885 = vadd.f32 %v6865, 1e-05
        %v6886 = vadd.f32 %v6866, 1e-05
        %v6887 = vadd.f32 %v6867, 1e-05
        %v6888 = vrsqrt.pop %v6884
        %v6889 = vmul.f32 %v6888, %v6884
        %v6890 = vmul.f32 %v6889, %v6888
        %v6891 = vmul.f32 0.5, %v6890
        %v6892 = vsub.f32 1.5, %v6891
        %v6893 = vmul.f32 %v6888, %v6892
        %vm6894 = vweird.f32 %v6884
        %vm6895 = vweird.f32 %v6888
        %vm6896 = vmor %vm6894, %vm6895
        %v6897 = vsel %vm6896, %v6888, %v6893
        %v6898 = vrsqrt.pop %v6885
        %v6899 = vmul.f32 %v6898, %v6885
        %v6900 = vmul.f32 %v6899, %v6898
        %v6901 = vmul.f32 0.5, %v6900
        %v6902 = vsub.f32 1.5, %v6901
        %v6903 = vmul.f32 %v6898, %v6902
        %vm6904 = vweird.f32 %v6885
        %vm6905 = vweird.f32 %v6898
        %vm6906 = vmor %vm6904, %vm6905
        %v6907 = vsel %vm6906, %v6898, %v6903
        %v6908 = vrsqrt.pop %v6886
        %v6909 = vmul.f32 %v6908, %v6886
        %v6910 = vmul.f32 %v6909, %v6908
        %v6911 = vmul.f32 0.5, %v6910
        %v6912 = vsub.f32 1.5, %v6911
        %v6913 = vmul.f32 %v6908, %v6912
        %vm6914 = vweird.f32 %v6886
        %vm6915 = vweird.f32 %v6908
        %vm6916 = vmor %vm6914, %vm6915
        %v6917 = vsel %vm6916, %v6908, %v6913
        %v6918 = vrsqrt.pop %v6887
        %v6919 = vmul.f32 %v6918, %v6887
        %v6920 = vmul.f32 %v6919, %v6918
        %v6921 = vmul.f32 0.5, %v6920
        %v6922 = vsub.f32 1.5, %v6921
        %v6923 = vmul.f32 %v6918, %v6922
        %vm6924 = vweird.f32 %v6887
        %vm6925 = vweird.f32 %v6918
        %vm6926 = vmor %vm6924, %vm6925
        %v6927 = vsel %vm6926, %v6918, %v6923
        %v6928 = vmul.f32 %v6868, %v6897
        %v6929 = vmul.f32 %v6869, %v6897
        %v6930 = vmul.f32 %v6870, %v6897
        %v6931 = vmul.f32 %v6871, %v6897
        %v6932 = vmul.f32 %v6872, %v6907
        %v6933 = vmul.f32 %v6873, %v6907
        %v6934 = vmul.f32 %v6874, %v6907
        %v6935 = vmul.f32 %v6875, %v6907
        %v6936 = vmul.f32 %v6876, %v6917
        %v6937 = vmul.f32 %v6877, %v6917
        %v6938 = vmul.f32 %v6878, %v6917
        %v6939 = vmul.f32 %v6879, %v6917
        %v6940 = vmul.f32 %v6880, %v6927
        %v6941 = vmul.f32 %v6881, %v6927
        %v6942 = vmul.f32 %v6882, %v6927
        %v6943 = vmul.f32 %v6883, %v6927
        %vm6944 = vcmp.ge.f32.partialorder %v6928, 0.0
        %vm6945 = vcmp.ge.f32.partialorder %v6929, 0.0
        %vm6946 = vcmp.ge.f32.partialorder %v6930, 0.0
        %vm6947 = vcmp.ge.f32.partialorder %v6931, 0.0
        %vm6948 = vcmp.ge.f32.partialorder %v6932, 0.0
        %vm6949 = vcmp.ge.f32.partialorder %v6933, 0.0
        %vm6950 = vcmp.ge.f32.partialorder %v6934, 0.0
        %vm6951 = vcmp.ge.f32.partialorder %v6935, 0.0
        %vm6952 = vcmp.ge.f32.partialorder %v6936, 0.0
        %vm6953 = vcmp.ge.f32.partialorder %v6937, 0.0
        %vm6954 = vcmp.ge.f32.partialorder %v6938, 0.0
        %vm6955 = vcmp.ge.f32.partialorder %v6939, 0.0
        %vm6956 = vcmp.ge.f32.partialorder %v6940, 0.0
        %vm6957 = vcmp.ge.f32.partialorder %v6941, 0.0
        %vm6958 = vcmp.ge.f32.partialorder %v6942, 0.0
        %vm6959 = vcmp.ge.f32.partialorder %v6943, 0.0
        %v6960 = vmul.f32 %v6928, 0.2
        %v6961 = vmul.f32 %v6929, 0.2
        %v6962 = vmul.f32 %v6930, 0.2
        %v6963 = vmul.f32 %v6931, 0.2
        %v6964 = vmul.f32 %v6932, 0.2
        %v6965 = vmul.f32 %v6933, 0.2
        %v6966 = vmul.f32 %v6934, 0.2
        %v6967 = vmul.f32 %v6935, 0.2
        %v6968 = vmul.f32 %v6936, 0.2
        %v6969 = vmul.f32 %v6937, 0.2
        %v6970 = vmul.f32 %v6938, 0.2
        %v6971 = vmul.f32 %v6939, 0.2
        %v6972 = vmul.f32 %v6940, 0.2
        %v6973 = vmul.f32 %v6941, 0.2
        %v6974 = vmul.f32 %v6942, 0.2
        %v6975 = vmul.f32 %v6943, 0.2
        %v6976 = vsel %vm6944, %v6928, %v6960
        %v6977 = vsel %vm6945, %v6929, %v6961
        %v6978 = vsel %vm6946, %v6930, %v6962
        %v6979 = vsel %vm6947, %v6931, %v6963
        %v6980 = vsel %vm6948, %v6932, %v6964
        %v6981 = vsel %vm6949, %v6933, %v6965
        %v6982 = vsel %vm6950, %v6934, %v6966
        %v6983 = vsel %vm6951, %v6935, %v6967
        %v6984 = vsel %vm6952, %v6936, %v6968
        %v6985 = vsel %vm6953, %v6937, %v6969
        %v6986 = vsel %vm6954, %v6938, %v6970
        %v6987 = vsel %vm6955, %v6939, %v6971
        %v6988 = vsel %vm6956, %v6940, %v6972
        %v6989 = vsel %vm6957, %v6941, %v6973
        %v6990 = vsel %vm6958, %v6942, %v6974
        %v6991 = vsel %vm6959, %v6943, %v6975
        %v6992 = vmul.f32 %v6976, %v2219
        %v6993 = vmul.f32 %v6977, %v2220
        %v6994 = vmul.f32 %v6978, %v2221
        %v6995 = vmul.f32 %v6979, %v6754
        %v6996 = vmul.f32 %v6980, %v2219
        %v6997 = vmul.f32 %v6981, %v2220
        %v6998 = vmul.f32 %v6982, %v2221
        %v6999 = vmul.f32 %v6983, %v6754
        %v7000 = vmul.f32 %v6984, %v2219
        %v7001 = vmul.f32 %v6985, %v2220
        %v7002 = vmul.f32 %v6986, %v2221
        %v7003 = vmul.f32 %v6987, %v6754
        %v7004 = vmul.f32 %v6988, %v2219
        %v7005 = vmul.f32 %v6989, %v2220
        %v7006 = vmul.f32 %v6990, %v2221
        %v7007 = vmul.f32 %v6991, %v6754
        %v7008 = vadd.f32 %v6992, %v6993
        %v7009 = vadd.f32 %v7008, %v6994
        %v7010 = vsel %vm1991, %v6995, 0.0
        %v7011 = vadd.f32 %v7009, %v7010
        %7012 = vadd.xlane.f32.xlu0 %v7011
        %v7013 = vpop.xlane.xlu0 %7012
        %v7014 = vadd.f32 %v6996, %v6997
        %v7015 = vadd.f32 %v7014, %v6998
        %v7016 = vsel %vm1991, %v6999, 0.0
        %v7017 = vadd.f32 %v7015, %v7016
        %7018 = vadd.xlane.f32.xlu0 %v7017
        %v7019 = vpop.xlane.xlu0 %7018
        %v7020 = vadd.f32 %v7000, %v7001
        %v7021 = vadd.f32 %v7020, %v7002
        %v7022 = vsel %vm1991, %v7003, 0.0
        %v7023 = vadd.f32 %v7021, %v7022
        %7024 = vadd.xlane.f32.xlu0 %v7023
        %v7025 = vpop.xlane.xlu0 %7024
        %v7026 = vadd.f32 %v7004, %v7005
        %v7027 = vadd.f32 %v7026, %v7006
        %v7028 = vsel %vm1991, %v7007, 0.0
        %v7029 = vadd.f32 %v7027, %v7028
        %7030 = vadd.xlane.f32.xlu0 %v7029
        %v7031 = vpop.xlane.xlu0 %7030
        %v7032 = vmul.f32 %v7013, 0.015625
        %v7033 = vmul.f32 %v7019, 0.015625
        %v7034 = vmul.f32 %v7025, 0.015625
        %v7035 = vmul.f32 %v7031, 0.015625
        %v7036 = vld [vmem:[%s7] sm:$0xff]
        %v7037 = vld [vmem:[%s7 + $0x8] sm:$0xff]
        %v7038 = vld [vmem:[%s7 + $0x10] sm:$0xff]
        %v7039 = vld [vmem:[%s7 + $0x18] sm:$0xff]
        %v7040 = vld [vmem:[%s8] sm:$0xff]
        %v7041 = vld [vmem:[%s8 + $0x8] sm:$0xff]
        %v7042 = vld [vmem:[%s8 + $0x10] sm:$0xff]
        %v7043 = vld [vmem:[%s8 + $0x18] sm:$0xff]
        %vm7044 = vcmask 261120
        %v7046 = vsel %vm7044, %v7036, 0
        %v7049 = vsel %vm7044, %v7037, 0
        %v7052 = vsel %vm7044, %v7038, 0
        %v7055 = vsel %vm7044, %v7039, 0
        %7057 = vmatpush.msra.mxu0 0.0
        %7058 = vmatpush.msra.mxu0 0.0
        %7059 = vmatpush.msra.mxu0 0.0
        %7060 = vmatpush.msra.mxu0 0.0
        %7061 = vmatpush.msra.mxu0 0.0
        %7062 = vmatpush.msra.mxu0 0.0
        %7063 = vmatpush.msra.mxu0 0.0
        %7064 = vmatpush.msra.mxu0 0.0
        %7065 = vmatpush.msra.mxu0 0.0
        %7066 = vmatpush.msra.mxu0 0.0
        %7067 = vmatpush.msra.mxu0 0.0
        %7068 = vmatpush.msra.mxu0 0.0
        %7069 = vmatpush.msra.mxu0 %v7035
        %7070 = vmatpush.msra.mxu0 %v7034
        %7071 = vmatpush.msra.mxu0 %v7033
        %7072 = vmatpush.msra.mxu0 %v7032
        %7073 = vmatmul.f32.gmra.mxu0 %v7046
        %v7074 = vpop.f32.mrf.mxu0
        %v7075 = vadd.f32 %v7040, %v7074
        %7076 = vmatmul.f32.gmra.mxu0 %v7049
        %v7077 = vpop.f32.mrf.mxu0
        %v7078 = vadd.f32 %v7041, %v7077
        %7079 = vmatmul.f32.gmra.mxu0 %v7052
        %v7080 = vpop.f32.mrf.mxu0
        %v7081 = vadd.f32 %v7042, %v7080
        %7082 = vmatmul.f32.gmra.mxu0 %v7055
        %v7083 = vpop.f32.mrf.mxu0
        %v7084 = vadd.f32 %v7043, %v7083
        %7085 = vdwg.mxu0
        %vm7086 = vcmp.ge.f32.partialorder %v7075, 0.0
        %vm7087 = vcmp.ge.f32.partialorder %v7078, 0.0
        %vm7088 = vcmp.ge.f32.partialorder %v7081, 0.0
        %vm7089 = vcmp.ge.f32.partialorder %v7084, 0.0
        %v7090 = vmul.f32 %v7075, 0.2
        %v7091 = vmul.f32 %v7078, 0.2
        %v7092 = vmul.f32 %v7081, 0.2
        %v7093 = vmul.f32 %v7084, 0.2
        %v7094 = vsel %vm7086, %v7075, %v7090
        %v7095 = vsel %vm7087, %v7078, %v7091
        %v7096 = vsel %vm7088, %v7081, %v7092
        %v7097 = vsel %vm7089, %v7084, %v7093
        %v7098 = vld [vmem:[%s9] sm:$0x1]
        %v7099 = vld [vmem:[#allocation3] sm:$0x1]
        %v7101 = vsel %vm7044, %v7098, 0
        %7103 = vmatpush.msra.mxu0 0.0
        %7104 = vmatpush.msra.mxu0 0.0
        %7105 = vmatpush.msra.mxu0 0.0
        %7106 = vmatpush.msra.mxu0 0.0
        %7107 = vmatpush.msra.mxu0 0.0
        %7108 = vmatpush.msra.mxu0 0.0
        %7109 = vmatpush.msra.mxu0 0.0
        %7110 = vmatpush.msra.mxu0 0.0
        %7111 = vmatpush.msra.mxu0 0.0
        %7112 = vmatpush.msra.mxu0 0.0
        %7113 = vmatpush.msra.mxu0 0.0
        %7114 = vmatpush.msra.mxu0 0.0
        %7115 = vmatpush.msra.mxu0 %v7097
        %7116 = vmatpush.msra.mxu0 %v7096
        %7117 = vmatpush.msra.mxu0 %v7095
        %7118 = vmatpush.msra.mxu0 %v7094
        %7119 = vmatmul.f32.gmra.mxu0 %v7101
        %v7120 = vpop.f32.mrf.mxu0
        %v7121 = vadd.f32 %v7099, %v7120
        %7122 = vdwg.mxu0
        %7124 = vset.pattern.permute.xlu0 0
        %7125 = vperm.xlu0 %7124, %v7121
        %v7126 = vpop.permute.xlu0 %7125
        %7128 = vst [vmem:[%s395] sm:$0x1] %v7126
        %s7129 = sand.u32 %s272, 1
        %s7130 = scalar_lea.sflag [#allocation6], %s7129
        %s7131 = sand.u32 %s272, 1
        %s7132 = scalar_lea.vmem [#allocation7], %s7131
        // Predicated region
        $region69: #{tpu_custom_call.1} parent=63 // pred_check
          %p7133 = pneg %p282
        $region70: #{tpu_custom_call.1} parent=63 // pred_check_branch
          %7135 = sbr.rel (%p7133) target = $region72
        $region71: #{tpu_custom_call.1} parent=63 // pred_region
          %7137 = vsyncadd %s7130, 0
          %s7138 = scalar_lea.hbm %s11, %s28
          %s7140 = sshll.u32 %s7132, 4
          %s7141 = int_to_ptr.vmem [resolvable:$true] %s7140
          %s7142 = sshll.u32 %s7138, 4
          %s7143 = int_to_ptr.hbm [resolvable:$true] %s7142
          %7145 = dma.vmem_to_hbm [thread:$0]  %s7141, 16, %s7143, %s7130
        $region72: #{tpu_custom_call.1} parent=63 // pred_fallthru
          _
      $region64: #{tpu_custom_call.1} parent=5 // pred_fallthru
        _
      %p7146 = scmp.le.s32.totalorder 2, %s23
      // Predicated region
      $region73: #{tpu_custom_call.1} parent=5 // pred_check
        %p7147 = pneg %p7146
      $region74: #{tpu_custom_call.1} parent=5 // pred_check_branch
        %7149 = sbr.rel (%p7147) target = $region76
      $region75: #{tpu_custom_call.1} parent=5 // pred_region
        %s7150 = ssub.s32 %s23, 2
        // Predicated region
        $region77: #{tpu_custom_call.1} parent=75 // pred_check
          %p7151 = pneg %p288
        $region78: #{tpu_custom_call.1} parent=75 // pred_check_branch
          %7153 = sbr.rel (%p7151) target = $region80
        $region79: #{tpu_custom_call.1} parent=75 // pred_region
          %s7154 = sand.u32 %s273, 1
          %s7155 = scalar_lea.sflag [#allocation6], %s7154
          %s7156 = sand.u32 %s273, 1
          %s7157 = scalar_lea.vmem [#allocation7], %s7156
          %7159 = dma.done %s7155, 16
        $region80: #{tpu_custom_call.1} parent=75 // pred_fallthru
          _
      $region76: #{tpu_custom_call.1} parent=5 // pred_fallthru
        _
    $region6: #{tpu_custom_call.1} parent=1 // loop_footer
      %s27 = sadd.s32 1, %s23
    $region7: #{tpu_custom_call.1} parent=1 // loop_footer_branch
      %22 = sbr.rel target = $region3
    $region8: #{tpu_custom_call.1} parent=1 // loop_exit
      _
    %7160 = vsyncpa [#allocation5], 1
    %s7161 = scalar_lea.sflag [#allocation5], 1
    %7162 = vsyncpa %s7161, 1
    %7163 = vsyncpa [#allocation6], 1
    %s7164 = scalar_lea.sflag [#allocation6], 1
    %7165 = vsyncpa %s7164, 1

</llo_original>
